<compile_context>
chip_gen: v6e
topology: v6e:2x2x1
jax: 0.10.0
libtpu: 0.0.40
codegen_flags: <defaults>
</compile_context>

<pallas_src>
import functools

import jax
import jax.numpy as jnp
from jax.experimental import pallas as pl
from jax.experimental.pallas import tpu as pltpu

INPUT_SIZE = 784
WIDTH = 1024


def _round_up(x, m):
    return ((x + m - 1) // m) * m


IN_PAD = _round_up(INPUT_SIZE, 128)  # 896 = 7 * 128


# ----------------------------------------------------------------------------
# Pallas kernel: fused VAE forward (one batch tile per grid step)
# ----------------------------------------------------------------------------
def vae_kernel(
    # inputs
    x_ref, eps_ref,
    w_e1_ref, b_e1_ref,
    w_e2_ref, b_e2_ref,
    w_h_ref, b_h_ref,          # fused, lane-aligned (mu | pad | log_var | pad) head
    w_d1_ref, b_d1_ref,
    w_d2_ref, b_d2_ref,
    w_d3_ref, b_d3_ref,
    # outputs
    dec_ref, head_ref,
    *, latent_pad,
):
    bf = jnp.bfloat16

    def mm(a, w_ref):
        # bf16 inputs on the MXU, f32 accumulation.
        a16 = a if a.dtype == bf else a.astype(bf)
        return jnp.dot(a16, w_ref[...], preferred_element_type=jnp.float32)

    x = x_ref[...]                                  # already bf16 (lane-dense)

    # ---- encoder: Linear -> ReLU -> Linear -> ReLU (bf16 intermediates) ----
    h = jnp.maximum(mm(x, w_e1_ref) + b_e1_ref[...], 0.0).astype(bf)
    h = jnp.maximum(mm(h, w_e2_ref) + b_e2_ref[...], 0.0).astype(bf)

    # ---- fused latent heads: single lane-dense matmul, 128-aligned segments ----
    head = mm(h, w_h_ref) + b_h_ref[...]            # f32, [mu|pad|lv|pad]
    head_ref[...] = head

    mu = head[:, :latent_pad]                       # lane offset 0
    lv = head[:, latent_pad:2 * latent_pad]         # lane offset latent_pad (multiple of 128)

    # ---- reparameterize: z = mean + exp(0.5 * log_var) * eps ----
    # Padded latent lanes: mu=0, lv=0 (exp -> 1), eps=0  =>  z stays 0 there.
    z = mu + jnp.exp(0.5 * lv) * eps_ref[...]

    # ---- decoder: Linear -> ReLU -> Linear -> ReLU -> Linear -> Sigmoid ----
    d = jnp.maximum(mm(z, w_d1_ref) + b_d1_ref[...], 0.0).astype(bf)
    d = jnp.maximum(mm(d, w_d2_ref) + b_d2_ref[...], 0.0).astype(bf)
    d = jax.nn.sigmoid(mm(d, w_d3_ref) + b_d3_ref[...])

    dec_ref[...] = d.astype(dec_ref.dtype)          # bf16 writeback (halved DMA)


# ----------------------------------------------------------------------------
# Wrapper: padding, bf16 weight packing, batch-tiled pallas_call
# ----------------------------------------------------------------------------
@jax.jit
def vae_forward(x, eps, params):
    bf = jnp.bfloat16
    B = x.shape[0]
    L = params["w_mu"].shape[1]
    L_PAD = _round_up(L, 128)        # lane-aligned latent segment
    HEAD_PAD = 2 * L_PAD             # [mu | pad | log_var | pad]

    # ---- batch tiling: >=2 grid steps for moderate batches (megacore), <=256 rows ----
    B8 = _round_up(B, 8)
    TB = max(8, min(256, _round_up(-(-B8 // 2), 8)))
    B_pad = _round_up(B8, TB)
    nb = B_pad // TB

    # ---- pad activations (zero pad; padded rows/cols sliced off / zeroed out) ----
    x_p = jnp.zeros((B_pad, IN_PAD), bf).at[:B, :INPUT_SIZE].set(x.astype(bf))
    eps_p = jnp.zeros((B_pad, L_PAD), jnp.float32).at[:B, :L].set(eps)

    # ---- bf16 weights (padded where needed); f32 biases ----
    w_e1 = jnp.zeros((IN_PAD, WIDTH), bf).at[:INPUT_SIZE, :].set(params["w_e1"].astype(bf))
    w_e2 = params["w_e2"].astype(bf)
    w_h = (jnp.zeros((WIDTH, HEAD_PAD), bf)
           .at[:, :L].set(params["w_mu"].astype(bf))
           .at[:, L_PAD:L_PAD + L].set(params["w_lv"].astype(bf)))
    b_h = (jnp.zeros((1, HEAD_PAD), jnp.float32)
           .at[:, :L].set(params["b_mu"])
           .at[:, L_PAD:L_PAD + L].set(params["b_lv"]))
    w_d1 = jnp.zeros((L_PAD, WIDTH), bf).at[:L, :].set(params["w_d1"].astype(bf))
    w_d2 = params["w_d2"].astype(bf)
    w_d3 = jnp.zeros((WIDTH, IN_PAD), bf).at[:, :INPUT_SIZE].set(params["w_d3"].astype(bf))
    b_d3 = jnp.zeros((1, IN_PAD), jnp.float32).at[:, :INPUT_SIZE].set(params["b_d3"])

    operands = (
        x_p, eps_p,
        w_e1, params["b_e1"],
        w_e2, params["b_e2"],
        w_h, b_h,
        w_d1, params["b_d1"],
        w_d2, params["b_d2"],
        w_d3, b_d3,
    )

    # ---- BlockSpecs: batch-tiled activations, single-buffered VMEM-resident weights ----
    def batch_spec(cols):
        return pl.BlockSpec((TB, cols), lambda i: (i, 0))

    def resident_spec(shape):
        # Constant index_map -> stays in VMEM across grid steps; single buffer
        # (double-buffering a never-changing block just wastes ~8 MiB of VMEM).
        return pl.BlockSpec(shape, lambda i: (0, 0), pipeline_mode=pl.Buffered(1))

    in_specs = [
        batch_spec(IN_PAD),                 # x (bf16)
        batch_spec(L_PAD),                  # eps (f32, lane-dense)
        resident_spec(w_e1.shape), resident_spec(params["b_e1"].shape),
        resident_spec(w_e2.shape), resident_spec(params["b_e2"].shape),
        resident_spec(w_h.shape), resident_spec(b_h.shape),
        resident_spec(w_d1.shape), resident_spec(params["b_d1"].shape),
        resident_spec(w_d2.shape), resident_spec(params["b_d2"].shape),
        resident_spec(w_d3.shape), resident_spec(b_d3.shape),
    ]
    out_specs = (batch_spec(IN_PAD), batch_spec(HEAD_PAD))
    out_shapes = (
        jax.ShapeDtypeStruct((B_pad, IN_PAD), bf),              # decoded (bf16, padded)
        jax.ShapeDtypeStruct((B_pad, HEAD_PAD), jnp.float32),   # [mu | pad | log_var | pad]
    )

    # ---- advisory cost estimate (weight-DMA dominated at small B) ----
    matmul_macs = (IN_PAD * WIDTH + WIDTH * WIDTH + WIDTH * HEAD_PAD
                   + L_PAD * WIDTH + WIDTH * WIDTH + WIDTH * IN_PAD)
    weight_bytes = 2 * (IN_PAD * WIDTH + WIDTH * WIDTH + WIDTH * HEAD_PAD
                        + L_PAD * WIDTH + WIDTH * WIDTH + WIDTH * IN_PAD)
    bias_bytes = 4 * (4 * WIDTH + HEAD_PAD + IN_PAD)
    act_bytes = B_pad * (2 * IN_PAD + 4 * L_PAD + 2 * IN_PAD + 4 * HEAD_PAD)
    cost = pl.CostEstimate(
        flops=2 * B_pad * matmul_macs,
        transcendentals=B_pad * (L_PAD + IN_PAD),
        bytes_accessed=weight_bytes + bias_bytes + act_bytes,
    )

    dec_p, head_p = pl.pallas_call(
        functools.partial(vae_kernel, latent_pad=L_PAD),
        out_shape=out_shapes,
        grid=(nb,),
        in_specs=in_specs,
        out_specs=out_specs,
        compiler_params=pltpu.CompilerParams(
            dimension_semantics=("parallel",),      # v7x: split batch over 2 TCs
            vmem_limit_bytes=48 * 1024 * 1024,      # fits v7x (64 MiB); needed on v5e
        ),
        cost_estimate=cost,
    )(*operands)

    decoded = dec_p[:B, :INPUT_SIZE].astype(jnp.float32)
    z_mean = head_p[:B, :L]
    z_log_var = head_p[:B, L_PAD:L_PAD + L]
    return decoded, z_mean, z_log_var


# ----------------------------------------------------------------------------
# Deterministic parameter initialization (mirrors VAE._init_weights)
# ----------------------------------------------------------------------------
def kaiming_uniform(key, fan_in, fan_out):
    bound = jnp.sqrt(2.0) * jnp.sqrt(3.0 / fan_in)
    return jax.random.uniform(key, (fan_in, fan_out), jnp.float32, -bound, bound)


def xavier_uniform(key, fan_in, fan_out):
    bound = jnp.sqrt(6.0 / (fan_in + fan_out))
    return jax.random.uniform(key, (fan_in, fan_out), jnp.float32, -bound, bound)


def init_params(key, latent_dim):
    keys = jax.random.split(key, 7)
    return {
        # encoder
        "w_e1": kaiming_uniform(keys[0], INPUT_SIZE, WIDTH),
        "b_e1": jnp.zeros((1, WIDTH), jnp.float32),
        "w_e2": kaiming_uniform(keys[1], WIDTH, WIDTH),
        "b_e2": jnp.zeros((1, WIDTH), jnp.float32),
        # latent heads
        "w_mu": kaiming_uniform(keys[2], WIDTH, latent_dim),
        "b_mu": jnp.zeros((1, latent_dim), jnp.float32),
        "w_lv": kaiming_uniform(keys[3], WIDTH, latent_dim),
        "b_lv": jnp.zeros((1, latent_dim), jnp.float32),
        # decoder
        "w_d1": kaiming_uniform(keys[4], latent_dim, WIDTH),
        "b_d1": jnp.zeros((1, WIDTH), jnp.float32),
        "w_d2": kaiming_uniform(keys[5], WIDTH, WIDTH),
        "b_d2": jnp.zeros((1, WIDTH), jnp.float32),
        # final layer: out_features == INPUT_SIZE -> xavier uniform
        "w_d3": xavier_uniform(keys[6], WIDTH, INPUT_SIZE),
        "b_d3": jnp.zeros((1, INPUT_SIZE), jnp.float32),
    }


# ----------------------------------------------------------------------------
# Pure-JAX reference (same bf16-in / f32-accum numerics as the kernel)
# ----------------------------------------------------------------------------
def vae_forward_ref(x, eps, p):
    def mm(a, w):
        return jnp.dot(a.astype(jnp.bfloat16), w.astype(jnp.bfloat16),
                       preferred_element_type=jnp.float32)

    h = jnp.maximum(mm(x, p["w_e1"]) + p["b_e1"], 0.0)
    h = jnp.maximum(mm(h, p["w_e2"]) + p["b_e2"], 0.0)
    z_mean = mm(h, p["w_mu"]) + p["b_mu"]
    z_log_var = mm(h, p["w_lv"]) + p["b_lv"]
    z = z_mean + jnp.exp(0.5 * z_log_var) * eps
    d = jnp.maximum(mm(z, p["w_d1"]) + p["b_d1"], 0.0)
    d = jnp.maximum(mm(d, p["w_d2"]) + p["b_d2"], 0.0)
    d = jax.nn.sigmoid(mm(d, p["w_d3"]) + p["b_d3"])
    return d, z_mean, z_log_var


if __name__ == "__main__":
    B = 8
    LATENT_DIM = 32

    key = jax.random.PRNGKey(0)
    k_param, k_x, k_eps = jax.random.split(key, 3)

    params = init_params(k_param, LATENT_DIM)
    x = jax.random.uniform(k_x, (B, INPUT_SIZE), jnp.float32)       # EMG/MNIST-like input
    eps = jax.random.normal(k_eps, (B, LATENT_DIM), jnp.float32)    # torch.randn_like(mean)

    decoded, z_mean, z_log_var = vae_forward(x, eps, params)
    jax.block_until_ready((decoded, z_mean, z_log_var))

    # sanity check against pure-JAX reference (same bf16 numerics)
    d_ref, m_ref, v_ref = vae_forward_ref(x, eps, params)
    assert decoded.shape == (B, INPUT_SIZE)
    assert z_mean.shape == (B, LATENT_DIM)
    assert z_log_var.shape == (B, LATENT_DIM)
    assert jnp.allclose(decoded, d_ref, atol=1e-2, rtol=1e-2)
    assert jnp.allclose(z_mean, m_ref, atol=1e-2, rtol=1e-2)
    assert jnp.allclose(z_log_var, v_ref, atol=1e-2, rtol=1e-2)

    print("KERNEL_OK")
</pallas_src>

<mosaic_0001>
module attributes {stable_mosaic.version = 11 : i64} {
  func.func @vae_kernel(%arg0: i32, %arg1: memref<8x896xbf16, #tpu.memory_space<vmem>>, %arg2: memref<8x128xf32, #tpu.memory_space<vmem>>, %arg3: memref<896x1024xbf16, #tpu.memory_space<vmem>>, %arg4: memref<1x1024xf32, #tpu.memory_space<vmem>>, %arg5: memref<1024x1024xbf16, #tpu.memory_space<vmem>>, %arg6: memref<1x1024xf32, #tpu.memory_space<vmem>>, %arg7: memref<1024x256xbf16, #tpu.memory_space<vmem>>, %arg8: memref<1x256xf32, #tpu.memory_space<vmem>>, %arg9: memref<128x1024xbf16, #tpu.memory_space<vmem>>, %arg10: memref<1x1024xf32, #tpu.memory_space<vmem>>, %arg11: memref<1024x1024xbf16, #tpu.memory_space<vmem>>, %arg12: memref<1x1024xf32, #tpu.memory_space<vmem>>, %arg13: memref<1024x896xbf16, #tpu.memory_space<vmem>>, %arg14: memref<1x896xf32, #tpu.memory_space<vmem>>, %arg15: memref<8x896xbf16, #tpu.memory_space<vmem>>, %arg16: memref<8x256xf32, #tpu.memory_space<vmem>>) attributes {dimension_semantics = [#tpu.dimension_semantics<parallel>], iteration_bounds = array<i64: 1>, scalar_prefetch = 0 : i64, scratch_operands = 0 : i64, tpu.core_type = #tpu.core_type<tc>, window_params = [{transform_indices = @transform_0, window_bounds = array<i64: 8, 896>}, {transform_indices = @transform_1, window_bounds = array<i64: 8, 128>}, {pipeline_mode = #tpu.pipeline_mode<synchronous>, transform_indices = @transform_2, window_bounds = array<i64: 896, 1024>}, {pipeline_mode = #tpu.pipeline_mode<synchronous>, transform_indices = @transform_3, window_bounds = array<i64: 1, 1024>}, {pipeline_mode = #tpu.pipeline_mode<synchronous>, transform_indices = @transform_4, window_bounds = array<i64: 1024, 1024>}, {pipeline_mode = #tpu.pipeline_mode<synchronous>, transform_indices = @transform_5, window_bounds = array<i64: 1, 1024>}, {pipeline_mode = #tpu.pipeline_mode<synchronous>, transform_indices = @transform_6, window_bounds = array<i64: 1024, 256>}, {pipeline_mode = #tpu.pipeline_mode<synchronous>, transform_indices = @transform_7, window_bounds = array<i64: 1, 256>}, {pipeline_mode = #tpu.pipeline_mode<synchronous>, transform_indices = @transform_8, window_bounds = array<i64: 128, 1024>}, {pipeline_mode = #tpu.pipeline_mode<synchronous>, transform_indices = @transform_9, window_bounds = array<i64: 1, 1024>}, {pipeline_mode = #tpu.pipeline_mode<synchronous>, transform_indices = @transform_10, window_bounds = array<i64: 1024, 1024>}, {pipeline_mode = #tpu.pipeline_mode<synchronous>, transform_indices = @transform_11, window_bounds = array<i64: 1, 1024>}, {pipeline_mode = #tpu.pipeline_mode<synchronous>, transform_indices = @transform_12, window_bounds = array<i64: 1024, 896>}, {pipeline_mode = #tpu.pipeline_mode<synchronous>, transform_indices = @transform_13, window_bounds = array<i64: 1, 896>}, {transform_indices = @transform_14, window_bounds = array<i64: 8, 896>}, {transform_indices = @transform_15, window_bounds = array<i64: 8, 256>}]} {
    %c0 = arith.constant 0 : index
    %c0_0 = arith.constant 0 : index
    %0 = vector.load %arg1[%c0, %c0_0] : memref<8x896xbf16, #tpu.memory_space<vmem>>, vector<8x896xbf16>
    %c0_1 = arith.constant 0 : index
    %c0_2 = arith.constant 0 : index
    %1 = vector.load %arg3[%c0_1, %c0_2] : memref<896x1024xbf16, #tpu.memory_space<vmem>>, vector<896x1024xbf16>
    %cst = arith.constant dense<0.000000e+00> : vector<8x1024xf32>
    %2 = tpu.matmul %0, %1, %cst {dimension_numbers = #tpu.dot_dimension_numbers<[1], [0], [0], [1], [0, 0, 1, 1], [], []>} : vector<8x896xbf16>, vector<896x1024xbf16>, vector<8x1024xf32> -> vector<8x1024xf32>
    %c0_3 = arith.constant 0 : index
    %c0_4 = arith.constant 0 : index
    %3 = vector.load %arg4[%c0_3, %c0_4] : memref<1x1024xf32, #tpu.memory_space<vmem>>, vector<1x1024xf32>
    %4 = vector.broadcast %3 : vector<1x1024xf32> to vector<8x1024xf32>
    %5 = arith.addf %2, %4 : vector<8x1024xf32>
    %cst_5 = arith.constant 0.000000e+00 : f32
    %6 = vector.broadcast %cst_5 : f32 to vector<8x1024xf32>
    %7 = arith.maximumf %5, %6 : vector<8x1024xf32>
    %8 = arith.truncf %7 : vector<8x1024xf32> to vector<8x1024xbf16>
    %c0_6 = arith.constant 0 : index
    %c0_7 = arith.constant 0 : index
    %9 = vector.load %arg5[%c0_6, %c0_7] : memref<1024x1024xbf16, #tpu.memory_space<vmem>>, vector<1024x1024xbf16>
    %cst_8 = arith.constant dense<0.000000e+00> : vector<8x1024xf32>
    %10 = tpu.matmul %8, %9, %cst_8 {dimension_numbers = #tpu.dot_dimension_numbers<[1], [0], [0], [1], [0, 0, 1, 1], [], []>} : vector<8x1024xbf16>, vector<1024x1024xbf16>, vector<8x1024xf32> -> vector<8x1024xf32>
    %c0_9 = arith.constant 0 : index
    %c0_10 = arith.constant 0 : index
    %11 = vector.load %arg6[%c0_9, %c0_10] : memref<1x1024xf32, #tpu.memory_space<vmem>>, vector<1x1024xf32>
    %12 = vector.broadcast %11 : vector<1x1024xf32> to vector<8x1024xf32>
    %13 = arith.addf %10, %12 : vector<8x1024xf32>
    %cst_11 = arith.constant 0.000000e+00 : f32
    %14 = vector.broadcast %cst_11 : f32 to vector<8x1024xf32>
    %15 = arith.maximumf %13, %14 : vector<8x1024xf32>
    %16 = arith.truncf %15 : vector<8x1024xf32> to vector<8x1024xbf16>
    %c0_12 = arith.constant 0 : index
    %c0_13 = arith.constant 0 : index
    %17 = vector.load %arg7[%c0_12, %c0_13] : memref<1024x256xbf16, #tpu.memory_space<vmem>>, vector<1024x256xbf16>
    %cst_14 = arith.constant dense<0.000000e+00> : vector<8x256xf32>
    %18 = tpu.matmul %16, %17, %cst_14 {dimension_numbers = #tpu.dot_dimension_numbers<[1], [0], [0], [1], [0, 0, 1, 1], [], []>} : vector<8x1024xbf16>, vector<1024x256xbf16>, vector<8x256xf32> -> vector<8x256xf32>
    %c0_15 = arith.constant 0 : index
    %c0_16 = arith.constant 0 : index
    %19 = vector.load %arg8[%c0_15, %c0_16] : memref<1x256xf32, #tpu.memory_space<vmem>>, vector<1x256xf32>
    %20 = vector.broadcast %19 : vector<1x256xf32> to vector<8x256xf32>
    %21 = arith.addf %18, %20 : vector<8x256xf32>
    %c0_17 = arith.constant 0 : index
    %c0_18 = arith.constant 0 : index
    %22 = vector.load %arg16[%c0_17, %c0_18] : memref<8x256xf32, #tpu.memory_space<vmem>>, vector<8x256xf32>
    tpu.vector_store %arg16[%c0_17, %c0_18], %21 {strides = array<i32>} : memref<8x256xf32, #tpu.memory_space<vmem>>, vector<8x256xf32>,
    %23 = vector.extract_strided_slice %21 {offsets = [0, 0], sizes = [8, 128], strides = [1, 1]} : vector<8x256xf32> to vector<8x128xf32>
    %24 = vector.extract_strided_slice %21 {offsets = [0, 128], sizes = [8, 128], strides = [1, 1]} : vector<8x256xf32> to vector<8x128xf32>
    %cst_19 = arith.constant 5.000000e-01 : f32
    %25 = vector.broadcast %cst_19 : f32 to vector<8x128xf32>
    %26 = arith.mulf %25, %24 : vector<8x128xf32>
    %27 = math.exp %26 : vector<8x128xf32>
    %c0_20 = arith.constant 0 : index
    %c0_21 = arith.constant 0 : index
    %28 = vector.load %arg2[%c0_20, %c0_21] : memref<8x128xf32, #tpu.memory_space<vmem>>, vector<8x128xf32>
    %29 = arith.mulf %27, %28 : vector<8x128xf32>
    %30 = arith.addf %23, %29 : vector<8x128xf32>
    %31 = arith.truncf %30 : vector<8x128xf32> to vector<8x128xbf16>
    %c0_22 = arith.constant 0 : index
    %c0_23 = arith.constant 0 : index
    %32 = vector.load %arg9[%c0_22, %c0_23] : memref<128x1024xbf16, #tpu.memory_space<vmem>>, vector<128x1024xbf16>
    %cst_24 = arith.constant dense<0.000000e+00> : vector<8x1024xf32>
    %33 = tpu.matmul %31, %32, %cst_24 {dimension_numbers = #tpu.dot_dimension_numbers<[1], [0], [0], [1], [0, 0, 1, 1], [], []>} : vector<8x128xbf16>, vector<128x1024xbf16>, vector<8x1024xf32> -> vector<8x1024xf32>
    %c0_25 = arith.constant 0 : index
    %c0_26 = arith.constant 0 : index
    %34 = vector.load %arg10[%c0_25, %c0_26] : memref<1x1024xf32, #tpu.memory_space<vmem>>, vector<1x1024xf32>
    %35 = vector.broadcast %34 : vector<1x1024xf32> to vector<8x1024xf32>
    %36 = arith.addf %33, %35 : vector<8x1024xf32>
    %cst_27 = arith.constant 0.000000e+00 : f32
    %37 = vector.broadcast %cst_27 : f32 to vector<8x1024xf32>
    %38 = arith.maximumf %36, %37 : vector<8x1024xf32>
    %39 = arith.truncf %38 : vector<8x1024xf32> to vector<8x1024xbf16>
    %c0_28 = arith.constant 0 : index
    %c0_29 = arith.constant 0 : index
    %40 = vector.load %arg11[%c0_28, %c0_29] : memref<1024x1024xbf16, #tpu.memory_space<vmem>>, vector<1024x1024xbf16>
    %cst_30 = arith.constant dense<0.000000e+00> : vector<8x1024xf32>
    %41 = tpu.matmul %39, %40, %cst_30 {dimension_numbers = #tpu.dot_dimension_numbers<[1], [0], [0], [1], [0, 0, 1, 1], [], []>} : vector<8x1024xbf16>, vector<1024x1024xbf16>, vector<8x1024xf32> -> vector<8x1024xf32>
    %c0_31 = arith.constant 0 : index
    %c0_32 = arith.constant 0 : index
    %42 = vector.load %arg12[%c0_31, %c0_32] : memref<1x1024xf32, #tpu.memory_space<vmem>>, vector<1x1024xf32>
    %43 = vector.broadcast %42 : vector<1x1024xf32> to vector<8x1024xf32>
    %44 = arith.addf %41, %43 : vector<8x1024xf32>
    %cst_33 = arith.constant 0.000000e+00 : f32
    %45 = vector.broadcast %cst_33 : f32 to vector<8x1024xf32>
    %46 = arith.maximumf %44, %45 : vector<8x1024xf32>
    %47 = arith.truncf %46 : vector<8x1024xf32> to vector<8x1024xbf16>
    %c0_34 = arith.constant 0 : index
    %c0_35 = arith.constant 0 : index
    %48 = vector.load %arg13[%c0_34, %c0_35] : memref<1024x896xbf16, #tpu.memory_space<vmem>>, vector<1024x896xbf16>
    %cst_36 = arith.constant dense<0.000000e+00> : vector<8x896xf32>
    %49 = tpu.matmul %47, %48, %cst_36 {dimension_numbers = #tpu.dot_dimension_numbers<[1], [0], [0], [1], [0, 0, 1, 1], [], []>} : vector<8x1024xbf16>, vector<1024x896xbf16>, vector<8x896xf32> -> vector<8x896xf32>
    %c0_37 = arith.constant 0 : index
    %c0_38 = arith.constant 0 : index
    %50 = vector.load %arg14[%c0_37, %c0_38] : memref<1x896xf32, #tpu.memory_space<vmem>>, vector<1x896xf32>
    %51 = vector.broadcast %50 : vector<1x896xf32> to vector<8x896xf32>
    %52 = arith.addf %49, %51 : vector<8x896xf32>
    %53 = arith.negf %52 : vector<8x896xf32>
    %54 = math.exp %53 : vector<8x896xf32>
    %cst_39 = arith.constant 1.000000e+00 : f32
    %55 = vector.broadcast %cst_39 : f32 to vector<8x896xf32>
    %56 = arith.addf %55, %54 : vector<8x896xf32>
    %57 = arith.divf %55, %56 : vector<8x896xf32>
    %58 = arith.truncf %57 : vector<8x896xf32> to vector<8x896xbf16>
    %c0_40 = arith.constant 0 : index
    %c0_41 = arith.constant 0 : index
    %59 = vector.load %arg15[%c0_40, %c0_41] : memref<8x896xbf16, #tpu.memory_space<vmem>>, vector<8x896xbf16>
    tpu.vector_store %arg15[%c0_40, %c0_41], %58 {strides = array<i32>} : memref<8x896xbf16, #tpu.memory_space<vmem>>, vector<8x896xbf16>,
    return
  }
  func.func @transform_0(%arg0: i32) -> (i32, i32) {
    %c0_i32 = arith.constant 0 : i32
    %c0_i32_0 = arith.constant 0 : i32
    return %arg0, %c0_i32 : i32, i32
  }
  func.func @transform_1(%arg0: i32) -> (i32, i32) {
    %c0_i32 = arith.constant 0 : i32
    %c0_i32_0 = arith.constant 0 : i32
    return %arg0, %c0_i32 : i32, i32
  }
  func.func @transform_2(%arg0: i32) -> (i32, i32) {
    %c0_i32 = arith.constant 0 : i32
    %c0_i32_0 = arith.constant 0 : i32
    %c0_i32_1 = arith.constant 0 : i32
    return %c0_i32, %c0_i32_0 : i32, i32
  }
  func.func @transform_3(%arg0: i32) -> (i32, i32) {
    %c0_i32 = arith.constant 0 : i32
    %c0_i32_0 = arith.constant 0 : i32
    %c0_i32_1 = arith.constant 0 : i32
    return %c0_i32, %c0_i32_0 : i32, i32
  }
  func.func @transform_4(%arg0: i32) -> (i32, i32) {
    %c0_i32 = arith.constant 0 : i32
    %c0_i32_0 = arith.constant 0 : i32
    %c0_i32_1 = arith.constant 0 : i32
    return %c0_i32, %c0_i32_0 : i32, i32
  }
  func.func @transform_5(%arg0: i32) -> (i32, i32) {
    %c0_i32 = arith.constant 0 : i32
    %c0_i32_0 = arith.constant 0 : i32
    %c0_i32_1 = arith.constant 0 : i32
    return %c0_i32, %c0_i32_0 : i32, i32
  }
  func.func @transform_6(%arg0: i32) -> (i32, i32) {
    %c0_i32 = arith.constant 0 : i32
    %c0_i32_0 = arith.constant 0 : i32
    %c0_i32_1 = arith.constant 0 : i32
    return %c0_i32, %c0_i32_0 : i32, i32
  }
  func.func @transform_7(%arg0: i32) -> (i32, i32) {
    %c0_i32 = arith.constant 0 : i32
    %c0_i32_0 = arith.constant 0 : i32
    %c0_i32_1 = arith.constant 0 : i32
    return %c0_i32, %c0_i32_0 : i32, i32
  }
  func.func @transform_8(%arg0: i32) -> (i32, i32) {
    %c0_i32 = arith.constant 0 : i32
    %c0_i32_0 = arith.constant 0 : i32
    %c0_i32_1 = arith.constant 0 : i32
    return %c0_i32, %c0_i32_0 : i32, i32
  }
  func.func @transform_9(%arg0: i32) -> (i32, i32) {
    %c0_i32 = arith.constant 0 : i32
    %c0_i32_0 = arith.constant 0 : i32
    %c0_i32_1 = arith.constant 0 : i32
    return %c0_i32, %c0_i32_0 : i32, i32
  }
  func.func @transform_10(%arg0: i32) -> (i32, i32) {
    %c0_i32 = arith.constant 0 : i32
    %c0_i32_0 = arith.constant 0 : i32
    %c0_i32_1 = arith.constant 0 : i32
    return %c0_i32, %c0_i32_0 : i32, i32
  }
  func.func @transform_11(%arg0: i32) -> (i32, i32) {
    %c0_i32 = arith.constant 0 : i32
    %c0_i32_0 = arith.constant 0 : i32
    %c0_i32_1 = arith.constant 0 : i32
    return %c0_i32, %c0_i32_0 : i32, i32
  }
  func.func @transform_12(%arg0: i32) -> (i32, i32) {
    %c0_i32 = arith.constant 0 : i32
    %c0_i32_0 = arith.constant 0 : i32
    %c0_i32_1 = arith.constant 0 : i32
    return %c0_i32, %c0_i32_0 : i32, i32
  }
  func.func @transform_13(%arg0: i32) -> (i32, i32) {
    %c0_i32 = arith.constant 0 : i32
    %c0_i32_0 = arith.constant 0 : i32
    %c0_i32_1 = arith.constant 0 : i32
    return %c0_i32, %c0_i32_0 : i32, i32
  }
  func.func @transform_14(%arg0: i32) -> (i32, i32) {
    %c0_i32 = arith.constant 0 : i32
    %c0_i32_0 = arith.constant 0 : i32
    return %arg0, %c0_i32 : i32, i32
  }
  func.func @transform_15(%arg0: i32) -> (i32, i32) {
    %c0_i32 = arith.constant 0 : i32
    %c0_i32_0 = arith.constant 0 : i32
    return %arg0, %c0_i32 : i32, i32
  }
}

</mosaic_0001>

<llo_original>
// kernel: vae_forward.1
$region0: #{vae_forward.1}
  #allocation0 [shape = 'u32[]', space=smem, size = 0x4, offset = 0x4, fixed_abs, tag = 'smem constant byte address 0x4 - core index']
  #allocation1 [shape = 'u32[144,128]{1,0:T(1,128)}', space=vmem, size = 0x12000, scoped, tag = 'internal scratch']
  %s0 = inlined_call_operand.vmem [shape: bf16[8,896], index: 0, kind: input, shape index: {}]
  %s1 = inlined_call_operand.vmem [shape: f32[8,128], index: 1, kind: input, shape index: {}]
  %s2 = inlined_call_operand.vmem [shape: bf16[896,1024], index: 2, kind: input, shape index: {}]
  %s3 = inlined_call_operand.vmem [shape: f32[1,1024], index: 3, kind: input, shape index: {}]
  %s4 = inlined_call_operand.vmem [shape: bf16[1024,1024], index: 4, kind: input, shape index: {}]
  %s5 = inlined_call_operand.vmem [shape: f32[1,1024], index: 5, kind: input, shape index: {}]
  %s6 = inlined_call_operand.vmem [shape: bf16[1024,256], index: 6, kind: input, shape index: {}]
  %s7 = inlined_call_operand.vmem [shape: f32[1,256], index: 7, kind: input, shape index: {}]
  %s8 = inlined_call_operand.vmem [shape: bf16[128,1024], index: 8, kind: input, shape index: {}]
  %s9 = inlined_call_operand.vmem [shape: f32[1,1024], index: 9, kind: input, shape index: {}]
  %s10 = inlined_call_operand.vmem [shape: bf16[1024,1024], index: 10, kind: input, shape index: {}]
  %s11 = inlined_call_operand.vmem [shape: f32[1,1024], index: 11, kind: input, shape index: {}]
  %s12 = inlined_call_operand.vmem [shape: bf16[1024,896], index: 12, kind: input, shape index: {}]
  %s13 = inlined_call_operand.vmem [shape: f32[1,896], index: 13, kind: input, shape index: {}]
  %s14 = inlined_call_operand.vmem [shape: bf16[8,896], index: 14, kind: output, shape index: {0}]
  %s15 = inlined_call_operand.vmem [shape: f32[8,256], index: 15, kind: output, shape index: {1}]
  %16 = xla_tuple %s14, %s15
  %s17 = sld [smem:[#allocation0]]
  $region74: #{vae_forward.1} parent=0
    _
  %s19 = ssub.s32 1, %s17
  %s20 = scalar_select 0, %s19, %s17
  // Predicated region
  $region2: #{vae_forward.1} parent=0 // pred_check
    _
  $region3: #{vae_forward.1} parent=0 // pred_check_branch
    %22 = sbr.rel (0) target = $region5
  $region4: #{vae_forward.1} parent=0 // pred_region
    _
  $region5: #{vae_forward.1} parent=0 // pred_fallthru
    _
  // Predicated region
  $region6: #{vae_forward.1} parent=0 // pred_check
    _
  $region7: #{vae_forward.1} parent=0 // pred_check_branch
    %24 = sbr.rel (0) target = $region9
  $region8: #{vae_forward.1} parent=0 // pred_region
    _
  $region9: #{vae_forward.1} parent=0 // pred_fallthru
    _
  // Predicated region
  $region10: #{vae_forward.1} parent=0 // pred_check
    _
  $region11: #{vae_forward.1} parent=0 // pred_check_branch
    %26 = sbr.rel (0) target = $region13
  $region12: #{vae_forward.1} parent=0 // pred_region
    _
  $region13: #{vae_forward.1} parent=0 // pred_fallthru
    _
  // Predicated region
  $region14: #{vae_forward.1} parent=0 // pred_check
    _
  $region15: #{vae_forward.1} parent=0 // pred_check_branch
    %28 = sbr.rel (0) target = $region17
  $region16: #{vae_forward.1} parent=0 // pred_region
    _
  $region17: #{vae_forward.1} parent=0 // pred_fallthru
    _
  // Predicated region
  $region18: #{vae_forward.1} parent=0 // pred_check
    _
  $region19: #{vae_forward.1} parent=0 // pred_check_branch
    %30 = sbr.rel (0) target = $region21
  $region20: #{vae_forward.1} parent=0 // pred_region
    _
  $region21: #{vae_forward.1} parent=0 // pred_fallthru
    _
  // Predicated region
  $region22: #{vae_forward.1} parent=0 // pred_check
    _
  $region23: #{vae_forward.1} parent=0 // pred_check_branch
    %32 = sbr.rel (0) target = $region25
  $region24: #{vae_forward.1} parent=0 // pred_region
    _
  $region25: #{vae_forward.1} parent=0 // pred_fallthru
    _
  // Predicated region
  $region26: #{vae_forward.1} parent=0 // pred_check
    _
  $region27: #{vae_forward.1} parent=0 // pred_check_branch
    %34 = sbr.rel (0) target = $region29
  $region28: #{vae_forward.1} parent=0 // pred_region
    _
  $region29: #{vae_forward.1} parent=0 // pred_fallthru
    _
  // Predicated region
  $region30: #{vae_forward.1} parent=0 // pred_check
    _
  $region31: #{vae_forward.1} parent=0 // pred_check_branch
    %36 = sbr.rel (0) target = $region33
  $region32: #{vae_forward.1} parent=0 // pred_region
    _
  $region33: #{vae_forward.1} parent=0 // pred_fallthru
    _
  // Predicated region
  $region34: #{vae_forward.1} parent=0 // pred_check
    _
  $region35: #{vae_forward.1} parent=0 // pred_check_branch
    %38 = sbr.rel (0) target = $region37
  $region36: #{vae_forward.1} parent=0 // pred_region
    _
  $region37: #{vae_forward.1} parent=0 // pred_fallthru
    _
  // Predicated region
  $region38: #{vae_forward.1} parent=0 // pred_check
    _
  $region39: #{vae_forward.1} parent=0 // pred_check_branch
    %40 = sbr.rel (0) target = $region41
  $region40: #{vae_forward.1} parent=0 // pred_region
    _
  $region41: #{vae_forward.1} parent=0 // pred_fallthru
    _
  // Predicated region
  $region42: #{vae_forward.1} parent=0 // pred_check
    _
  $region43: #{vae_forward.1} parent=0 // pred_check_branch
    %42 = sbr.rel (0) target = $region45
  $region44: #{vae_forward.1} parent=0 // pred_region
    _
  $region45: #{vae_forward.1} parent=0 // pred_fallthru
    _
  // Predicated region
  $region46: #{vae_forward.1} parent=0 // pred_check
    _
  $region47: #{vae_forward.1} parent=0 // pred_check_branch
    %44 = sbr.rel (0) target = $region49
  $region48: #{vae_forward.1} parent=0 // pred_region
    _
  $region49: #{vae_forward.1} parent=0 // pred_fallthru
    _
  // Predicated region
  $region50: #{vae_forward.1} parent=0 // pred_check
    _
  $region51: #{vae_forward.1} parent=0 // pred_check_branch
    %46 = sbr.rel (0) target = $region53
  $region52: #{vae_forward.1} parent=0 // pred_region
    _
  $region53: #{vae_forward.1} parent=0 // pred_fallthru
    _
  // Predicated region
  $region54: #{vae_forward.1} parent=0 // pred_check
    _
  $region55: #{vae_forward.1} parent=0 // pred_check_branch
    %48 = sbr.rel (0) target = $region57
  $region56: #{vae_forward.1} parent=0 // pred_region
    _
  $region57: #{vae_forward.1} parent=0 // pred_fallthru
    _
  %v50 = vld [vmem:[%s0] sm:$0xff]
  %v51 = vld [vmem:[%s0 + $0x8] sm:$0xff]
  %v52 = vld [vmem:[%s0 + $0x10] sm:$0xff]
  %v53 = vld [vmem:[%s0 + $0x18] sm:$0xf]
  %v54 = vld [vmem:[%s2] sm:$0xff]
  %v55 = vld [vmem:[%s2 + $0x8] sm:$0xff]
  %v56 = vld [vmem:[%s2 + $0x10] sm:$0xff]
  %v57 = vld [vmem:[%s2 + $0x18] sm:$0xff]
  %v58 = vld [vmem:[%s2 + $0x20] sm:$0xff]
  %v59 = vld [vmem:[%s2 + $0x28] sm:$0xff]
  %v60 = vld [vmem:[%s2 + $0x30] sm:$0xff]
  %v61 = vld [vmem:[%s2 + $0x38] sm:$0xff]
  %v62 = vld [vmem:[%s2 + $0x40] sm:$0xff]
  %v63 = vld [vmem:[%s2 + $0x48] sm:$0xff]
  %v64 = vld [vmem:[%s2 + $0x50] sm:$0xff]
  %v65 = vld [vmem:[%s2 + $0x58] sm:$0xff]
  %v66 = vld [vmem:[%s2 + $0x60] sm:$0xff]
  %v67 = vld [vmem:[%s2 + $0x68] sm:$0xff]
  %v68 = vld [vmem:[%s2 + $0x70] sm:$0xff]
  %v69 = vld [vmem:[%s2 + $0x78] sm:$0xff]
  %v70 = vld [vmem:[%s2 + $0x80] sm:$0xff]
  %v71 = vld [vmem:[%s2 + $0x88] sm:$0xff]
  %v72 = vld [vmem:[%s2 + $0x90] sm:$0xff]
  %v73 = vld [vmem:[%s2 + $0x98] sm:$0xff]
  %v74 = vld [vmem:[%s2 + $0xa0] sm:$0xff]
  %v75 = vld [vmem:[%s2 + $0xa8] sm:$0xff]
  %v76 = vld [vmem:[%s2 + $0xb0] sm:$0xff]
  %v77 = vld [vmem:[%s2 + $0xb8] sm:$0xff]
  %v78 = vld [vmem:[%s2 + $0xc0] sm:$0xff]
  %v79 = vld [vmem:[%s2 + $0xc8] sm:$0xff]
  %v80 = vld [vmem:[%s2 + $0xd0] sm:$0xff]
  %v81 = vld [vmem:[%s2 + $0xd8] sm:$0xff]
  %v82 = vld [vmem:[%s2 + $0xe0] sm:$0xff]
  %v83 = vld [vmem:[%s2 + $0xe8] sm:$0xff]
  %v84 = vld [vmem:[%s2 + $0xf0] sm:$0xff]
  %v85 = vld [vmem:[%s2 + $0xf8] sm:$0xff]
  %v86 = vld [vmem:[%s2 + $0x100] sm:$0xff]
  %v87 = vld [vmem:[%s2 + $0x108] sm:$0xff]
  %v88 = vld [vmem:[%s2 + $0x110] sm:$0xff]
  %v89 = vld [vmem:[%s2 + $0x118] sm:$0xff]
  %v90 = vld [vmem:[%s2 + $0x120] sm:$0xff]
  %v91 = vld [vmem:[%s2 + $0x128] sm:$0xff]
  %v92 = vld [vmem:[%s2 + $0x130] sm:$0xff]
  %v93 = vld [vmem:[%s2 + $0x138] sm:$0xff]
  %v94 = vld [vmem:[%s2 + $0x140] sm:$0xff]
  %v95 = vld [vmem:[%s2 + $0x148] sm:$0xff]
  %v96 = vld [vmem:[%s2 + $0x150] sm:$0xff]
  %v97 = vld [vmem:[%s2 + $0x158] sm:$0xff]
  %v98 = vld [vmem:[%s2 + $0x160] sm:$0xff]
  %v99 = vld [vmem:[%s2 + $0x168] sm:$0xff]
  %v100 = vld [vmem:[%s2 + $0x170] sm:$0xff]
  %v101 = vld [vmem:[%s2 + $0x178] sm:$0xff]
  %v102 = vld [vmem:[%s2 + $0x180] sm:$0xff]
  %v103 = vld [vmem:[%s2 + $0x188] sm:$0xff]
  %v104 = vld [vmem:[%s2 + $0x190] sm:$0xff]
  %v105 = vld [vmem:[%s2 + $0x198] sm:$0xff]
  %v106 = vld [vmem:[%s2 + $0x1a0] sm:$0xff]
  %v107 = vld [vmem:[%s2 + $0x1a8] sm:$0xff]
  %v108 = vld [vmem:[%s2 + $0x1b0] sm:$0xff]
  %v109 = vld [vmem:[%s2 + $0x1b8] sm:$0xff]
  %v110 = vld [vmem:[%s2 + $0x1c0] sm:$0xff]
  %v111 = vld [vmem:[%s2 + $0x1c8] sm:$0xff]
  %v112 = vld [vmem:[%s2 + $0x1d0] sm:$0xff]
  %v113 = vld [vmem:[%s2 + $0x1d8] sm:$0xff]
  %v114 = vld [vmem:[%s2 + $0x1e0] sm:$0xff]
  %v115 = vld [vmem:[%s2 + $0x1e8] sm:$0xff]
  %v116 = vld [vmem:[%s2 + $0x1f0] sm:$0xff]
  %v117 = vld [vmem:[%s2 + $0x1f8] sm:$0xff]
  %v118 = vld [vmem:[%s2 + $0x200] sm:$0xff]
  %v119 = vld [vmem:[%s2 + $0x208] sm:$0xff]
  %v120 = vld [vmem:[%s2 + $0x210] sm:$0xff]
  %v121 = vld [vmem:[%s2 + $0x218] sm:$0xff]
  %v122 = vld [vmem:[%s2 + $0x220] sm:$0xff]
  %v123 = vld [vmem:[%s2 + $0x228] sm:$0xff]
  %v124 = vld [vmem:[%s2 + $0x230] sm:$0xff]
  %v125 = vld [vmem:[%s2 + $0x238] sm:$0xff]
  %v126 = vld [vmem:[%s2 + $0x240] sm:$0xff]
  %v127 = vld [vmem:[%s2 + $0x248] sm:$0xff]
  %v128 = vld [vmem:[%s2 + $0x250] sm:$0xff]
  %v129 = vld [vmem:[%s2 + $0x258] sm:$0xff]
  %v130 = vld [vmem:[%s2 + $0x260] sm:$0xff]
  %v131 = vld [vmem:[%s2 + $0x268] sm:$0xff]
  %v132 = vld [vmem:[%s2 + $0x270] sm:$0xff]
  %v133 = vld [vmem:[%s2 + $0x278] sm:$0xff]
  %v134 = vld [vmem:[%s2 + $0x280] sm:$0xff]
  %v135 = vld [vmem:[%s2 + $0x288] sm:$0xff]
  %v136 = vld [vmem:[%s2 + $0x290] sm:$0xff]
  %v137 = vld [vmem:[%s2 + $0x298] sm:$0xff]
  %v138 = vld [vmem:[%s2 + $0x2a0] sm:$0xff]
  %v139 = vld [vmem:[%s2 + $0x2a8] sm:$0xff]
  %v140 = vld [vmem:[%s2 + $0x2b0] sm:$0xff]
  %v141 = vld [vmem:[%s2 + $0x2b8] sm:$0xff]
  %v142 = vld [vmem:[%s2 + $0x2c0] sm:$0xff]
  %v143 = vld [vmem:[%s2 + $0x2c8] sm:$0xff]
  %v144 = vld [vmem:[%s2 + $0x2d0] sm:$0xff]
  %v145 = vld [vmem:[%s2 + $0x2d8] sm:$0xff]
  %v146 = vld [vmem:[%s2 + $0x2e0] sm:$0xff]
  %v147 = vld [vmem:[%s2 + $0x2e8] sm:$0xff]
  %v148 = vld [vmem:[%s2 + $0x2f0] sm:$0xff]
  %v149 = vld [vmem:[%s2 + $0x2f8] sm:$0xff]
  %v150 = vld [vmem:[%s2 + $0x300] sm:$0xff]
  %v151 = vld [vmem:[%s2 + $0x308] sm:$0xff]
  %v152 = vld [vmem:[%s2 + $0x310] sm:$0xff]
  %v153 = vld [vmem:[%s2 + $0x318] sm:$0xff]
  %v154 = vld [vmem:[%s2 + $0x320] sm:$0xff]
  %v155 = vld [vmem:[%s2 + $0x328] sm:$0xff]
  %v156 = vld [vmem:[%s2 + $0x330] sm:$0xff]
  %v157 = vld [vmem:[%s2 + $0x338] sm:$0xff]
  %v158 = vld [vmem:[%s2 + $0x340] sm:$0xff]
  %v159 = vld [vmem:[%s2 + $0x348] sm:$0xff]
  %v160 = vld [vmem:[%s2 + $0x350] sm:$0xff]
  %v161 = vld [vmem:[%s2 + $0x358] sm:$0xff]
  %v162 = vld [vmem:[%s2 + $0x360] sm:$0xff]
  %v163 = vld [vmem:[%s2 + $0x368] sm:$0xff]
  %v164 = vld [vmem:[%s2 + $0x370] sm:$0xff]
  %v165 = vld [vmem:[%s2 + $0x378] sm:$0xff]
  %v166 = vld [vmem:[%s2 + $0x380] sm:$0xff]
  %v167 = vld [vmem:[%s2 + $0x388] sm:$0xff]
  %v168 = vld [vmem:[%s2 + $0x390] sm:$0xff]
  %v169 = vld [vmem:[%s2 + $0x398] sm:$0xff]
  %v170 = vld [vmem:[%s2 + $0x3a0] sm:$0xff]
  %v171 = vld [vmem:[%s2 + $0x3a8] sm:$0xff]
  %v172 = vld [vmem:[%s2 + $0x3b0] sm:$0xff]
  %v173 = vld [vmem:[%s2 + $0x3b8] sm:$0xff]
  %v174 = vld [vmem:[%s2 + $0x3c0] sm:$0xff]
  %v175 = vld [vmem:[%s2 + $0x3c8] sm:$0xff]
  %v176 = vld [vmem:[%s2 + $0x3d0] sm:$0xff]
  %v177 = vld [vmem:[%s2 + $0x3d8] sm:$0xff]
  %v178 = vld [vmem:[%s2 + $0x3e0] sm:$0xff]
  %v179 = vld [vmem:[%s2 + $0x3e8] sm:$0xff]
  %v180 = vld [vmem:[%s2 + $0x3f0] sm:$0xff]
  %v181 = vld [vmem:[%s2 + $0x3f8] sm:$0xff]
  %v182 = vld [vmem:[%s2 + $0x400] sm:$0xff]
  %v183 = vld [vmem:[%s2 + $0x408] sm:$0xff]
  %v184 = vld [vmem:[%s2 + $0x410] sm:$0xff]
  %v185 = vld [vmem:[%s2 + $0x418] sm:$0xff]
  %v186 = vld [vmem:[%s2 + $0x420] sm:$0xff]
  %v187 = vld [vmem:[%s2 + $0x428] sm:$0xff]
  %v188 = vld [vmem:[%s2 + $0x430] sm:$0xff]
  %v189 = vld [vmem:[%s2 + $0x438] sm:$0xff]
  %v190 = vld [vmem:[%s2 + $0x440] sm:$0xff]
  %v191 = vld [vmem:[%s2 + $0x448] sm:$0xff]
  %v192 = vld [vmem:[%s2 + $0x450] sm:$0xff]
  %v193 = vld [vmem:[%s2 + $0x458] sm:$0xff]
  %v194 = vld [vmem:[%s2 + $0x460] sm:$0xff]
  %v195 = vld [vmem:[%s2 + $0x468] sm:$0xff]
  %v196 = vld [vmem:[%s2 + $0x470] sm:$0xff]
  %v197 = vld [vmem:[%s2 + $0x478] sm:$0xff]
  %v198 = vld [vmem:[%s2 + $0x480] sm:$0xff]
  %v199 = vld [vmem:[%s2 + $0x488] sm:$0xff]
  %v200 = vld [vmem:[%s2 + $0x490] sm:$0xff]
  %v201 = vld [vmem:[%s2 + $0x498] sm:$0xff]
  %v202 = vld [vmem:[%s2 + $0x4a0] sm:$0xff]
  %v203 = vld [vmem:[%s2 + $0x4a8] sm:$0xff]
  %v204 = vld [vmem:[%s2 + $0x4b0] sm:$0xff]
  %v205 = vld [vmem:[%s2 + $0x4b8] sm:$0xff]
  %v206 = vld [vmem:[%s2 + $0x4c0] sm:$0xff]
  %v207 = vld [vmem:[%s2 + $0x4c8] sm:$0xff]
  %v208 = vld [vmem:[%s2 + $0x4d0] sm:$0xff]
  %v209 = vld [vmem:[%s2 + $0x4d8] sm:$0xff]
  %v210 = vld [vmem:[%s2 + $0x4e0] sm:$0xff]
  %v211 = vld [vmem:[%s2 + $0x4e8] sm:$0xff]
  %v212 = vld [vmem:[%s2 + $0x4f0] sm:$0xff]
  %v213 = vld [vmem:[%s2 + $0x4f8] sm:$0xff]
  %v214 = vld [vmem:[%s2 + $0x500] sm:$0xff]
  %v215 = vld [vmem:[%s2 + $0x508] sm:$0xff]
  %v216 = vld [vmem:[%s2 + $0x510] sm:$0xff]
  %v217 = vld [vmem:[%s2 + $0x518] sm:$0xff]
  %v218 = vld [vmem:[%s2 + $0x520] sm:$0xff]
  %v219 = vld [vmem:[%s2 + $0x528] sm:$0xff]
  %v220 = vld [vmem:[%s2 + $0x530] sm:$0xff]
  %v221 = vld [vmem:[%s2 + $0x538] sm:$0xff]
  %v222 = vld [vmem:[%s2 + $0x540] sm:$0xff]
  %v223 = vld [vmem:[%s2 + $0x548] sm:$0xff]
  %v224 = vld [vmem:[%s2 + $0x550] sm:$0xff]
  %v225 = vld [vmem:[%s2 + $0x558] sm:$0xff]
  %v226 = vld [vmem:[%s2 + $0x560] sm:$0xff]
  %v227 = vld [vmem:[%s2 + $0x568] sm:$0xff]
  %v228 = vld [vmem:[%s2 + $0x570] sm:$0xff]
  %v229 = vld [vmem:[%s2 + $0x578] sm:$0xff]
  %v230 = vld [vmem:[%s2 + $0x580] sm:$0xff]
  %v231 = vld [vmem:[%s2 + $0x588] sm:$0xff]
  %v232 = vld [vmem:[%s2 + $0x590] sm:$0xff]
  %v233 = vld [vmem:[%s2 + $0x598] sm:$0xff]
  %v234 = vld [vmem:[%s2 + $0x5a0] sm:$0xff]
  %v235 = vld [vmem:[%s2 + $0x5a8] sm:$0xff]
  %v236 = vld [vmem:[%s2 + $0x5b0] sm:$0xff]
  %v237 = vld [vmem:[%s2 + $0x5b8] sm:$0xff]
  %v238 = vld [vmem:[%s2 + $0x5c0] sm:$0xff]
  %v239 = vld [vmem:[%s2 + $0x5c8] sm:$0xff]
  %v240 = vld [vmem:[%s2 + $0x5d0] sm:$0xff]
  %v241 = vld [vmem:[%s2 + $0x5d8] sm:$0xff]
  %v242 = vld [vmem:[%s2 + $0x5e0] sm:$0xff]
  %v243 = vld [vmem:[%s2 + $0x5e8] sm:$0xff]
  %v244 = vld [vmem:[%s2 + $0x5f0] sm:$0xff]
  %v245 = vld [vmem:[%s2 + $0x5f8] sm:$0xff]
  %v246 = vld [vmem:[%s2 + $0x600] sm:$0xff]
  %v247 = vld [vmem:[%s2 + $0x608] sm:$0xff]
  %v248 = vld [vmem:[%s2 + $0x610] sm:$0xff]
  %v249 = vld [vmem:[%s2 + $0x618] sm:$0xff]
  %v250 = vld [vmem:[%s2 + $0x620] sm:$0xff]
  %v251 = vld [vmem:[%s2 + $0x628] sm:$0xff]
  %v252 = vld [vmem:[%s2 + $0x630] sm:$0xff]
  %v253 = vld [vmem:[%s2 + $0x638] sm:$0xff]
  %v254 = vld [vmem:[%s2 + $0x640] sm:$0xff]
  %v255 = vld [vmem:[%s2 + $0x648] sm:$0xff]
  %v256 = vld [vmem:[%s2 + $0x650] sm:$0xff]
  %v257 = vld [vmem:[%s2 + $0x658] sm:$0xff]
  %v258 = vld [vmem:[%s2 + $0x660] sm:$0xff]
  %v259 = vld [vmem:[%s2 + $0x668] sm:$0xff]
  %v260 = vld [vmem:[%s2 + $0x670] sm:$0xff]
  %v261 = vld [vmem:[%s2 + $0x678] sm:$0xff]
  %v262 = vld [vmem:[%s2 + $0x680] sm:$0xff]
  %v263 = vld [vmem:[%s2 + $0x688] sm:$0xff]
  %v264 = vld [vmem:[%s2 + $0x690] sm:$0xff]
  %v265 = vld [vmem:[%s2 + $0x698] sm:$0xff]
  %v266 = vld [vmem:[%s2 + $0x6a0] sm:$0xff]
  %v267 = vld [vmem:[%s2 + $0x6a8] sm:$0xff]
  %v268 = vld [vmem:[%s2 + $0x6b0] sm:$0xff]
  %v269 = vld [vmem:[%s2 + $0x6b8] sm:$0xff]
  %v270 = vld [vmem:[%s2 + $0x6c0] sm:$0xff]
  %v271 = vld [vmem:[%s2 + $0x6c8] sm:$0xff]
  %v272 = vld [vmem:[%s2 + $0x6d0] sm:$0xff]
  %v273 = vld [vmem:[%s2 + $0x6d8] sm:$0xff]
  %v274 = vld [vmem:[%s2 + $0x6e0] sm:$0xff]
  %v275 = vld [vmem:[%s2 + $0x6e8] sm:$0xff]
  %v276 = vld [vmem:[%s2 + $0x6f0] sm:$0xff]
  %v277 = vld [vmem:[%s2 + $0x6f8] sm:$0xff]
  %v278 = vld [vmem:[%s2 + $0x700] sm:$0xff]
  %v279 = vld [vmem:[%s2 + $0x708] sm:$0xff]
  %v280 = vld [vmem:[%s2 + $0x710] sm:$0xff]
  %v281 = vld [vmem:[%s2 + $0x718] sm:$0xff]
  %v282 = vld [vmem:[%s2 + $0x720] sm:$0xff]
  %v283 = vld [vmem:[%s2 + $0x728] sm:$0xff]
  %v284 = vld [vmem:[%s2 + $0x730] sm:$0xff]
  %v285 = vld [vmem:[%s2 + $0x738] sm:$0xff]
  %v286 = vld [vmem:[%s2 + $0x740] sm:$0xff]
  %v287 = vld [vmem:[%s2 + $0x748] sm:$0xff]
  %v288 = vld [vmem:[%s2 + $0x750] sm:$0xff]
  %v289 = vld [vmem:[%s2 + $0x758] sm:$0xff]
  %v290 = vld [vmem:[%s2 + $0x760] sm:$0xff]
  %v291 = vld [vmem:[%s2 + $0x768] sm:$0xff]
  %v292 = vld [vmem:[%s2 + $0x770] sm:$0xff]
  %v293 = vld [vmem:[%s2 + $0x778] sm:$0xff]
  %v294 = vld [vmem:[%s2 + $0x780] sm:$0xff]
  %v295 = vld [vmem:[%s2 + $0x788] sm:$0xff]
  %v296 = vld [vmem:[%s2 + $0x790] sm:$0xff]
  %v297 = vld [vmem:[%s2 + $0x798] sm:$0xff]
  %v298 = vld [vmem:[%s2 + $0x7a0] sm:$0xff]
  %v299 = vld [vmem:[%s2 + $0x7a8] sm:$0xff]
  %v300 = vld [vmem:[%s2 + $0x7b0] sm:$0xff]
  %v301 = vld [vmem:[%s2 + $0x7b8] sm:$0xff]
  %v302 = vld [vmem:[%s2 + $0x7c0] sm:$0xff]
  %v303 = vld [vmem:[%s2 + $0x7c8] sm:$0xff]
  %v304 = vld [vmem:[%s2 + $0x7d0] sm:$0xff]
  %v305 = vld [vmem:[%s2 + $0x7d8] sm:$0xff]
  %v306 = vld [vmem:[%s2 + $0x7e0] sm:$0xff]
  %v307 = vld [vmem:[%s2 + $0x7e8] sm:$0xff]
  %v308 = vld [vmem:[%s2 + $0x7f0] sm:$0xff]
  %v309 = vld [vmem:[%s2 + $0x7f8] sm:$0xff]
  %v310 = vld [vmem:[%s2 + $0x800] sm:$0xff]
  %v311 = vld [vmem:[%s2 + $0x808] sm:$0xff]
  %v312 = vld [vmem:[%s2 + $0x810] sm:$0xff]
  %v313 = vld [vmem:[%s2 + $0x818] sm:$0xff]
  %v314 = vld [vmem:[%s2 + $0x820] sm:$0xff]
  %v315 = vld [vmem:[%s2 + $0x828] sm:$0xff]
  %v316 = vld [vmem:[%s2 + $0x830] sm:$0xff]
  %v317 = vld [vmem:[%s2 + $0x838] sm:$0xff]
  %v318 = vld [vmem:[%s2 + $0x840] sm:$0xff]
  %v319 = vld [vmem:[%s2 + $0x848] sm:$0xff]
  %v320 = vld [vmem:[%s2 + $0x850] sm:$0xff]
  %v321 = vld [vmem:[%s2 + $0x858] sm:$0xff]
  %v322 = vld [vmem:[%s2 + $0x860] sm:$0xff]
  %v323 = vld [vmem:[%s2 + $0x868] sm:$0xff]
  %v324 = vld [vmem:[%s2 + $0x870] sm:$0xff]
  %v325 = vld [vmem:[%s2 + $0x878] sm:$0xff]
  %v326 = vld [vmem:[%s2 + $0x880] sm:$0xff]
  %v327 = vld [vmem:[%s2 + $0x888] sm:$0xff]
  %v328 = vld [vmem:[%s2 + $0x890] sm:$0xff]
  %v329 = vld [vmem:[%s2 + $0x898] sm:$0xff]
  %v330 = vld [vmem:[%s2 + $0x8a0] sm:$0xff]
  %v331 = vld [vmem:[%s2 + $0x8a8] sm:$0xff]
  %v332 = vld [vmem:[%s2 + $0x8b0] sm:$0xff]
  %v333 = vld [vmem:[%s2 + $0x8b8] sm:$0xff]
  %v334 = vld [vmem:[%s2 + $0x8c0] sm:$0xff]
  %v335 = vld [vmem:[%s2 + $0x8c8] sm:$0xff]
  %v336 = vld [vmem:[%s2 + $0x8d0] sm:$0xff]
  %v337 = vld [vmem:[%s2 + $0x8d8] sm:$0xff]
  %v338 = vld [vmem:[%s2 + $0x8e0] sm:$0xff]
  %v339 = vld [vmem:[%s2 + $0x8e8] sm:$0xff]
  %v340 = vld [vmem:[%s2 + $0x8f0] sm:$0xff]
  %v341 = vld [vmem:[%s2 + $0x8f8] sm:$0xff]
  %v342 = vld [vmem:[%s2 + $0x900] sm:$0xff]
  %v343 = vld [vmem:[%s2 + $0x908] sm:$0xff]
  %v344 = vld [vmem:[%s2 + $0x910] sm:$0xff]
  %v345 = vld [vmem:[%s2 + $0x918] sm:$0xff]
  %v346 = vld [vmem:[%s2 + $0x920] sm:$0xff]
  %v347 = vld [vmem:[%s2 + $0x928] sm:$0xff]
  %v348 = vld [vmem:[%s2 + $0x930] sm:$0xff]
  %v349 = vld [vmem:[%s2 + $0x938] sm:$0xff]
  %v350 = vld [vmem:[%s2 + $0x940] sm:$0xff]
  %v351 = vld [vmem:[%s2 + $0x948] sm:$0xff]
  %v352 = vld [vmem:[%s2 + $0x950] sm:$0xff]
  %v353 = vld [vmem:[%s2 + $0x958] sm:$0xff]
  %v354 = vld [vmem:[%s2 + $0x960] sm:$0xff]
  %v355 = vld [vmem:[%s2 + $0x968] sm:$0xff]
  %v356 = vld [vmem:[%s2 + $0x970] sm:$0xff]
  %v357 = vld [vmem:[%s2 + $0x978] sm:$0xff]
  %v358 = vld [vmem:[%s2 + $0x980] sm:$0xff]
  %v359 = vld [vmem:[%s2 + $0x988] sm:$0xff]
  %v360 = vld [vmem:[%s2 + $0x990] sm:$0xff]
  %v361 = vld [vmem:[%s2 + $0x998] sm:$0xff]
  %v362 = vld [vmem:[%s2 + $0x9a0] sm:$0xff]
  %v363 = vld [vmem:[%s2 + $0x9a8] sm:$0xff]
  %v364 = vld [vmem:[%s2 + $0x9b0] sm:$0xff]
  %v365 = vld [vmem:[%s2 + $0x9b8] sm:$0xff]
  %v366 = vld [vmem:[%s2 + $0x9c0] sm:$0xff]
  %v367 = vld [vmem:[%s2 + $0x9c8] sm:$0xff]
  %v368 = vld [vmem:[%s2 + $0x9d0] sm:$0xff]
  %v369 = vld [vmem:[%s2 + $0x9d8] sm:$0xff]
  %v370 = vld [vmem:[%s2 + $0x9e0] sm:$0xff]
  %v371 = vld [vmem:[%s2 + $0x9e8] sm:$0xff]
  %v372 = vld [vmem:[%s2 + $0x9f0] sm:$0xff]
  %v373 = vld [vmem:[%s2 + $0x9f8] sm:$0xff]
  %v374 = vld [vmem:[%s2 + $0xa00] sm:$0xff]
  %v375 = vld [vmem:[%s2 + $0xa08] sm:$0xff]
  %v376 = vld [vmem:[%s2 + $0xa10] sm:$0xff]
  %v377 = vld [vmem:[%s2 + $0xa18] sm:$0xff]
  %v378 = vld [vmem:[%s2 + $0xa20] sm:$0xff]
  %v379 = vld [vmem:[%s2 + $0xa28] sm:$0xff]
  %v380 = vld [vmem:[%s2 + $0xa30] sm:$0xff]
  %v381 = vld [vmem:[%s2 + $0xa38] sm:$0xff]
  %v382 = vld [vmem:[%s2 + $0xa40] sm:$0xff]
  %v383 = vld [vmem:[%s2 + $0xa48] sm:$0xff]
  %v384 = vld [vmem:[%s2 + $0xa50] sm:$0xff]
  %v385 = vld [vmem:[%s2 + $0xa58] sm:$0xff]
  %v386 = vld [vmem:[%s2 + $0xa60] sm:$0xff]
  %v387 = vld [vmem:[%s2 + $0xa68] sm:$0xff]
  %v388 = vld [vmem:[%s2 + $0xa70] sm:$0xff]
  %v389 = vld [vmem:[%s2 + $0xa78] sm:$0xff]
  %v390 = vld [vmem:[%s2 + $0xa80] sm:$0xff]
  %v391 = vld [vmem:[%s2 + $0xa88] sm:$0xff]
  %v392 = vld [vmem:[%s2 + $0xa90] sm:$0xff]
  %v393 = vld [vmem:[%s2 + $0xa98] sm:$0xff]
  %v394 = vld [vmem:[%s2 + $0xaa0] sm:$0xff]
  %v395 = vld [vmem:[%s2 + $0xaa8] sm:$0xff]
  %v396 = vld [vmem:[%s2 + $0xab0] sm:$0xff]
  %v397 = vld [vmem:[%s2 + $0xab8] sm:$0xff]
  %v398 = vld [vmem:[%s2 + $0xac0] sm:$0xff]
  %v399 = vld [vmem:[%s2 + $0xac8] sm:$0xff]
  %v400 = vld [vmem:[%s2 + $0xad0] sm:$0xff]
  %v401 = vld [vmem:[%s2 + $0xad8] sm:$0xff]
  %v402 = vld [vmem:[%s2 + $0xae0] sm:$0xff]
  %v403 = vld [vmem:[%s2 + $0xae8] sm:$0xff]
  %v404 = vld [vmem:[%s2 + $0xaf0] sm:$0xff]
  %v405 = vld [vmem:[%s2 + $0xaf8] sm:$0xff]
  %v406 = vld [vmem:[%s2 + $0xb00] sm:$0xff]
  %v407 = vld [vmem:[%s2 + $0xb08] sm:$0xff]
  %v408 = vld [vmem:[%s2 + $0xb10] sm:$0xff]
  %v409 = vld [vmem:[%s2 + $0xb18] sm:$0xff]
  %v410 = vld [vmem:[%s2 + $0xb20] sm:$0xff]
  %v411 = vld [vmem:[%s2 + $0xb28] sm:$0xff]
  %v412 = vld [vmem:[%s2 + $0xb30] sm:$0xff]
  %v413 = vld [vmem:[%s2 + $0xb38] sm:$0xff]
  %v414 = vld [vmem:[%s2 + $0xb40] sm:$0xff]
  %v415 = vld [vmem:[%s2 + $0xb48] sm:$0xff]
  %v416 = vld [vmem:[%s2 + $0xb50] sm:$0xff]
  %v417 = vld [vmem:[%s2 + $0xb58] sm:$0xff]
  %v418 = vld [vmem:[%s2 + $0xb60] sm:$0xff]
  %v419 = vld [vmem:[%s2 + $0xb68] sm:$0xff]
  %v420 = vld [vmem:[%s2 + $0xb70] sm:$0xff]
  %v421 = vld [vmem:[%s2 + $0xb78] sm:$0xff]
  %v422 = vld [vmem:[%s2 + $0xb80] sm:$0xff]
  %v423 = vld [vmem:[%s2 + $0xb88] sm:$0xff]
  %v424 = vld [vmem:[%s2 + $0xb90] sm:$0xff]
  %v425 = vld [vmem:[%s2 + $0xb98] sm:$0xff]
  %v426 = vld [vmem:[%s2 + $0xba0] sm:$0xff]
  %v427 = vld [vmem:[%s2 + $0xba8] sm:$0xff]
  %v428 = vld [vmem:[%s2 + $0xbb0] sm:$0xff]
  %v429 = vld [vmem:[%s2 + $0xbb8] sm:$0xff]
  %v430 = vld [vmem:[%s2 + $0xbc0] sm:$0xff]
  %v431 = vld [vmem:[%s2 + $0xbc8] sm:$0xff]
  %v432 = vld [vmem:[%s2 + $0xbd0] sm:$0xff]
  %v433 = vld [vmem:[%s2 + $0xbd8] sm:$0xff]
  %v434 = vld [vmem:[%s2 + $0xbe0] sm:$0xff]
  %v435 = vld [vmem:[%s2 + $0xbe8] sm:$0xff]
  %v436 = vld [vmem:[%s2 + $0xbf0] sm:$0xff]
  %v437 = vld [vmem:[%s2 + $0xbf8] sm:$0xff]
  %v438 = vld [vmem:[%s2 + $0xc00] sm:$0xff]
  %v439 = vld [vmem:[%s2 + $0xc08] sm:$0xff]
  %v440 = vld [vmem:[%s2 + $0xc10] sm:$0xff]
  %v441 = vld [vmem:[%s2 + $0xc18] sm:$0xff]
  %v442 = vld [vmem:[%s2 + $0xc20] sm:$0xff]
  %v443 = vld [vmem:[%s2 + $0xc28] sm:$0xff]
  %v444 = vld [vmem:[%s2 + $0xc30] sm:$0xff]
  %v445 = vld [vmem:[%s2 + $0xc38] sm:$0xff]
  %v446 = vld [vmem:[%s2 + $0xc40] sm:$0xff]
  %v447 = vld [vmem:[%s2 + $0xc48] sm:$0xff]
  %v448 = vld [vmem:[%s2 + $0xc50] sm:$0xff]
  %v449 = vld [vmem:[%s2 + $0xc58] sm:$0xff]
  %v450 = vld [vmem:[%s2 + $0xc60] sm:$0xff]
  %v451 = vld [vmem:[%s2 + $0xc68] sm:$0xff]
  %v452 = vld [vmem:[%s2 + $0xc70] sm:$0xff]
  %v453 = vld [vmem:[%s2 + $0xc78] sm:$0xff]
  %v454 = vld [vmem:[%s2 + $0xc80] sm:$0xff]
  %v455 = vld [vmem:[%s2 + $0xc88] sm:$0xff]
  %v456 = vld [vmem:[%s2 + $0xc90] sm:$0xff]
  %v457 = vld [vmem:[%s2 + $0xc98] sm:$0xff]
  %v458 = vld [vmem:[%s2 + $0xca0] sm:$0xff]
  %v459 = vld [vmem:[%s2 + $0xca8] sm:$0xff]
  %v460 = vld [vmem:[%s2 + $0xcb0] sm:$0xff]
  %v461 = vld [vmem:[%s2 + $0xcb8] sm:$0xff]
  %v462 = vld [vmem:[%s2 + $0xcc0] sm:$0xff]
  %v463 = vld [vmem:[%s2 + $0xcc8] sm:$0xff]
  %v464 = vld [vmem:[%s2 + $0xcd0] sm:$0xff]
  %v465 = vld [vmem:[%s2 + $0xcd8] sm:$0xff]
  %v466 = vld [vmem:[%s2 + $0xce0] sm:$0xff]
  %v467 = vld [vmem:[%s2 + $0xce8] sm:$0xff]
  %v468 = vld [vmem:[%s2 + $0xcf0] sm:$0xff]
  %v469 = vld [vmem:[%s2 + $0xcf8] sm:$0xff]
  %v470 = vld [vmem:[%s2 + $0xd00] sm:$0xff]
  %v471 = vld [vmem:[%s2 + $0xd08] sm:$0xff]
  %v472 = vld [vmem:[%s2 + $0xd10] sm:$0xff]
  %v473 = vld [vmem:[%s2 + $0xd18] sm:$0xff]
  %v474 = vld [vmem:[%s2 + $0xd20] sm:$0xff]
  %v475 = vld [vmem:[%s2 + $0xd28] sm:$0xff]
  %v476 = vld [vmem:[%s2 + $0xd30] sm:$0xff]
  %v477 = vld [vmem:[%s2 + $0xd38] sm:$0xff]
  %v478 = vld [vmem:[%s2 + $0xd40] sm:$0xff]
  %v479 = vld [vmem:[%s2 + $0xd48] sm:$0xff]
  %v480 = vld [vmem:[%s2 + $0xd50] sm:$0xff]
  %v481 = vld [vmem:[%s2 + $0xd58] sm:$0xff]
  %v482 = vld [vmem:[%s2 + $0xd60] sm:$0xff]
  %v483 = vld [vmem:[%s2 + $0xd68] sm:$0xff]
  %v484 = vld [vmem:[%s2 + $0xd70] sm:$0xff]
  %v485 = vld [vmem:[%s2 + $0xd78] sm:$0xff]
  %v486 = vld [vmem:[%s2 + $0xd80] sm:$0xff]
  %v487 = vld [vmem:[%s2 + $0xd88] sm:$0xff]
  %v488 = vld [vmem:[%s2 + $0xd90] sm:$0xff]
  %v489 = vld [vmem:[%s2 + $0xd98] sm:$0xff]
  %v490 = vld [vmem:[%s2 + $0xda0] sm:$0xff]
  %v491 = vld [vmem:[%s2 + $0xda8] sm:$0xff]
  %v492 = vld [vmem:[%s2 + $0xdb0] sm:$0xff]
  %v493 = vld [vmem:[%s2 + $0xdb8] sm:$0xff]
  %v494 = vld [vmem:[%s2 + $0xdc0] sm:$0xff]
  %v495 = vld [vmem:[%s2 + $0xdc8] sm:$0xff]
  %v496 = vld [vmem:[%s2 + $0xdd0] sm:$0xff]
  %v497 = vld [vmem:[%s2 + $0xdd8] sm:$0xff]
  %v498 = vld [vmem:[%s2 + $0xde0] sm:$0xff]
  %v499 = vld [vmem:[%s2 + $0xde8] sm:$0xff]
  %v500 = vld [vmem:[%s2 + $0xdf0] sm:$0xff]
  %v501 = vld [vmem:[%s2 + $0xdf8] sm:$0xff]
  %v502 = vld [vmem:[%s3] sm:$0xff]
  %v504 = vlaneseq
  %v505 = vshrl.u32 %v504, 7
  %v506 = vsub.s32 0, %v505
  %v507 = vrot.slane %v502, %v506
  %v508 = vlaneseq
  %v509 = vshrl.u32 %v508, 7
  %v510 = vsub.s32 1, %v509
  %v511 = vrot.slane %v502, %v510
  %v512 = vlaneseq
  %v513 = vshrl.u32 %v512, 7
  %v514 = vsub.s32 2, %v513
  %v515 = vrot.slane %v502, %v514
  %v516 = vlaneseq
  %v517 = vshrl.u32 %v516, 7
  %v518 = vsub.s32 3, %v517
  %v519 = vrot.slane %v502, %v518
  %v520 = vlaneseq
  %v521 = vshrl.u32 %v520, 7
  %v522 = vsub.s32 4, %v521
  %v523 = vrot.slane %v502, %v522
  %v524 = vlaneseq
  %v525 = vshrl.u32 %v524, 7
  %v526 = vsub.s32 5, %v525
  %v527 = vrot.slane %v502, %v526
  %v528 = vlaneseq
  %v529 = vshrl.u32 %v528, 7
  %v530 = vsub.s32 6, %v529
  %v531 = vrot.slane %v502, %v530
  %v532 = vlaneseq
  %v533 = vshrl.u32 %v532, 7
  %v534 = vsub.s32 7, %v533
  %v535 = vrot.slane %v502, %v534
  %v548 = vunpack.c.l.b16 %v50
  %v549 = vunpack.c.h.b16 %v50
  %v550 = vunpack.c.l.b16 %v51
  %v551 = vunpack.c.h.b16 %v51
  %v552 = vunpack.c.l.b16 %v52
  %v553 = vunpack.c.h.b16 %v52
  %v554 = vunpack.c.l.b16 %v53
  %v555 = vpack.c.b16 %v548, %v548
  %v556 = vpack.c.b16 %v549, %v549
  %v557 = vpack.c.b16 %v550, %v550
  %v558 = vpack.c.b16 %v551, %v551
  %v559 = vpack.c.b16 %v552, %v552
  %v560 = vpack.c.b16 %v553, %v553
  %v561 = vpack.c.b16 %v554, %v554
  %v1017 = vunpack.c.l.b16 %v54
  %v1018 = vunpack.c.h.b16 %v54
  %v1019 = vunpack.c.l.b16 %v55
  %v1020 = vunpack.c.h.b16 %v55
  %v1021 = vunpack.c.l.b16 %v56
  %v1022 = vunpack.c.h.b16 %v56
  %v1023 = vunpack.c.l.b16 %v57
  %v1024 = vunpack.c.h.b16 %v57
  %v1025 = vunpack.c.l.b16 %v58
  %v1026 = vunpack.c.h.b16 %v58
  %v1027 = vunpack.c.l.b16 %v59
  %v1028 = vunpack.c.h.b16 %v59
  %v1029 = vunpack.c.l.b16 %v60
  %v1030 = vunpack.c.h.b16 %v60
  %v1031 = vunpack.c.l.b16 %v61
  %v1032 = vunpack.c.h.b16 %v61
  %v1033 = vunpack.c.l.b16 %v62
  %v1034 = vunpack.c.h.b16 %v62
  %v1035 = vunpack.c.l.b16 %v63
  %v1036 = vunpack.c.h.b16 %v63
  %v1037 = vunpack.c.l.b16 %v64
  %v1038 = vunpack.c.h.b16 %v64
  %v1039 = vunpack.c.l.b16 %v65
  %v1040 = vunpack.c.h.b16 %v65
  %v1041 = vunpack.c.l.b16 %v66
  %v1042 = vunpack.c.h.b16 %v66
  %v1043 = vunpack.c.l.b16 %v67
  %v1044 = vunpack.c.h.b16 %v67
  %v1045 = vunpack.c.l.b16 %v68
  %v1046 = vunpack.c.h.b16 %v68
  %v1047 = vunpack.c.l.b16 %v69
  %v1048 = vunpack.c.h.b16 %v69
  %v1049 = vunpack.c.l.b16 %v70
  %v1050 = vunpack.c.h.b16 %v70
  %v1051 = vunpack.c.l.b16 %v71
  %v1052 = vunpack.c.h.b16 %v71
  %v1053 = vunpack.c.l.b16 %v72
  %v1054 = vunpack.c.h.b16 %v72
  %v1055 = vunpack.c.l.b16 %v73
  %v1056 = vunpack.c.h.b16 %v73
  %v1057 = vunpack.c.l.b16 %v74
  %v1058 = vunpack.c.h.b16 %v74
  %v1059 = vunpack.c.l.b16 %v75
  %v1060 = vunpack.c.h.b16 %v75
  %v1061 = vunpack.c.l.b16 %v76
  %v1062 = vunpack.c.h.b16 %v76
  %v1063 = vunpack.c.l.b16 %v77
  %v1064 = vunpack.c.h.b16 %v77
  %v1065 = vunpack.c.l.b16 %v78
  %v1066 = vunpack.c.h.b16 %v78
  %v1067 = vunpack.c.l.b16 %v79
  %v1068 = vunpack.c.h.b16 %v79
  %v1069 = vunpack.c.l.b16 %v80
  %v1070 = vunpack.c.h.b16 %v80
  %v1071 = vunpack.c.l.b16 %v81
  %v1072 = vunpack.c.h.b16 %v81
  %v1073 = vunpack.c.l.b16 %v82
  %v1074 = vunpack.c.h.b16 %v82
  %v1075 = vunpack.c.l.b16 %v83
  %v1076 = vunpack.c.h.b16 %v83
  %v1077 = vunpack.c.l.b16 %v84
  %v1078 = vunpack.c.h.b16 %v84
  %v1079 = vunpack.c.l.b16 %v85
  %v1080 = vunpack.c.h.b16 %v85
  %v1081 = vunpack.c.l.b16 %v86
  %v1082 = vunpack.c.h.b16 %v86
  %v1083 = vunpack.c.l.b16 %v87
  %v1084 = vunpack.c.h.b16 %v87
  %v1085 = vunpack.c.l.b16 %v88
  %v1086 = vunpack.c.h.b16 %v88
  %v1087 = vunpack.c.l.b16 %v89
  %v1088 = vunpack.c.h.b16 %v89
  %v1089 = vunpack.c.l.b16 %v90
  %v1090 = vunpack.c.h.b16 %v90
  %v1091 = vunpack.c.l.b16 %v91
  %v1092 = vunpack.c.h.b16 %v91
  %v1093 = vunpack.c.l.b16 %v92
  %v1094 = vunpack.c.h.b16 %v92
  %v1095 = vunpack.c.l.b16 %v93
  %v1096 = vunpack.c.h.b16 %v93
  %v1097 = vunpack.c.l.b16 %v94
  %v1098 = vunpack.c.h.b16 %v94
  %v1099 = vunpack.c.l.b16 %v95
  %v1100 = vunpack.c.h.b16 %v95
  %v1101 = vunpack.c.l.b16 %v96
  %v1102 = vunpack.c.h.b16 %v96
  %v1103 = vunpack.c.l.b16 %v97
  %v1104 = vunpack.c.h.b16 %v97
  %v1105 = vunpack.c.l.b16 %v98
  %v1106 = vunpack.c.h.b16 %v98
  %v1107 = vunpack.c.l.b16 %v99
  %v1108 = vunpack.c.h.b16 %v99
  %v1109 = vunpack.c.l.b16 %v100
  %v1110 = vunpack.c.h.b16 %v100
  %v1111 = vunpack.c.l.b16 %v101
  %v1112 = vunpack.c.h.b16 %v101
  %v1113 = vunpack.c.l.b16 %v102
  %v1114 = vunpack.c.h.b16 %v102
  %v1115 = vunpack.c.l.b16 %v103
  %v1116 = vunpack.c.h.b16 %v103
  %v1117 = vunpack.c.l.b16 %v104
  %v1118 = vunpack.c.h.b16 %v104
  %v1119 = vunpack.c.l.b16 %v105
  %v1120 = vunpack.c.h.b16 %v105
  %v1121 = vunpack.c.l.b16 %v106
  %v1122 = vunpack.c.h.b16 %v106
  %v1123 = vunpack.c.l.b16 %v107
  %v1124 = vunpack.c.h.b16 %v107
  %v1125 = vunpack.c.l.b16 %v108
  %v1126 = vunpack.c.h.b16 %v108
  %v1127 = vunpack.c.l.b16 %v109
  %v1128 = vunpack.c.h.b16 %v109
  %v1129 = vunpack.c.l.b16 %v110
  %v1130 = vunpack.c.h.b16 %v110
  %v1131 = vunpack.c.l.b16 %v111
  %v1132 = vunpack.c.h.b16 %v111
  %v1133 = vunpack.c.l.b16 %v112
  %v1134 = vunpack.c.h.b16 %v112
  %v1135 = vunpack.c.l.b16 %v113
  %v1136 = vunpack.c.h.b16 %v113
  %v1137 = vunpack.c.l.b16 %v114
  %v1138 = vunpack.c.h.b16 %v114
  %v1139 = vunpack.c.l.b16 %v115
  %v1140 = vunpack.c.h.b16 %v115
  %v1141 = vunpack.c.l.b16 %v116
  %v1142 = vunpack.c.h.b16 %v116
  %v1143 = vunpack.c.l.b16 %v117
  %v1144 = vunpack.c.h.b16 %v117
  %v1145 = vunpack.c.l.b16 %v118
  %v1146 = vunpack.c.h.b16 %v118
  %v1147 = vunpack.c.l.b16 %v119
  %v1148 = vunpack.c.h.b16 %v119
  %v1149 = vunpack.c.l.b16 %v120
  %v1150 = vunpack.c.h.b16 %v120
  %v1151 = vunpack.c.l.b16 %v121
  %v1152 = vunpack.c.h.b16 %v121
  %v1153 = vunpack.c.l.b16 %v122
  %v1154 = vunpack.c.h.b16 %v122
  %v1155 = vunpack.c.l.b16 %v123
  %v1156 = vunpack.c.h.b16 %v123
  %v1157 = vunpack.c.l.b16 %v124
  %v1158 = vunpack.c.h.b16 %v124
  %v1159 = vunpack.c.l.b16 %v125
  %v1160 = vunpack.c.h.b16 %v125
  %v1161 = vunpack.c.l.b16 %v126
  %v1162 = vunpack.c.h.b16 %v126
  %v1163 = vunpack.c.l.b16 %v127
  %v1164 = vunpack.c.h.b16 %v127
  %v1165 = vunpack.c.l.b16 %v128
  %v1166 = vunpack.c.h.b16 %v128
  %v1167 = vunpack.c.l.b16 %v129
  %v1168 = vunpack.c.h.b16 %v129
  %v1169 = vunpack.c.l.b16 %v130
  %v1170 = vunpack.c.h.b16 %v130
  %v1171 = vunpack.c.l.b16 %v131
  %v1172 = vunpack.c.h.b16 %v131
  %v1173 = vunpack.c.l.b16 %v132
  %v1174 = vunpack.c.h.b16 %v132
  %v1175 = vunpack.c.l.b16 %v133
  %v1176 = vunpack.c.h.b16 %v133
  %v1177 = vunpack.c.l.b16 %v134
  %v1178 = vunpack.c.h.b16 %v134
  %v1179 = vunpack.c.l.b16 %v135
  %v1180 = vunpack.c.h.b16 %v135
  %v1181 = vunpack.c.l.b16 %v136
  %v1182 = vunpack.c.h.b16 %v136
  %v1183 = vunpack.c.l.b16 %v137
  %v1184 = vunpack.c.h.b16 %v137
  %v1185 = vunpack.c.l.b16 %v138
  %v1186 = vunpack.c.h.b16 %v138
  %v1187 = vunpack.c.l.b16 %v139
  %v1188 = vunpack.c.h.b16 %v139
  %v1189 = vunpack.c.l.b16 %v140
  %v1190 = vunpack.c.h.b16 %v140
  %v1191 = vunpack.c.l.b16 %v141
  %v1192 = vunpack.c.h.b16 %v141
  %v1193 = vunpack.c.l.b16 %v142
  %v1194 = vunpack.c.h.b16 %v142
  %v1195 = vunpack.c.l.b16 %v143
  %v1196 = vunpack.c.h.b16 %v143
  %v1197 = vunpack.c.l.b16 %v144
  %v1198 = vunpack.c.h.b16 %v144
  %v1199 = vunpack.c.l.b16 %v145
  %v1200 = vunpack.c.h.b16 %v145
  %v1201 = vunpack.c.l.b16 %v146
  %v1202 = vunpack.c.h.b16 %v146
  %v1203 = vunpack.c.l.b16 %v147
  %v1204 = vunpack.c.h.b16 %v147
  %v1205 = vunpack.c.l.b16 %v148
  %v1206 = vunpack.c.h.b16 %v148
  %v1207 = vunpack.c.l.b16 %v149
  %v1208 = vunpack.c.h.b16 %v149
  %v1209 = vunpack.c.l.b16 %v150
  %v1210 = vunpack.c.h.b16 %v150
  %v1211 = vunpack.c.l.b16 %v151
  %v1212 = vunpack.c.h.b16 %v151
  %v1213 = vunpack.c.l.b16 %v152
  %v1214 = vunpack.c.h.b16 %v152
  %v1215 = vunpack.c.l.b16 %v153
  %v1216 = vunpack.c.h.b16 %v153
  %v1217 = vunpack.c.l.b16 %v154
  %v1218 = vunpack.c.h.b16 %v154
  %v1219 = vunpack.c.l.b16 %v155
  %v1220 = vunpack.c.h.b16 %v155
  %v1221 = vunpack.c.l.b16 %v156
  %v1222 = vunpack.c.h.b16 %v156
  %v1223 = vunpack.c.l.b16 %v157
  %v1224 = vunpack.c.h.b16 %v157
  %v1225 = vunpack.c.l.b16 %v158
  %v1226 = vunpack.c.h.b16 %v158
  %v1227 = vunpack.c.l.b16 %v159
  %v1228 = vunpack.c.h.b16 %v159
  %v1229 = vunpack.c.l.b16 %v160
  %v1230 = vunpack.c.h.b16 %v160
  %v1231 = vunpack.c.l.b16 %v161
  %v1232 = vunpack.c.h.b16 %v161
  %v1233 = vunpack.c.l.b16 %v162
  %v1234 = vunpack.c.h.b16 %v162
  %v1235 = vunpack.c.l.b16 %v163
  %v1236 = vunpack.c.h.b16 %v163
  %v1237 = vunpack.c.l.b16 %v164
  %v1238 = vunpack.c.h.b16 %v164
  %v1239 = vunpack.c.l.b16 %v165
  %v1240 = vunpack.c.h.b16 %v165
  %v1241 = vunpack.c.l.b16 %v166
  %v1242 = vunpack.c.h.b16 %v166
  %v1243 = vunpack.c.l.b16 %v167
  %v1244 = vunpack.c.h.b16 %v167
  %v1245 = vunpack.c.l.b16 %v168
  %v1246 = vunpack.c.h.b16 %v168
  %v1247 = vunpack.c.l.b16 %v169
  %v1248 = vunpack.c.h.b16 %v169
  %v1249 = vunpack.c.l.b16 %v170
  %v1250 = vunpack.c.h.b16 %v170
  %v1251 = vunpack.c.l.b16 %v171
  %v1252 = vunpack.c.h.b16 %v171
  %v1253 = vunpack.c.l.b16 %v172
  %v1254 = vunpack.c.h.b16 %v172
  %v1255 = vunpack.c.l.b16 %v173
  %v1256 = vunpack.c.h.b16 %v173
  %v1257 = vunpack.c.l.b16 %v174
  %v1258 = vunpack.c.h.b16 %v174
  %v1259 = vunpack.c.l.b16 %v175
  %v1260 = vunpack.c.h.b16 %v175
  %v1261 = vunpack.c.l.b16 %v176
  %v1262 = vunpack.c.h.b16 %v176
  %v1263 = vunpack.c.l.b16 %v177
  %v1264 = vunpack.c.h.b16 %v177
  %v1265 = vunpack.c.l.b16 %v178
  %v1266 = vunpack.c.h.b16 %v178
  %v1267 = vunpack.c.l.b16 %v179
  %v1268 = vunpack.c.h.b16 %v179
  %v1269 = vunpack.c.l.b16 %v180
  %v1270 = vunpack.c.h.b16 %v180
  %v1271 = vunpack.c.l.b16 %v181
  %v1272 = vunpack.c.h.b16 %v181
  %v1273 = vunpack.c.l.b16 %v182
  %v1274 = vunpack.c.h.b16 %v182
  %v1275 = vunpack.c.l.b16 %v183
  %v1276 = vunpack.c.h.b16 %v183
  %v1277 = vunpack.c.l.b16 %v184
  %v1278 = vunpack.c.h.b16 %v184
  %v1279 = vunpack.c.l.b16 %v185
  %v1280 = vunpack.c.h.b16 %v185
  %v1281 = vunpack.c.l.b16 %v186
  %v1282 = vunpack.c.h.b16 %v186
  %v1283 = vunpack.c.l.b16 %v187
  %v1284 = vunpack.c.h.b16 %v187
  %v1285 = vunpack.c.l.b16 %v188
  %v1286 = vunpack.c.h.b16 %v188
  %v1287 = vunpack.c.l.b16 %v189
  %v1288 = vunpack.c.h.b16 %v189
  %v1289 = vunpack.c.l.b16 %v190
  %v1290 = vunpack.c.h.b16 %v190
  %v1291 = vunpack.c.l.b16 %v191
  %v1292 = vunpack.c.h.b16 %v191
  %v1293 = vunpack.c.l.b16 %v192
  %v1294 = vunpack.c.h.b16 %v192
  %v1295 = vunpack.c.l.b16 %v193
  %v1296 = vunpack.c.h.b16 %v193
  %v1297 = vunpack.c.l.b16 %v194
  %v1298 = vunpack.c.h.b16 %v194
  %v1299 = vunpack.c.l.b16 %v195
  %v1300 = vunpack.c.h.b16 %v195
  %v1301 = vunpack.c.l.b16 %v196
  %v1302 = vunpack.c.h.b16 %v196
  %v1303 = vunpack.c.l.b16 %v197
  %v1304 = vunpack.c.h.b16 %v197
  %v1305 = vunpack.c.l.b16 %v198
  %v1306 = vunpack.c.h.b16 %v198
  %v1307 = vunpack.c.l.b16 %v199
  %v1308 = vunpack.c.h.b16 %v199
  %v1309 = vunpack.c.l.b16 %v200
  %v1310 = vunpack.c.h.b16 %v200
  %v1311 = vunpack.c.l.b16 %v201
  %v1312 = vunpack.c.h.b16 %v201
  %v1313 = vunpack.c.l.b16 %v202
  %v1314 = vunpack.c.h.b16 %v202
  %v1315 = vunpack.c.l.b16 %v203
  %v1316 = vunpack.c.h.b16 %v203
  %v1317 = vunpack.c.l.b16 %v204
  %v1318 = vunpack.c.h.b16 %v204
  %v1319 = vunpack.c.l.b16 %v205
  %v1320 = vunpack.c.h.b16 %v205
  %v1321 = vunpack.c.l.b16 %v206
  %v1322 = vunpack.c.h.b16 %v206
  %v1323 = vunpack.c.l.b16 %v207
  %v1324 = vunpack.c.h.b16 %v207
  %v1325 = vunpack.c.l.b16 %v208
  %v1326 = vunpack.c.h.b16 %v208
  %v1327 = vunpack.c.l.b16 %v209
  %v1328 = vunpack.c.h.b16 %v209
  %v1329 = vunpack.c.l.b16 %v210
  %v1330 = vunpack.c.h.b16 %v210
  %v1331 = vunpack.c.l.b16 %v211
  %v1332 = vunpack.c.h.b16 %v211
  %v1333 = vunpack.c.l.b16 %v212
  %v1334 = vunpack.c.h.b16 %v212
  %v1335 = vunpack.c.l.b16 %v213
  %v1336 = vunpack.c.h.b16 %v213
  %v1337 = vunpack.c.l.b16 %v214
  %v1338 = vunpack.c.h.b16 %v214
  %v1339 = vunpack.c.l.b16 %v215
  %v1340 = vunpack.c.h.b16 %v215
  %v1341 = vunpack.c.l.b16 %v216
  %v1342 = vunpack.c.h.b16 %v216
  %v1343 = vunpack.c.l.b16 %v217
  %v1344 = vunpack.c.h.b16 %v217
  %v1345 = vunpack.c.l.b16 %v218
  %v1346 = vunpack.c.h.b16 %v218
  %v1347 = vunpack.c.l.b16 %v219
  %v1348 = vunpack.c.h.b16 %v219
  %v1349 = vunpack.c.l.b16 %v220
  %v1350 = vunpack.c.h.b16 %v220
  %v1351 = vunpack.c.l.b16 %v221
  %v1352 = vunpack.c.h.b16 %v221
  %v1353 = vunpack.c.l.b16 %v222
  %v1354 = vunpack.c.h.b16 %v222
  %v1355 = vunpack.c.l.b16 %v223
  %v1356 = vunpack.c.h.b16 %v223
  %v1357 = vunpack.c.l.b16 %v224
  %v1358 = vunpack.c.h.b16 %v224
  %v1359 = vunpack.c.l.b16 %v225
  %v1360 = vunpack.c.h.b16 %v225
  %v1361 = vunpack.c.l.b16 %v226
  %v1362 = vunpack.c.h.b16 %v226
  %v1363 = vunpack.c.l.b16 %v227
  %v1364 = vunpack.c.h.b16 %v227
  %v1365 = vunpack.c.l.b16 %v228
  %v1366 = vunpack.c.h.b16 %v228
  %v1367 = vunpack.c.l.b16 %v229
  %v1368 = vunpack.c.h.b16 %v229
  %v1369 = vunpack.c.l.b16 %v230
  %v1370 = vunpack.c.h.b16 %v230
  %v1371 = vunpack.c.l.b16 %v231
  %v1372 = vunpack.c.h.b16 %v231
  %v1373 = vunpack.c.l.b16 %v232
  %v1374 = vunpack.c.h.b16 %v232
  %v1375 = vunpack.c.l.b16 %v233
  %v1376 = vunpack.c.h.b16 %v233
  %v1377 = vunpack.c.l.b16 %v234
  %v1378 = vunpack.c.h.b16 %v234
  %v1379 = vunpack.c.l.b16 %v235
  %v1380 = vunpack.c.h.b16 %v235
  %v1381 = vunpack.c.l.b16 %v236
  %v1382 = vunpack.c.h.b16 %v236
  %v1383 = vunpack.c.l.b16 %v237
  %v1384 = vunpack.c.h.b16 %v237
  %v1385 = vunpack.c.l.b16 %v238
  %v1386 = vunpack.c.h.b16 %v238
  %v1387 = vunpack.c.l.b16 %v239
  %v1388 = vunpack.c.h.b16 %v239
  %v1389 = vunpack.c.l.b16 %v240
  %v1390 = vunpack.c.h.b16 %v240
  %v1391 = vunpack.c.l.b16 %v241
  %v1392 = vunpack.c.h.b16 %v241
  %v1393 = vunpack.c.l.b16 %v242
  %v1394 = vunpack.c.h.b16 %v242
  %v1395 = vunpack.c.l.b16 %v243
  %v1396 = vunpack.c.h.b16 %v243
  %v1397 = vunpack.c.l.b16 %v244
  %v1398 = vunpack.c.h.b16 %v244
  %v1399 = vunpack.c.l.b16 %v245
  %v1400 = vunpack.c.h.b16 %v245
  %v1401 = vunpack.c.l.b16 %v246
  %v1402 = vunpack.c.h.b16 %v246
  %v1403 = vunpack.c.l.b16 %v247
  %v1404 = vunpack.c.h.b16 %v247
  %v1405 = vunpack.c.l.b16 %v248
  %v1406 = vunpack.c.h.b16 %v248
  %v1407 = vunpack.c.l.b16 %v249
  %v1408 = vunpack.c.h.b16 %v249
  %v1409 = vunpack.c.l.b16 %v250
  %v1410 = vunpack.c.h.b16 %v250
  %v1411 = vunpack.c.l.b16 %v251
  %v1412 = vunpack.c.h.b16 %v251
  %v1413 = vunpack.c.l.b16 %v252
  %v1414 = vunpack.c.h.b16 %v252
  %v1415 = vunpack.c.l.b16 %v253
  %v1416 = vunpack.c.h.b16 %v253
  %v1417 = vunpack.c.l.b16 %v254
  %v1418 = vunpack.c.h.b16 %v254
  %v1419 = vunpack.c.l.b16 %v255
  %v1420 = vunpack.c.h.b16 %v255
  %v1421 = vunpack.c.l.b16 %v256
  %v1422 = vunpack.c.h.b16 %v256
  %v1423 = vunpack.c.l.b16 %v257
  %v1424 = vunpack.c.h.b16 %v257
  %v1425 = vunpack.c.l.b16 %v258
  %v1426 = vunpack.c.h.b16 %v258
  %v1427 = vunpack.c.l.b16 %v259
  %v1428 = vunpack.c.h.b16 %v259
  %v1429 = vunpack.c.l.b16 %v260
  %v1430 = vunpack.c.h.b16 %v260
  %v1431 = vunpack.c.l.b16 %v261
  %v1432 = vunpack.c.h.b16 %v261
  %v1433 = vunpack.c.l.b16 %v262
  %v1434 = vunpack.c.h.b16 %v262
  %v1435 = vunpack.c.l.b16 %v263
  %v1436 = vunpack.c.h.b16 %v263
  %v1437 = vunpack.c.l.b16 %v264
  %v1438 = vunpack.c.h.b16 %v264
  %v1439 = vunpack.c.l.b16 %v265
  %v1440 = vunpack.c.h.b16 %v265
  %v1441 = vunpack.c.l.b16 %v266
  %v1442 = vunpack.c.h.b16 %v266
  %v1443 = vunpack.c.l.b16 %v267
  %v1444 = vunpack.c.h.b16 %v267
  %v1445 = vunpack.c.l.b16 %v268
  %v1446 = vunpack.c.h.b16 %v268
  %v1447 = vunpack.c.l.b16 %v269
  %v1448 = vunpack.c.h.b16 %v269
  %v1449 = vunpack.c.l.b16 %v270
  %v1450 = vunpack.c.h.b16 %v270
  %v1451 = vunpack.c.l.b16 %v271
  %v1452 = vunpack.c.h.b16 %v271
  %v1453 = vunpack.c.l.b16 %v272
  %v1454 = vunpack.c.h.b16 %v272
  %v1455 = vunpack.c.l.b16 %v273
  %v1456 = vunpack.c.h.b16 %v273
  %v1457 = vunpack.c.l.b16 %v274
  %v1458 = vunpack.c.h.b16 %v274
  %v1459 = vunpack.c.l.b16 %v275
  %v1460 = vunpack.c.h.b16 %v275
  %v1461 = vunpack.c.l.b16 %v276
  %v1462 = vunpack.c.h.b16 %v276
  %v1463 = vunpack.c.l.b16 %v277
  %v1464 = vunpack.c.h.b16 %v277
  %v1465 = vunpack.c.l.b16 %v278
  %v1466 = vunpack.c.h.b16 %v278
  %v1467 = vunpack.c.l.b16 %v279
  %v1468 = vunpack.c.h.b16 %v279
  %v1469 = vunpack.c.l.b16 %v280
  %v1470 = vunpack.c.h.b16 %v280
  %v1471 = vunpack.c.l.b16 %v281
  %v1472 = vunpack.c.h.b16 %v281
  %v1473 = vunpack.c.l.b16 %v282
  %v1474 = vunpack.c.h.b16 %v282
  %v1475 = vunpack.c.l.b16 %v283
  %v1476 = vunpack.c.h.b16 %v283
  %v1477 = vunpack.c.l.b16 %v284
  %v1478 = vunpack.c.h.b16 %v284
  %v1479 = vunpack.c.l.b16 %v285
  %v1480 = vunpack.c.h.b16 %v285
  %v1481 = vunpack.c.l.b16 %v286
  %v1482 = vunpack.c.h.b16 %v286
  %v1483 = vunpack.c.l.b16 %v287
  %v1484 = vunpack.c.h.b16 %v287
  %v1485 = vunpack.c.l.b16 %v288
  %v1486 = vunpack.c.h.b16 %v288
  %v1487 = vunpack.c.l.b16 %v289
  %v1488 = vunpack.c.h.b16 %v289
  %v1489 = vunpack.c.l.b16 %v290
  %v1490 = vunpack.c.h.b16 %v290
  %v1491 = vunpack.c.l.b16 %v291
  %v1492 = vunpack.c.h.b16 %v291
  %v1493 = vunpack.c.l.b16 %v292
  %v1494 = vunpack.c.h.b16 %v292
  %v1495 = vunpack.c.l.b16 %v293
  %v1496 = vunpack.c.h.b16 %v293
  %v1497 = vunpack.c.l.b16 %v294
  %v1498 = vunpack.c.h.b16 %v294
  %v1499 = vunpack.c.l.b16 %v295
  %v1500 = vunpack.c.h.b16 %v295
  %v1501 = vunpack.c.l.b16 %v296
  %v1502 = vunpack.c.h.b16 %v296
  %v1503 = vunpack.c.l.b16 %v297
  %v1504 = vunpack.c.h.b16 %v297
  %v1505 = vunpack.c.l.b16 %v298
  %v1506 = vunpack.c.h.b16 %v298
  %v1507 = vunpack.c.l.b16 %v299
  %v1508 = vunpack.c.h.b16 %v299
  %v1509 = vunpack.c.l.b16 %v300
  %v1510 = vunpack.c.h.b16 %v300
  %v1511 = vunpack.c.l.b16 %v301
  %v1512 = vunpack.c.h.b16 %v301
  %v1513 = vunpack.c.l.b16 %v302
  %v1514 = vunpack.c.h.b16 %v302
  %v1515 = vunpack.c.l.b16 %v303
  %v1516 = vunpack.c.h.b16 %v303
  %v1517 = vunpack.c.l.b16 %v304
  %v1518 = vunpack.c.h.b16 %v304
  %v1519 = vunpack.c.l.b16 %v305
  %v1520 = vunpack.c.h.b16 %v305
  %v1521 = vunpack.c.l.b16 %v306
  %v1522 = vunpack.c.h.b16 %v306
  %v1523 = vunpack.c.l.b16 %v307
  %v1524 = vunpack.c.h.b16 %v307
  %v1525 = vunpack.c.l.b16 %v308
  %v1526 = vunpack.c.h.b16 %v308
  %v1527 = vunpack.c.l.b16 %v309
  %v1528 = vunpack.c.h.b16 %v309
  %v1529 = vunpack.c.l.b16 %v310
  %v1530 = vunpack.c.h.b16 %v310
  %v1531 = vunpack.c.l.b16 %v311
  %v1532 = vunpack.c.h.b16 %v311
  %v1533 = vunpack.c.l.b16 %v312
  %v1534 = vunpack.c.h.b16 %v312
  %v1535 = vunpack.c.l.b16 %v313
  %v1536 = vunpack.c.h.b16 %v313
  %v1537 = vunpack.c.l.b16 %v314
  %v1538 = vunpack.c.h.b16 %v314
  %v1539 = vunpack.c.l.b16 %v315
  %v1540 = vunpack.c.h.b16 %v315
  %v1541 = vunpack.c.l.b16 %v316
  %v1542 = vunpack.c.h.b16 %v316
  %v1543 = vunpack.c.l.b16 %v317
  %v1544 = vunpack.c.h.b16 %v317
  %v1545 = vunpack.c.l.b16 %v318
  %v1546 = vunpack.c.h.b16 %v318
  %v1547 = vunpack.c.l.b16 %v319
  %v1548 = vunpack.c.h.b16 %v319
  %v1549 = vunpack.c.l.b16 %v320
  %v1550 = vunpack.c.h.b16 %v320
  %v1551 = vunpack.c.l.b16 %v321
  %v1552 = vunpack.c.h.b16 %v321
  %v1553 = vunpack.c.l.b16 %v322
  %v1554 = vunpack.c.h.b16 %v322
  %v1555 = vunpack.c.l.b16 %v323
  %v1556 = vunpack.c.h.b16 %v323
  %v1557 = vunpack.c.l.b16 %v324
  %v1558 = vunpack.c.h.b16 %v324
  %v1559 = vunpack.c.l.b16 %v325
  %v1560 = vunpack.c.h.b16 %v325
  %v1561 = vunpack.c.l.b16 %v326
  %v1562 = vunpack.c.h.b16 %v326
  %v1563 = vunpack.c.l.b16 %v327
  %v1564 = vunpack.c.h.b16 %v327
  %v1565 = vunpack.c.l.b16 %v328
  %v1566 = vunpack.c.h.b16 %v328
  %v1567 = vunpack.c.l.b16 %v329
  %v1568 = vunpack.c.h.b16 %v329
  %v1569 = vunpack.c.l.b16 %v330
  %v1570 = vunpack.c.h.b16 %v330
  %v1571 = vunpack.c.l.b16 %v331
  %v1572 = vunpack.c.h.b16 %v331
  %v1573 = vunpack.c.l.b16 %v332
  %v1574 = vunpack.c.h.b16 %v332
  %v1575 = vunpack.c.l.b16 %v333
  %v1576 = vunpack.c.h.b16 %v333
  %v1577 = vunpack.c.l.b16 %v334
  %v1578 = vunpack.c.h.b16 %v334
  %v1579 = vunpack.c.l.b16 %v335
  %v1580 = vunpack.c.h.b16 %v335
  %v1581 = vunpack.c.l.b16 %v336
  %v1582 = vunpack.c.h.b16 %v336
  %v1583 = vunpack.c.l.b16 %v337
  %v1584 = vunpack.c.h.b16 %v337
  %v1585 = vunpack.c.l.b16 %v338
  %v1586 = vunpack.c.h.b16 %v338
  %v1587 = vunpack.c.l.b16 %v339
  %v1588 = vunpack.c.h.b16 %v339
  %v1589 = vunpack.c.l.b16 %v340
  %v1590 = vunpack.c.h.b16 %v340
  %v1591 = vunpack.c.l.b16 %v341
  %v1592 = vunpack.c.h.b16 %v341
  %v1593 = vunpack.c.l.b16 %v342
  %v1594 = vunpack.c.h.b16 %v342
  %v1595 = vunpack.c.l.b16 %v343
  %v1596 = vunpack.c.h.b16 %v343
  %v1597 = vunpack.c.l.b16 %v344
  %v1598 = vunpack.c.h.b16 %v344
  %v1599 = vunpack.c.l.b16 %v345
  %v1600 = vunpack.c.h.b16 %v345
  %v1601 = vunpack.c.l.b16 %v346
  %v1602 = vunpack.c.h.b16 %v346
  %v1603 = vunpack.c.l.b16 %v347
  %v1604 = vunpack.c.h.b16 %v347
  %v1605 = vunpack.c.l.b16 %v348
  %v1606 = vunpack.c.h.b16 %v348
  %v1607 = vunpack.c.l.b16 %v349
  %v1608 = vunpack.c.h.b16 %v349
  %v1609 = vunpack.c.l.b16 %v350
  %v1610 = vunpack.c.h.b16 %v350
  %v1611 = vunpack.c.l.b16 %v351
  %v1612 = vunpack.c.h.b16 %v351
  %v1613 = vunpack.c.l.b16 %v352
  %v1614 = vunpack.c.h.b16 %v352
  %v1615 = vunpack.c.l.b16 %v353
  %v1616 = vunpack.c.h.b16 %v353
  %v1617 = vunpack.c.l.b16 %v354
  %v1618 = vunpack.c.h.b16 %v354
  %v1619 = vunpack.c.l.b16 %v355
  %v1620 = vunpack.c.h.b16 %v355
  %v1621 = vunpack.c.l.b16 %v356
  %v1622 = vunpack.c.h.b16 %v356
  %v1623 = vunpack.c.l.b16 %v357
  %v1624 = vunpack.c.h.b16 %v357
  %v1625 = vunpack.c.l.b16 %v358
  %v1626 = vunpack.c.h.b16 %v358
  %v1627 = vunpack.c.l.b16 %v359
  %v1628 = vunpack.c.h.b16 %v359
  %v1629 = vunpack.c.l.b16 %v360
  %v1630 = vunpack.c.h.b16 %v360
  %v1631 = vunpack.c.l.b16 %v361
  %v1632 = vunpack.c.h.b16 %v361
  %v1633 = vunpack.c.l.b16 %v362
  %v1634 = vunpack.c.h.b16 %v362
  %v1635 = vunpack.c.l.b16 %v363
  %v1636 = vunpack.c.h.b16 %v363
  %v1637 = vunpack.c.l.b16 %v364
  %v1638 = vunpack.c.h.b16 %v364
  %v1639 = vunpack.c.l.b16 %v365
  %v1640 = vunpack.c.h.b16 %v365
  %v1641 = vunpack.c.l.b16 %v366
  %v1642 = vunpack.c.h.b16 %v366
  %v1643 = vunpack.c.l.b16 %v367
  %v1644 = vunpack.c.h.b16 %v367
  %v1645 = vunpack.c.l.b16 %v368
  %v1646 = vunpack.c.h.b16 %v368
  %v1647 = vunpack.c.l.b16 %v369
  %v1648 = vunpack.c.h.b16 %v369
  %v1649 = vunpack.c.l.b16 %v370
  %v1650 = vunpack.c.h.b16 %v370
  %v1651 = vunpack.c.l.b16 %v371
  %v1652 = vunpack.c.h.b16 %v371
  %v1653 = vunpack.c.l.b16 %v372
  %v1654 = vunpack.c.h.b16 %v372
  %v1655 = vunpack.c.l.b16 %v373
  %v1656 = vunpack.c.h.b16 %v373
  %v1657 = vunpack.c.l.b16 %v374
  %v1658 = vunpack.c.h.b16 %v374
  %v1659 = vunpack.c.l.b16 %v375
  %v1660 = vunpack.c.h.b16 %v375
  %v1661 = vunpack.c.l.b16 %v376
  %v1662 = vunpack.c.h.b16 %v376
  %v1663 = vunpack.c.l.b16 %v377
  %v1664 = vunpack.c.h.b16 %v377
  %v1665 = vunpack.c.l.b16 %v378
  %v1666 = vunpack.c.h.b16 %v378
  %v1667 = vunpack.c.l.b16 %v379
  %v1668 = vunpack.c.h.b16 %v379
  %v1669 = vunpack.c.l.b16 %v380
  %v1670 = vunpack.c.h.b16 %v380
  %v1671 = vunpack.c.l.b16 %v381
  %v1672 = vunpack.c.h.b16 %v381
  %v1673 = vunpack.c.l.b16 %v382
  %v1674 = vunpack.c.h.b16 %v382
  %v1675 = vunpack.c.l.b16 %v383
  %v1676 = vunpack.c.h.b16 %v383
  %v1677 = vunpack.c.l.b16 %v384
  %v1678 = vunpack.c.h.b16 %v384
  %v1679 = vunpack.c.l.b16 %v385
  %v1680 = vunpack.c.h.b16 %v385
  %v1681 = vunpack.c.l.b16 %v386
  %v1682 = vunpack.c.h.b16 %v386
  %v1683 = vunpack.c.l.b16 %v387
  %v1684 = vunpack.c.h.b16 %v387
  %v1685 = vunpack.c.l.b16 %v388
  %v1686 = vunpack.c.h.b16 %v388
  %v1687 = vunpack.c.l.b16 %v389
  %v1688 = vunpack.c.h.b16 %v389
  %v1689 = vunpack.c.l.b16 %v390
  %v1690 = vunpack.c.h.b16 %v390
  %v1691 = vunpack.c.l.b16 %v391
  %v1692 = vunpack.c.h.b16 %v391
  %v1693 = vunpack.c.l.b16 %v392
  %v1694 = vunpack.c.h.b16 %v392
  %v1695 = vunpack.c.l.b16 %v393
  %v1696 = vunpack.c.h.b16 %v393
  %v1697 = vunpack.c.l.b16 %v394
  %v1698 = vunpack.c.h.b16 %v394
  %v1699 = vunpack.c.l.b16 %v395
  %v1700 = vunpack.c.h.b16 %v395
  %v1701 = vunpack.c.l.b16 %v396
  %v1702 = vunpack.c.h.b16 %v396
  %v1703 = vunpack.c.l.b16 %v397
  %v1704 = vunpack.c.h.b16 %v397
  %v1705 = vunpack.c.l.b16 %v398
  %v1706 = vunpack.c.h.b16 %v398
  %v1707 = vunpack.c.l.b16 %v399
  %v1708 = vunpack.c.h.b16 %v399
  %v1709 = vunpack.c.l.b16 %v400
  %v1710 = vunpack.c.h.b16 %v400
  %v1711 = vunpack.c.l.b16 %v401
  %v1712 = vunpack.c.h.b16 %v401
  %v1713 = vunpack.c.l.b16 %v402
  %v1714 = vunpack.c.h.b16 %v402
  %v1715 = vunpack.c.l.b16 %v403
  %v1716 = vunpack.c.h.b16 %v403
  %v1717 = vunpack.c.l.b16 %v404
  %v1718 = vunpack.c.h.b16 %v404
  %v1719 = vunpack.c.l.b16 %v405
  %v1720 = vunpack.c.h.b16 %v405
  %v1721 = vunpack.c.l.b16 %v406
  %v1722 = vunpack.c.h.b16 %v406
  %v1723 = vunpack.c.l.b16 %v407
  %v1724 = vunpack.c.h.b16 %v407
  %v1725 = vunpack.c.l.b16 %v408
  %v1726 = vunpack.c.h.b16 %v408
  %v1727 = vunpack.c.l.b16 %v409
  %v1728 = vunpack.c.h.b16 %v409
  %v1729 = vunpack.c.l.b16 %v410
  %v1730 = vunpack.c.h.b16 %v410
  %v1731 = vunpack.c.l.b16 %v411
  %v1732 = vunpack.c.h.b16 %v411
  %v1733 = vunpack.c.l.b16 %v412
  %v1734 = vunpack.c.h.b16 %v412
  %v1735 = vunpack.c.l.b16 %v413
  %v1736 = vunpack.c.h.b16 %v413
  %v1737 = vunpack.c.l.b16 %v414
  %v1738 = vunpack.c.h.b16 %v414
  %v1739 = vunpack.c.l.b16 %v415
  %v1740 = vunpack.c.h.b16 %v415
  %v1741 = vunpack.c.l.b16 %v416
  %v1742 = vunpack.c.h.b16 %v416
  %v1743 = vunpack.c.l.b16 %v417
  %v1744 = vunpack.c.h.b16 %v417
  %v1745 = vunpack.c.l.b16 %v418
  %v1746 = vunpack.c.h.b16 %v418
  %v1747 = vunpack.c.l.b16 %v419
  %v1748 = vunpack.c.h.b16 %v419
  %v1749 = vunpack.c.l.b16 %v420
  %v1750 = vunpack.c.h.b16 %v420
  %v1751 = vunpack.c.l.b16 %v421
  %v1752 = vunpack.c.h.b16 %v421
  %v1753 = vunpack.c.l.b16 %v422
  %v1754 = vunpack.c.h.b16 %v422
  %v1755 = vunpack.c.l.b16 %v423
  %v1756 = vunpack.c.h.b16 %v423
  %v1757 = vunpack.c.l.b16 %v424
  %v1758 = vunpack.c.h.b16 %v424
  %v1759 = vunpack.c.l.b16 %v425
  %v1760 = vunpack.c.h.b16 %v425
  %v1761 = vunpack.c.l.b16 %v426
  %v1762 = vunpack.c.h.b16 %v426
  %v1763 = vunpack.c.l.b16 %v427
  %v1764 = vunpack.c.h.b16 %v427
  %v1765 = vunpack.c.l.b16 %v428
  %v1766 = vunpack.c.h.b16 %v428
  %v1767 = vunpack.c.l.b16 %v429
  %v1768 = vunpack.c.h.b16 %v429
  %v1769 = vunpack.c.l.b16 %v430
  %v1770 = vunpack.c.h.b16 %v430
  %v1771 = vunpack.c.l.b16 %v431
  %v1772 = vunpack.c.h.b16 %v431
  %v1773 = vunpack.c.l.b16 %v432
  %v1774 = vunpack.c.h.b16 %v432
  %v1775 = vunpack.c.l.b16 %v433
  %v1776 = vunpack.c.h.b16 %v433
  %v1777 = vunpack.c.l.b16 %v434
  %v1778 = vunpack.c.h.b16 %v434
  %v1779 = vunpack.c.l.b16 %v435
  %v1780 = vunpack.c.h.b16 %v435
  %v1781 = vunpack.c.l.b16 %v436
  %v1782 = vunpack.c.h.b16 %v436
  %v1783 = vunpack.c.l.b16 %v437
  %v1784 = vunpack.c.h.b16 %v437
  %v1785 = vunpack.c.l.b16 %v438
  %v1786 = vunpack.c.h.b16 %v438
  %v1787 = vunpack.c.l.b16 %v439
  %v1788 = vunpack.c.h.b16 %v439
  %v1789 = vunpack.c.l.b16 %v440
  %v1790 = vunpack.c.h.b16 %v440
  %v1791 = vunpack.c.l.b16 %v441
  %v1792 = vunpack.c.h.b16 %v441
  %v1793 = vunpack.c.l.b16 %v442
  %v1794 = vunpack.c.h.b16 %v442
  %v1795 = vunpack.c.l.b16 %v443
  %v1796 = vunpack.c.h.b16 %v443
  %v1797 = vunpack.c.l.b16 %v444
  %v1798 = vunpack.c.h.b16 %v444
  %v1799 = vunpack.c.l.b16 %v445
  %v1800 = vunpack.c.h.b16 %v445
  %v1801 = vunpack.c.l.b16 %v446
  %v1802 = vunpack.c.h.b16 %v446
  %v1803 = vunpack.c.l.b16 %v447
  %v1804 = vunpack.c.h.b16 %v447
  %v1805 = vunpack.c.l.b16 %v448
  %v1806 = vunpack.c.h.b16 %v448
  %v1807 = vunpack.c.l.b16 %v449
  %v1808 = vunpack.c.h.b16 %v449
  %v1809 = vunpack.c.l.b16 %v450
  %v1810 = vunpack.c.h.b16 %v450
  %v1811 = vunpack.c.l.b16 %v451
  %v1812 = vunpack.c.h.b16 %v451
  %v1813 = vunpack.c.l.b16 %v452
  %v1814 = vunpack.c.h.b16 %v452
  %v1815 = vunpack.c.l.b16 %v453
  %v1816 = vunpack.c.h.b16 %v453
  %v1817 = vunpack.c.l.b16 %v454
  %v1818 = vunpack.c.h.b16 %v454
  %v1819 = vunpack.c.l.b16 %v455
  %v1820 = vunpack.c.h.b16 %v455
  %v1821 = vunpack.c.l.b16 %v456
  %v1822 = vunpack.c.h.b16 %v456
  %v1823 = vunpack.c.l.b16 %v457
  %v1824 = vunpack.c.h.b16 %v457
  %v1825 = vunpack.c.l.b16 %v458
  %v1826 = vunpack.c.h.b16 %v458
  %v1827 = vunpack.c.l.b16 %v459
  %v1828 = vunpack.c.h.b16 %v459
  %v1829 = vunpack.c.l.b16 %v460
  %v1830 = vunpack.c.h.b16 %v460
  %v1831 = vunpack.c.l.b16 %v461
  %v1832 = vunpack.c.h.b16 %v461
  %v1833 = vunpack.c.l.b16 %v462
  %v1834 = vunpack.c.h.b16 %v462
  %v1835 = vunpack.c.l.b16 %v463
  %v1836 = vunpack.c.h.b16 %v463
  %v1837 = vunpack.c.l.b16 %v464
  %v1838 = vunpack.c.h.b16 %v464
  %v1839 = vunpack.c.l.b16 %v465
  %v1840 = vunpack.c.h.b16 %v465
  %v1841 = vunpack.c.l.b16 %v466
  %v1842 = vunpack.c.h.b16 %v466
  %v1843 = vunpack.c.l.b16 %v467
  %v1844 = vunpack.c.h.b16 %v467
  %v1845 = vunpack.c.l.b16 %v468
  %v1846 = vunpack.c.h.b16 %v468
  %v1847 = vunpack.c.l.b16 %v469
  %v1848 = vunpack.c.h.b16 %v469
  %v1849 = vunpack.c.l.b16 %v470
  %v1850 = vunpack.c.h.b16 %v470
  %v1851 = vunpack.c.l.b16 %v471
  %v1852 = vunpack.c.h.b16 %v471
  %v1853 = vunpack.c.l.b16 %v472
  %v1854 = vunpack.c.h.b16 %v472
  %v1855 = vunpack.c.l.b16 %v473
  %v1856 = vunpack.c.h.b16 %v473
  %v1857 = vunpack.c.l.b16 %v474
  %v1858 = vunpack.c.h.b16 %v474
  %v1859 = vunpack.c.l.b16 %v475
  %v1860 = vunpack.c.h.b16 %v475
  %v1861 = vunpack.c.l.b16 %v476
  %v1862 = vunpack.c.h.b16 %v476
  %v1863 = vunpack.c.l.b16 %v477
  %v1864 = vunpack.c.h.b16 %v477
  %v1865 = vunpack.c.l.b16 %v478
  %v1866 = vunpack.c.h.b16 %v478
  %v1867 = vunpack.c.l.b16 %v479
  %v1868 = vunpack.c.h.b16 %v479
  %v1869 = vunpack.c.l.b16 %v480
  %v1870 = vunpack.c.h.b16 %v480
  %v1871 = vunpack.c.l.b16 %v481
  %v1872 = vunpack.c.h.b16 %v481
  %v1873 = vunpack.c.l.b16 %v482
  %v1874 = vunpack.c.h.b16 %v482
  %v1875 = vunpack.c.l.b16 %v483
  %v1876 = vunpack.c.h.b16 %v483
  %v1877 = vunpack.c.l.b16 %v484
  %v1878 = vunpack.c.h.b16 %v484
  %v1879 = vunpack.c.l.b16 %v485
  %v1880 = vunpack.c.h.b16 %v485
  %v1881 = vunpack.c.l.b16 %v486
  %v1882 = vunpack.c.h.b16 %v486
  %v1883 = vunpack.c.l.b16 %v487
  %v1884 = vunpack.c.h.b16 %v487
  %v1885 = vunpack.c.l.b16 %v488
  %v1886 = vunpack.c.h.b16 %v488
  %v1887 = vunpack.c.l.b16 %v489
  %v1888 = vunpack.c.h.b16 %v489
  %v1889 = vunpack.c.l.b16 %v490
  %v1890 = vunpack.c.h.b16 %v490
  %v1891 = vunpack.c.l.b16 %v491
  %v1892 = vunpack.c.h.b16 %v491
  %v1893 = vunpack.c.l.b16 %v492
  %v1894 = vunpack.c.h.b16 %v492
  %v1895 = vunpack.c.l.b16 %v493
  %v1896 = vunpack.c.h.b16 %v493
  %v1897 = vunpack.c.l.b16 %v494
  %v1898 = vunpack.c.h.b16 %v494
  %v1899 = vunpack.c.l.b16 %v495
  %v1900 = vunpack.c.h.b16 %v495
  %v1901 = vunpack.c.l.b16 %v496
  %v1902 = vunpack.c.h.b16 %v496
  %v1903 = vunpack.c.l.b16 %v497
  %v1904 = vunpack.c.h.b16 %v497
  %v1905 = vunpack.c.l.b16 %v498
  %v1906 = vunpack.c.h.b16 %v498
  %v1907 = vunpack.c.l.b16 %v499
  %v1908 = vunpack.c.h.b16 %v499
  %v1909 = vunpack.c.l.b16 %v500
  %v1910 = vunpack.c.h.b16 %v500
  %v1911 = vunpack.c.l.b16 %v501
  %v1912 = vunpack.c.h.b16 %v501
  %v1913 = vpack.c.b16 %v1025, %v1017
  %v1914 = vpack.c.b16 %v1026, %v1018
  %v1915 = vpack.c.b16 %v1027, %v1019
  %v1916 = vpack.c.b16 %v1028, %v1020
  %v1917 = vpack.c.b16 %v1029, %v1021
  %v1918 = vpack.c.b16 %v1030, %v1022
  %v1919 = vpack.c.b16 %v1031, %v1023
  %v1920 = vpack.c.b16 %v1032, %v1024
  %v1921 = vpack.c.b16 %v1041, %v1033
  %v1922 = vpack.c.b16 %v1042, %v1034
  %v1923 = vpack.c.b16 %v1043, %v1035
  %v1924 = vpack.c.b16 %v1044, %v1036
  %v1925 = vpack.c.b16 %v1045, %v1037
  %v1926 = vpack.c.b16 %v1046, %v1038
  %v1927 = vpack.c.b16 %v1047, %v1039
  %v1928 = vpack.c.b16 %v1048, %v1040
  %v1929 = vpack.c.b16 %v1057, %v1049
  %v1930 = vpack.c.b16 %v1058, %v1050
  %v1931 = vpack.c.b16 %v1059, %v1051
  %v1932 = vpack.c.b16 %v1060, %v1052
  %v1933 = vpack.c.b16 %v1061, %v1053
  %v1934 = vpack.c.b16 %v1062, %v1054
  %v1935 = vpack.c.b16 %v1063, %v1055
  %v1936 = vpack.c.b16 %v1064, %v1056
  %v1937 = vpack.c.b16 %v1073, %v1065
  %v1938 = vpack.c.b16 %v1074, %v1066
  %v1939 = vpack.c.b16 %v1075, %v1067
  %v1940 = vpack.c.b16 %v1076, %v1068
  %v1941 = vpack.c.b16 %v1077, %v1069
  %v1942 = vpack.c.b16 %v1078, %v1070
  %v1943 = vpack.c.b16 %v1079, %v1071
  %v1944 = vpack.c.b16 %v1080, %v1072
  %v1945 = vpack.c.b16 %v1089, %v1081
  %v1946 = vpack.c.b16 %v1090, %v1082
  %v1947 = vpack.c.b16 %v1091, %v1083
  %v1948 = vpack.c.b16 %v1092, %v1084
  %v1949 = vpack.c.b16 %v1093, %v1085
  %v1950 = vpack.c.b16 %v1094, %v1086
  %v1951 = vpack.c.b16 %v1095, %v1087
  %v1952 = vpack.c.b16 %v1096, %v1088
  %v1953 = vpack.c.b16 %v1105, %v1097
  %v1954 = vpack.c.b16 %v1106, %v1098
  %v1955 = vpack.c.b16 %v1107, %v1099
  %v1956 = vpack.c.b16 %v1108, %v1100
  %v1957 = vpack.c.b16 %v1109, %v1101
  %v1958 = vpack.c.b16 %v1110, %v1102
  %v1959 = vpack.c.b16 %v1111, %v1103
  %v1960 = vpack.c.b16 %v1112, %v1104
  %v1961 = vpack.c.b16 %v1121, %v1113
  %v1962 = vpack.c.b16 %v1122, %v1114
  %v1963 = vpack.c.b16 %v1123, %v1115
  %v1964 = vpack.c.b16 %v1124, %v1116
  %v1965 = vpack.c.b16 %v1125, %v1117
  %v1966 = vpack.c.b16 %v1126, %v1118
  %v1967 = vpack.c.b16 %v1127, %v1119
  %v1968 = vpack.c.b16 %v1128, %v1120
  %v1969 = vpack.c.b16 %v1137, %v1129
  %v1970 = vpack.c.b16 %v1138, %v1130
  %v1971 = vpack.c.b16 %v1139, %v1131
  %v1972 = vpack.c.b16 %v1140, %v1132
  %v1973 = vpack.c.b16 %v1141, %v1133
  %v1974 = vpack.c.b16 %v1142, %v1134
  %v1975 = vpack.c.b16 %v1143, %v1135
  %v1976 = vpack.c.b16 %v1144, %v1136
  %v1977 = vpack.c.b16 %v1153, %v1145
  %v1978 = vpack.c.b16 %v1154, %v1146
  %v1979 = vpack.c.b16 %v1155, %v1147
  %v1980 = vpack.c.b16 %v1156, %v1148
  %v1981 = vpack.c.b16 %v1157, %v1149
  %v1982 = vpack.c.b16 %v1158, %v1150
  %v1983 = vpack.c.b16 %v1159, %v1151
  %v1984 = vpack.c.b16 %v1160, %v1152
  %v1985 = vpack.c.b16 %v1169, %v1161
  %v1986 = vpack.c.b16 %v1170, %v1162
  %v1987 = vpack.c.b16 %v1171, %v1163
  %v1988 = vpack.c.b16 %v1172, %v1164
  %v1989 = vpack.c.b16 %v1173, %v1165
  %v1990 = vpack.c.b16 %v1174, %v1166
  %v1991 = vpack.c.b16 %v1175, %v1167
  %v1992 = vpack.c.b16 %v1176, %v1168
  %v1993 = vpack.c.b16 %v1185, %v1177
  %v1994 = vpack.c.b16 %v1186, %v1178
  %v1995 = vpack.c.b16 %v1187, %v1179
  %v1996 = vpack.c.b16 %v1188, %v1180
  %v1997 = vpack.c.b16 %v1189, %v1181
  %v1998 = vpack.c.b16 %v1190, %v1182
  %v1999 = vpack.c.b16 %v1191, %v1183
  %v2000 = vpack.c.b16 %v1192, %v1184
  %v2001 = vpack.c.b16 %v1201, %v1193
  %v2002 = vpack.c.b16 %v1202, %v1194
  %v2003 = vpack.c.b16 %v1203, %v1195
  %v2004 = vpack.c.b16 %v1204, %v1196
  %v2005 = vpack.c.b16 %v1205, %v1197
  %v2006 = vpack.c.b16 %v1206, %v1198
  %v2007 = vpack.c.b16 %v1207, %v1199
  %v2008 = vpack.c.b16 %v1208, %v1200
  %v2009 = vpack.c.b16 %v1217, %v1209
  %v2010 = vpack.c.b16 %v1218, %v1210
  %v2011 = vpack.c.b16 %v1219, %v1211
  %v2012 = vpack.c.b16 %v1220, %v1212
  %v2013 = vpack.c.b16 %v1221, %v1213
  %v2014 = vpack.c.b16 %v1222, %v1214
  %v2015 = vpack.c.b16 %v1223, %v1215
  %v2016 = vpack.c.b16 %v1224, %v1216
  %v2017 = vpack.c.b16 %v1233, %v1225
  %v2018 = vpack.c.b16 %v1234, %v1226
  %v2019 = vpack.c.b16 %v1235, %v1227
  %v2020 = vpack.c.b16 %v1236, %v1228
  %v2021 = vpack.c.b16 %v1237, %v1229
  %v2022 = vpack.c.b16 %v1238, %v1230
  %v2023 = vpack.c.b16 %v1239, %v1231
  %v2024 = vpack.c.b16 %v1240, %v1232
  %v2025 = vpack.c.b16 %v1249, %v1241
  %v2026 = vpack.c.b16 %v1250, %v1242
  %v2027 = vpack.c.b16 %v1251, %v1243
  %v2028 = vpack.c.b16 %v1252, %v1244
  %v2029 = vpack.c.b16 %v1253, %v1245
  %v2030 = vpack.c.b16 %v1254, %v1246
  %v2031 = vpack.c.b16 %v1255, %v1247
  %v2032 = vpack.c.b16 %v1256, %v1248
  %v2033 = vpack.c.b16 %v1265, %v1257
  %v2034 = vpack.c.b16 %v1266, %v1258
  %v2035 = vpack.c.b16 %v1267, %v1259
  %v2036 = vpack.c.b16 %v1268, %v1260
  %v2037 = vpack.c.b16 %v1269, %v1261
  %v2038 = vpack.c.b16 %v1270, %v1262
  %v2039 = vpack.c.b16 %v1271, %v1263
  %v2040 = vpack.c.b16 %v1272, %v1264
  %v2041 = vpack.c.b16 %v1281, %v1273
  %v2042 = vpack.c.b16 %v1282, %v1274
  %v2043 = vpack.c.b16 %v1283, %v1275
  %v2044 = vpack.c.b16 %v1284, %v1276
  %v2045 = vpack.c.b16 %v1285, %v1277
  %v2046 = vpack.c.b16 %v1286, %v1278
  %v2047 = vpack.c.b16 %v1287, %v1279
  %v2048 = vpack.c.b16 %v1288, %v1280
  %v2049 = vpack.c.b16 %v1297, %v1289
  %v2050 = vpack.c.b16 %v1298, %v1290
  %v2051 = vpack.c.b16 %v1299, %v1291
  %v2052 = vpack.c.b16 %v1300, %v1292
  %v2053 = vpack.c.b16 %v1301, %v1293
  %v2054 = vpack.c.b16 %v1302, %v1294
  %v2055 = vpack.c.b16 %v1303, %v1295
  %v2056 = vpack.c.b16 %v1304, %v1296
  %v2057 = vpack.c.b16 %v1313, %v1305
  %v2058 = vpack.c.b16 %v1314, %v1306
  %v2059 = vpack.c.b16 %v1315, %v1307
  %v2060 = vpack.c.b16 %v1316, %v1308
  %v2061 = vpack.c.b16 %v1317, %v1309
  %v2062 = vpack.c.b16 %v1318, %v1310
  %v2063 = vpack.c.b16 %v1319, %v1311
  %v2064 = vpack.c.b16 %v1320, %v1312
  %v2065 = vpack.c.b16 %v1329, %v1321
  %v2066 = vpack.c.b16 %v1330, %v1322
  %v2067 = vpack.c.b16 %v1331, %v1323
  %v2068 = vpack.c.b16 %v1332, %v1324
  %v2069 = vpack.c.b16 %v1333, %v1325
  %v2070 = vpack.c.b16 %v1334, %v1326
  %v2071 = vpack.c.b16 %v1335, %v1327
  %v2072 = vpack.c.b16 %v1336, %v1328
  %v2073 = vpack.c.b16 %v1345, %v1337
  %v2074 = vpack.c.b16 %v1346, %v1338
  %v2075 = vpack.c.b16 %v1347, %v1339
  %v2076 = vpack.c.b16 %v1348, %v1340
  %v2077 = vpack.c.b16 %v1349, %v1341
  %v2078 = vpack.c.b16 %v1350, %v1342
  %v2079 = vpack.c.b16 %v1351, %v1343
  %v2080 = vpack.c.b16 %v1352, %v1344
  %v2081 = vpack.c.b16 %v1361, %v1353
  %v2082 = vpack.c.b16 %v1362, %v1354
  %v2083 = vpack.c.b16 %v1363, %v1355
  %v2084 = vpack.c.b16 %v1364, %v1356
  %v2085 = vpack.c.b16 %v1365, %v1357
  %v2086 = vpack.c.b16 %v1366, %v1358
  %v2087 = vpack.c.b16 %v1367, %v1359
  %v2088 = vpack.c.b16 %v1368, %v1360
  %v2089 = vpack.c.b16 %v1377, %v1369
  %v2090 = vpack.c.b16 %v1378, %v1370
  %v2091 = vpack.c.b16 %v1379, %v1371
  %v2092 = vpack.c.b16 %v1380, %v1372
  %v2093 = vpack.c.b16 %v1381, %v1373
  %v2094 = vpack.c.b16 %v1382, %v1374
  %v2095 = vpack.c.b16 %v1383, %v1375
  %v2096 = vpack.c.b16 %v1384, %v1376
  %v2097 = vpack.c.b16 %v1393, %v1385
  %v2098 = vpack.c.b16 %v1394, %v1386
  %v2099 = vpack.c.b16 %v1395, %v1387
  %v2100 = vpack.c.b16 %v1396, %v1388
  %v2101 = vpack.c.b16 %v1397, %v1389
  %v2102 = vpack.c.b16 %v1398, %v1390
  %v2103 = vpack.c.b16 %v1399, %v1391
  %v2104 = vpack.c.b16 %v1400, %v1392
  %v2105 = vpack.c.b16 %v1409, %v1401
  %v2106 = vpack.c.b16 %v1410, %v1402
  %v2107 = vpack.c.b16 %v1411, %v1403
  %v2108 = vpack.c.b16 %v1412, %v1404
  %v2109 = vpack.c.b16 %v1413, %v1405
  %v2110 = vpack.c.b16 %v1414, %v1406
  %v2111 = vpack.c.b16 %v1415, %v1407
  %v2112 = vpack.c.b16 %v1416, %v1408
  %v2113 = vpack.c.b16 %v1425, %v1417
  %v2114 = vpack.c.b16 %v1426, %v1418
  %v2115 = vpack.c.b16 %v1427, %v1419
  %v2116 = vpack.c.b16 %v1428, %v1420
  %v2117 = vpack.c.b16 %v1429, %v1421
  %v2118 = vpack.c.b16 %v1430, %v1422
  %v2119 = vpack.c.b16 %v1431, %v1423
  %v2120 = vpack.c.b16 %v1432, %v1424
  %v2121 = vpack.c.b16 %v1441, %v1433
  %v2122 = vpack.c.b16 %v1442, %v1434
  %v2123 = vpack.c.b16 %v1443, %v1435
  %v2124 = vpack.c.b16 %v1444, %v1436
  %v2125 = vpack.c.b16 %v1445, %v1437
  %v2126 = vpack.c.b16 %v1446, %v1438
  %v2127 = vpack.c.b16 %v1447, %v1439
  %v2128 = vpack.c.b16 %v1448, %v1440
  %v2129 = vpack.c.b16 %v1457, %v1449
  %v2130 = vpack.c.b16 %v1458, %v1450
  %v2131 = vpack.c.b16 %v1459, %v1451
  %v2132 = vpack.c.b16 %v1460, %v1452
  %v2133 = vpack.c.b16 %v1461, %v1453
  %v2134 = vpack.c.b16 %v1462, %v1454
  %v2135 = vpack.c.b16 %v1463, %v1455
  %v2136 = vpack.c.b16 %v1464, %v1456
  %v2137 = vpack.c.b16 %v1473, %v1465
  %v2138 = vpack.c.b16 %v1474, %v1466
  %v2139 = vpack.c.b16 %v1475, %v1467
  %v2140 = vpack.c.b16 %v1476, %v1468
  %v2141 = vpack.c.b16 %v1477, %v1469
  %v2142 = vpack.c.b16 %v1478, %v1470
  %v2143 = vpack.c.b16 %v1479, %v1471
  %v2144 = vpack.c.b16 %v1480, %v1472
  %v2145 = vpack.c.b16 %v1489, %v1481
  %v2146 = vpack.c.b16 %v1490, %v1482
  %v2147 = vpack.c.b16 %v1491, %v1483
  %v2148 = vpack.c.b16 %v1492, %v1484
  %v2149 = vpack.c.b16 %v1493, %v1485
  %v2150 = vpack.c.b16 %v1494, %v1486
  %v2151 = vpack.c.b16 %v1495, %v1487
  %v2152 = vpack.c.b16 %v1496, %v1488
  %v2153 = vpack.c.b16 %v1505, %v1497
  %v2154 = vpack.c.b16 %v1506, %v1498
  %v2155 = vpack.c.b16 %v1507, %v1499
  %v2156 = vpack.c.b16 %v1508, %v1500
  %v2157 = vpack.c.b16 %v1509, %v1501
  %v2158 = vpack.c.b16 %v1510, %v1502
  %v2159 = vpack.c.b16 %v1511, %v1503
  %v2160 = vpack.c.b16 %v1512, %v1504
  %v2161 = vpack.c.b16 %v1521, %v1513
  %v2162 = vpack.c.b16 %v1522, %v1514
  %v2163 = vpack.c.b16 %v1523, %v1515
  %v2164 = vpack.c.b16 %v1524, %v1516
  %v2165 = vpack.c.b16 %v1525, %v1517
  %v2166 = vpack.c.b16 %v1526, %v1518
  %v2167 = vpack.c.b16 %v1527, %v1519
  %v2168 = vpack.c.b16 %v1528, %v1520
  %v2169 = vpack.c.b16 %v1537, %v1529
  %v2170 = vpack.c.b16 %v1538, %v1530
  %v2171 = vpack.c.b16 %v1539, %v1531
  %v2172 = vpack.c.b16 %v1540, %v1532
  %v2173 = vpack.c.b16 %v1541, %v1533
  %v2174 = vpack.c.b16 %v1542, %v1534
  %v2175 = vpack.c.b16 %v1543, %v1535
  %v2176 = vpack.c.b16 %v1544, %v1536
  %v2177 = vpack.c.b16 %v1553, %v1545
  %v2178 = vpack.c.b16 %v1554, %v1546
  %v2179 = vpack.c.b16 %v1555, %v1547
  %v2180 = vpack.c.b16 %v1556, %v1548
  %v2181 = vpack.c.b16 %v1557, %v1549
  %v2182 = vpack.c.b16 %v1558, %v1550
  %v2183 = vpack.c.b16 %v1559, %v1551
  %v2184 = vpack.c.b16 %v1560, %v1552
  %v2185 = vpack.c.b16 %v1569, %v1561
  %v2186 = vpack.c.b16 %v1570, %v1562
  %v2187 = vpack.c.b16 %v1571, %v1563
  %v2188 = vpack.c.b16 %v1572, %v1564
  %v2189 = vpack.c.b16 %v1573, %v1565
  %v2190 = vpack.c.b16 %v1574, %v1566
  %v2191 = vpack.c.b16 %v1575, %v1567
  %v2192 = vpack.c.b16 %v1576, %v1568
  %v2193 = vpack.c.b16 %v1585, %v1577
  %v2194 = vpack.c.b16 %v1586, %v1578
  %v2195 = vpack.c.b16 %v1587, %v1579
  %v2196 = vpack.c.b16 %v1588, %v1580
  %v2197 = vpack.c.b16 %v1589, %v1581
  %v2198 = vpack.c.b16 %v1590, %v1582
  %v2199 = vpack.c.b16 %v1591, %v1583
  %v2200 = vpack.c.b16 %v1592, %v1584
  %v2201 = vpack.c.b16 %v1601, %v1593
  %v2202 = vpack.c.b16 %v1602, %v1594
  %v2203 = vpack.c.b16 %v1603, %v1595
  %v2204 = vpack.c.b16 %v1604, %v1596
  %v2205 = vpack.c.b16 %v1605, %v1597
  %v2206 = vpack.c.b16 %v1606, %v1598
  %v2207 = vpack.c.b16 %v1607, %v1599
  %v2208 = vpack.c.b16 %v1608, %v1600
  %v2209 = vpack.c.b16 %v1617, %v1609
  %v2210 = vpack.c.b16 %v1618, %v1610
  %v2211 = vpack.c.b16 %v1619, %v1611
  %v2212 = vpack.c.b16 %v1620, %v1612
  %v2213 = vpack.c.b16 %v1621, %v1613
  %v2214 = vpack.c.b16 %v1622, %v1614
  %v2215 = vpack.c.b16 %v1623, %v1615
  %v2216 = vpack.c.b16 %v1624, %v1616
  %v2217 = vpack.c.b16 %v1633, %v1625
  %v2218 = vpack.c.b16 %v1634, %v1626
  %v2219 = vpack.c.b16 %v1635, %v1627
  %v2220 = vpack.c.b16 %v1636, %v1628
  %v2221 = vpack.c.b16 %v1637, %v1629
  %v2222 = vpack.c.b16 %v1638, %v1630
  %v2223 = vpack.c.b16 %v1639, %v1631
  %v2224 = vpack.c.b16 %v1640, %v1632
  %v2225 = vpack.c.b16 %v1649, %v1641
  %v2226 = vpack.c.b16 %v1650, %v1642
  %v2227 = vpack.c.b16 %v1651, %v1643
  %v2228 = vpack.c.b16 %v1652, %v1644
  %v2229 = vpack.c.b16 %v1653, %v1645
  %v2230 = vpack.c.b16 %v1654, %v1646
  %v2231 = vpack.c.b16 %v1655, %v1647
  %v2232 = vpack.c.b16 %v1656, %v1648
  %v2233 = vpack.c.b16 %v1665, %v1657
  %v2234 = vpack.c.b16 %v1666, %v1658
  %v2235 = vpack.c.b16 %v1667, %v1659
  %v2236 = vpack.c.b16 %v1668, %v1660
  %v2237 = vpack.c.b16 %v1669, %v1661
  %v2238 = vpack.c.b16 %v1670, %v1662
  %v2239 = vpack.c.b16 %v1671, %v1663
  %v2240 = vpack.c.b16 %v1672, %v1664
  %v2241 = vpack.c.b16 %v1681, %v1673
  %v2242 = vpack.c.b16 %v1682, %v1674
  %v2243 = vpack.c.b16 %v1683, %v1675
  %v2244 = vpack.c.b16 %v1684, %v1676
  %v2245 = vpack.c.b16 %v1685, %v1677
  %v2246 = vpack.c.b16 %v1686, %v1678
  %v2247 = vpack.c.b16 %v1687, %v1679
  %v2248 = vpack.c.b16 %v1688, %v1680
  %v2249 = vpack.c.b16 %v1697, %v1689
  %v2250 = vpack.c.b16 %v1698, %v1690
  %v2251 = vpack.c.b16 %v1699, %v1691
  %v2252 = vpack.c.b16 %v1700, %v1692
  %v2253 = vpack.c.b16 %v1701, %v1693
  %v2254 = vpack.c.b16 %v1702, %v1694
  %v2255 = vpack.c.b16 %v1703, %v1695
  %v2256 = vpack.c.b16 %v1704, %v1696
  %v2257 = vpack.c.b16 %v1713, %v1705
  %v2258 = vpack.c.b16 %v1714, %v1706
  %v2259 = vpack.c.b16 %v1715, %v1707
  %v2260 = vpack.c.b16 %v1716, %v1708
  %v2261 = vpack.c.b16 %v1717, %v1709
  %v2262 = vpack.c.b16 %v1718, %v1710
  %v2263 = vpack.c.b16 %v1719, %v1711
  %v2264 = vpack.c.b16 %v1720, %v1712
  %v2265 = vpack.c.b16 %v1729, %v1721
  %v2266 = vpack.c.b16 %v1730, %v1722
  %v2267 = vpack.c.b16 %v1731, %v1723
  %v2268 = vpack.c.b16 %v1732, %v1724
  %v2269 = vpack.c.b16 %v1733, %v1725
  %v2270 = vpack.c.b16 %v1734, %v1726
  %v2271 = vpack.c.b16 %v1735, %v1727
  %v2272 = vpack.c.b16 %v1736, %v1728
  %v2273 = vpack.c.b16 %v1745, %v1737
  %v2274 = vpack.c.b16 %v1746, %v1738
  %v2275 = vpack.c.b16 %v1747, %v1739
  %v2276 = vpack.c.b16 %v1748, %v1740
  %v2277 = vpack.c.b16 %v1749, %v1741
  %v2278 = vpack.c.b16 %v1750, %v1742
  %v2279 = vpack.c.b16 %v1751, %v1743
  %v2280 = vpack.c.b16 %v1752, %v1744
  %v2281 = vpack.c.b16 %v1761, %v1753
  %v2282 = vpack.c.b16 %v1762, %v1754
  %v2283 = vpack.c.b16 %v1763, %v1755
  %v2284 = vpack.c.b16 %v1764, %v1756
  %v2285 = vpack.c.b16 %v1765, %v1757
  %v2286 = vpack.c.b16 %v1766, %v1758
  %v2287 = vpack.c.b16 %v1767, %v1759
  %v2288 = vpack.c.b16 %v1768, %v1760
  %v2289 = vpack.c.b16 %v1777, %v1769
  %v2290 = vpack.c.b16 %v1778, %v1770
  %v2291 = vpack.c.b16 %v1779, %v1771
  %v2292 = vpack.c.b16 %v1780, %v1772
  %v2293 = vpack.c.b16 %v1781, %v1773
  %v2294 = vpack.c.b16 %v1782, %v1774
  %v2295 = vpack.c.b16 %v1783, %v1775
  %v2296 = vpack.c.b16 %v1784, %v1776
  %v2297 = vpack.c.b16 %v1793, %v1785
  %v2298 = vpack.c.b16 %v1794, %v1786
  %v2299 = vpack.c.b16 %v1795, %v1787
  %v2300 = vpack.c.b16 %v1796, %v1788
  %v2301 = vpack.c.b16 %v1797, %v1789
  %v2302 = vpack.c.b16 %v1798, %v1790
  %v2303 = vpack.c.b16 %v1799, %v1791
  %v2304 = vpack.c.b16 %v1800, %v1792
  %v2305 = vpack.c.b16 %v1809, %v1801
  %v2306 = vpack.c.b16 %v1810, %v1802
  %v2307 = vpack.c.b16 %v1811, %v1803
  %v2308 = vpack.c.b16 %v1812, %v1804
  %v2309 = vpack.c.b16 %v1813, %v1805
  %v2310 = vpack.c.b16 %v1814, %v1806
  %v2311 = vpack.c.b16 %v1815, %v1807
  %v2312 = vpack.c.b16 %v1816, %v1808
  %v2313 = vpack.c.b16 %v1825, %v1817
  %v2314 = vpack.c.b16 %v1826, %v1818
  %v2315 = vpack.c.b16 %v1827, %v1819
  %v2316 = vpack.c.b16 %v1828, %v1820
  %v2317 = vpack.c.b16 %v1829, %v1821
  %v2318 = vpack.c.b16 %v1830, %v1822
  %v2319 = vpack.c.b16 %v1831, %v1823
  %v2320 = vpack.c.b16 %v1832, %v1824
  %v2321 = vpack.c.b16 %v1841, %v1833
  %v2322 = vpack.c.b16 %v1842, %v1834
  %v2323 = vpack.c.b16 %v1843, %v1835
  %v2324 = vpack.c.b16 %v1844, %v1836
  %v2325 = vpack.c.b16 %v1845, %v1837
  %v2326 = vpack.c.b16 %v1846, %v1838
  %v2327 = vpack.c.b16 %v1847, %v1839
  %v2328 = vpack.c.b16 %v1848, %v1840
  %v2329 = vpack.c.b16 %v1857, %v1849
  %v2330 = vpack.c.b16 %v1858, %v1850
  %v2331 = vpack.c.b16 %v1859, %v1851
  %v2332 = vpack.c.b16 %v1860, %v1852
  %v2333 = vpack.c.b16 %v1861, %v1853
  %v2334 = vpack.c.b16 %v1862, %v1854
  %v2335 = vpack.c.b16 %v1863, %v1855
  %v2336 = vpack.c.b16 %v1864, %v1856
  %v2337 = vpack.c.b16 %v1873, %v1865
  %v2338 = vpack.c.b16 %v1874, %v1866
  %v2339 = vpack.c.b16 %v1875, %v1867
  %v2340 = vpack.c.b16 %v1876, %v1868
  %v2341 = vpack.c.b16 %v1877, %v1869
  %v2342 = vpack.c.b16 %v1878, %v1870
  %v2343 = vpack.c.b16 %v1879, %v1871
  %v2344 = vpack.c.b16 %v1880, %v1872
  %v2345 = vpack.c.b16 %v1889, %v1881
  %v2346 = vpack.c.b16 %v1890, %v1882
  %v2347 = vpack.c.b16 %v1891, %v1883
  %v2348 = vpack.c.b16 %v1892, %v1884
  %v2349 = vpack.c.b16 %v1893, %v1885
  %v2350 = vpack.c.b16 %v1894, %v1886
  %v2351 = vpack.c.b16 %v1895, %v1887
  %v2352 = vpack.c.b16 %v1896, %v1888
  %v2353 = vpack.c.b16 %v1905, %v1897
  %v2354 = vpack.c.b16 %v1906, %v1898
  %v2355 = vpack.c.b16 %v1907, %v1899
  %v2356 = vpack.c.b16 %v1908, %v1900
  %v2357 = vpack.c.b16 %v1909, %v1901
  %v2358 = vpack.c.b16 %v1910, %v1902
  %v2359 = vpack.c.b16 %v1911, %v1903
  %v2360 = vpack.c.b16 %v1912, %v1904
  %2809 = vmatprep.subr.bf16.mxu0 %v1970
  %2810 = vmatpush1.bf16.msra.mxu0 %v1969
  %2811 = vmatprep.subr.bf16.mxu0 %v1962
  %2812 = vmatpush1.bf16.msra.mxu0 %v1961
  %2813 = vmatprep.subr.bf16.mxu0 %v1954
  %2814 = vmatpush1.bf16.msra.mxu0 %v1953
  %2815 = vmatprep.subr.bf16.mxu0 %v1946
  %2816 = vmatpush1.bf16.msra.mxu0 %v1945
  %2817 = vmatprep.subr.bf16.mxu0 %v1938
  %2818 = vmatpush1.bf16.msra.mxu0 %v1937
  %2819 = vmatprep.subr.bf16.mxu0 %v1930
  %2820 = vmatpush1.bf16.msra.mxu0 %v1929
  %2821 = vmatprep.subr.bf16.mxu0 %v1922
  %2822 = vmatpush1.bf16.msra.mxu0 %v1921
  %2823 = vmatprep.subr.bf16.mxu0 %v1914
  %2824 = vmatpush1.bf16.msra.mxu0 %v1913
  %2825 = vmatprep.subr.bf16.mxu0 %v2034
  %2826 = vmatpush2.bf16.msra.mxu0 %v2033
  %2827 = vmatprep.subr.bf16.mxu0 %v2026
  %2828 = vmatpush2.bf16.msra.mxu0 %v2025
  %2829 = vmatprep.subr.bf16.mxu0 %v2018
  %2830 = vmatpush2.bf16.msra.mxu0 %v2017
  %2831 = vmatprep.subr.bf16.mxu0 %v2010
  %2832 = vmatpush2.bf16.msra.mxu0 %v2009
  %2833 = vmatprep.subr.bf16.mxu0 %v2002
  %2834 = vmatpush2.bf16.msra.mxu0 %v2001
  %2835 = vmatprep.subr.bf16.mxu0 %v1994
  %2836 = vmatpush2.bf16.msra.mxu0 %v1993
  %2837 = vmatprep.subr.bf16.mxu0 %v1986
  %2838 = vmatpush2.bf16.msra.mxu0 %v1985
  %2839 = vmatprep.subr.bf16.mxu0 %v1978
  %2840 = vmatpush2.bf16.msra.mxu0 %v1977
  %2841 = vmatprep.mubr.bf16.mxu0 %v556
  %2842 = vmatmul.mubr.bf16.gmra.mxu0 %v555
  %v2843 = vpop.f32.mrf.mxu0
  %v2844 = vadd.f32 %v507, %v2843
  %v2845 = vpop.f32.mrf.mxu0
  %v2846 = vadd.f32 %v511, %v2845
  %v2847 = vpop.f32.mrf.mxu0
  %v2848 = vpop.f32.mrf.mxu0
  %2849 = vdwg.mxu0
  %2850 = vmatprep.subr.bf16.mxu0 %v2098
  %2851 = vmatpush1.bf16.msra.mxu0 %v2097
  %2852 = vmatprep.subr.bf16.mxu0 %v2090
  %2853 = vmatpush1.bf16.msra.mxu0 %v2089
  %2854 = vmatprep.subr.bf16.mxu0 %v2082
  %2855 = vmatpush1.bf16.msra.mxu0 %v2081
  %2856 = vmatprep.subr.bf16.mxu0 %v2074
  %2857 = vmatpush1.bf16.msra.mxu0 %v2073
  %2858 = vmatprep.subr.bf16.mxu0 %v2066
  %2859 = vmatpush1.bf16.msra.mxu0 %v2065
  %2860 = vmatprep.subr.bf16.mxu0 %v2058
  %2861 = vmatpush1.bf16.msra.mxu0 %v2057
  %2862 = vmatprep.subr.bf16.mxu0 %v2050
  %2863 = vmatpush1.bf16.msra.mxu0 %v2049
  %2864 = vmatprep.subr.bf16.mxu0 %v2042
  %2865 = vmatpush1.bf16.msra.mxu0 %v2041
  %2866 = vmatprep.subr.bf16.mxu0 %v2162
  %2867 = vmatpush2.bf16.msra.mxu0 %v2161
  %2868 = vmatprep.subr.bf16.mxu0 %v2154
  %2869 = vmatpush2.bf16.msra.mxu0 %v2153
  %2870 = vmatprep.subr.bf16.mxu0 %v2146
  %2871 = vmatpush2.bf16.msra.mxu0 %v2145
  %2872 = vmatprep.subr.bf16.mxu0 %v2138
  %2873 = vmatpush2.bf16.msra.mxu0 %v2137
  %2874 = vmatprep.subr.bf16.mxu0 %v2130
  %2875 = vmatpush2.bf16.msra.mxu0 %v2129
  %2876 = vmatprep.subr.bf16.mxu0 %v2122
  %2877 = vmatpush2.bf16.msra.mxu0 %v2121
  %2878 = vmatprep.subr.bf16.mxu0 %v2114
  %2879 = vmatpush2.bf16.msra.mxu0 %v2113
  %2880 = vmatprep.subr.bf16.mxu0 %v2106
  %2881 = vmatpush2.bf16.msra.mxu0 %v2105
  %2882 = vmatprep.mubr.bf16.mxu0 %v558
  %2883 = vmatmul.mubr.bf16.gmra.mxu0 %v557
  %v2884 = vpop.f32.mrf.mxu0
  %v2885 = vadd.f32 %v2844, %v2884
  %v2886 = vpop.f32.mrf.mxu0
  %v2887 = vadd.f32 %v2846, %v2886
  %v2888 = vpop.f32.mrf.mxu0
  %v2889 = vpop.f32.mrf.mxu0
  %2890 = vdwg.mxu0
  %2891 = vmatprep.subr.bf16.mxu0 %v2226
  %2892 = vmatpush1.bf16.msra.mxu0 %v2225
  %2893 = vmatprep.subr.bf16.mxu0 %v2218
  %2894 = vmatpush1.bf16.msra.mxu0 %v2217
  %2895 = vmatprep.subr.bf16.mxu0 %v2210
  %2896 = vmatpush1.bf16.msra.mxu0 %v2209
  %2897 = vmatprep.subr.bf16.mxu0 %v2202
  %2898 = vmatpush1.bf16.msra.mxu0 %v2201
  %2899 = vmatprep.subr.bf16.mxu0 %v2194
  %2900 = vmatpush1.bf16.msra.mxu0 %v2193
  %2901 = vmatprep.subr.bf16.mxu0 %v2186
  %2902 = vmatpush1.bf16.msra.mxu0 %v2185
  %2903 = vmatprep.subr.bf16.mxu0 %v2178
  %2904 = vmatpush1.bf16.msra.mxu0 %v2177
  %2905 = vmatprep.subr.bf16.mxu0 %v2170
  %2906 = vmatpush1.bf16.msra.mxu0 %v2169
  %2907 = vmatprep.subr.bf16.mxu0 %v2290
  %2908 = vmatpush2.bf16.msra.mxu0 %v2289
  %2909 = vmatprep.subr.bf16.mxu0 %v2282
  %2910 = vmatpush2.bf16.msra.mxu0 %v2281
  %2911 = vmatprep.subr.bf16.mxu0 %v2274
  %2912 = vmatpush2.bf16.msra.mxu0 %v2273
  %2913 = vmatprep.subr.bf16.mxu0 %v2266
  %2914 = vmatpush2.bf16.msra.mxu0 %v2265
  %2915 = vmatprep.subr.bf16.mxu0 %v2258
  %2916 = vmatpush2.bf16.msra.mxu0 %v2257
  %2917 = vmatprep.subr.bf16.mxu0 %v2250
  %2918 = vmatpush2.bf16.msra.mxu0 %v2249
  %2919 = vmatprep.subr.bf16.mxu0 %v2242
  %2920 = vmatpush2.bf16.msra.mxu0 %v2241
  %2921 = vmatprep.subr.bf16.mxu0 %v2234
  %2922 = vmatpush2.bf16.msra.mxu0 %v2233
  %2923 = vmatprep.mubr.bf16.mxu0 %v560
  %2924 = vmatmul.mubr.bf16.gmra.mxu0 %v559
  %v2925 = vpop.f32.mrf.mxu0
  %v2926 = vadd.f32 %v2885, %v2925
  %v2927 = vpop.f32.mrf.mxu0
  %v2928 = vadd.f32 %v2887, %v2927
  %v2929 = vpop.f32.mrf.mxu0
  %v2930 = vpop.f32.mrf.mxu0
  %2931 = vdwg.mxu0
  %2932 = vmatprep.subr.bf16.mxu0 %v2354
  %2933 = vmatpush1.bf16.msra.mxu0 %v2353
  %2934 = vmatprep.subr.bf16.mxu0 %v2346
  %2935 = vmatpush1.bf16.msra.mxu0 %v2345
  %2936 = vmatprep.subr.bf16.mxu0 %v2338
  %2937 = vmatpush1.bf16.msra.mxu0 %v2337
  %2938 = vmatprep.subr.bf16.mxu0 %v2330
  %2939 = vmatpush1.bf16.msra.mxu0 %v2329
  %2940 = vmatprep.subr.bf16.mxu0 %v2322
  %2941 = vmatpush1.bf16.msra.mxu0 %v2321
  %2942 = vmatprep.subr.bf16.mxu0 %v2314
  %2943 = vmatpush1.bf16.msra.mxu0 %v2313
  %2944 = vmatprep.subr.bf16.mxu0 %v2306
  %2945 = vmatpush1.bf16.msra.mxu0 %v2305
  %2946 = vmatprep.subr.bf16.mxu0 %v2298
  %2947 = vmatpush1.bf16.msra.mxu0 %v2297
  %2948 = vmatprep.subr.bf16.mxu0 0
  %2949 = vmatpush2.bf16.msra.mxu0 0
  %2950 = vmatprep.subr.bf16.mxu0 0
  %2951 = vmatpush2.bf16.msra.mxu0 0
  %2952 = vmatprep.subr.bf16.mxu0 0
  %2953 = vmatpush2.bf16.msra.mxu0 0
  %2954 = vmatprep.subr.bf16.mxu0 0
  %2955 = vmatpush2.bf16.msra.mxu0 0
  %2956 = vmatprep.subr.bf16.mxu0 0
  %2957 = vmatpush2.bf16.msra.mxu0 0
  %2958 = vmatprep.subr.bf16.mxu0 0
  %2959 = vmatpush2.bf16.msra.mxu0 0
  %2960 = vmatprep.subr.bf16.mxu0 0
  %2961 = vmatpush2.bf16.msra.mxu0 0
  %2962 = vmatprep.subr.bf16.mxu0 0
  %2963 = vmatpush2.bf16.msra.mxu0 0
  %2964 = vmatprep.mubr.bf16.mxu0 0
  %2965 = vmatmul.mubr.bf16.gmra.mxu0 %v561
  %v2966 = vpop.f32.mrf.mxu0
  %v2967 = vadd.f32 %v2926, %v2966
  %v2968 = vpop.f32.mrf.mxu0
  %v2969 = vadd.f32 %v2928, %v2968
  %v2970 = vpop.f32.mrf.mxu0
  %v2971 = vpop.f32.mrf.mxu0
  %2972 = vdwg.mxu0
  %2973 = vmatprep.subr.bf16.mxu0 %v1972
  %2974 = vmatpush1.bf16.msra.mxu0 %v1971
  %2975 = vmatprep.subr.bf16.mxu0 %v1964
  %2976 = vmatpush1.bf16.msra.mxu0 %v1963
  %2977 = vmatprep.subr.bf16.mxu0 %v1956
  %2978 = vmatpush1.bf16.msra.mxu0 %v1955
  %2979 = vmatprep.subr.bf16.mxu0 %v1948
  %2980 = vmatpush1.bf16.msra.mxu0 %v1947
  %2981 = vmatprep.subr.bf16.mxu0 %v1940
  %2982 = vmatpush1.bf16.msra.mxu0 %v1939
  %2983 = vmatprep.subr.bf16.mxu0 %v1932
  %2984 = vmatpush1.bf16.msra.mxu0 %v1931
  %2985 = vmatprep.subr.bf16.mxu0 %v1924
  %2986 = vmatpush1.bf16.msra.mxu0 %v1923
  %2987 = vmatprep.subr.bf16.mxu0 %v1916
  %2988 = vmatpush1.bf16.msra.mxu0 %v1915
  %2989 = vmatprep.subr.bf16.mxu0 %v2036
  %2990 = vmatpush2.bf16.msra.mxu0 %v2035
  %2991 = vmatprep.subr.bf16.mxu0 %v2028
  %2992 = vmatpush2.bf16.msra.mxu0 %v2027
  %2993 = vmatprep.subr.bf16.mxu0 %v2020
  %2994 = vmatpush2.bf16.msra.mxu0 %v2019
  %2995 = vmatprep.subr.bf16.mxu0 %v2012
  %2996 = vmatpush2.bf16.msra.mxu0 %v2011
  %2997 = vmatprep.subr.bf16.mxu0 %v2004
  %2998 = vmatpush2.bf16.msra.mxu0 %v2003
  %2999 = vmatprep.subr.bf16.mxu0 %v1996
  %3000 = vmatpush2.bf16.msra.mxu0 %v1995
  %3001 = vmatprep.subr.bf16.mxu0 %v1988
  %3002 = vmatpush2.bf16.msra.mxu0 %v1987
  %3003 = vmatprep.subr.bf16.mxu0 %v1980
  %3004 = vmatpush2.bf16.msra.mxu0 %v1979
  %3005 = vmatprep.mubr.bf16.mxu0 %v556
  %3006 = vmatmul.mubr.bf16.gmra.mxu0 %v555
  %v3007 = vpop.f32.mrf.mxu0
  %v3008 = vadd.f32 %v515, %v3007
  %v3009 = vpop.f32.mrf.mxu0
  %v3010 = vadd.f32 %v519, %v3009
  %v3011 = vpop.f32.mrf.mxu0
  %v3012 = vpop.f32.mrf.mxu0
  %3013 = vdwg.mxu0
  %3014 = vmatprep.subr.bf16.mxu0 %v2100
  %3015 = vmatpush1.bf16.msra.mxu0 %v2099
  %3016 = vmatprep.subr.bf16.mxu0 %v2092
  %3017 = vmatpush1.bf16.msra.mxu0 %v2091
  %3018 = vmatprep.subr.bf16.mxu0 %v2084
  %3019 = vmatpush1.bf16.msra.mxu0 %v2083
  %3020 = vmatprep.subr.bf16.mxu0 %v2076
  %3021 = vmatpush1.bf16.msra.mxu0 %v2075
  %3022 = vmatprep.subr.bf16.mxu0 %v2068
  %3023 = vmatpush1.bf16.msra.mxu0 %v2067
  %3024 = vmatprep.subr.bf16.mxu0 %v2060
  %3025 = vmatpush1.bf16.msra.mxu0 %v2059
  %3026 = vmatprep.subr.bf16.mxu0 %v2052
  %3027 = vmatpush1.bf16.msra.mxu0 %v2051
  %3028 = vmatprep.subr.bf16.mxu0 %v2044
  %3029 = vmatpush1.bf16.msra.mxu0 %v2043
  %3030 = vmatprep.subr.bf16.mxu0 %v2164
  %3031 = vmatpush2.bf16.msra.mxu0 %v2163
  %3032 = vmatprep.subr.bf16.mxu0 %v2156
  %3033 = vmatpush2.bf16.msra.mxu0 %v2155
  %3034 = vmatprep.subr.bf16.mxu0 %v2148
  %3035 = vmatpush2.bf16.msra.mxu0 %v2147
  %3036 = vmatprep.subr.bf16.mxu0 %v2140
  %3037 = vmatpush2.bf16.msra.mxu0 %v2139
  %3038 = vmatprep.subr.bf16.mxu0 %v2132
  %3039 = vmatpush2.bf16.msra.mxu0 %v2131
  %3040 = vmatprep.subr.bf16.mxu0 %v2124
  %3041 = vmatpush2.bf16.msra.mxu0 %v2123
  %3042 = vmatprep.subr.bf16.mxu0 %v2116
  %3043 = vmatpush2.bf16.msra.mxu0 %v2115
  %3044 = vmatprep.subr.bf16.mxu0 %v2108
  %3045 = vmatpush2.bf16.msra.mxu0 %v2107
  %3046 = vmatprep.mubr.bf16.mxu0 %v558
  %3047 = vmatmul.mubr.bf16.gmra.mxu0 %v557
  %v3048 = vpop.f32.mrf.mxu0
  %v3049 = vadd.f32 %v3008, %v3048
  %v3050 = vpop.f32.mrf.mxu0
  %v3051 = vadd.f32 %v3010, %v3050
  %v3052 = vpop.f32.mrf.mxu0
  %v3053 = vpop.f32.mrf.mxu0
  %3054 = vdwg.mxu0
  %3055 = vmatprep.subr.bf16.mxu0 %v2228
  %3056 = vmatpush1.bf16.msra.mxu0 %v2227
  %3057 = vmatprep.subr.bf16.mxu0 %v2220
  %3058 = vmatpush1.bf16.msra.mxu0 %v2219
  %3059 = vmatprep.subr.bf16.mxu0 %v2212
  %3060 = vmatpush1.bf16.msra.mxu0 %v2211
  %3061 = vmatprep.subr.bf16.mxu0 %v2204
  %3062 = vmatpush1.bf16.msra.mxu0 %v2203
  %3063 = vmatprep.subr.bf16.mxu0 %v2196
  %3064 = vmatpush1.bf16.msra.mxu0 %v2195
  %3065 = vmatprep.subr.bf16.mxu0 %v2188
  %3066 = vmatpush1.bf16.msra.mxu0 %v2187
  %3067 = vmatprep.subr.bf16.mxu0 %v2180
  %3068 = vmatpush1.bf16.msra.mxu0 %v2179
  %3069 = vmatprep.subr.bf16.mxu0 %v2172
  %3070 = vmatpush1.bf16.msra.mxu0 %v2171
  %3071 = vmatprep.subr.bf16.mxu0 %v2292
  %3072 = vmatpush2.bf16.msra.mxu0 %v2291
  %3073 = vmatprep.subr.bf16.mxu0 %v2284
  %3074 = vmatpush2.bf16.msra.mxu0 %v2283
  %3075 = vmatprep.subr.bf16.mxu0 %v2276
  %3076 = vmatpush2.bf16.msra.mxu0 %v2275
  %3077 = vmatprep.subr.bf16.mxu0 %v2268
  %3078 = vmatpush2.bf16.msra.mxu0 %v2267
  %3079 = vmatprep.subr.bf16.mxu0 %v2260
  %3080 = vmatpush2.bf16.msra.mxu0 %v2259
  %3081 = vmatprep.subr.bf16.mxu0 %v2252
  %3082 = vmatpush2.bf16.msra.mxu0 %v2251
  %3083 = vmatprep.subr.bf16.mxu0 %v2244
  %3084 = vmatpush2.bf16.msra.mxu0 %v2243
  %3085 = vmatprep.subr.bf16.mxu0 %v2236
  %3086 = vmatpush2.bf16.msra.mxu0 %v2235
  %3087 = vmatprep.mubr.bf16.mxu0 %v560
  %3088 = vmatmul.mubr.bf16.gmra.mxu0 %v559
  %v3089 = vpop.f32.mrf.mxu0
  %v3090 = vadd.f32 %v3049, %v3089
  %v3091 = vpop.f32.mrf.mxu0
  %v3092 = vadd.f32 %v3051, %v3091
  %v3093 = vpop.f32.mrf.mxu0
  %v3094 = vpop.f32.mrf.mxu0
  %3095 = vdwg.mxu0
  %3096 = vmatprep.subr.bf16.mxu0 %v2356
  %3097 = vmatpush1.bf16.msra.mxu0 %v2355
  %3098 = vmatprep.subr.bf16.mxu0 %v2348
  %3099 = vmatpush1.bf16.msra.mxu0 %v2347
  %3100 = vmatprep.subr.bf16.mxu0 %v2340
  %3101 = vmatpush1.bf16.msra.mxu0 %v2339
  %3102 = vmatprep.subr.bf16.mxu0 %v2332
  %3103 = vmatpush1.bf16.msra.mxu0 %v2331
  %3104 = vmatprep.subr.bf16.mxu0 %v2324
  %3105 = vmatpush1.bf16.msra.mxu0 %v2323
  %3106 = vmatprep.subr.bf16.mxu0 %v2316
  %3107 = vmatpush1.bf16.msra.mxu0 %v2315
  %3108 = vmatprep.subr.bf16.mxu0 %v2308
  %3109 = vmatpush1.bf16.msra.mxu0 %v2307
  %3110 = vmatprep.subr.bf16.mxu0 %v2300
  %3111 = vmatpush1.bf16.msra.mxu0 %v2299
  %3112 = vmatprep.subr.bf16.mxu0 0
  %3113 = vmatpush2.bf16.msra.mxu0 0
  %3114 = vmatprep.subr.bf16.mxu0 0
  %3115 = vmatpush2.bf16.msra.mxu0 0
  %3116 = vmatprep.subr.bf16.mxu0 0
  %3117 = vmatpush2.bf16.msra.mxu0 0
  %3118 = vmatprep.subr.bf16.mxu0 0
  %3119 = vmatpush2.bf16.msra.mxu0 0
  %3120 = vmatprep.subr.bf16.mxu0 0
  %3121 = vmatpush2.bf16.msra.mxu0 0
  %3122 = vmatprep.subr.bf16.mxu0 0
  %3123 = vmatpush2.bf16.msra.mxu0 0
  %3124 = vmatprep.subr.bf16.mxu0 0
  %3125 = vmatpush2.bf16.msra.mxu0 0
  %3126 = vmatprep.subr.bf16.mxu0 0
  %3127 = vmatpush2.bf16.msra.mxu0 0
  %3128 = vmatprep.mubr.bf16.mxu0 0
  %3129 = vmatmul.mubr.bf16.gmra.mxu0 %v561
  %v3130 = vpop.f32.mrf.mxu0
  %v3131 = vadd.f32 %v3090, %v3130
  %v3132 = vpop.f32.mrf.mxu0
  %v3133 = vadd.f32 %v3092, %v3132
  %v3134 = vpop.f32.mrf.mxu0
  %v3135 = vpop.f32.mrf.mxu0
  %3136 = vdwg.mxu0
  %3137 = vmatprep.subr.bf16.mxu0 %v1974
  %3138 = vmatpush1.bf16.msra.mxu0 %v1973
  %3139 = vmatprep.subr.bf16.mxu0 %v1966
  %3140 = vmatpush1.bf16.msra.mxu0 %v1965
  %3141 = vmatprep.subr.bf16.mxu0 %v1958
  %3142 = vmatpush1.bf16.msra.mxu0 %v1957
  %3143 = vmatprep.subr.bf16.mxu0 %v1950
  %3144 = vmatpush1.bf16.msra.mxu0 %v1949
  %3145 = vmatprep.subr.bf16.mxu0 %v1942
  %3146 = vmatpush1.bf16.msra.mxu0 %v1941
  %3147 = vmatprep.subr.bf16.mxu0 %v1934
  %3148 = vmatpush1.bf16.msra.mxu0 %v1933
  %3149 = vmatprep.subr.bf16.mxu0 %v1926
  %3150 = vmatpush1.bf16.msra.mxu0 %v1925
  %3151 = vmatprep.subr.bf16.mxu0 %v1918
  %3152 = vmatpush1.bf16.msra.mxu0 %v1917
  %3153 = vmatprep.subr.bf16.mxu0 %v2038
  %3154 = vmatpush2.bf16.msra.mxu0 %v2037
  %3155 = vmatprep.subr.bf16.mxu0 %v2030
  %3156 = vmatpush2.bf16.msra.mxu0 %v2029
  %3157 = vmatprep.subr.bf16.mxu0 %v2022
  %3158 = vmatpush2.bf16.msra.mxu0 %v2021
  %3159 = vmatprep.subr.bf16.mxu0 %v2014
  %3160 = vmatpush2.bf16.msra.mxu0 %v2013
  %3161 = vmatprep.subr.bf16.mxu0 %v2006
  %3162 = vmatpush2.bf16.msra.mxu0 %v2005
  %3163 = vmatprep.subr.bf16.mxu0 %v1998
  %3164 = vmatpush2.bf16.msra.mxu0 %v1997
  %3165 = vmatprep.subr.bf16.mxu0 %v1990
  %3166 = vmatpush2.bf16.msra.mxu0 %v1989
  %3167 = vmatprep.subr.bf16.mxu0 %v1982
  %3168 = vmatpush2.bf16.msra.mxu0 %v1981
  %3169 = vmatprep.mubr.bf16.mxu0 %v556
  %3170 = vmatmul.mubr.bf16.gmra.mxu0 %v555
  %v3171 = vpop.f32.mrf.mxu0
  %v3172 = vadd.f32 %v523, %v3171
  %v3173 = vpop.f32.mrf.mxu0
  %v3174 = vadd.f32 %v527, %v3173
  %v3175 = vpop.f32.mrf.mxu0
  %v3176 = vpop.f32.mrf.mxu0
  %3177 = vdwg.mxu0
  %3178 = vmatprep.subr.bf16.mxu0 %v2102
  %3179 = vmatpush1.bf16.msra.mxu0 %v2101
  %3180 = vmatprep.subr.bf16.mxu0 %v2094
  %3181 = vmatpush1.bf16.msra.mxu0 %v2093
  %3182 = vmatprep.subr.bf16.mxu0 %v2086
  %3183 = vmatpush1.bf16.msra.mxu0 %v2085
  %3184 = vmatprep.subr.bf16.mxu0 %v2078
  %3185 = vmatpush1.bf16.msra.mxu0 %v2077
  %3186 = vmatprep.subr.bf16.mxu0 %v2070
  %3187 = vmatpush1.bf16.msra.mxu0 %v2069
  %3188 = vmatprep.subr.bf16.mxu0 %v2062
  %3189 = vmatpush1.bf16.msra.mxu0 %v2061
  %3190 = vmatprep.subr.bf16.mxu0 %v2054
  %3191 = vmatpush1.bf16.msra.mxu0 %v2053
  %3192 = vmatprep.subr.bf16.mxu0 %v2046
  %3193 = vmatpush1.bf16.msra.mxu0 %v2045
  %3194 = vmatprep.subr.bf16.mxu0 %v2166
  %3195 = vmatpush2.bf16.msra.mxu0 %v2165
  %3196 = vmatprep.subr.bf16.mxu0 %v2158
  %3197 = vmatpush2.bf16.msra.mxu0 %v2157
  %3198 = vmatprep.subr.bf16.mxu0 %v2150
  %3199 = vmatpush2.bf16.msra.mxu0 %v2149
  %3200 = vmatprep.subr.bf16.mxu0 %v2142
  %3201 = vmatpush2.bf16.msra.mxu0 %v2141
  %3202 = vmatprep.subr.bf16.mxu0 %v2134
  %3203 = vmatpush2.bf16.msra.mxu0 %v2133
  %3204 = vmatprep.subr.bf16.mxu0 %v2126
  %3205 = vmatpush2.bf16.msra.mxu0 %v2125
  %3206 = vmatprep.subr.bf16.mxu0 %v2118
  %3207 = vmatpush2.bf16.msra.mxu0 %v2117
  %3208 = vmatprep.subr.bf16.mxu0 %v2110
  %3209 = vmatpush2.bf16.msra.mxu0 %v2109
  %3210 = vmatprep.mubr.bf16.mxu0 %v558
  %3211 = vmatmul.mubr.bf16.gmra.mxu0 %v557
  %v3212 = vpop.f32.mrf.mxu0
  %v3213 = vadd.f32 %v3172, %v3212
  %v3214 = vpop.f32.mrf.mxu0
  %v3215 = vadd.f32 %v3174, %v3214
  %v3216 = vpop.f32.mrf.mxu0
  %v3217 = vpop.f32.mrf.mxu0
  %3218 = vdwg.mxu0
  %3219 = vmatprep.subr.bf16.mxu0 %v2230
  %3220 = vmatpush1.bf16.msra.mxu0 %v2229
  %3221 = vmatprep.subr.bf16.mxu0 %v2222
  %3222 = vmatpush1.bf16.msra.mxu0 %v2221
  %3223 = vmatprep.subr.bf16.mxu0 %v2214
  %3224 = vmatpush1.bf16.msra.mxu0 %v2213
  %3225 = vmatprep.subr.bf16.mxu0 %v2206
  %3226 = vmatpush1.bf16.msra.mxu0 %v2205
  %3227 = vmatprep.subr.bf16.mxu0 %v2198
  %3228 = vmatpush1.bf16.msra.mxu0 %v2197
  %3229 = vmatprep.subr.bf16.mxu0 %v2190
  %3230 = vmatpush1.bf16.msra.mxu0 %v2189
  %3231 = vmatprep.subr.bf16.mxu0 %v2182
  %3232 = vmatpush1.bf16.msra.mxu0 %v2181
  %3233 = vmatprep.subr.bf16.mxu0 %v2174
  %3234 = vmatpush1.bf16.msra.mxu0 %v2173
  %3235 = vmatprep.subr.bf16.mxu0 %v2294
  %3236 = vmatpush2.bf16.msra.mxu0 %v2293
  %3237 = vmatprep.subr.bf16.mxu0 %v2286
  %3238 = vmatpush2.bf16.msra.mxu0 %v2285
  %3239 = vmatprep.subr.bf16.mxu0 %v2278
  %3240 = vmatpush2.bf16.msra.mxu0 %v2277
  %3241 = vmatprep.subr.bf16.mxu0 %v2270
  %3242 = vmatpush2.bf16.msra.mxu0 %v2269
  %3243 = vmatprep.subr.bf16.mxu0 %v2262
  %3244 = vmatpush2.bf16.msra.mxu0 %v2261
  %3245 = vmatprep.subr.bf16.mxu0 %v2254
  %3246 = vmatpush2.bf16.msra.mxu0 %v2253
  %3247 = vmatprep.subr.bf16.mxu0 %v2246
  %3248 = vmatpush2.bf16.msra.mxu0 %v2245
  %3249 = vmatprep.subr.bf16.mxu0 %v2238
  %3250 = vmatpush2.bf16.msra.mxu0 %v2237
  %3251 = vmatprep.mubr.bf16.mxu0 %v560
  %3252 = vmatmul.mubr.bf16.gmra.mxu0 %v559
  %v3253 = vpop.f32.mrf.mxu0
  %v3254 = vadd.f32 %v3213, %v3253
  %v3255 = vpop.f32.mrf.mxu0
  %v3256 = vadd.f32 %v3215, %v3255
  %v3257 = vpop.f32.mrf.mxu0
  %v3258 = vpop.f32.mrf.mxu0
  %3259 = vdwg.mxu0
  %3260 = vmatprep.subr.bf16.mxu0 %v2358
  %3261 = vmatpush1.bf16.msra.mxu0 %v2357
  %3262 = vmatprep.subr.bf16.mxu0 %v2350
  %3263 = vmatpush1.bf16.msra.mxu0 %v2349
  %3264 = vmatprep.subr.bf16.mxu0 %v2342
  %3265 = vmatpush1.bf16.msra.mxu0 %v2341
  %3266 = vmatprep.subr.bf16.mxu0 %v2334
  %3267 = vmatpush1.bf16.msra.mxu0 %v2333
  %3268 = vmatprep.subr.bf16.mxu0 %v2326
  %3269 = vmatpush1.bf16.msra.mxu0 %v2325
  %3270 = vmatprep.subr.bf16.mxu0 %v2318
  %3271 = vmatpush1.bf16.msra.mxu0 %v2317
  %3272 = vmatprep.subr.bf16.mxu0 %v2310
  %3273 = vmatpush1.bf16.msra.mxu0 %v2309
  %3274 = vmatprep.subr.bf16.mxu0 %v2302
  %3275 = vmatpush1.bf16.msra.mxu0 %v2301
  %3276 = vmatprep.subr.bf16.mxu0 0
  %3277 = vmatpush2.bf16.msra.mxu0 0
  %3278 = vmatprep.subr.bf16.mxu0 0
  %3279 = vmatpush2.bf16.msra.mxu0 0
  %3280 = vmatprep.subr.bf16.mxu0 0
  %3281 = vmatpush2.bf16.msra.mxu0 0
  %3282 = vmatprep.subr.bf16.mxu0 0
  %3283 = vmatpush2.bf16.msra.mxu0 0
  %3284 = vmatprep.subr.bf16.mxu0 0
  %3285 = vmatpush2.bf16.msra.mxu0 0
  %3286 = vmatprep.subr.bf16.mxu0 0
  %3287 = vmatpush2.bf16.msra.mxu0 0
  %3288 = vmatprep.subr.bf16.mxu0 0
  %3289 = vmatpush2.bf16.msra.mxu0 0
  %3290 = vmatprep.subr.bf16.mxu0 0
  %3291 = vmatpush2.bf16.msra.mxu0 0
  %3292 = vmatprep.mubr.bf16.mxu0 0
  %3293 = vmatmul.mubr.bf16.gmra.mxu0 %v561
  %v3294 = vpop.f32.mrf.mxu0
  %v3295 = vadd.f32 %v3254, %v3294
  %v3296 = vpop.f32.mrf.mxu0
  %v3297 = vadd.f32 %v3256, %v3296
  %v3298 = vpop.f32.mrf.mxu0
  %v3299 = vpop.f32.mrf.mxu0
  %3300 = vdwg.mxu0
  %3301 = vmatprep.subr.bf16.mxu0 %v1976
  %3302 = vmatpush1.bf16.msra.mxu0 %v1975
  %3303 = vmatprep.subr.bf16.mxu0 %v1968
  %3304 = vmatpush1.bf16.msra.mxu0 %v1967
  %3305 = vmatprep.subr.bf16.mxu0 %v1960
  %3306 = vmatpush1.bf16.msra.mxu0 %v1959
  %3307 = vmatprep.subr.bf16.mxu0 %v1952
  %3308 = vmatpush1.bf16.msra.mxu0 %v1951
  %3309 = vmatprep.subr.bf16.mxu0 %v1944
  %3310 = vmatpush1.bf16.msra.mxu0 %v1943
  %3311 = vmatprep.subr.bf16.mxu0 %v1936
  %3312 = vmatpush1.bf16.msra.mxu0 %v1935
  %3313 = vmatprep.subr.bf16.mxu0 %v1928
  %3314 = vmatpush1.bf16.msra.mxu0 %v1927
  %3315 = vmatprep.subr.bf16.mxu0 %v1920
  %3316 = vmatpush1.bf16.msra.mxu0 %v1919
  %3317 = vmatprep.subr.bf16.mxu0 %v2040
  %3318 = vmatpush2.bf16.msra.mxu0 %v2039
  %3319 = vmatprep.subr.bf16.mxu0 %v2032
  %3320 = vmatpush2.bf16.msra.mxu0 %v2031
  %3321 = vmatprep.subr.bf16.mxu0 %v2024
  %3322 = vmatpush2.bf16.msra.mxu0 %v2023
  %3323 = vmatprep.subr.bf16.mxu0 %v2016
  %3324 = vmatpush2.bf16.msra.mxu0 %v2015
  %3325 = vmatprep.subr.bf16.mxu0 %v2008
  %3326 = vmatpush2.bf16.msra.mxu0 %v2007
  %3327 = vmatprep.subr.bf16.mxu0 %v2000
  %3328 = vmatpush2.bf16.msra.mxu0 %v1999
  %3329 = vmatprep.subr.bf16.mxu0 %v1992
  %3330 = vmatpush2.bf16.msra.mxu0 %v1991
  %3331 = vmatprep.subr.bf16.mxu0 %v1984
  %3332 = vmatpush2.bf16.msra.mxu0 %v1983
  %3333 = vmatprep.mubr.bf16.mxu0 %v556
  %3334 = vmatmul.mubr.bf16.gmra.mxu0 %v555
  %v3335 = vpop.f32.mrf.mxu0
  %v3336 = vadd.f32 %v531, %v3335
  %v3337 = vpop.f32.mrf.mxu0
  %v3338 = vadd.f32 %v535, %v3337
  %v3339 = vpop.f32.mrf.mxu0
  %v3340 = vpop.f32.mrf.mxu0
  %3341 = vdwg.mxu0
  %3342 = vmatprep.subr.bf16.mxu0 %v2104
  %3343 = vmatpush1.bf16.msra.mxu0 %v2103
  %3344 = vmatprep.subr.bf16.mxu0 %v2096
  %3345 = vmatpush1.bf16.msra.mxu0 %v2095
  %3346 = vmatprep.subr.bf16.mxu0 %v2088
  %3347 = vmatpush1.bf16.msra.mxu0 %v2087
  %3348 = vmatprep.subr.bf16.mxu0 %v2080
  %3349 = vmatpush1.bf16.msra.mxu0 %v2079
  %3350 = vmatprep.subr.bf16.mxu0 %v2072
  %3351 = vmatpush1.bf16.msra.mxu0 %v2071
  %3352 = vmatprep.subr.bf16.mxu0 %v2064
  %3353 = vmatpush1.bf16.msra.mxu0 %v2063
  %3354 = vmatprep.subr.bf16.mxu0 %v2056
  %3355 = vmatpush1.bf16.msra.mxu0 %v2055
  %3356 = vmatprep.subr.bf16.mxu0 %v2048
  %3357 = vmatpush1.bf16.msra.mxu0 %v2047
  %3358 = vmatprep.subr.bf16.mxu0 %v2168
  %3359 = vmatpush2.bf16.msra.mxu0 %v2167
  %3360 = vmatprep.subr.bf16.mxu0 %v2160
  %3361 = vmatpush2.bf16.msra.mxu0 %v2159
  %3362 = vmatprep.subr.bf16.mxu0 %v2152
  %3363 = vmatpush2.bf16.msra.mxu0 %v2151
  %3364 = vmatprep.subr.bf16.mxu0 %v2144
  %3365 = vmatpush2.bf16.msra.mxu0 %v2143
  %3366 = vmatprep.subr.bf16.mxu0 %v2136
  %3367 = vmatpush2.bf16.msra.mxu0 %v2135
  %3368 = vmatprep.subr.bf16.mxu0 %v2128
  %3369 = vmatpush2.bf16.msra.mxu0 %v2127
  %3370 = vmatprep.subr.bf16.mxu0 %v2120
  %3371 = vmatpush2.bf16.msra.mxu0 %v2119
  %3372 = vmatprep.subr.bf16.mxu0 %v2112
  %3373 = vmatpush2.bf16.msra.mxu0 %v2111
  %3374 = vmatprep.mubr.bf16.mxu0 %v558
  %3375 = vmatmul.mubr.bf16.gmra.mxu0 %v557
  %v3376 = vpop.f32.mrf.mxu0
  %v3377 = vadd.f32 %v3336, %v3376
  %v3378 = vpop.f32.mrf.mxu0
  %v3379 = vadd.f32 %v3338, %v3378
  %v3380 = vpop.f32.mrf.mxu0
  %v3381 = vpop.f32.mrf.mxu0
  %3382 = vdwg.mxu0
  %3383 = vmatprep.subr.bf16.mxu0 %v2232
  %3384 = vmatpush1.bf16.msra.mxu0 %v2231
  %3385 = vmatprep.subr.bf16.mxu0 %v2224
  %3386 = vmatpush1.bf16.msra.mxu0 %v2223
  %3387 = vmatprep.subr.bf16.mxu0 %v2216
  %3388 = vmatpush1.bf16.msra.mxu0 %v2215
  %3389 = vmatprep.subr.bf16.mxu0 %v2208
  %3390 = vmatpush1.bf16.msra.mxu0 %v2207
  %3391 = vmatprep.subr.bf16.mxu0 %v2200
  %3392 = vmatpush1.bf16.msra.mxu0 %v2199
  %3393 = vmatprep.subr.bf16.mxu0 %v2192
  %3394 = vmatpush1.bf16.msra.mxu0 %v2191
  %3395 = vmatprep.subr.bf16.mxu0 %v2184
  %3396 = vmatpush1.bf16.msra.mxu0 %v2183
  %3397 = vmatprep.subr.bf16.mxu0 %v2176
  %3398 = vmatpush1.bf16.msra.mxu0 %v2175
  %3399 = vmatprep.subr.bf16.mxu0 %v2296
  %3400 = vmatpush2.bf16.msra.mxu0 %v2295
  %3401 = vmatprep.subr.bf16.mxu0 %v2288
  %3402 = vmatpush2.bf16.msra.mxu0 %v2287
  %3403 = vmatprep.subr.bf16.mxu0 %v2280
  %3404 = vmatpush2.bf16.msra.mxu0 %v2279
  %3405 = vmatprep.subr.bf16.mxu0 %v2272
  %3406 = vmatpush2.bf16.msra.mxu0 %v2271
  %3407 = vmatprep.subr.bf16.mxu0 %v2264
  %3408 = vmatpush2.bf16.msra.mxu0 %v2263
  %3409 = vmatprep.subr.bf16.mxu0 %v2256
  %3410 = vmatpush2.bf16.msra.mxu0 %v2255
  %3411 = vmatprep.subr.bf16.mxu0 %v2248
  %3412 = vmatpush2.bf16.msra.mxu0 %v2247
  %3413 = vmatprep.subr.bf16.mxu0 %v2240
  %3414 = vmatpush2.bf16.msra.mxu0 %v2239
  %3415 = vmatprep.mubr.bf16.mxu0 %v560
  %3416 = vmatmul.mubr.bf16.gmra.mxu0 %v559
  %v3417 = vpop.f32.mrf.mxu0
  %v3418 = vadd.f32 %v3377, %v3417
  %v3419 = vpop.f32.mrf.mxu0
  %v3420 = vadd.f32 %v3379, %v3419
  %v3421 = vpop.f32.mrf.mxu0
  %v3422 = vpop.f32.mrf.mxu0
  %3423 = vdwg.mxu0
  %3424 = vmatprep.subr.bf16.mxu0 %v2360
  %3425 = vmatpush1.bf16.msra.mxu0 %v2359
  %3426 = vmatprep.subr.bf16.mxu0 %v2352
  %3427 = vmatpush1.bf16.msra.mxu0 %v2351
  %3428 = vmatprep.subr.bf16.mxu0 %v2344
  %3429 = vmatpush1.bf16.msra.mxu0 %v2343
  %3430 = vmatprep.subr.bf16.mxu0 %v2336
  %3431 = vmatpush1.bf16.msra.mxu0 %v2335
  %3432 = vmatprep.subr.bf16.mxu0 %v2328
  %3433 = vmatpush1.bf16.msra.mxu0 %v2327
  %3434 = vmatprep.subr.bf16.mxu0 %v2320
  %3435 = vmatpush1.bf16.msra.mxu0 %v2319
  %3436 = vmatprep.subr.bf16.mxu0 %v2312
  %3437 = vmatpush1.bf16.msra.mxu0 %v2311
  %3438 = vmatprep.subr.bf16.mxu0 %v2304
  %3439 = vmatpush1.bf16.msra.mxu0 %v2303
  %3440 = vmatprep.subr.bf16.mxu0 0
  %3441 = vmatpush2.bf16.msra.mxu0 0
  %3442 = vmatprep.subr.bf16.mxu0 0
  %3443 = vmatpush2.bf16.msra.mxu0 0
  %3444 = vmatprep.subr.bf16.mxu0 0
  %3445 = vmatpush2.bf16.msra.mxu0 0
  %3446 = vmatprep.subr.bf16.mxu0 0
  %3447 = vmatpush2.bf16.msra.mxu0 0
  %3448 = vmatprep.subr.bf16.mxu0 0
  %3449 = vmatpush2.bf16.msra.mxu0 0
  %3450 = vmatprep.subr.bf16.mxu0 0
  %3451 = vmatpush2.bf16.msra.mxu0 0
  %3452 = vmatprep.subr.bf16.mxu0 0
  %3453 = vmatpush2.bf16.msra.mxu0 0
  %3454 = vmatprep.subr.bf16.mxu0 0
  %3455 = vmatpush2.bf16.msra.mxu0 0
  %3456 = vmatprep.mubr.bf16.mxu0 0
  %3457 = vmatmul.mubr.bf16.gmra.mxu0 %v561
  %v3458 = vpop.f32.mrf.mxu0
  %v3459 = vadd.f32 %v3418, %v3458
  %v3460 = vpop.f32.mrf.mxu0
  %v3461 = vadd.f32 %v3420, %v3460
  %v3462 = vpop.f32.mrf.mxu0
  %v3463 = vpop.f32.mrf.mxu0
  %3464 = vdwg.mxu0
  %v3465 = vmax.f32 %v2967, 0.0
  %v3466 = vmax.f32 %v2969, 0.0
  %v3467 = vmax.f32 %v3131, 0.0
  %v3468 = vmax.f32 %v3133, 0.0
  %v3469 = vmax.f32 %v3295, 0.0
  %v3470 = vmax.f32 %v3297, 0.0
  %v3471 = vmax.f32 %v3459, 0.0
  %v3472 = vmax.f32 %v3461, 0.0
  %v3473 = vpack.c.bf16 %v3465, %v3465
  %v3474 = vpack.c.bf16 %v3466, %v3466
  %v3475 = vpack.c.bf16 %v3467, %v3467
  %v3476 = vpack.c.bf16 %v3468, %v3468
  %v3477 = vpack.c.bf16 %v3469, %v3469
  %v3478 = vpack.c.bf16 %v3470, %v3470
  %v3479 = vpack.c.bf16 %v3471, %v3471
  %v3480 = vpack.c.bf16 %v3472, %v3472
  %v3481 = vld [vmem:[%s4] sm:$0xff]
  %v3482 = vld [vmem:[%s4 + $0x8] sm:$0xff]
  %v3483 = vld [vmem:[%s4 + $0x10] sm:$0xff]
  %v3484 = vld [vmem:[%s4 + $0x18] sm:$0xff]
  %v3485 = vld [vmem:[%s4 + $0x20] sm:$0xff]
  %v3486 = vld [vmem:[%s4 + $0x28] sm:$0xff]
  %v3487 = vld [vmem:[%s4 + $0x30] sm:$0xff]
  %v3488 = vld [vmem:[%s4 + $0x38] sm:$0xff]
  %v3489 = vld [vmem:[%s4 + $0x40] sm:$0xff]
  %v3490 = vld [vmem:[%s4 + $0x48] sm:$0xff]
  %v3491 = vld [vmem:[%s4 + $0x50] sm:$0xff]
  %v3492 = vld [vmem:[%s4 + $0x58] sm:$0xff]
  %v3493 = vld [vmem:[%s4 + $0x60] sm:$0xff]
  %v3494 = vld [vmem:[%s4 + $0x68] sm:$0xff]
  %v3495 = vld [vmem:[%s4 + $0x70] sm:$0xff]
  %v3496 = vld [vmem:[%s4 + $0x78] sm:$0xff]
  %v3497 = vld [vmem:[%s4 + $0x80] sm:$0xff]
  %v3498 = vld [vmem:[%s4 + $0x88] sm:$0xff]
  %v3499 = vld [vmem:[%s4 + $0x90] sm:$0xff]
  %v3500 = vld [vmem:[%s4 + $0x98] sm:$0xff]
  %v3501 = vld [vmem:[%s4 + $0xa0] sm:$0xff]
  %v3502 = vld [vmem:[%s4 + $0xa8] sm:$0xff]
  %v3503 = vld [vmem:[%s4 + $0xb0] sm:$0xff]
  %v3504 = vld [vmem:[%s4 + $0xb8] sm:$0xff]
  %v3505 = vld [vmem:[%s4 + $0xc0] sm:$0xff]
  %v3506 = vld [vmem:[%s4 + $0xc8] sm:$0xff]
  %v3507 = vld [vmem:[%s4 + $0xd0] sm:$0xff]
  %v3508 = vld [vmem:[%s4 + $0xd8] sm:$0xff]
  %v3509 = vld [vmem:[%s4 + $0xe0] sm:$0xff]
  %v3510 = vld [vmem:[%s4 + $0xe8] sm:$0xff]
  %v3511 = vld [vmem:[%s4 + $0xf0] sm:$0xff]
  %v3512 = vld [vmem:[%s4 + $0xf8] sm:$0xff]
  %v3513 = vld [vmem:[%s4 + $0x100] sm:$0xff]
  %v3514 = vld [vmem:[%s4 + $0x108] sm:$0xff]
  %v3515 = vld [vmem:[%s4 + $0x110] sm:$0xff]
  %v3516 = vld [vmem:[%s4 + $0x118] sm:$0xff]
  %v3517 = vld [vmem:[%s4 + $0x120] sm:$0xff]
  %v3518 = vld [vmem:[%s4 + $0x128] sm:$0xff]
  %v3519 = vld [vmem:[%s4 + $0x130] sm:$0xff]
  %v3520 = vld [vmem:[%s4 + $0x138] sm:$0xff]
  %v3521 = vld [vmem:[%s4 + $0x140] sm:$0xff]
  %v3522 = vld [vmem:[%s4 + $0x148] sm:$0xff]
  %v3523 = vld [vmem:[%s4 + $0x150] sm:$0xff]
  %v3524 = vld [vmem:[%s4 + $0x158] sm:$0xff]
  %v3525 = vld [vmem:[%s4 + $0x160] sm:$0xff]
  %v3526 = vld [vmem:[%s4 + $0x168] sm:$0xff]
  %v3527 = vld [vmem:[%s4 + $0x170] sm:$0xff]
  %v3528 = vld [vmem:[%s4 + $0x178] sm:$0xff]
  %v3529 = vld [vmem:[%s4 + $0x180] sm:$0xff]
  %v3530 = vld [vmem:[%s4 + $0x188] sm:$0xff]
  %v3531 = vld [vmem:[%s4 + $0x190] sm:$0xff]
  %v3532 = vld [vmem:[%s4 + $0x198] sm:$0xff]
  %v3533 = vld [vmem:[%s4 + $0x1a0] sm:$0xff]
  %v3534 = vld [vmem:[%s4 + $0x1a8] sm:$0xff]
  %v3535 = vld [vmem:[%s4 + $0x1b0] sm:$0xff]
  %v3536 = vld [vmem:[%s4 + $0x1b8] sm:$0xff]
  %v3537 = vld [vmem:[%s4 + $0x1c0] sm:$0xff]
  %v3538 = vld [vmem:[%s4 + $0x1c8] sm:$0xff]
  %v3539 = vld [vmem:[%s4 + $0x1d0] sm:$0xff]
  %v3540 = vld [vmem:[%s4 + $0x1d8] sm:$0xff]
  %v3541 = vld [vmem:[%s4 + $0x1e0] sm:$0xff]
  %v3542 = vld [vmem:[%s4 + $0x1e8] sm:$0xff]
  %v3543 = vld [vmem:[%s4 + $0x1f0] sm:$0xff]
  %v3544 = vld [vmem:[%s4 + $0x1f8] sm:$0xff]
  %v3545 = vld [vmem:[%s4 + $0x200] sm:$0xff]
  %v3546 = vld [vmem:[%s4 + $0x208] sm:$0xff]
  %v3547 = vld [vmem:[%s4 + $0x210] sm:$0xff]
  %v3548 = vld [vmem:[%s4 + $0x218] sm:$0xff]
  %v3549 = vld [vmem:[%s4 + $0x220] sm:$0xff]
  %v3550 = vld [vmem:[%s4 + $0x228] sm:$0xff]
  %v3551 = vld [vmem:[%s4 + $0x230] sm:$0xff]
  %v3552 = vld [vmem:[%s4 + $0x238] sm:$0xff]
  %v3553 = vld [vmem:[%s4 + $0x240] sm:$0xff]
  %v3554 = vld [vmem:[%s4 + $0x248] sm:$0xff]
  %v3555 = vld [vmem:[%s4 + $0x250] sm:$0xff]
  %v3556 = vld [vmem:[%s4 + $0x258] sm:$0xff]
  %v3557 = vld [vmem:[%s4 + $0x260] sm:$0xff]
  %v3558 = vld [vmem:[%s4 + $0x268] sm:$0xff]
  %v3559 = vld [vmem:[%s4 + $0x270] sm:$0xff]
  %v3560 = vld [vmem:[%s4 + $0x278] sm:$0xff]
  %v3561 = vld [vmem:[%s4 + $0x280] sm:$0xff]
  %v3562 = vld [vmem:[%s4 + $0x288] sm:$0xff]
  %v3563 = vld [vmem:[%s4 + $0x290] sm:$0xff]
  %v3564 = vld [vmem:[%s4 + $0x298] sm:$0xff]
  %v3565 = vld [vmem:[%s4 + $0x2a0] sm:$0xff]
  %v3566 = vld [vmem:[%s4 + $0x2a8] sm:$0xff]
  %v3567 = vld [vmem:[%s4 + $0x2b0] sm:$0xff]
  %v3568 = vld [vmem:[%s4 + $0x2b8] sm:$0xff]
  %v3569 = vld [vmem:[%s4 + $0x2c0] sm:$0xff]
  %v3570 = vld [vmem:[%s4 + $0x2c8] sm:$0xff]
  %v3571 = vld [vmem:[%s4 + $0x2d0] sm:$0xff]
  %v3572 = vld [vmem:[%s4 + $0x2d8] sm:$0xff]
  %v3573 = vld [vmem:[%s4 + $0x2e0] sm:$0xff]
  %v3574 = vld [vmem:[%s4 + $0x2e8] sm:$0xff]
  %v3575 = vld [vmem:[%s4 + $0x2f0] sm:$0xff]
  %v3576 = vld [vmem:[%s4 + $0x2f8] sm:$0xff]
  %v3577 = vld [vmem:[%s4 + $0x300] sm:$0xff]
  %v3578 = vld [vmem:[%s4 + $0x308] sm:$0xff]
  %v3579 = vld [vmem:[%s4 + $0x310] sm:$0xff]
  %v3580 = vld [vmem:[%s4 + $0x318] sm:$0xff]
  %v3581 = vld [vmem:[%s4 + $0x320] sm:$0xff]
  %v3582 = vld [vmem:[%s4 + $0x328] sm:$0xff]
  %v3583 = vld [vmem:[%s4 + $0x330] sm:$0xff]
  %v3584 = vld [vmem:[%s4 + $0x338] sm:$0xff]
  %v3585 = vld [vmem:[%s4 + $0x340] sm:$0xff]
  %v3586 = vld [vmem:[%s4 + $0x348] sm:$0xff]
  %v3587 = vld [vmem:[%s4 + $0x350] sm:$0xff]
  %v3588 = vld [vmem:[%s4 + $0x358] sm:$0xff]
  %v3589 = vld [vmem:[%s4 + $0x360] sm:$0xff]
  %v3590 = vld [vmem:[%s4 + $0x368] sm:$0xff]
  %v3591 = vld [vmem:[%s4 + $0x370] sm:$0xff]
  %v3592 = vld [vmem:[%s4 + $0x378] sm:$0xff]
  %v3593 = vld [vmem:[%s4 + $0x380] sm:$0xff]
  %v3594 = vld [vmem:[%s4 + $0x388] sm:$0xff]
  %v3595 = vld [vmem:[%s4 + $0x390] sm:$0xff]
  %v3596 = vld [vmem:[%s4 + $0x398] sm:$0xff]
  %v3597 = vld [vmem:[%s4 + $0x3a0] sm:$0xff]
  %v3598 = vld [vmem:[%s4 + $0x3a8] sm:$0xff]
  %v3599 = vld [vmem:[%s4 + $0x3b0] sm:$0xff]
  %v3600 = vld [vmem:[%s4 + $0x3b8] sm:$0xff]
  %v3601 = vld [vmem:[%s4 + $0x3c0] sm:$0xff]
  %v3602 = vld [vmem:[%s4 + $0x3c8] sm:$0xff]
  %v3603 = vld [vmem:[%s4 + $0x3d0] sm:$0xff]
  %v3604 = vld [vmem:[%s4 + $0x3d8] sm:$0xff]
  %v3605 = vld [vmem:[%s4 + $0x3e0] sm:$0xff]
  %v3606 = vld [vmem:[%s4 + $0x3e8] sm:$0xff]
  %v3607 = vld [vmem:[%s4 + $0x3f0] sm:$0xff]
  %v3608 = vld [vmem:[%s4 + $0x3f8] sm:$0xff]
  %v3609 = vld [vmem:[%s4 + $0x400] sm:$0xff]
  %v3610 = vld [vmem:[%s4 + $0x408] sm:$0xff]
  %v3611 = vld [vmem:[%s4 + $0x410] sm:$0xff]
  %v3612 = vld [vmem:[%s4 + $0x418] sm:$0xff]
  %v3613 = vld [vmem:[%s4 + $0x420] sm:$0xff]
  %v3614 = vld [vmem:[%s4 + $0x428] sm:$0xff]
  %v3615 = vld [vmem:[%s4 + $0x430] sm:$0xff]
  %v3616 = vld [vmem:[%s4 + $0x438] sm:$0xff]
  %v3617 = vld [vmem:[%s4 + $0x440] sm:$0xff]
  %v3618 = vld [vmem:[%s4 + $0x448] sm:$0xff]
  %v3619 = vld [vmem:[%s4 + $0x450] sm:$0xff]
  %v3620 = vld [vmem:[%s4 + $0x458] sm:$0xff]
  %v3621 = vld [vmem:[%s4 + $0x460] sm:$0xff]
  %v3622 = vld [vmem:[%s4 + $0x468] sm:$0xff]
  %v3623 = vld [vmem:[%s4 + $0x470] sm:$0xff]
  %v3624 = vld [vmem:[%s4 + $0x478] sm:$0xff]
  %v3625 = vld [vmem:[%s4 + $0x480] sm:$0xff]
  %v3626 = vld [vmem:[%s4 + $0x488] sm:$0xff]
  %v3627 = vld [vmem:[%s4 + $0x490] sm:$0xff]
  %v3628 = vld [vmem:[%s4 + $0x498] sm:$0xff]
  %v3629 = vld [vmem:[%s4 + $0x4a0] sm:$0xff]
  %v3630 = vld [vmem:[%s4 + $0x4a8] sm:$0xff]
  %v3631 = vld [vmem:[%s4 + $0x4b0] sm:$0xff]
  %v3632 = vld [vmem:[%s4 + $0x4b8] sm:$0xff]
  %v3633 = vld [vmem:[%s4 + $0x4c0] sm:$0xff]
  %v3634 = vld [vmem:[%s4 + $0x4c8] sm:$0xff]
  %v3635 = vld [vmem:[%s4 + $0x4d0] sm:$0xff]
  %v3636 = vld [vmem:[%s4 + $0x4d8] sm:$0xff]
  %v3637 = vld [vmem:[%s4 + $0x4e0] sm:$0xff]
  %v3638 = vld [vmem:[%s4 + $0x4e8] sm:$0xff]
  %v3639 = vld [vmem:[%s4 + $0x4f0] sm:$0xff]
  %v3640 = vld [vmem:[%s4 + $0x4f8] sm:$0xff]
  %v3641 = vld [vmem:[%s4 + $0x500] sm:$0xff]
  %v3642 = vld [vmem:[%s4 + $0x508] sm:$0xff]
  %v3643 = vld [vmem:[%s4 + $0x510] sm:$0xff]
  %v3644 = vld [vmem:[%s4 + $0x518] sm:$0xff]
  %v3645 = vld [vmem:[%s4 + $0x520] sm:$0xff]
  %v3646 = vld [vmem:[%s4 + $0x528] sm:$0xff]
  %v3647 = vld [vmem:[%s4 + $0x530] sm:$0xff]
  %v3648 = vld [vmem:[%s4 + $0x538] sm:$0xff]
  %v3649 = vld [vmem:[%s4 + $0x540] sm:$0xff]
  %v3650 = vld [vmem:[%s4 + $0x548] sm:$0xff]
  %v3651 = vld [vmem:[%s4 + $0x550] sm:$0xff]
  %v3652 = vld [vmem:[%s4 + $0x558] sm:$0xff]
  %v3653 = vld [vmem:[%s4 + $0x560] sm:$0xff]
  %v3654 = vld [vmem:[%s4 + $0x568] sm:$0xff]
  %v3655 = vld [vmem:[%s4 + $0x570] sm:$0xff]
  %v3656 = vld [vmem:[%s4 + $0x578] sm:$0xff]
  %v3657 = vld [vmem:[%s4 + $0x580] sm:$0xff]
  %v3658 = vld [vmem:[%s4 + $0x588] sm:$0xff]
  %v3659 = vld [vmem:[%s4 + $0x590] sm:$0xff]
  %v3660 = vld [vmem:[%s4 + $0x598] sm:$0xff]
  %v3661 = vld [vmem:[%s4 + $0x5a0] sm:$0xff]
  %v3662 = vld [vmem:[%s4 + $0x5a8] sm:$0xff]
  %v3663 = vld [vmem:[%s4 + $0x5b0] sm:$0xff]
  %v3664 = vld [vmem:[%s4 + $0x5b8] sm:$0xff]
  %v3665 = vld [vmem:[%s4 + $0x5c0] sm:$0xff]
  %v3666 = vld [vmem:[%s4 + $0x5c8] sm:$0xff]
  %v3667 = vld [vmem:[%s4 + $0x5d0] sm:$0xff]
  %v3668 = vld [vmem:[%s4 + $0x5d8] sm:$0xff]
  %v3669 = vld [vmem:[%s4 + $0x5e0] sm:$0xff]
  %v3670 = vld [vmem:[%s4 + $0x5e8] sm:$0xff]
  %v3671 = vld [vmem:[%s4 + $0x5f0] sm:$0xff]
  %v3672 = vld [vmem:[%s4 + $0x5f8] sm:$0xff]
  %v3673 = vld [vmem:[%s4 + $0x600] sm:$0xff]
  %v3674 = vld [vmem:[%s4 + $0x608] sm:$0xff]
  %v3675 = vld [vmem:[%s4 + $0x610] sm:$0xff]
  %v3676 = vld [vmem:[%s4 + $0x618] sm:$0xff]
  %v3677 = vld [vmem:[%s4 + $0x620] sm:$0xff]
  %v3678 = vld [vmem:[%s4 + $0x628] sm:$0xff]
  %v3679 = vld [vmem:[%s4 + $0x630] sm:$0xff]
  %v3680 = vld [vmem:[%s4 + $0x638] sm:$0xff]
  %v3681 = vld [vmem:[%s4 + $0x640] sm:$0xff]
  %v3682 = vld [vmem:[%s4 + $0x648] sm:$0xff]
  %v3683 = vld [vmem:[%s4 + $0x650] sm:$0xff]
  %v3684 = vld [vmem:[%s4 + $0x658] sm:$0xff]
  %v3685 = vld [vmem:[%s4 + $0x660] sm:$0xff]
  %v3686 = vld [vmem:[%s4 + $0x668] sm:$0xff]
  %v3687 = vld [vmem:[%s4 + $0x670] sm:$0xff]
  %v3688 = vld [vmem:[%s4 + $0x678] sm:$0xff]
  %v3689 = vld [vmem:[%s4 + $0x680] sm:$0xff]
  %v3690 = vld [vmem:[%s4 + $0x688] sm:$0xff]
  %v3691 = vld [vmem:[%s4 + $0x690] sm:$0xff]
  %v3692 = vld [vmem:[%s4 + $0x698] sm:$0xff]
  %v3693 = vld [vmem:[%s4 + $0x6a0] sm:$0xff]
  %v3694 = vld [vmem:[%s4 + $0x6a8] sm:$0xff]
  %v3695 = vld [vmem:[%s4 + $0x6b0] sm:$0xff]
  %v3696 = vld [vmem:[%s4 + $0x6b8] sm:$0xff]
  %v3697 = vld [vmem:[%s4 + $0x6c0] sm:$0xff]
  %v3698 = vld [vmem:[%s4 + $0x6c8] sm:$0xff]
  %v3699 = vld [vmem:[%s4 + $0x6d0] sm:$0xff]
  %v3700 = vld [vmem:[%s4 + $0x6d8] sm:$0xff]
  %v3701 = vld [vmem:[%s4 + $0x6e0] sm:$0xff]
  %v3702 = vld [vmem:[%s4 + $0x6e8] sm:$0xff]
  %v3703 = vld [vmem:[%s4 + $0x6f0] sm:$0xff]
  %v3704 = vld [vmem:[%s4 + $0x6f8] sm:$0xff]
  %v3705 = vld [vmem:[%s4 + $0x700] sm:$0xff]
  %v3706 = vld [vmem:[%s4 + $0x708] sm:$0xff]
  %v3707 = vld [vmem:[%s4 + $0x710] sm:$0xff]
  %v3708 = vld [vmem:[%s4 + $0x718] sm:$0xff]
  %v3709 = vld [vmem:[%s4 + $0x720] sm:$0xff]
  %v3710 = vld [vmem:[%s4 + $0x728] sm:$0xff]
  %v3711 = vld [vmem:[%s4 + $0x730] sm:$0xff]
  %v3712 = vld [vmem:[%s4 + $0x738] sm:$0xff]
  %v3713 = vld [vmem:[%s4 + $0x740] sm:$0xff]
  %v3714 = vld [vmem:[%s4 + $0x748] sm:$0xff]
  %v3715 = vld [vmem:[%s4 + $0x750] sm:$0xff]
  %v3716 = vld [vmem:[%s4 + $0x758] sm:$0xff]
  %v3717 = vld [vmem:[%s4 + $0x760] sm:$0xff]
  %v3718 = vld [vmem:[%s4 + $0x768] sm:$0xff]
  %v3719 = vld [vmem:[%s4 + $0x770] sm:$0xff]
  %v3720 = vld [vmem:[%s4 + $0x778] sm:$0xff]
  %v3721 = vld [vmem:[%s4 + $0x780] sm:$0xff]
  %v3722 = vld [vmem:[%s4 + $0x788] sm:$0xff]
  %v3723 = vld [vmem:[%s4 + $0x790] sm:$0xff]
  %v3724 = vld [vmem:[%s4 + $0x798] sm:$0xff]
  %v3725 = vld [vmem:[%s4 + $0x7a0] sm:$0xff]
  %v3726 = vld [vmem:[%s4 + $0x7a8] sm:$0xff]
  %v3727 = vld [vmem:[%s4 + $0x7b0] sm:$0xff]
  %v3728 = vld [vmem:[%s4 + $0x7b8] sm:$0xff]
  %v3729 = vld [vmem:[%s4 + $0x7c0] sm:$0xff]
  %v3730 = vld [vmem:[%s4 + $0x7c8] sm:$0xff]
  %v3731 = vld [vmem:[%s4 + $0x7d0] sm:$0xff]
  %v3732 = vld [vmem:[%s4 + $0x7d8] sm:$0xff]
  %v3733 = vld [vmem:[%s4 + $0x7e0] sm:$0xff]
  %v3734 = vld [vmem:[%s4 + $0x7e8] sm:$0xff]
  %v3735 = vld [vmem:[%s4 + $0x7f0] sm:$0xff]
  %v3736 = vld [vmem:[%s4 + $0x7f8] sm:$0xff]
  %v3737 = vld [vmem:[%s4 + $0x800] sm:$0xff]
  %v3738 = vld [vmem:[%s4 + $0x808] sm:$0xff]
  %v3739 = vld [vmem:[%s4 + $0x810] sm:$0xff]
  %v3740 = vld [vmem:[%s4 + $0x818] sm:$0xff]
  %v3741 = vld [vmem:[%s4 + $0x820] sm:$0xff]
  %v3742 = vld [vmem:[%s4 + $0x828] sm:$0xff]
  %v3743 = vld [vmem:[%s4 + $0x830] sm:$0xff]
  %v3744 = vld [vmem:[%s4 + $0x838] sm:$0xff]
  %v3745 = vld [vmem:[%s4 + $0x840] sm:$0xff]
  %v3746 = vld [vmem:[%s4 + $0x848] sm:$0xff]
  %v3747 = vld [vmem:[%s4 + $0x850] sm:$0xff]
  %v3748 = vld [vmem:[%s4 + $0x858] sm:$0xff]
  %v3749 = vld [vmem:[%s4 + $0x860] sm:$0xff]
  %v3750 = vld [vmem:[%s4 + $0x868] sm:$0xff]
  %v3751 = vld [vmem:[%s4 + $0x870] sm:$0xff]
  %v3752 = vld [vmem:[%s4 + $0x878] sm:$0xff]
  %v3753 = vld [vmem:[%s4 + $0x880] sm:$0xff]
  %v3754 = vld [vmem:[%s4 + $0x888] sm:$0xff]
  %v3755 = vld [vmem:[%s4 + $0x890] sm:$0xff]
  %v3756 = vld [vmem:[%s4 + $0x898] sm:$0xff]
  %v3757 = vld [vmem:[%s4 + $0x8a0] sm:$0xff]
  %v3758 = vld [vmem:[%s4 + $0x8a8] sm:$0xff]
  %v3759 = vld [vmem:[%s4 + $0x8b0] sm:$0xff]
  %v3760 = vld [vmem:[%s4 + $0x8b8] sm:$0xff]
  %v3761 = vld [vmem:[%s4 + $0x8c0] sm:$0xff]
  %v3762 = vld [vmem:[%s4 + $0x8c8] sm:$0xff]
  %v3763 = vld [vmem:[%s4 + $0x8d0] sm:$0xff]
  %v3764 = vld [vmem:[%s4 + $0x8d8] sm:$0xff]
  %v3765 = vld [vmem:[%s4 + $0x8e0] sm:$0xff]
  %v3766 = vld [vmem:[%s4 + $0x8e8] sm:$0xff]
  %v3767 = vld [vmem:[%s4 + $0x8f0] sm:$0xff]
  %v3768 = vld [vmem:[%s4 + $0x8f8] sm:$0xff]
  %v3769 = vld [vmem:[%s4 + $0x900] sm:$0xff]
  %v3770 = vld [vmem:[%s4 + $0x908] sm:$0xff]
  %v3771 = vld [vmem:[%s4 + $0x910] sm:$0xff]
  %v3772 = vld [vmem:[%s4 + $0x918] sm:$0xff]
  %v3773 = vld [vmem:[%s4 + $0x920] sm:$0xff]
  %v3774 = vld [vmem:[%s4 + $0x928] sm:$0xff]
  %v3775 = vld [vmem:[%s4 + $0x930] sm:$0xff]
  %v3776 = vld [vmem:[%s4 + $0x938] sm:$0xff]
  %v3777 = vld [vmem:[%s4 + $0x940] sm:$0xff]
  %v3778 = vld [vmem:[%s4 + $0x948] sm:$0xff]
  %v3779 = vld [vmem:[%s4 + $0x950] sm:$0xff]
  %v3780 = vld [vmem:[%s4 + $0x958] sm:$0xff]
  %v3781 = vld [vmem:[%s4 + $0x960] sm:$0xff]
  %v3782 = vld [vmem:[%s4 + $0x968] sm:$0xff]
  %v3783 = vld [vmem:[%s4 + $0x970] sm:$0xff]
  %v3784 = vld [vmem:[%s4 + $0x978] sm:$0xff]
  %v3785 = vld [vmem:[%s4 + $0x980] sm:$0xff]
  %v3786 = vld [vmem:[%s4 + $0x988] sm:$0xff]
  %v3787 = vld [vmem:[%s4 + $0x990] sm:$0xff]
  %v3788 = vld [vmem:[%s4 + $0x998] sm:$0xff]
  %v3789 = vld [vmem:[%s4 + $0x9a0] sm:$0xff]
  %v3790 = vld [vmem:[%s4 + $0x9a8] sm:$0xff]
  %v3791 = vld [vmem:[%s4 + $0x9b0] sm:$0xff]
  %v3792 = vld [vmem:[%s4 + $0x9b8] sm:$0xff]
  %v3793 = vld [vmem:[%s4 + $0x9c0] sm:$0xff]
  %v3794 = vld [vmem:[%s4 + $0x9c8] sm:$0xff]
  %v3795 = vld [vmem:[%s4 + $0x9d0] sm:$0xff]
  %v3796 = vld [vmem:[%s4 + $0x9d8] sm:$0xff]
  %v3797 = vld [vmem:[%s4 + $0x9e0] sm:$0xff]
  %v3798 = vld [vmem:[%s4 + $0x9e8] sm:$0xff]
  %v3799 = vld [vmem:[%s4 + $0x9f0] sm:$0xff]
  %v3800 = vld [vmem:[%s4 + $0x9f8] sm:$0xff]
  %v3801 = vld [vmem:[%s4 + $0xa00] sm:$0xff]
  %v3802 = vld [vmem:[%s4 + $0xa08] sm:$0xff]
  %v3803 = vld [vmem:[%s4 + $0xa10] sm:$0xff]
  %v3804 = vld [vmem:[%s4 + $0xa18] sm:$0xff]
  %v3805 = vld [vmem:[%s4 + $0xa20] sm:$0xff]
  %v3806 = vld [vmem:[%s4 + $0xa28] sm:$0xff]
  %v3807 = vld [vmem:[%s4 + $0xa30] sm:$0xff]
  %v3808 = vld [vmem:[%s4 + $0xa38] sm:$0xff]
  %v3809 = vld [vmem:[%s4 + $0xa40] sm:$0xff]
  %v3810 = vld [vmem:[%s4 + $0xa48] sm:$0xff]
  %v3811 = vld [vmem:[%s4 + $0xa50] sm:$0xff]
  %v3812 = vld [vmem:[%s4 + $0xa58] sm:$0xff]
  %v3813 = vld [vmem:[%s4 + $0xa60] sm:$0xff]
  %v3814 = vld [vmem:[%s4 + $0xa68] sm:$0xff]
  %v3815 = vld [vmem:[%s4 + $0xa70] sm:$0xff]
  %v3816 = vld [vmem:[%s4 + $0xa78] sm:$0xff]
  %v3817 = vld [vmem:[%s4 + $0xa80] sm:$0xff]
  %v3818 = vld [vmem:[%s4 + $0xa88] sm:$0xff]
  %v3819 = vld [vmem:[%s4 + $0xa90] sm:$0xff]
  %v3820 = vld [vmem:[%s4 + $0xa98] sm:$0xff]
  %v3821 = vld [vmem:[%s4 + $0xaa0] sm:$0xff]
  %v3822 = vld [vmem:[%s4 + $0xaa8] sm:$0xff]
  %v3823 = vld [vmem:[%s4 + $0xab0] sm:$0xff]
  %v3824 = vld [vmem:[%s4 + $0xab8] sm:$0xff]
  %v3825 = vld [vmem:[%s4 + $0xac0] sm:$0xff]
  %v3826 = vld [vmem:[%s4 + $0xac8] sm:$0xff]
  %v3827 = vld [vmem:[%s4 + $0xad0] sm:$0xff]
  %v3828 = vld [vmem:[%s4 + $0xad8] sm:$0xff]
  %v3829 = vld [vmem:[%s4 + $0xae0] sm:$0xff]
  %v3830 = vld [vmem:[%s4 + $0xae8] sm:$0xff]
  %v3831 = vld [vmem:[%s4 + $0xaf0] sm:$0xff]
  %v3832 = vld [vmem:[%s4 + $0xaf8] sm:$0xff]
  %v3833 = vld [vmem:[%s4 + $0xb00] sm:$0xff]
  %v3834 = vld [vmem:[%s4 + $0xb08] sm:$0xff]
  %v3835 = vld [vmem:[%s4 + $0xb10] sm:$0xff]
  %v3836 = vld [vmem:[%s4 + $0xb18] sm:$0xff]
  %v3837 = vld [vmem:[%s4 + $0xb20] sm:$0xff]
  %v3838 = vld [vmem:[%s4 + $0xb28] sm:$0xff]
  %v3839 = vld [vmem:[%s4 + $0xb30] sm:$0xff]
  %v3840 = vld [vmem:[%s4 + $0xb38] sm:$0xff]
  %v3841 = vld [vmem:[%s4 + $0xb40] sm:$0xff]
  %v3842 = vld [vmem:[%s4 + $0xb48] sm:$0xff]
  %v3843 = vld [vmem:[%s4 + $0xb50] sm:$0xff]
  %v3844 = vld [vmem:[%s4 + $0xb58] sm:$0xff]
  %v3845 = vld [vmem:[%s4 + $0xb60] sm:$0xff]
  %v3846 = vld [vmem:[%s4 + $0xb68] sm:$0xff]
  %v3847 = vld [vmem:[%s4 + $0xb70] sm:$0xff]
  %v3848 = vld [vmem:[%s4 + $0xb78] sm:$0xff]
  %v3849 = vld [vmem:[%s4 + $0xb80] sm:$0xff]
  %v3850 = vld [vmem:[%s4 + $0xb88] sm:$0xff]
  %v3851 = vld [vmem:[%s4 + $0xb90] sm:$0xff]
  %v3852 = vld [vmem:[%s4 + $0xb98] sm:$0xff]
  %v3853 = vld [vmem:[%s4 + $0xba0] sm:$0xff]
  %v3854 = vld [vmem:[%s4 + $0xba8] sm:$0xff]
  %v3855 = vld [vmem:[%s4 + $0xbb0] sm:$0xff]
  %v3856 = vld [vmem:[%s4 + $0xbb8] sm:$0xff]
  %v3857 = vld [vmem:[%s4 + $0xbc0] sm:$0xff]
  %v3858 = vld [vmem:[%s4 + $0xbc8] sm:$0xff]
  %v3859 = vld [vmem:[%s4 + $0xbd0] sm:$0xff]
  %v3860 = vld [vmem:[%s4 + $0xbd8] sm:$0xff]
  %v3861 = vld [vmem:[%s4 + $0xbe0] sm:$0xff]
  %v3862 = vld [vmem:[%s4 + $0xbe8] sm:$0xff]
  %v3863 = vld [vmem:[%s4 + $0xbf0] sm:$0xff]
  %v3864 = vld [vmem:[%s4 + $0xbf8] sm:$0xff]
  %v3865 = vld [vmem:[%s4 + $0xc00] sm:$0xff]
  %v3866 = vld [vmem:[%s4 + $0xc08] sm:$0xff]
  %v3867 = vld [vmem:[%s4 + $0xc10] sm:$0xff]
  %v3868 = vld [vmem:[%s4 + $0xc18] sm:$0xff]
  %v3869 = vld [vmem:[%s4 + $0xc20] sm:$0xff]
  %v3870 = vld [vmem:[%s4 + $0xc28] sm:$0xff]
  %v3871 = vld [vmem:[%s4 + $0xc30] sm:$0xff]
  %v3872 = vld [vmem:[%s4 + $0xc38] sm:$0xff]
  %v3873 = vld [vmem:[%s4 + $0xc40] sm:$0xff]
  %v3874 = vld [vmem:[%s4 + $0xc48] sm:$0xff]
  %v3875 = vld [vmem:[%s4 + $0xc50] sm:$0xff]
  %v3876 = vld [vmem:[%s4 + $0xc58] sm:$0xff]
  %v3877 = vld [vmem:[%s4 + $0xc60] sm:$0xff]
  %v3878 = vld [vmem:[%s4 + $0xc68] sm:$0xff]
  %v3879 = vld [vmem:[%s4 + $0xc70] sm:$0xff]
  %v3880 = vld [vmem:[%s4 + $0xc78] sm:$0xff]
  %v3881 = vld [vmem:[%s4 + $0xc80] sm:$0xff]
  %v3882 = vld [vmem:[%s4 + $0xc88] sm:$0xff]
  %v3883 = vld [vmem:[%s4 + $0xc90] sm:$0xff]
  %v3884 = vld [vmem:[%s4 + $0xc98] sm:$0xff]
  %v3885 = vld [vmem:[%s4 + $0xca0] sm:$0xff]
  %v3886 = vld [vmem:[%s4 + $0xca8] sm:$0xff]
  %v3887 = vld [vmem:[%s4 + $0xcb0] sm:$0xff]
  %v3888 = vld [vmem:[%s4 + $0xcb8] sm:$0xff]
  %v3889 = vld [vmem:[%s4 + $0xcc0] sm:$0xff]
  %v3890 = vld [vmem:[%s4 + $0xcc8] sm:$0xff]
  %v3891 = vld [vmem:[%s4 + $0xcd0] sm:$0xff]
  %v3892 = vld [vmem:[%s4 + $0xcd8] sm:$0xff]
  %v3893 = vld [vmem:[%s4 + $0xce0] sm:$0xff]
  %v3894 = vld [vmem:[%s4 + $0xce8] sm:$0xff]
  %v3895 = vld [vmem:[%s4 + $0xcf0] sm:$0xff]
  %v3896 = vld [vmem:[%s4 + $0xcf8] sm:$0xff]
  %v3897 = vld [vmem:[%s4 + $0xd00] sm:$0xff]
  %v3898 = vld [vmem:[%s4 + $0xd08] sm:$0xff]
  %v3899 = vld [vmem:[%s4 + $0xd10] sm:$0xff]
  %v3900 = vld [vmem:[%s4 + $0xd18] sm:$0xff]
  %v3901 = vld [vmem:[%s4 + $0xd20] sm:$0xff]
  %v3902 = vld [vmem:[%s4 + $0xd28] sm:$0xff]
  %v3903 = vld [vmem:[%s4 + $0xd30] sm:$0xff]
  %v3904 = vld [vmem:[%s4 + $0xd38] sm:$0xff]
  %v3905 = vld [vmem:[%s4 + $0xd40] sm:$0xff]
  %v3906 = vld [vmem:[%s4 + $0xd48] sm:$0xff]
  %v3907 = vld [vmem:[%s4 + $0xd50] sm:$0xff]
  %v3908 = vld [vmem:[%s4 + $0xd58] sm:$0xff]
  %v3909 = vld [vmem:[%s4 + $0xd60] sm:$0xff]
  %v3910 = vld [vmem:[%s4 + $0xd68] sm:$0xff]
  %v3911 = vld [vmem:[%s4 + $0xd70] sm:$0xff]
  %v3912 = vld [vmem:[%s4 + $0xd78] sm:$0xff]
  %v3913 = vld [vmem:[%s4 + $0xd80] sm:$0xff]
  %v3914 = vld [vmem:[%s4 + $0xd88] sm:$0xff]
  %v3915 = vld [vmem:[%s4 + $0xd90] sm:$0xff]
  %v3916 = vld [vmem:[%s4 + $0xd98] sm:$0xff]
  %v3917 = vld [vmem:[%s4 + $0xda0] sm:$0xff]
  %v3918 = vld [vmem:[%s4 + $0xda8] sm:$0xff]
  %v3919 = vld [vmem:[%s4 + $0xdb0] sm:$0xff]
  %v3920 = vld [vmem:[%s4 + $0xdb8] sm:$0xff]
  %v3921 = vld [vmem:[%s4 + $0xdc0] sm:$0xff]
  %v3922 = vld [vmem:[%s4 + $0xdc8] sm:$0xff]
  %v3923 = vld [vmem:[%s4 + $0xdd0] sm:$0xff]
  %v3924 = vld [vmem:[%s4 + $0xdd8] sm:$0xff]
  %v3925 = vld [vmem:[%s4 + $0xde0] sm:$0xff]
  %v3926 = vld [vmem:[%s4 + $0xde8] sm:$0xff]
  %v3927 = vld [vmem:[%s4 + $0xdf0] sm:$0xff]
  %v3928 = vld [vmem:[%s4 + $0xdf8] sm:$0xff]
  %v3929 = vld [vmem:[%s4 + $0xe00] sm:$0xff]
  %v3930 = vld [vmem:[%s4 + $0xe08] sm:$0xff]
  %v3931 = vld [vmem:[%s4 + $0xe10] sm:$0xff]
  %v3932 = vld [vmem:[%s4 + $0xe18] sm:$0xff]
  %v3933 = vld [vmem:[%s4 + $0xe20] sm:$0xff]
  %v3934 = vld [vmem:[%s4 + $0xe28] sm:$0xff]
  %v3935 = vld [vmem:[%s4 + $0xe30] sm:$0xff]
  %v3936 = vld [vmem:[%s4 + $0xe38] sm:$0xff]
  %v3937 = vld [vmem:[%s4 + $0xe40] sm:$0xff]
  %v3938 = vld [vmem:[%s4 + $0xe48] sm:$0xff]
  %v3939 = vld [vmem:[%s4 + $0xe50] sm:$0xff]
  %v3940 = vld [vmem:[%s4 + $0xe58] sm:$0xff]
  %v3941 = vld [vmem:[%s4 + $0xe60] sm:$0xff]
  %v3942 = vld [vmem:[%s4 + $0xe68] sm:$0xff]
  %v3943 = vld [vmem:[%s4 + $0xe70] sm:$0xff]
  %v3944 = vld [vmem:[%s4 + $0xe78] sm:$0xff]
  %v3945 = vld [vmem:[%s4 + $0xe80] sm:$0xff]
  %v3946 = vld [vmem:[%s4 + $0xe88] sm:$0xff]
  %v3947 = vld [vmem:[%s4 + $0xe90] sm:$0xff]
  %v3948 = vld [vmem:[%s4 + $0xe98] sm:$0xff]
  %v3949 = vld [vmem:[%s4 + $0xea0] sm:$0xff]
  %v3950 = vld [vmem:[%s4 + $0xea8] sm:$0xff]
  %v3951 = vld [vmem:[%s4 + $0xeb0] sm:$0xff]
  %v3952 = vld [vmem:[%s4 + $0xeb8] sm:$0xff]
  %v3953 = vld [vmem:[%s4 + $0xec0] sm:$0xff]
  %v3954 = vld [vmem:[%s4 + $0xec8] sm:$0xff]
  %v3955 = vld [vmem:[%s4 + $0xed0] sm:$0xff]
  %v3956 = vld [vmem:[%s4 + $0xed8] sm:$0xff]
  %v3957 = vld [vmem:[%s4 + $0xee0] sm:$0xff]
  %v3958 = vld [vmem:[%s4 + $0xee8] sm:$0xff]
  %v3959 = vld [vmem:[%s4 + $0xef0] sm:$0xff]
  %v3960 = vld [vmem:[%s4 + $0xef8] sm:$0xff]
  %v3961 = vld [vmem:[%s4 + $0xf00] sm:$0xff]
  %v3962 = vld [vmem:[%s4 + $0xf08] sm:$0xff]
  %v3963 = vld [vmem:[%s4 + $0xf10] sm:$0xff]
  %v3964 = vld [vmem:[%s4 + $0xf18] sm:$0xff]
  %v3965 = vld [vmem:[%s4 + $0xf20] sm:$0xff]
  %v3966 = vld [vmem:[%s4 + $0xf28] sm:$0xff]
  %v3967 = vld [vmem:[%s4 + $0xf30] sm:$0xff]
  %v3968 = vld [vmem:[%s4 + $0xf38] sm:$0xff]
  %v3969 = vld [vmem:[%s4 + $0xf40] sm:$0xff]
  %v3970 = vld [vmem:[%s4 + $0xf48] sm:$0xff]
  %v3971 = vld [vmem:[%s4 + $0xf50] sm:$0xff]
  %v3972 = vld [vmem:[%s4 + $0xf58] sm:$0xff]
  %v3973 = vld [vmem:[%s4 + $0xf60] sm:$0xff]
  %v3974 = vld [vmem:[%s4 + $0xf68] sm:$0xff]
  %v3975 = vld [vmem:[%s4 + $0xf70] sm:$0xff]
  %v3976 = vld [vmem:[%s4 + $0xf78] sm:$0xff]
  %v3977 = vld [vmem:[%s4 + $0xf80] sm:$0xff]
  %v3978 = vld [vmem:[%s4 + $0xf88] sm:$0xff]
  %v3979 = vld [vmem:[%s4 + $0xf90] sm:$0xff]
  %v3980 = vld [vmem:[%s4 + $0xf98] sm:$0xff]
  %v3981 = vld [vmem:[%s4 + $0xfa0] sm:$0xff]
  %v3982 = vld [vmem:[%s4 + $0xfa8] sm:$0xff]
  %v3983 = vld [vmem:[%s4 + $0xfb0] sm:$0xff]
  %v3984 = vld [vmem:[%s4 + $0xfb8] sm:$0xff]
  %v3985 = vld [vmem:[%s4 + $0xfc0] sm:$0xff]
  %v3986 = vld [vmem:[%s4 + $0xfc8] sm:$0xff]
  %v3987 = vld [vmem:[%s4 + $0xfd0] sm:$0xff]
  %v3988 = vld [vmem:[%s4 + $0xfd8] sm:$0xff]
  %v3989 = vld [vmem:[%s4 + $0xfe0] sm:$0xff]
  %v3990 = vld [vmem:[%s4 + $0xfe8] sm:$0xff]
  %v3991 = vld [vmem:[%s4 + $0xff0] sm:$0xff]
  %v3992 = vld [vmem:[%s4 + $0xff8] sm:$0xff]
  %v3993 = vld [vmem:[%s5] sm:$0xff]
  %v3995 = vlaneseq
  %v3996 = vshrl.u32 %v3995, 7
  %v3997 = vsub.s32 0, %v3996
  %v3998 = vrot.slane %v3993, %v3997
  %v3999 = vlaneseq
  %v4000 = vshrl.u32 %v3999, 7
  %v4001 = vsub.s32 1, %v4000
  %v4002 = vrot.slane %v3993, %v4001
  %v4003 = vlaneseq
  %v4004 = vshrl.u32 %v4003, 7
  %v4005 = vsub.s32 2, %v4004
  %v4006 = vrot.slane %v3993, %v4005
  %v4007 = vlaneseq
  %v4008 = vshrl.u32 %v4007, 7
  %v4009 = vsub.s32 3, %v4008
  %v4010 = vrot.slane %v3993, %v4009
  %v4011 = vlaneseq
  %v4012 = vshrl.u32 %v4011, 7
  %v4013 = vsub.s32 4, %v4012
  %v4014 = vrot.slane %v3993, %v4013
  %v4015 = vlaneseq
  %v4016 = vshrl.u32 %v4015, 7
  %v4017 = vsub.s32 5, %v4016
  %v4018 = vrot.slane %v3993, %v4017
  %v4019 = vlaneseq
  %v4020 = vshrl.u32 %v4019, 7
  %v4021 = vsub.s32 6, %v4020
  %v4022 = vrot.slane %v3993, %v4021
  %v4023 = vlaneseq
  %v4024 = vshrl.u32 %v4023, 7
  %v4025 = vsub.s32 7, %v4024
  %v4026 = vrot.slane %v3993, %v4025
  %v4547 = vunpack.c.l.b16 %v3481
  %v4548 = vunpack.c.h.b16 %v3481
  %v4549 = vunpack.c.l.b16 %v3482
  %v4550 = vunpack.c.h.b16 %v3482
  %v4551 = vunpack.c.l.b16 %v3483
  %v4552 = vunpack.c.h.b16 %v3483
  %v4553 = vunpack.c.l.b16 %v3484
  %v4554 = vunpack.c.h.b16 %v3484
  %v4555 = vunpack.c.l.b16 %v3485
  %v4556 = vunpack.c.h.b16 %v3485
  %v4557 = vunpack.c.l.b16 %v3486
  %v4558 = vunpack.c.h.b16 %v3486
  %v4559 = vunpack.c.l.b16 %v3487
  %v4560 = vunpack.c.h.b16 %v3487
  %v4561 = vunpack.c.l.b16 %v3488
  %v4562 = vunpack.c.h.b16 %v3488
  %v4563 = vunpack.c.l.b16 %v3489
  %v4564 = vunpack.c.h.b16 %v3489
  %v4565 = vunpack.c.l.b16 %v3490
  %v4566 = vunpack.c.h.b16 %v3490
  %v4567 = vunpack.c.l.b16 %v3491
  %v4568 = vunpack.c.h.b16 %v3491
  %v4569 = vunpack.c.l.b16 %v3492
  %v4570 = vunpack.c.h.b16 %v3492
  %v4571 = vunpack.c.l.b16 %v3493
  %v4572 = vunpack.c.h.b16 %v3493
  %v4573 = vunpack.c.l.b16 %v3494
  %v4574 = vunpack.c.h.b16 %v3494
  %v4575 = vunpack.c.l.b16 %v3495
  %v4576 = vunpack.c.h.b16 %v3495
  %v4577 = vunpack.c.l.b16 %v3496
  %v4578 = vunpack.c.h.b16 %v3496
  %v4579 = vunpack.c.l.b16 %v3497
  %v4580 = vunpack.c.h.b16 %v3497
  %v4581 = vunpack.c.l.b16 %v3498
  %v4582 = vunpack.c.h.b16 %v3498
  %v4583 = vunpack.c.l.b16 %v3499
  %v4584 = vunpack.c.h.b16 %v3499
  %v4585 = vunpack.c.l.b16 %v3500
  %v4586 = vunpack.c.h.b16 %v3500
  %v4587 = vunpack.c.l.b16 %v3501
  %v4588 = vunpack.c.h.b16 %v3501
  %v4589 = vunpack.c.l.b16 %v3502
  %v4590 = vunpack.c.h.b16 %v3502
  %v4591 = vunpack.c.l.b16 %v3503
  %v4592 = vunpack.c.h.b16 %v3503
  %v4593 = vunpack.c.l.b16 %v3504
  %v4594 = vunpack.c.h.b16 %v3504
  %v4595 = vunpack.c.l.b16 %v3505
  %v4596 = vunpack.c.h.b16 %v3505
  %v4597 = vunpack.c.l.b16 %v3506
  %v4598 = vunpack.c.h.b16 %v3506
  %v4599 = vunpack.c.l.b16 %v3507
  %v4600 = vunpack.c.h.b16 %v3507
  %v4601 = vunpack.c.l.b16 %v3508
  %v4602 = vunpack.c.h.b16 %v3508
  %v4603 = vunpack.c.l.b16 %v3509
  %v4604 = vunpack.c.h.b16 %v3509
  %v4605 = vunpack.c.l.b16 %v3510
  %v4606 = vunpack.c.h.b16 %v3510
  %v4607 = vunpack.c.l.b16 %v3511
  %v4608 = vunpack.c.h.b16 %v3511
  %v4609 = vunpack.c.l.b16 %v3512
  %v4610 = vunpack.c.h.b16 %v3512
  %v4611 = vunpack.c.l.b16 %v3513
  %v4612 = vunpack.c.h.b16 %v3513
  %v4613 = vunpack.c.l.b16 %v3514
  %v4614 = vunpack.c.h.b16 %v3514
  %v4615 = vunpack.c.l.b16 %v3515
  %v4616 = vunpack.c.h.b16 %v3515
  %v4617 = vunpack.c.l.b16 %v3516
  %v4618 = vunpack.c.h.b16 %v3516
  %v4619 = vunpack.c.l.b16 %v3517
  %v4620 = vunpack.c.h.b16 %v3517
  %v4621 = vunpack.c.l.b16 %v3518
  %v4622 = vunpack.c.h.b16 %v3518
  %v4623 = vunpack.c.l.b16 %v3519
  %v4624 = vunpack.c.h.b16 %v3519
  %v4625 = vunpack.c.l.b16 %v3520
  %v4626 = vunpack.c.h.b16 %v3520
  %v4627 = vunpack.c.l.b16 %v3521
  %v4628 = vunpack.c.h.b16 %v3521
  %v4629 = vunpack.c.l.b16 %v3522
  %v4630 = vunpack.c.h.b16 %v3522
  %v4631 = vunpack.c.l.b16 %v3523
  %v4632 = vunpack.c.h.b16 %v3523
  %v4633 = vunpack.c.l.b16 %v3524
  %v4634 = vunpack.c.h.b16 %v3524
  %v4635 = vunpack.c.l.b16 %v3525
  %v4636 = vunpack.c.h.b16 %v3525
  %v4637 = vunpack.c.l.b16 %v3526
  %v4638 = vunpack.c.h.b16 %v3526
  %v4639 = vunpack.c.l.b16 %v3527
  %v4640 = vunpack.c.h.b16 %v3527
  %v4641 = vunpack.c.l.b16 %v3528
  %v4642 = vunpack.c.h.b16 %v3528
  %v4643 = vunpack.c.l.b16 %v3529
  %v4644 = vunpack.c.h.b16 %v3529
  %v4645 = vunpack.c.l.b16 %v3530
  %v4646 = vunpack.c.h.b16 %v3530
  %v4647 = vunpack.c.l.b16 %v3531
  %v4648 = vunpack.c.h.b16 %v3531
  %v4649 = vunpack.c.l.b16 %v3532
  %v4650 = vunpack.c.h.b16 %v3532
  %v4651 = vunpack.c.l.b16 %v3533
  %v4652 = vunpack.c.h.b16 %v3533
  %v4653 = vunpack.c.l.b16 %v3534
  %v4654 = vunpack.c.h.b16 %v3534
  %v4655 = vunpack.c.l.b16 %v3535
  %v4656 = vunpack.c.h.b16 %v3535
  %v4657 = vunpack.c.l.b16 %v3536
  %v4658 = vunpack.c.h.b16 %v3536
  %v4659 = vunpack.c.l.b16 %v3537
  %v4660 = vunpack.c.h.b16 %v3537
  %v4661 = vunpack.c.l.b16 %v3538
  %v4662 = vunpack.c.h.b16 %v3538
  %v4663 = vunpack.c.l.b16 %v3539
  %v4664 = vunpack.c.h.b16 %v3539
  %v4665 = vunpack.c.l.b16 %v3540
  %v4666 = vunpack.c.h.b16 %v3540
  %v4667 = vunpack.c.l.b16 %v3541
  %v4668 = vunpack.c.h.b16 %v3541
  %v4669 = vunpack.c.l.b16 %v3542
  %v4670 = vunpack.c.h.b16 %v3542
  %v4671 = vunpack.c.l.b16 %v3543
  %v4672 = vunpack.c.h.b16 %v3543
  %v4673 = vunpack.c.l.b16 %v3544
  %v4674 = vunpack.c.h.b16 %v3544
  %v4675 = vunpack.c.l.b16 %v3545
  %v4676 = vunpack.c.h.b16 %v3545
  %v4677 = vunpack.c.l.b16 %v3546
  %v4678 = vunpack.c.h.b16 %v3546
  %v4679 = vunpack.c.l.b16 %v3547
  %v4680 = vunpack.c.h.b16 %v3547
  %v4681 = vunpack.c.l.b16 %v3548
  %v4682 = vunpack.c.h.b16 %v3548
  %v4683 = vunpack.c.l.b16 %v3549
  %v4684 = vunpack.c.h.b16 %v3549
  %v4685 = vunpack.c.l.b16 %v3550
  %v4686 = vunpack.c.h.b16 %v3550
  %v4687 = vunpack.c.l.b16 %v3551
  %v4688 = vunpack.c.h.b16 %v3551
  %v4689 = vunpack.c.l.b16 %v3552
  %v4690 = vunpack.c.h.b16 %v3552
  %v4691 = vunpack.c.l.b16 %v3553
  %v4692 = vunpack.c.h.b16 %v3553
  %v4693 = vunpack.c.l.b16 %v3554
  %v4694 = vunpack.c.h.b16 %v3554
  %v4695 = vunpack.c.l.b16 %v3555
  %v4696 = vunpack.c.h.b16 %v3555
  %v4697 = vunpack.c.l.b16 %v3556
  %v4698 = vunpack.c.h.b16 %v3556
  %v4699 = vunpack.c.l.b16 %v3557
  %v4700 = vunpack.c.h.b16 %v3557
  %v4701 = vunpack.c.l.b16 %v3558
  %v4702 = vunpack.c.h.b16 %v3558
  %v4703 = vunpack.c.l.b16 %v3559
  %v4704 = vunpack.c.h.b16 %v3559
  %v4705 = vunpack.c.l.b16 %v3560
  %v4706 = vunpack.c.h.b16 %v3560
  %v4707 = vunpack.c.l.b16 %v3561
  %v4708 = vunpack.c.h.b16 %v3561
  %v4709 = vunpack.c.l.b16 %v3562
  %v4710 = vunpack.c.h.b16 %v3562
  %v4711 = vunpack.c.l.b16 %v3563
  %v4712 = vunpack.c.h.b16 %v3563
  %v4713 = vunpack.c.l.b16 %v3564
  %v4714 = vunpack.c.h.b16 %v3564
  %v4715 = vunpack.c.l.b16 %v3565
  %v4716 = vunpack.c.h.b16 %v3565
  %v4717 = vunpack.c.l.b16 %v3566
  %v4718 = vunpack.c.h.b16 %v3566
  %v4719 = vunpack.c.l.b16 %v3567
  %v4720 = vunpack.c.h.b16 %v3567
  %v4721 = vunpack.c.l.b16 %v3568
  %v4722 = vunpack.c.h.b16 %v3568
  %v4723 = vunpack.c.l.b16 %v3569
  %v4724 = vunpack.c.h.b16 %v3569
  %v4725 = vunpack.c.l.b16 %v3570
  %v4726 = vunpack.c.h.b16 %v3570
  %v4727 = vunpack.c.l.b16 %v3571
  %v4728 = vunpack.c.h.b16 %v3571
  %v4729 = vunpack.c.l.b16 %v3572
  %v4730 = vunpack.c.h.b16 %v3572
  %v4731 = vunpack.c.l.b16 %v3573
  %v4732 = vunpack.c.h.b16 %v3573
  %v4733 = vunpack.c.l.b16 %v3574
  %v4734 = vunpack.c.h.b16 %v3574
  %v4735 = vunpack.c.l.b16 %v3575
  %v4736 = vunpack.c.h.b16 %v3575
  %v4737 = vunpack.c.l.b16 %v3576
  %v4738 = vunpack.c.h.b16 %v3576
  %v4739 = vunpack.c.l.b16 %v3577
  %v4740 = vunpack.c.h.b16 %v3577
  %v4741 = vunpack.c.l.b16 %v3578
  %v4742 = vunpack.c.h.b16 %v3578
  %v4743 = vunpack.c.l.b16 %v3579
  %v4744 = vunpack.c.h.b16 %v3579
  %v4745 = vunpack.c.l.b16 %v3580
  %v4746 = vunpack.c.h.b16 %v3580
  %v4747 = vunpack.c.l.b16 %v3581
  %v4748 = vunpack.c.h.b16 %v3581
  %v4749 = vunpack.c.l.b16 %v3582
  %v4750 = vunpack.c.h.b16 %v3582
  %v4751 = vunpack.c.l.b16 %v3583
  %v4752 = vunpack.c.h.b16 %v3583
  %v4753 = vunpack.c.l.b16 %v3584
  %v4754 = vunpack.c.h.b16 %v3584
  %v4755 = vunpack.c.l.b16 %v3585
  %v4756 = vunpack.c.h.b16 %v3585
  %v4757 = vunpack.c.l.b16 %v3586
  %v4758 = vunpack.c.h.b16 %v3586
  %v4759 = vunpack.c.l.b16 %v3587
  %v4760 = vunpack.c.h.b16 %v3587
  %v4761 = vunpack.c.l.b16 %v3588
  %v4762 = vunpack.c.h.b16 %v3588
  %v4763 = vunpack.c.l.b16 %v3589
  %v4764 = vunpack.c.h.b16 %v3589
  %v4765 = vunpack.c.l.b16 %v3590
  %v4766 = vunpack.c.h.b16 %v3590
  %v4767 = vunpack.c.l.b16 %v3591
  %v4768 = vunpack.c.h.b16 %v3591
  %v4769 = vunpack.c.l.b16 %v3592
  %v4770 = vunpack.c.h.b16 %v3592
  %v4771 = vunpack.c.l.b16 %v3593
  %v4772 = vunpack.c.h.b16 %v3593
  %v4773 = vunpack.c.l.b16 %v3594
  %v4774 = vunpack.c.h.b16 %v3594
  %v4775 = vunpack.c.l.b16 %v3595
  %v4776 = vunpack.c.h.b16 %v3595
  %v4777 = vunpack.c.l.b16 %v3596
  %v4778 = vunpack.c.h.b16 %v3596
  %v4779 = vunpack.c.l.b16 %v3597
  %v4780 = vunpack.c.h.b16 %v3597
  %v4781 = vunpack.c.l.b16 %v3598
  %v4782 = vunpack.c.h.b16 %v3598
  %v4783 = vunpack.c.l.b16 %v3599
  %v4784 = vunpack.c.h.b16 %v3599
  %v4785 = vunpack.c.l.b16 %v3600
  %v4786 = vunpack.c.h.b16 %v3600
  %v4787 = vunpack.c.l.b16 %v3601
  %v4788 = vunpack.c.h.b16 %v3601
  %v4789 = vunpack.c.l.b16 %v3602
  %v4790 = vunpack.c.h.b16 %v3602
  %v4791 = vunpack.c.l.b16 %v3603
  %v4792 = vunpack.c.h.b16 %v3603
  %v4793 = vunpack.c.l.b16 %v3604
  %v4794 = vunpack.c.h.b16 %v3604
  %v4795 = vunpack.c.l.b16 %v3605
  %v4796 = vunpack.c.h.b16 %v3605
  %v4797 = vunpack.c.l.b16 %v3606
  %v4798 = vunpack.c.h.b16 %v3606
  %v4799 = vunpack.c.l.b16 %v3607
  %v4800 = vunpack.c.h.b16 %v3607
  %v4801 = vunpack.c.l.b16 %v3608
  %v4802 = vunpack.c.h.b16 %v3608
  %v4803 = vunpack.c.l.b16 %v3609
  %v4804 = vunpack.c.h.b16 %v3609
  %v4805 = vunpack.c.l.b16 %v3610
  %v4806 = vunpack.c.h.b16 %v3610
  %v4807 = vunpack.c.l.b16 %v3611
  %v4808 = vunpack.c.h.b16 %v3611
  %v4809 = vunpack.c.l.b16 %v3612
  %v4810 = vunpack.c.h.b16 %v3612
  %v4811 = vunpack.c.l.b16 %v3613
  %v4812 = vunpack.c.h.b16 %v3613
  %v4813 = vunpack.c.l.b16 %v3614
  %v4814 = vunpack.c.h.b16 %v3614
  %v4815 = vunpack.c.l.b16 %v3615
  %v4816 = vunpack.c.h.b16 %v3615
  %v4817 = vunpack.c.l.b16 %v3616
  %v4818 = vunpack.c.h.b16 %v3616
  %v4819 = vunpack.c.l.b16 %v3617
  %v4820 = vunpack.c.h.b16 %v3617
  %v4821 = vunpack.c.l.b16 %v3618
  %v4822 = vunpack.c.h.b16 %v3618
  %v4823 = vunpack.c.l.b16 %v3619
  %v4824 = vunpack.c.h.b16 %v3619
  %v4825 = vunpack.c.l.b16 %v3620
  %v4826 = vunpack.c.h.b16 %v3620
  %v4827 = vunpack.c.l.b16 %v3621
  %v4828 = vunpack.c.h.b16 %v3621
  %v4829 = vunpack.c.l.b16 %v3622
  %v4830 = vunpack.c.h.b16 %v3622
  %v4831 = vunpack.c.l.b16 %v3623
  %v4832 = vunpack.c.h.b16 %v3623
  %v4833 = vunpack.c.l.b16 %v3624
  %v4834 = vunpack.c.h.b16 %v3624
  %v4835 = vunpack.c.l.b16 %v3625
  %v4836 = vunpack.c.h.b16 %v3625
  %v4837 = vunpack.c.l.b16 %v3626
  %v4838 = vunpack.c.h.b16 %v3626
  %v4839 = vunpack.c.l.b16 %v3627
  %v4840 = vunpack.c.h.b16 %v3627
  %v4841 = vunpack.c.l.b16 %v3628
  %v4842 = vunpack.c.h.b16 %v3628
  %v4843 = vunpack.c.l.b16 %v3629
  %v4844 = vunpack.c.h.b16 %v3629
  %v4845 = vunpack.c.l.b16 %v3630
  %v4846 = vunpack.c.h.b16 %v3630
  %v4847 = vunpack.c.l.b16 %v3631
  %v4848 = vunpack.c.h.b16 %v3631
  %v4849 = vunpack.c.l.b16 %v3632
  %v4850 = vunpack.c.h.b16 %v3632
  %v4851 = vunpack.c.l.b16 %v3633
  %v4852 = vunpack.c.h.b16 %v3633
  %v4853 = vunpack.c.l.b16 %v3634
  %v4854 = vunpack.c.h.b16 %v3634
  %v4855 = vunpack.c.l.b16 %v3635
  %v4856 = vunpack.c.h.b16 %v3635
  %v4857 = vunpack.c.l.b16 %v3636
  %v4858 = vunpack.c.h.b16 %v3636
  %v4859 = vunpack.c.l.b16 %v3637
  %v4860 = vunpack.c.h.b16 %v3637
  %v4861 = vunpack.c.l.b16 %v3638
  %v4862 = vunpack.c.h.b16 %v3638
  %v4863 = vunpack.c.l.b16 %v3639
  %v4864 = vunpack.c.h.b16 %v3639
  %v4865 = vunpack.c.l.b16 %v3640
  %v4866 = vunpack.c.h.b16 %v3640
  %v4867 = vunpack.c.l.b16 %v3641
  %v4868 = vunpack.c.h.b16 %v3641
  %v4869 = vunpack.c.l.b16 %v3642
  %v4870 = vunpack.c.h.b16 %v3642
  %v4871 = vunpack.c.l.b16 %v3643
  %v4872 = vunpack.c.h.b16 %v3643
  %v4873 = vunpack.c.l.b16 %v3644
  %v4874 = vunpack.c.h.b16 %v3644
  %v4875 = vunpack.c.l.b16 %v3645
  %v4876 = vunpack.c.h.b16 %v3645
  %v4877 = vunpack.c.l.b16 %v3646
  %v4878 = vunpack.c.h.b16 %v3646
  %v4879 = vunpack.c.l.b16 %v3647
  %v4880 = vunpack.c.h.b16 %v3647
  %v4881 = vunpack.c.l.b16 %v3648
  %v4882 = vunpack.c.h.b16 %v3648
  %v4883 = vunpack.c.l.b16 %v3649
  %v4884 = vunpack.c.h.b16 %v3649
  %v4885 = vunpack.c.l.b16 %v3650
  %v4886 = vunpack.c.h.b16 %v3650
  %v4887 = vunpack.c.l.b16 %v3651
  %v4888 = vunpack.c.h.b16 %v3651
  %v4889 = vunpack.c.l.b16 %v3652
  %v4890 = vunpack.c.h.b16 %v3652
  %v4891 = vunpack.c.l.b16 %v3653
  %v4892 = vunpack.c.h.b16 %v3653
  %v4893 = vunpack.c.l.b16 %v3654
  %v4894 = vunpack.c.h.b16 %v3654
  %v4895 = vunpack.c.l.b16 %v3655
  %v4896 = vunpack.c.h.b16 %v3655
  %v4897 = vunpack.c.l.b16 %v3656
  %v4898 = vunpack.c.h.b16 %v3656
  %v4899 = vunpack.c.l.b16 %v3657
  %v4900 = vunpack.c.h.b16 %v3657
  %v4901 = vunpack.c.l.b16 %v3658
  %v4902 = vunpack.c.h.b16 %v3658
  %v4903 = vunpack.c.l.b16 %v3659
  %v4904 = vunpack.c.h.b16 %v3659
  %v4905 = vunpack.c.l.b16 %v3660
  %v4906 = vunpack.c.h.b16 %v3660
  %v4907 = vunpack.c.l.b16 %v3661
  %v4908 = vunpack.c.h.b16 %v3661
  %v4909 = vunpack.c.l.b16 %v3662
  %v4910 = vunpack.c.h.b16 %v3662
  %v4911 = vunpack.c.l.b16 %v3663
  %v4912 = vunpack.c.h.b16 %v3663
  %v4913 = vunpack.c.l.b16 %v3664
  %v4914 = vunpack.c.h.b16 %v3664
  %v4915 = vunpack.c.l.b16 %v3665
  %v4916 = vunpack.c.h.b16 %v3665
  %v4917 = vunpack.c.l.b16 %v3666
  %v4918 = vunpack.c.h.b16 %v3666
  %v4919 = vunpack.c.l.b16 %v3667
  %v4920 = vunpack.c.h.b16 %v3667
  %v4921 = vunpack.c.l.b16 %v3668
  %v4922 = vunpack.c.h.b16 %v3668
  %v4923 = vunpack.c.l.b16 %v3669
  %v4924 = vunpack.c.h.b16 %v3669
  %v4925 = vunpack.c.l.b16 %v3670
  %v4926 = vunpack.c.h.b16 %v3670
  %v4927 = vunpack.c.l.b16 %v3671
  %v4928 = vunpack.c.h.b16 %v3671
  %v4929 = vunpack.c.l.b16 %v3672
  %v4930 = vunpack.c.h.b16 %v3672
  %v4931 = vunpack.c.l.b16 %v3673
  %v4932 = vunpack.c.h.b16 %v3673
  %v4933 = vunpack.c.l.b16 %v3674
  %v4934 = vunpack.c.h.b16 %v3674
  %v4935 = vunpack.c.l.b16 %v3675
  %v4936 = vunpack.c.h.b16 %v3675
  %v4937 = vunpack.c.l.b16 %v3676
  %v4938 = vunpack.c.h.b16 %v3676
  %v4939 = vunpack.c.l.b16 %v3677
  %v4940 = vunpack.c.h.b16 %v3677
  %v4941 = vunpack.c.l.b16 %v3678
  %v4942 = vunpack.c.h.b16 %v3678
  %v4943 = vunpack.c.l.b16 %v3679
  %v4944 = vunpack.c.h.b16 %v3679
  %v4945 = vunpack.c.l.b16 %v3680
  %v4946 = vunpack.c.h.b16 %v3680
  %v4947 = vunpack.c.l.b16 %v3681
  %v4948 = vunpack.c.h.b16 %v3681
  %v4949 = vunpack.c.l.b16 %v3682
  %v4950 = vunpack.c.h.b16 %v3682
  %v4951 = vunpack.c.l.b16 %v3683
  %v4952 = vunpack.c.h.b16 %v3683
  %v4953 = vunpack.c.l.b16 %v3684
  %v4954 = vunpack.c.h.b16 %v3684
  %v4955 = vunpack.c.l.b16 %v3685
  %v4956 = vunpack.c.h.b16 %v3685
  %v4957 = vunpack.c.l.b16 %v3686
  %v4958 = vunpack.c.h.b16 %v3686
  %v4959 = vunpack.c.l.b16 %v3687
  %v4960 = vunpack.c.h.b16 %v3687
  %v4961 = vunpack.c.l.b16 %v3688
  %v4962 = vunpack.c.h.b16 %v3688
  %v4963 = vunpack.c.l.b16 %v3689
  %v4964 = vunpack.c.h.b16 %v3689
  %v4965 = vunpack.c.l.b16 %v3690
  %v4966 = vunpack.c.h.b16 %v3690
  %v4967 = vunpack.c.l.b16 %v3691
  %v4968 = vunpack.c.h.b16 %v3691
  %v4969 = vunpack.c.l.b16 %v3692
  %v4970 = vunpack.c.h.b16 %v3692
  %v4971 = vunpack.c.l.b16 %v3693
  %v4972 = vunpack.c.h.b16 %v3693
  %v4973 = vunpack.c.l.b16 %v3694
  %v4974 = vunpack.c.h.b16 %v3694
  %v4975 = vunpack.c.l.b16 %v3695
  %v4976 = vunpack.c.h.b16 %v3695
  %v4977 = vunpack.c.l.b16 %v3696
  %v4978 = vunpack.c.h.b16 %v3696
  %v4979 = vunpack.c.l.b16 %v3697
  %v4980 = vunpack.c.h.b16 %v3697
  %v4981 = vunpack.c.l.b16 %v3698
  %v4982 = vunpack.c.h.b16 %v3698
  %v4983 = vunpack.c.l.b16 %v3699
  %v4984 = vunpack.c.h.b16 %v3699
  %v4985 = vunpack.c.l.b16 %v3700
  %v4986 = vunpack.c.h.b16 %v3700
  %v4987 = vunpack.c.l.b16 %v3701
  %v4988 = vunpack.c.h.b16 %v3701
  %v4989 = vunpack.c.l.b16 %v3702
  %v4990 = vunpack.c.h.b16 %v3702
  %v4991 = vunpack.c.l.b16 %v3703
  %v4992 = vunpack.c.h.b16 %v3703
  %v4993 = vunpack.c.l.b16 %v3704
  %v4994 = vunpack.c.h.b16 %v3704
  %v4995 = vunpack.c.l.b16 %v3705
  %v4996 = vunpack.c.h.b16 %v3705
  %v4997 = vunpack.c.l.b16 %v3706
  %v4998 = vunpack.c.h.b16 %v3706
  %v4999 = vunpack.c.l.b16 %v3707
  %v5000 = vunpack.c.h.b16 %v3707
  %v5001 = vunpack.c.l.b16 %v3708
  %v5002 = vunpack.c.h.b16 %v3708
  %v5003 = vunpack.c.l.b16 %v3709
  %v5004 = vunpack.c.h.b16 %v3709
  %v5005 = vunpack.c.l.b16 %v3710
  %v5006 = vunpack.c.h.b16 %v3710
  %v5007 = vunpack.c.l.b16 %v3711
  %v5008 = vunpack.c.h.b16 %v3711
  %v5009 = vunpack.c.l.b16 %v3712
  %v5010 = vunpack.c.h.b16 %v3712
  %v5011 = vunpack.c.l.b16 %v3713
  %v5012 = vunpack.c.h.b16 %v3713
  %v5013 = vunpack.c.l.b16 %v3714
  %v5014 = vunpack.c.h.b16 %v3714
  %v5015 = vunpack.c.l.b16 %v3715
  %v5016 = vunpack.c.h.b16 %v3715
  %v5017 = vunpack.c.l.b16 %v3716
  %v5018 = vunpack.c.h.b16 %v3716
  %v5019 = vunpack.c.l.b16 %v3717
  %v5020 = vunpack.c.h.b16 %v3717
  %v5021 = vunpack.c.l.b16 %v3718
  %v5022 = vunpack.c.h.b16 %v3718
  %v5023 = vunpack.c.l.b16 %v3719
  %v5024 = vunpack.c.h.b16 %v3719
  %v5025 = vunpack.c.l.b16 %v3720
  %v5026 = vunpack.c.h.b16 %v3720
  %v5027 = vunpack.c.l.b16 %v3721
  %v5028 = vunpack.c.h.b16 %v3721
  %v5029 = vunpack.c.l.b16 %v3722
  %v5030 = vunpack.c.h.b16 %v3722
  %v5031 = vunpack.c.l.b16 %v3723
  %v5032 = vunpack.c.h.b16 %v3723
  %v5033 = vunpack.c.l.b16 %v3724
  %v5034 = vunpack.c.h.b16 %v3724
  %v5035 = vunpack.c.l.b16 %v3725
  %v5036 = vunpack.c.h.b16 %v3725
  %v5037 = vunpack.c.l.b16 %v3726
  %v5038 = vunpack.c.h.b16 %v3726
  %v5039 = vunpack.c.l.b16 %v3727
  %v5040 = vunpack.c.h.b16 %v3727
  %v5041 = vunpack.c.l.b16 %v3728
  %v5042 = vunpack.c.h.b16 %v3728
  %v5043 = vunpack.c.l.b16 %v3729
  %v5044 = vunpack.c.h.b16 %v3729
  %v5045 = vunpack.c.l.b16 %v3730
  %v5046 = vunpack.c.h.b16 %v3730
  %v5047 = vunpack.c.l.b16 %v3731
  %v5048 = vunpack.c.h.b16 %v3731
  %v5049 = vunpack.c.l.b16 %v3732
  %v5050 = vunpack.c.h.b16 %v3732
  %v5051 = vunpack.c.l.b16 %v3733
  %v5052 = vunpack.c.h.b16 %v3733
  %v5053 = vunpack.c.l.b16 %v3734
  %v5054 = vunpack.c.h.b16 %v3734
  %v5055 = vunpack.c.l.b16 %v3735
  %v5056 = vunpack.c.h.b16 %v3735
  %v5057 = vunpack.c.l.b16 %v3736
  %v5058 = vunpack.c.h.b16 %v3736
  %v5059 = vunpack.c.l.b16 %v3737
  %v5060 = vunpack.c.h.b16 %v3737
  %v5061 = vunpack.c.l.b16 %v3738
  %v5062 = vunpack.c.h.b16 %v3738
  %v5063 = vunpack.c.l.b16 %v3739
  %v5064 = vunpack.c.h.b16 %v3739
  %v5065 = vunpack.c.l.b16 %v3740
  %v5066 = vunpack.c.h.b16 %v3740
  %v5067 = vunpack.c.l.b16 %v3741
  %v5068 = vunpack.c.h.b16 %v3741
  %v5069 = vunpack.c.l.b16 %v3742
  %v5070 = vunpack.c.h.b16 %v3742
  %v5071 = vunpack.c.l.b16 %v3743
  %v5072 = vunpack.c.h.b16 %v3743
  %v5073 = vunpack.c.l.b16 %v3744
  %v5074 = vunpack.c.h.b16 %v3744
  %v5075 = vunpack.c.l.b16 %v3745
  %v5076 = vunpack.c.h.b16 %v3745
  %v5077 = vunpack.c.l.b16 %v3746
  %v5078 = vunpack.c.h.b16 %v3746
  %v5079 = vunpack.c.l.b16 %v3747
  %v5080 = vunpack.c.h.b16 %v3747
  %v5081 = vunpack.c.l.b16 %v3748
  %v5082 = vunpack.c.h.b16 %v3748
  %v5083 = vunpack.c.l.b16 %v3749
  %v5084 = vunpack.c.h.b16 %v3749
  %v5085 = vunpack.c.l.b16 %v3750
  %v5086 = vunpack.c.h.b16 %v3750
  %v5087 = vunpack.c.l.b16 %v3751
  %v5088 = vunpack.c.h.b16 %v3751
  %v5089 = vunpack.c.l.b16 %v3752
  %v5090 = vunpack.c.h.b16 %v3752
  %v5091 = vunpack.c.l.b16 %v3753
  %v5092 = vunpack.c.h.b16 %v3753
  %v5093 = vunpack.c.l.b16 %v3754
  %v5094 = vunpack.c.h.b16 %v3754
  %v5095 = vunpack.c.l.b16 %v3755
  %v5096 = vunpack.c.h.b16 %v3755
  %v5097 = vunpack.c.l.b16 %v3756
  %v5098 = vunpack.c.h.b16 %v3756
  %v5099 = vunpack.c.l.b16 %v3757
  %v5100 = vunpack.c.h.b16 %v3757
  %v5101 = vunpack.c.l.b16 %v3758
  %v5102 = vunpack.c.h.b16 %v3758
  %v5103 = vunpack.c.l.b16 %v3759
  %v5104 = vunpack.c.h.b16 %v3759
  %v5105 = vunpack.c.l.b16 %v3760
  %v5106 = vunpack.c.h.b16 %v3760
  %v5107 = vunpack.c.l.b16 %v3761
  %v5108 = vunpack.c.h.b16 %v3761
  %v5109 = vunpack.c.l.b16 %v3762
  %v5110 = vunpack.c.h.b16 %v3762
  %v5111 = vunpack.c.l.b16 %v3763
  %v5112 = vunpack.c.h.b16 %v3763
  %v5113 = vunpack.c.l.b16 %v3764
  %v5114 = vunpack.c.h.b16 %v3764
  %v5115 = vunpack.c.l.b16 %v3765
  %v5116 = vunpack.c.h.b16 %v3765
  %v5117 = vunpack.c.l.b16 %v3766
  %v5118 = vunpack.c.h.b16 %v3766
  %v5119 = vunpack.c.l.b16 %v3767
  %v5120 = vunpack.c.h.b16 %v3767
  %v5121 = vunpack.c.l.b16 %v3768
  %v5122 = vunpack.c.h.b16 %v3768
  %v5123 = vunpack.c.l.b16 %v3769
  %v5124 = vunpack.c.h.b16 %v3769
  %v5125 = vunpack.c.l.b16 %v3770
  %v5126 = vunpack.c.h.b16 %v3770
  %v5127 = vunpack.c.l.b16 %v3771
  %v5128 = vunpack.c.h.b16 %v3771
  %v5129 = vunpack.c.l.b16 %v3772
  %v5130 = vunpack.c.h.b16 %v3772
  %v5131 = vunpack.c.l.b16 %v3773
  %v5132 = vunpack.c.h.b16 %v3773
  %v5133 = vunpack.c.l.b16 %v3774
  %v5134 = vunpack.c.h.b16 %v3774
  %v5135 = vunpack.c.l.b16 %v3775
  %v5136 = vunpack.c.h.b16 %v3775
  %v5137 = vunpack.c.l.b16 %v3776
  %v5138 = vunpack.c.h.b16 %v3776
  %v5139 = vunpack.c.l.b16 %v3777
  %v5140 = vunpack.c.h.b16 %v3777
  %v5141 = vunpack.c.l.b16 %v3778
  %v5142 = vunpack.c.h.b16 %v3778
  %v5143 = vunpack.c.l.b16 %v3779
  %v5144 = vunpack.c.h.b16 %v3779
  %v5145 = vunpack.c.l.b16 %v3780
  %v5146 = vunpack.c.h.b16 %v3780
  %v5147 = vunpack.c.l.b16 %v3781
  %v5148 = vunpack.c.h.b16 %v3781
  %v5149 = vunpack.c.l.b16 %v3782
  %v5150 = vunpack.c.h.b16 %v3782
  %v5151 = vunpack.c.l.b16 %v3783
  %v5152 = vunpack.c.h.b16 %v3783
  %v5153 = vunpack.c.l.b16 %v3784
  %v5154 = vunpack.c.h.b16 %v3784
  %v5155 = vunpack.c.l.b16 %v3785
  %v5156 = vunpack.c.h.b16 %v3785
  %v5157 = vunpack.c.l.b16 %v3786
  %v5158 = vunpack.c.h.b16 %v3786
  %v5159 = vunpack.c.l.b16 %v3787
  %v5160 = vunpack.c.h.b16 %v3787
  %v5161 = vunpack.c.l.b16 %v3788
  %v5162 = vunpack.c.h.b16 %v3788
  %v5163 = vunpack.c.l.b16 %v3789
  %v5164 = vunpack.c.h.b16 %v3789
  %v5165 = vunpack.c.l.b16 %v3790
  %v5166 = vunpack.c.h.b16 %v3790
  %v5167 = vunpack.c.l.b16 %v3791
  %v5168 = vunpack.c.h.b16 %v3791
  %v5169 = vunpack.c.l.b16 %v3792
  %v5170 = vunpack.c.h.b16 %v3792
  %v5171 = vunpack.c.l.b16 %v3793
  %v5172 = vunpack.c.h.b16 %v3793
  %v5173 = vunpack.c.l.b16 %v3794
  %v5174 = vunpack.c.h.b16 %v3794
  %v5175 = vunpack.c.l.b16 %v3795
  %v5176 = vunpack.c.h.b16 %v3795
  %v5177 = vunpack.c.l.b16 %v3796
  %v5178 = vunpack.c.h.b16 %v3796
  %v5179 = vunpack.c.l.b16 %v3797
  %v5180 = vunpack.c.h.b16 %v3797
  %v5181 = vunpack.c.l.b16 %v3798
  %v5182 = vunpack.c.h.b16 %v3798
  %v5183 = vunpack.c.l.b16 %v3799
  %v5184 = vunpack.c.h.b16 %v3799
  %v5185 = vunpack.c.l.b16 %v3800
  %v5186 = vunpack.c.h.b16 %v3800
  %v5187 = vunpack.c.l.b16 %v3801
  %v5188 = vunpack.c.h.b16 %v3801
  %v5189 = vunpack.c.l.b16 %v3802
  %v5190 = vunpack.c.h.b16 %v3802
  %v5191 = vunpack.c.l.b16 %v3803
  %v5192 = vunpack.c.h.b16 %v3803
  %v5193 = vunpack.c.l.b16 %v3804
  %v5194 = vunpack.c.h.b16 %v3804
  %v5195 = vunpack.c.l.b16 %v3805
  %v5196 = vunpack.c.h.b16 %v3805
  %v5197 = vunpack.c.l.b16 %v3806
  %v5198 = vunpack.c.h.b16 %v3806
  %v5199 = vunpack.c.l.b16 %v3807
  %v5200 = vunpack.c.h.b16 %v3807
  %v5201 = vunpack.c.l.b16 %v3808
  %v5202 = vunpack.c.h.b16 %v3808
  %v5203 = vunpack.c.l.b16 %v3809
  %v5204 = vunpack.c.h.b16 %v3809
  %v5205 = vunpack.c.l.b16 %v3810
  %v5206 = vunpack.c.h.b16 %v3810
  %v5207 = vunpack.c.l.b16 %v3811
  %v5208 = vunpack.c.h.b16 %v3811
  %v5209 = vunpack.c.l.b16 %v3812
  %v5210 = vunpack.c.h.b16 %v3812
  %v5211 = vunpack.c.l.b16 %v3813
  %v5212 = vunpack.c.h.b16 %v3813
  %v5213 = vunpack.c.l.b16 %v3814
  %v5214 = vunpack.c.h.b16 %v3814
  %v5215 = vunpack.c.l.b16 %v3815
  %v5216 = vunpack.c.h.b16 %v3815
  %v5217 = vunpack.c.l.b16 %v3816
  %v5218 = vunpack.c.h.b16 %v3816
  %v5219 = vunpack.c.l.b16 %v3817
  %v5220 = vunpack.c.h.b16 %v3817
  %v5221 = vunpack.c.l.b16 %v3818
  %v5222 = vunpack.c.h.b16 %v3818
  %v5223 = vunpack.c.l.b16 %v3819
  %v5224 = vunpack.c.h.b16 %v3819
  %v5225 = vunpack.c.l.b16 %v3820
  %v5226 = vunpack.c.h.b16 %v3820
  %v5227 = vunpack.c.l.b16 %v3821
  %v5228 = vunpack.c.h.b16 %v3821
  %v5229 = vunpack.c.l.b16 %v3822
  %v5230 = vunpack.c.h.b16 %v3822
  %v5231 = vunpack.c.l.b16 %v3823
  %v5232 = vunpack.c.h.b16 %v3823
  %v5233 = vunpack.c.l.b16 %v3824
  %v5234 = vunpack.c.h.b16 %v3824
  %v5235 = vunpack.c.l.b16 %v3825
  %v5236 = vunpack.c.h.b16 %v3825
  %v5237 = vunpack.c.l.b16 %v3826
  %v5238 = vunpack.c.h.b16 %v3826
  %v5239 = vunpack.c.l.b16 %v3827
  %v5240 = vunpack.c.h.b16 %v3827
  %v5241 = vunpack.c.l.b16 %v3828
  %v5242 = vunpack.c.h.b16 %v3828
  %v5243 = vunpack.c.l.b16 %v3829
  %v5244 = vunpack.c.h.b16 %v3829
  %v5245 = vunpack.c.l.b16 %v3830
  %v5246 = vunpack.c.h.b16 %v3830
  %v5247 = vunpack.c.l.b16 %v3831
  %v5248 = vunpack.c.h.b16 %v3831
  %v5249 = vunpack.c.l.b16 %v3832
  %v5250 = vunpack.c.h.b16 %v3832
  %v5251 = vunpack.c.l.b16 %v3833
  %v5252 = vunpack.c.h.b16 %v3833
  %v5253 = vunpack.c.l.b16 %v3834
  %v5254 = vunpack.c.h.b16 %v3834
  %v5255 = vunpack.c.l.b16 %v3835
  %v5256 = vunpack.c.h.b16 %v3835
  %v5257 = vunpack.c.l.b16 %v3836
  %v5258 = vunpack.c.h.b16 %v3836
  %v5259 = vunpack.c.l.b16 %v3837
  %v5260 = vunpack.c.h.b16 %v3837
  %v5261 = vunpack.c.l.b16 %v3838
  %v5262 = vunpack.c.h.b16 %v3838
  %v5263 = vunpack.c.l.b16 %v3839
  %v5264 = vunpack.c.h.b16 %v3839
  %v5265 = vunpack.c.l.b16 %v3840
  %v5266 = vunpack.c.h.b16 %v3840
  %v5267 = vunpack.c.l.b16 %v3841
  %v5268 = vunpack.c.h.b16 %v3841
  %v5269 = vunpack.c.l.b16 %v3842
  %v5270 = vunpack.c.h.b16 %v3842
  %v5271 = vunpack.c.l.b16 %v3843
  %v5272 = vunpack.c.h.b16 %v3843
  %v5273 = vunpack.c.l.b16 %v3844
  %v5274 = vunpack.c.h.b16 %v3844
  %v5275 = vunpack.c.l.b16 %v3845
  %v5276 = vunpack.c.h.b16 %v3845
  %v5277 = vunpack.c.l.b16 %v3846
  %v5278 = vunpack.c.h.b16 %v3846
  %v5279 = vunpack.c.l.b16 %v3847
  %v5280 = vunpack.c.h.b16 %v3847
  %v5281 = vunpack.c.l.b16 %v3848
  %v5282 = vunpack.c.h.b16 %v3848
  %v5283 = vunpack.c.l.b16 %v3849
  %v5284 = vunpack.c.h.b16 %v3849
  %v5285 = vunpack.c.l.b16 %v3850
  %v5286 = vunpack.c.h.b16 %v3850
  %v5287 = vunpack.c.l.b16 %v3851
  %v5288 = vunpack.c.h.b16 %v3851
  %v5289 = vunpack.c.l.b16 %v3852
  %v5290 = vunpack.c.h.b16 %v3852
  %v5291 = vunpack.c.l.b16 %v3853
  %v5292 = vunpack.c.h.b16 %v3853
  %v5293 = vunpack.c.l.b16 %v3854
  %v5294 = vunpack.c.h.b16 %v3854
  %v5295 = vunpack.c.l.b16 %v3855
  %v5296 = vunpack.c.h.b16 %v3855
  %v5297 = vunpack.c.l.b16 %v3856
  %v5298 = vunpack.c.h.b16 %v3856
  %v5299 = vunpack.c.l.b16 %v3857
  %v5300 = vunpack.c.h.b16 %v3857
  %v5301 = vunpack.c.l.b16 %v3858
  %v5302 = vunpack.c.h.b16 %v3858
  %v5303 = vunpack.c.l.b16 %v3859
  %v5304 = vunpack.c.h.b16 %v3859
  %v5305 = vunpack.c.l.b16 %v3860
  %v5306 = vunpack.c.h.b16 %v3860
  %v5307 = vunpack.c.l.b16 %v3861
  %v5308 = vunpack.c.h.b16 %v3861
  %v5309 = vunpack.c.l.b16 %v3862
  %v5310 = vunpack.c.h.b16 %v3862
  %v5311 = vunpack.c.l.b16 %v3863
  %v5312 = vunpack.c.h.b16 %v3863
  %v5313 = vunpack.c.l.b16 %v3864
  %v5314 = vunpack.c.h.b16 %v3864
  %v5315 = vunpack.c.l.b16 %v3865
  %v5316 = vunpack.c.h.b16 %v3865
  %v5317 = vunpack.c.l.b16 %v3866
  %v5318 = vunpack.c.h.b16 %v3866
  %v5319 = vunpack.c.l.b16 %v3867
  %v5320 = vunpack.c.h.b16 %v3867
  %v5321 = vunpack.c.l.b16 %v3868
  %v5322 = vunpack.c.h.b16 %v3868
  %v5323 = vunpack.c.l.b16 %v3869
  %v5324 = vunpack.c.h.b16 %v3869
  %v5325 = vunpack.c.l.b16 %v3870
  %v5326 = vunpack.c.h.b16 %v3870
  %v5327 = vunpack.c.l.b16 %v3871
  %v5328 = vunpack.c.h.b16 %v3871
  %v5329 = vunpack.c.l.b16 %v3872
  %v5330 = vunpack.c.h.b16 %v3872
  %v5331 = vunpack.c.l.b16 %v3873
  %v5332 = vunpack.c.h.b16 %v3873
  %v5333 = vunpack.c.l.b16 %v3874
  %v5334 = vunpack.c.h.b16 %v3874
  %v5335 = vunpack.c.l.b16 %v3875
  %v5336 = vunpack.c.h.b16 %v3875
  %v5337 = vunpack.c.l.b16 %v3876
  %v5338 = vunpack.c.h.b16 %v3876
  %v5339 = vunpack.c.l.b16 %v3877
  %v5340 = vunpack.c.h.b16 %v3877
  %v5341 = vunpack.c.l.b16 %v3878
  %v5342 = vunpack.c.h.b16 %v3878
  %v5343 = vunpack.c.l.b16 %v3879
  %v5344 = vunpack.c.h.b16 %v3879
  %v5345 = vunpack.c.l.b16 %v3880
  %v5346 = vunpack.c.h.b16 %v3880
  %v5347 = vunpack.c.l.b16 %v3881
  %v5348 = vunpack.c.h.b16 %v3881
  %v5349 = vunpack.c.l.b16 %v3882
  %v5350 = vunpack.c.h.b16 %v3882
  %v5351 = vunpack.c.l.b16 %v3883
  %v5352 = vunpack.c.h.b16 %v3883
  %v5353 = vunpack.c.l.b16 %v3884
  %v5354 = vunpack.c.h.b16 %v3884
  %v5355 = vunpack.c.l.b16 %v3885
  %v5356 = vunpack.c.h.b16 %v3885
  %v5357 = vunpack.c.l.b16 %v3886
  %v5358 = vunpack.c.h.b16 %v3886
  %v5359 = vunpack.c.l.b16 %v3887
  %v5360 = vunpack.c.h.b16 %v3887
  %v5361 = vunpack.c.l.b16 %v3888
  %v5362 = vunpack.c.h.b16 %v3888
  %v5363 = vunpack.c.l.b16 %v3889
  %v5364 = vunpack.c.h.b16 %v3889
  %v5365 = vunpack.c.l.b16 %v3890
  %v5366 = vunpack.c.h.b16 %v3890
  %v5367 = vunpack.c.l.b16 %v3891
  %v5368 = vunpack.c.h.b16 %v3891
  %v5369 = vunpack.c.l.b16 %v3892
  %v5370 = vunpack.c.h.b16 %v3892
  %v5371 = vunpack.c.l.b16 %v3893
  %v5372 = vunpack.c.h.b16 %v3893
  %v5373 = vunpack.c.l.b16 %v3894
  %v5374 = vunpack.c.h.b16 %v3894
  %v5375 = vunpack.c.l.b16 %v3895
  %v5376 = vunpack.c.h.b16 %v3895
  %v5377 = vunpack.c.l.b16 %v3896
  %v5378 = vunpack.c.h.b16 %v3896
  %v5379 = vunpack.c.l.b16 %v3897
  %v5380 = vunpack.c.h.b16 %v3897
  %v5381 = vunpack.c.l.b16 %v3898
  %v5382 = vunpack.c.h.b16 %v3898
  %v5383 = vunpack.c.l.b16 %v3899
  %v5384 = vunpack.c.h.b16 %v3899
  %v5385 = vunpack.c.l.b16 %v3900
  %v5386 = vunpack.c.h.b16 %v3900
  %v5387 = vunpack.c.l.b16 %v3901
  %v5388 = vunpack.c.h.b16 %v3901
  %v5389 = vunpack.c.l.b16 %v3902
  %v5390 = vunpack.c.h.b16 %v3902
  %v5391 = vunpack.c.l.b16 %v3903
  %v5392 = vunpack.c.h.b16 %v3903
  %v5393 = vunpack.c.l.b16 %v3904
  %v5394 = vunpack.c.h.b16 %v3904
  %v5395 = vunpack.c.l.b16 %v3905
  %v5396 = vunpack.c.h.b16 %v3905
  %v5397 = vunpack.c.l.b16 %v3906
  %v5398 = vunpack.c.h.b16 %v3906
  %v5399 = vunpack.c.l.b16 %v3907
  %v5400 = vunpack.c.h.b16 %v3907
  %v5401 = vunpack.c.l.b16 %v3908
  %v5402 = vunpack.c.h.b16 %v3908
  %v5403 = vunpack.c.l.b16 %v3909
  %v5404 = vunpack.c.h.b16 %v3909
  %v5405 = vunpack.c.l.b16 %v3910
  %v5406 = vunpack.c.h.b16 %v3910
  %v5407 = vunpack.c.l.b16 %v3911
  %v5408 = vunpack.c.h.b16 %v3911
  %v5409 = vunpack.c.l.b16 %v3912
  %v5410 = vunpack.c.h.b16 %v3912
  %v5411 = vunpack.c.l.b16 %v3913
  %v5412 = vunpack.c.h.b16 %v3913
  %v5413 = vunpack.c.l.b16 %v3914
  %v5414 = vunpack.c.h.b16 %v3914
  %v5415 = vunpack.c.l.b16 %v3915
  %v5416 = vunpack.c.h.b16 %v3915
  %v5417 = vunpack.c.l.b16 %v3916
  %v5418 = vunpack.c.h.b16 %v3916
  %v5419 = vunpack.c.l.b16 %v3917
  %v5420 = vunpack.c.h.b16 %v3917
  %v5421 = vunpack.c.l.b16 %v3918
  %v5422 = vunpack.c.h.b16 %v3918
  %v5423 = vunpack.c.l.b16 %v3919
  %v5424 = vunpack.c.h.b16 %v3919
  %v5425 = vunpack.c.l.b16 %v3920
  %v5426 = vunpack.c.h.b16 %v3920
  %v5427 = vunpack.c.l.b16 %v3921
  %v5428 = vunpack.c.h.b16 %v3921
  %v5429 = vunpack.c.l.b16 %v3922
  %v5430 = vunpack.c.h.b16 %v3922
  %v5431 = vunpack.c.l.b16 %v3923
  %v5432 = vunpack.c.h.b16 %v3923
  %v5433 = vunpack.c.l.b16 %v3924
  %v5434 = vunpack.c.h.b16 %v3924
  %v5435 = vunpack.c.l.b16 %v3925
  %v5436 = vunpack.c.h.b16 %v3925
  %v5437 = vunpack.c.l.b16 %v3926
  %v5438 = vunpack.c.h.b16 %v3926
  %v5439 = vunpack.c.l.b16 %v3927
  %v5440 = vunpack.c.h.b16 %v3927
  %v5441 = vunpack.c.l.b16 %v3928
  %v5442 = vunpack.c.h.b16 %v3928
  %v5443 = vunpack.c.l.b16 %v3929
  %v5444 = vunpack.c.h.b16 %v3929
  %v5445 = vunpack.c.l.b16 %v3930
  %v5446 = vunpack.c.h.b16 %v3930
  %v5447 = vunpack.c.l.b16 %v3931
  %v5448 = vunpack.c.h.b16 %v3931
  %v5449 = vunpack.c.l.b16 %v3932
  %v5450 = vunpack.c.h.b16 %v3932
  %v5451 = vunpack.c.l.b16 %v3933
  %v5452 = vunpack.c.h.b16 %v3933
  %v5453 = vunpack.c.l.b16 %v3934
  %v5454 = vunpack.c.h.b16 %v3934
  %v5455 = vunpack.c.l.b16 %v3935
  %v5456 = vunpack.c.h.b16 %v3935
  %v5457 = vunpack.c.l.b16 %v3936
  %v5458 = vunpack.c.h.b16 %v3936
  %v5459 = vunpack.c.l.b16 %v3937
  %v5460 = vunpack.c.h.b16 %v3937
  %v5461 = vunpack.c.l.b16 %v3938
  %v5462 = vunpack.c.h.b16 %v3938
  %v5463 = vunpack.c.l.b16 %v3939
  %v5464 = vunpack.c.h.b16 %v3939
  %v5465 = vunpack.c.l.b16 %v3940
  %v5466 = vunpack.c.h.b16 %v3940
  %v5467 = vunpack.c.l.b16 %v3941
  %v5468 = vunpack.c.h.b16 %v3941
  %v5469 = vunpack.c.l.b16 %v3942
  %v5470 = vunpack.c.h.b16 %v3942
  %v5471 = vunpack.c.l.b16 %v3943
  %v5472 = vunpack.c.h.b16 %v3943
  %v5473 = vunpack.c.l.b16 %v3944
  %v5474 = vunpack.c.h.b16 %v3944
  %v5475 = vunpack.c.l.b16 %v3945
  %v5476 = vunpack.c.h.b16 %v3945
  %v5477 = vunpack.c.l.b16 %v3946
  %v5478 = vunpack.c.h.b16 %v3946
  %v5479 = vunpack.c.l.b16 %v3947
  %v5480 = vunpack.c.h.b16 %v3947
  %v5481 = vunpack.c.l.b16 %v3948
  %v5482 = vunpack.c.h.b16 %v3948
  %v5483 = vunpack.c.l.b16 %v3949
  %v5484 = vunpack.c.h.b16 %v3949
  %v5485 = vunpack.c.l.b16 %v3950
  %v5486 = vunpack.c.h.b16 %v3950
  %v5487 = vunpack.c.l.b16 %v3951
  %v5488 = vunpack.c.h.b16 %v3951
  %v5489 = vunpack.c.l.b16 %v3952
  %v5490 = vunpack.c.h.b16 %v3952
  %v5491 = vunpack.c.l.b16 %v3953
  %v5492 = vunpack.c.h.b16 %v3953
  %v5493 = vunpack.c.l.b16 %v3954
  %v5494 = vunpack.c.h.b16 %v3954
  %v5495 = vunpack.c.l.b16 %v3955
  %v5496 = vunpack.c.h.b16 %v3955
  %v5497 = vunpack.c.l.b16 %v3956
  %v5498 = vunpack.c.h.b16 %v3956
  %v5499 = vunpack.c.l.b16 %v3957
  %v5500 = vunpack.c.h.b16 %v3957
  %v5501 = vunpack.c.l.b16 %v3958
  %v5502 = vunpack.c.h.b16 %v3958
  %v5503 = vunpack.c.l.b16 %v3959
  %v5504 = vunpack.c.h.b16 %v3959
  %v5505 = vunpack.c.l.b16 %v3960
  %v5506 = vunpack.c.h.b16 %v3960
  %v5507 = vunpack.c.l.b16 %v3961
  %v5508 = vunpack.c.h.b16 %v3961
  %v5509 = vunpack.c.l.b16 %v3962
  %v5510 = vunpack.c.h.b16 %v3962
  %v5511 = vunpack.c.l.b16 %v3963
  %v5512 = vunpack.c.h.b16 %v3963
  %v5513 = vunpack.c.l.b16 %v3964
  %v5514 = vunpack.c.h.b16 %v3964
  %v5515 = vunpack.c.l.b16 %v3965
  %v5516 = vunpack.c.h.b16 %v3965
  %v5517 = vunpack.c.l.b16 %v3966
  %v5518 = vunpack.c.h.b16 %v3966
  %v5519 = vunpack.c.l.b16 %v3967
  %v5520 = vunpack.c.h.b16 %v3967
  %v5521 = vunpack.c.l.b16 %v3968
  %v5522 = vunpack.c.h.b16 %v3968
  %v5523 = vunpack.c.l.b16 %v3969
  %v5524 = vunpack.c.h.b16 %v3969
  %v5525 = vunpack.c.l.b16 %v3970
  %v5526 = vunpack.c.h.b16 %v3970
  %v5527 = vunpack.c.l.b16 %v3971
  %v5528 = vunpack.c.h.b16 %v3971
  %v5529 = vunpack.c.l.b16 %v3972
  %v5530 = vunpack.c.h.b16 %v3972
  %v5531 = vunpack.c.l.b16 %v3973
  %v5532 = vunpack.c.h.b16 %v3973
  %v5533 = vunpack.c.l.b16 %v3974
  %v5534 = vunpack.c.h.b16 %v3974
  %v5535 = vunpack.c.l.b16 %v3975
  %v5536 = vunpack.c.h.b16 %v3975
  %v5537 = vunpack.c.l.b16 %v3976
  %v5538 = vunpack.c.h.b16 %v3976
  %v5539 = vunpack.c.l.b16 %v3977
  %v5540 = vunpack.c.h.b16 %v3977
  %v5541 = vunpack.c.l.b16 %v3978
  %v5542 = vunpack.c.h.b16 %v3978
  %v5543 = vunpack.c.l.b16 %v3979
  %v5544 = vunpack.c.h.b16 %v3979
  %v5545 = vunpack.c.l.b16 %v3980
  %v5546 = vunpack.c.h.b16 %v3980
  %v5547 = vunpack.c.l.b16 %v3981
  %v5548 = vunpack.c.h.b16 %v3981
  %v5549 = vunpack.c.l.b16 %v3982
  %v5550 = vunpack.c.h.b16 %v3982
  %v5551 = vunpack.c.l.b16 %v3983
  %v5552 = vunpack.c.h.b16 %v3983
  %v5553 = vunpack.c.l.b16 %v3984
  %v5554 = vunpack.c.h.b16 %v3984
  %v5555 = vunpack.c.l.b16 %v3985
  %v5556 = vunpack.c.h.b16 %v3985
  %v5557 = vunpack.c.l.b16 %v3986
  %v5558 = vunpack.c.h.b16 %v3986
  %v5559 = vunpack.c.l.b16 %v3987
  %v5560 = vunpack.c.h.b16 %v3987
  %v5561 = vunpack.c.l.b16 %v3988
  %v5562 = vunpack.c.h.b16 %v3988
  %v5563 = vunpack.c.l.b16 %v3989
  %v5564 = vunpack.c.h.b16 %v3989
  %v5565 = vunpack.c.l.b16 %v3990
  %v5566 = vunpack.c.h.b16 %v3990
  %v5567 = vunpack.c.l.b16 %v3991
  %v5568 = vunpack.c.h.b16 %v3991
  %v5569 = vunpack.c.l.b16 %v3992
  %v5570 = vunpack.c.h.b16 %v3992
  %v5571 = vpack.c.b16 %v4555, %v4547
  %v5572 = vpack.c.b16 %v4556, %v4548
  %v5573 = vpack.c.b16 %v4557, %v4549
  %v5574 = vpack.c.b16 %v4558, %v4550
  %v5575 = vpack.c.b16 %v4559, %v4551
  %v5576 = vpack.c.b16 %v4560, %v4552
  %v5577 = vpack.c.b16 %v4561, %v4553
  %v5578 = vpack.c.b16 %v4562, %v4554
  %v5579 = vpack.c.b16 %v4571, %v4563
  %v5580 = vpack.c.b16 %v4572, %v4564
  %v5581 = vpack.c.b16 %v4573, %v4565
  %v5582 = vpack.c.b16 %v4574, %v4566
  %v5583 = vpack.c.b16 %v4575, %v4567
  %v5584 = vpack.c.b16 %v4576, %v4568
  %v5585 = vpack.c.b16 %v4577, %v4569
  %v5586 = vpack.c.b16 %v4578, %v4570
  %v5587 = vpack.c.b16 %v4587, %v4579
  %v5588 = vpack.c.b16 %v4588, %v4580
  %v5589 = vpack.c.b16 %v4589, %v4581
  %v5590 = vpack.c.b16 %v4590, %v4582
  %v5591 = vpack.c.b16 %v4591, %v4583
  %v5592 = vpack.c.b16 %v4592, %v4584
  %v5593 = vpack.c.b16 %v4593, %v4585
  %v5594 = vpack.c.b16 %v4594, %v4586
  %v5595 = vpack.c.b16 %v4603, %v4595
  %v5596 = vpack.c.b16 %v4604, %v4596
  %v5597 = vpack.c.b16 %v4605, %v4597
  %v5598 = vpack.c.b16 %v4606, %v4598
  %v5599 = vpack.c.b16 %v4607, %v4599
  %v5600 = vpack.c.b16 %v4608, %v4600
  %v5601 = vpack.c.b16 %v4609, %v4601
  %v5602 = vpack.c.b16 %v4610, %v4602
  %v5603 = vpack.c.b16 %v4619, %v4611
  %v5604 = vpack.c.b16 %v4620, %v4612
  %v5605 = vpack.c.b16 %v4621, %v4613
  %v5606 = vpack.c.b16 %v4622, %v4614
  %v5607 = vpack.c.b16 %v4623, %v4615
  %v5608 = vpack.c.b16 %v4624, %v4616
  %v5609 = vpack.c.b16 %v4625, %v4617
  %v5610 = vpack.c.b16 %v4626, %v4618
  %v5611 = vpack.c.b16 %v4635, %v4627
  %v5612 = vpack.c.b16 %v4636, %v4628
  %v5613 = vpack.c.b16 %v4637, %v4629
  %v5614 = vpack.c.b16 %v4638, %v4630
  %v5615 = vpack.c.b16 %v4639, %v4631
  %v5616 = vpack.c.b16 %v4640, %v4632
  %v5617 = vpack.c.b16 %v4641, %v4633
  %v5618 = vpack.c.b16 %v4642, %v4634
  %v5619 = vpack.c.b16 %v4651, %v4643
  %v5620 = vpack.c.b16 %v4652, %v4644
  %v5621 = vpack.c.b16 %v4653, %v4645
  %v5622 = vpack.c.b16 %v4654, %v4646
  %v5623 = vpack.c.b16 %v4655, %v4647
  %v5624 = vpack.c.b16 %v4656, %v4648
  %v5625 = vpack.c.b16 %v4657, %v4649
  %v5626 = vpack.c.b16 %v4658, %v4650
  %v5627 = vpack.c.b16 %v4667, %v4659
  %v5628 = vpack.c.b16 %v4668, %v4660
  %v5629 = vpack.c.b16 %v4669, %v4661
  %v5630 = vpack.c.b16 %v4670, %v4662
  %v5631 = vpack.c.b16 %v4671, %v4663
  %v5632 = vpack.c.b16 %v4672, %v4664
  %v5633 = vpack.c.b16 %v4673, %v4665
  %v5634 = vpack.c.b16 %v4674, %v4666
  %v5635 = vpack.c.b16 %v4683, %v4675
  %v5636 = vpack.c.b16 %v4684, %v4676
  %v5637 = vpack.c.b16 %v4685, %v4677
  %v5638 = vpack.c.b16 %v4686, %v4678
  %v5639 = vpack.c.b16 %v4687, %v4679
  %v5640 = vpack.c.b16 %v4688, %v4680
  %v5641 = vpack.c.b16 %v4689, %v4681
  %v5642 = vpack.c.b16 %v4690, %v4682
  %v5643 = vpack.c.b16 %v4699, %v4691
  %v5644 = vpack.c.b16 %v4700, %v4692
  %v5645 = vpack.c.b16 %v4701, %v4693
  %v5646 = vpack.c.b16 %v4702, %v4694
  %v5647 = vpack.c.b16 %v4703, %v4695
  %v5648 = vpack.c.b16 %v4704, %v4696
  %v5649 = vpack.c.b16 %v4705, %v4697
  %v5650 = vpack.c.b16 %v4706, %v4698
  %v5651 = vpack.c.b16 %v4715, %v4707
  %v5652 = vpack.c.b16 %v4716, %v4708
  %v5653 = vpack.c.b16 %v4717, %v4709
  %v5654 = vpack.c.b16 %v4718, %v4710
  %v5655 = vpack.c.b16 %v4719, %v4711
  %v5656 = vpack.c.b16 %v4720, %v4712
  %v5657 = vpack.c.b16 %v4721, %v4713
  %v5658 = vpack.c.b16 %v4722, %v4714
  %v5659 = vpack.c.b16 %v4731, %v4723
  %v5660 = vpack.c.b16 %v4732, %v4724
  %v5661 = vpack.c.b16 %v4733, %v4725
  %v5662 = vpack.c.b16 %v4734, %v4726
  %v5663 = vpack.c.b16 %v4735, %v4727
  %v5664 = vpack.c.b16 %v4736, %v4728
  %v5665 = vpack.c.b16 %v4737, %v4729
  %v5666 = vpack.c.b16 %v4738, %v4730
  %v5667 = vpack.c.b16 %v4747, %v4739
  %v5668 = vpack.c.b16 %v4748, %v4740
  %v5669 = vpack.c.b16 %v4749, %v4741
  %v5670 = vpack.c.b16 %v4750, %v4742
  %v5671 = vpack.c.b16 %v4751, %v4743
  %v5672 = vpack.c.b16 %v4752, %v4744
  %v5673 = vpack.c.b16 %v4753, %v4745
  %v5674 = vpack.c.b16 %v4754, %v4746
  %v5675 = vpack.c.b16 %v4763, %v4755
  %v5676 = vpack.c.b16 %v4764, %v4756
  %v5677 = vpack.c.b16 %v4765, %v4757
  %v5678 = vpack.c.b16 %v4766, %v4758
  %v5679 = vpack.c.b16 %v4767, %v4759
  %v5680 = vpack.c.b16 %v4768, %v4760
  %v5681 = vpack.c.b16 %v4769, %v4761
  %v5682 = vpack.c.b16 %v4770, %v4762
  %v5683 = vpack.c.b16 %v4779, %v4771
  %v5684 = vpack.c.b16 %v4780, %v4772
  %v5685 = vpack.c.b16 %v4781, %v4773
  %v5686 = vpack.c.b16 %v4782, %v4774
  %v5687 = vpack.c.b16 %v4783, %v4775
  %v5688 = vpack.c.b16 %v4784, %v4776
  %v5689 = vpack.c.b16 %v4785, %v4777
  %v5690 = vpack.c.b16 %v4786, %v4778
  %v5691 = vpack.c.b16 %v4795, %v4787
  %v5692 = vpack.c.b16 %v4796, %v4788
  %v5693 = vpack.c.b16 %v4797, %v4789
  %v5694 = vpack.c.b16 %v4798, %v4790
  %v5695 = vpack.c.b16 %v4799, %v4791
  %v5696 = vpack.c.b16 %v4800, %v4792
  %v5697 = vpack.c.b16 %v4801, %v4793
  %v5698 = vpack.c.b16 %v4802, %v4794
  %v5699 = vpack.c.b16 %v4811, %v4803
  %v5700 = vpack.c.b16 %v4812, %v4804
  %v5701 = vpack.c.b16 %v4813, %v4805
  %v5702 = vpack.c.b16 %v4814, %v4806
  %v5703 = vpack.c.b16 %v4815, %v4807
  %v5704 = vpack.c.b16 %v4816, %v4808
  %v5705 = vpack.c.b16 %v4817, %v4809
  %v5706 = vpack.c.b16 %v4818, %v4810
  %v5707 = vpack.c.b16 %v4827, %v4819
  %v5708 = vpack.c.b16 %v4828, %v4820
  %v5709 = vpack.c.b16 %v4829, %v4821
  %v5710 = vpack.c.b16 %v4830, %v4822
  %v5711 = vpack.c.b16 %v4831, %v4823
  %v5712 = vpack.c.b16 %v4832, %v4824
  %v5713 = vpack.c.b16 %v4833, %v4825
  %v5714 = vpack.c.b16 %v4834, %v4826
  %v5715 = vpack.c.b16 %v4843, %v4835
  %v5716 = vpack.c.b16 %v4844, %v4836
  %v5717 = vpack.c.b16 %v4845, %v4837
  %v5718 = vpack.c.b16 %v4846, %v4838
  %v5719 = vpack.c.b16 %v4847, %v4839
  %v5720 = vpack.c.b16 %v4848, %v4840
  %v5721 = vpack.c.b16 %v4849, %v4841
  %v5722 = vpack.c.b16 %v4850, %v4842
  %v5723 = vpack.c.b16 %v4859, %v4851
  %v5724 = vpack.c.b16 %v4860, %v4852
  %v5725 = vpack.c.b16 %v4861, %v4853
  %v5726 = vpack.c.b16 %v4862, %v4854
  %v5727 = vpack.c.b16 %v4863, %v4855
  %v5728 = vpack.c.b16 %v4864, %v4856
  %v5729 = vpack.c.b16 %v4865, %v4857
  %v5730 = vpack.c.b16 %v4866, %v4858
  %v5731 = vpack.c.b16 %v4875, %v4867
  %v5732 = vpack.c.b16 %v4876, %v4868
  %v5733 = vpack.c.b16 %v4877, %v4869
  %v5734 = vpack.c.b16 %v4878, %v4870
  %v5735 = vpack.c.b16 %v4879, %v4871
  %v5736 = vpack.c.b16 %v4880, %v4872
  %v5737 = vpack.c.b16 %v4881, %v4873
  %v5738 = vpack.c.b16 %v4882, %v4874
  %v5739 = vpack.c.b16 %v4891, %v4883
  %v5740 = vpack.c.b16 %v4892, %v4884
  %v5741 = vpack.c.b16 %v4893, %v4885
  %v5742 = vpack.c.b16 %v4894, %v4886
  %v5743 = vpack.c.b16 %v4895, %v4887
  %v5744 = vpack.c.b16 %v4896, %v4888
  %v5745 = vpack.c.b16 %v4897, %v4889
  %v5746 = vpack.c.b16 %v4898, %v4890
  %v5747 = vpack.c.b16 %v4907, %v4899
  %v5748 = vpack.c.b16 %v4908, %v4900
  %v5749 = vpack.c.b16 %v4909, %v4901
  %v5750 = vpack.c.b16 %v4910, %v4902
  %v5751 = vpack.c.b16 %v4911, %v4903
  %v5752 = vpack.c.b16 %v4912, %v4904
  %v5753 = vpack.c.b16 %v4913, %v4905
  %v5754 = vpack.c.b16 %v4914, %v4906
  %v5755 = vpack.c.b16 %v4923, %v4915
  %v5756 = vpack.c.b16 %v4924, %v4916
  %v5757 = vpack.c.b16 %v4925, %v4917
  %v5758 = vpack.c.b16 %v4926, %v4918
  %v5759 = vpack.c.b16 %v4927, %v4919
  %v5760 = vpack.c.b16 %v4928, %v4920
  %v5761 = vpack.c.b16 %v4929, %v4921
  %v5762 = vpack.c.b16 %v4930, %v4922
  %v5763 = vpack.c.b16 %v4939, %v4931
  %v5764 = vpack.c.b16 %v4940, %v4932
  %v5765 = vpack.c.b16 %v4941, %v4933
  %v5766 = vpack.c.b16 %v4942, %v4934
  %v5767 = vpack.c.b16 %v4943, %v4935
  %v5768 = vpack.c.b16 %v4944, %v4936
  %v5769 = vpack.c.b16 %v4945, %v4937
  %v5770 = vpack.c.b16 %v4946, %v4938
  %v5771 = vpack.c.b16 %v4955, %v4947
  %v5772 = vpack.c.b16 %v4956, %v4948
  %v5773 = vpack.c.b16 %v4957, %v4949
  %v5774 = vpack.c.b16 %v4958, %v4950
  %v5775 = vpack.c.b16 %v4959, %v4951
  %v5776 = vpack.c.b16 %v4960, %v4952
  %v5777 = vpack.c.b16 %v4961, %v4953
  %v5778 = vpack.c.b16 %v4962, %v4954
  %v5779 = vpack.c.b16 %v4971, %v4963
  %v5780 = vpack.c.b16 %v4972, %v4964
  %v5781 = vpack.c.b16 %v4973, %v4965
  %v5782 = vpack.c.b16 %v4974, %v4966
  %v5783 = vpack.c.b16 %v4975, %v4967
  %v5784 = vpack.c.b16 %v4976, %v4968
  %v5785 = vpack.c.b16 %v4977, %v4969
  %v5786 = vpack.c.b16 %v4978, %v4970
  %v5787 = vpack.c.b16 %v4987, %v4979
  %v5788 = vpack.c.b16 %v4988, %v4980
  %v5789 = vpack.c.b16 %v4989, %v4981
  %v5790 = vpack.c.b16 %v4990, %v4982
  %v5791 = vpack.c.b16 %v4991, %v4983
  %v5792 = vpack.c.b16 %v4992, %v4984
  %v5793 = vpack.c.b16 %v4993, %v4985
  %v5794 = vpack.c.b16 %v4994, %v4986
  %v5795 = vpack.c.b16 %v5003, %v4995
  %v5796 = vpack.c.b16 %v5004, %v4996
  %v5797 = vpack.c.b16 %v5005, %v4997
  %v5798 = vpack.c.b16 %v5006, %v4998
  %v5799 = vpack.c.b16 %v5007, %v4999
  %v5800 = vpack.c.b16 %v5008, %v5000
  %v5801 = vpack.c.b16 %v5009, %v5001
  %v5802 = vpack.c.b16 %v5010, %v5002
  %v5803 = vpack.c.b16 %v5019, %v5011
  %v5804 = vpack.c.b16 %v5020, %v5012
  %v5805 = vpack.c.b16 %v5021, %v5013
  %v5806 = vpack.c.b16 %v5022, %v5014
  %v5807 = vpack.c.b16 %v5023, %v5015
  %v5808 = vpack.c.b16 %v5024, %v5016
  %v5809 = vpack.c.b16 %v5025, %v5017
  %v5810 = vpack.c.b16 %v5026, %v5018
  %v5811 = vpack.c.b16 %v5035, %v5027
  %v5812 = vpack.c.b16 %v5036, %v5028
  %v5813 = vpack.c.b16 %v5037, %v5029
  %v5814 = vpack.c.b16 %v5038, %v5030
  %v5815 = vpack.c.b16 %v5039, %v5031
  %v5816 = vpack.c.b16 %v5040, %v5032
  %v5817 = vpack.c.b16 %v5041, %v5033
  %v5818 = vpack.c.b16 %v5042, %v5034
  %v5819 = vpack.c.b16 %v5051, %v5043
  %v5820 = vpack.c.b16 %v5052, %v5044
  %v5821 = vpack.c.b16 %v5053, %v5045
  %v5822 = vpack.c.b16 %v5054, %v5046
  %v5823 = vpack.c.b16 %v5055, %v5047
  %v5824 = vpack.c.b16 %v5056, %v5048
  %v5825 = vpack.c.b16 %v5057, %v5049
  %v5826 = vpack.c.b16 %v5058, %v5050
  %v5827 = vpack.c.b16 %v5067, %v5059
  %v5828 = vpack.c.b16 %v5068, %v5060
  %v5829 = vpack.c.b16 %v5069, %v5061
  %v5830 = vpack.c.b16 %v5070, %v5062
  %v5831 = vpack.c.b16 %v5071, %v5063
  %v5832 = vpack.c.b16 %v5072, %v5064
  %v5833 = vpack.c.b16 %v5073, %v5065
  %v5834 = vpack.c.b16 %v5074, %v5066
  %v5835 = vpack.c.b16 %v5083, %v5075
  %v5836 = vpack.c.b16 %v5084, %v5076
  %v5837 = vpack.c.b16 %v5085, %v5077
  %v5838 = vpack.c.b16 %v5086, %v5078
  %v5839 = vpack.c.b16 %v5087, %v5079
  %v5840 = vpack.c.b16 %v5088, %v5080
  %v5841 = vpack.c.b16 %v5089, %v5081
  %v5842 = vpack.c.b16 %v5090, %v5082
  %v5843 = vpack.c.b16 %v5099, %v5091
  %v5844 = vpack.c.b16 %v5100, %v5092
  %v5845 = vpack.c.b16 %v5101, %v5093
  %v5846 = vpack.c.b16 %v5102, %v5094
  %v5847 = vpack.c.b16 %v5103, %v5095
  %v5848 = vpack.c.b16 %v5104, %v5096
  %v5849 = vpack.c.b16 %v5105, %v5097
  %v5850 = vpack.c.b16 %v5106, %v5098
  %v5851 = vpack.c.b16 %v5115, %v5107
  %v5852 = vpack.c.b16 %v5116, %v5108
  %v5853 = vpack.c.b16 %v5117, %v5109
  %v5854 = vpack.c.b16 %v5118, %v5110
  %v5855 = vpack.c.b16 %v5119, %v5111
  %v5856 = vpack.c.b16 %v5120, %v5112
  %v5857 = vpack.c.b16 %v5121, %v5113
  %v5858 = vpack.c.b16 %v5122, %v5114
  %v5859 = vpack.c.b16 %v5131, %v5123
  %v5860 = vpack.c.b16 %v5132, %v5124
  %v5861 = vpack.c.b16 %v5133, %v5125
  %v5862 = vpack.c.b16 %v5134, %v5126
  %v5863 = vpack.c.b16 %v5135, %v5127
  %v5864 = vpack.c.b16 %v5136, %v5128
  %v5865 = vpack.c.b16 %v5137, %v5129
  %v5866 = vpack.c.b16 %v5138, %v5130
  %v5867 = vpack.c.b16 %v5147, %v5139
  %v5868 = vpack.c.b16 %v5148, %v5140
  %v5869 = vpack.c.b16 %v5149, %v5141
  %v5870 = vpack.c.b16 %v5150, %v5142
  %v5871 = vpack.c.b16 %v5151, %v5143
  %v5872 = vpack.c.b16 %v5152, %v5144
  %v5873 = vpack.c.b16 %v5153, %v5145
  %v5874 = vpack.c.b16 %v5154, %v5146
  %v5875 = vpack.c.b16 %v5163, %v5155
  %v5876 = vpack.c.b16 %v5164, %v5156
  %v5877 = vpack.c.b16 %v5165, %v5157
  %v5878 = vpack.c.b16 %v5166, %v5158
  %v5879 = vpack.c.b16 %v5167, %v5159
  %v5880 = vpack.c.b16 %v5168, %v5160
  %v5881 = vpack.c.b16 %v5169, %v5161
  %v5882 = vpack.c.b16 %v5170, %v5162
  %v5883 = vpack.c.b16 %v5179, %v5171
  %v5884 = vpack.c.b16 %v5180, %v5172
  %v5885 = vpack.c.b16 %v5181, %v5173
  %v5886 = vpack.c.b16 %v5182, %v5174
  %v5887 = vpack.c.b16 %v5183, %v5175
  %v5888 = vpack.c.b16 %v5184, %v5176
  %v5889 = vpack.c.b16 %v5185, %v5177
  %v5890 = vpack.c.b16 %v5186, %v5178
  %v5891 = vpack.c.b16 %v5195, %v5187
  %v5892 = vpack.c.b16 %v5196, %v5188
  %v5893 = vpack.c.b16 %v5197, %v5189
  %v5894 = vpack.c.b16 %v5198, %v5190
  %v5895 = vpack.c.b16 %v5199, %v5191
  %v5896 = vpack.c.b16 %v5200, %v5192
  %v5897 = vpack.c.b16 %v5201, %v5193
  %v5898 = vpack.c.b16 %v5202, %v5194
  %v5899 = vpack.c.b16 %v5211, %v5203
  %v5900 = vpack.c.b16 %v5212, %v5204
  %v5901 = vpack.c.b16 %v5213, %v5205
  %v5902 = vpack.c.b16 %v5214, %v5206
  %v5903 = vpack.c.b16 %v5215, %v5207
  %v5904 = vpack.c.b16 %v5216, %v5208
  %v5905 = vpack.c.b16 %v5217, %v5209
  %v5906 = vpack.c.b16 %v5218, %v5210
  %v5907 = vpack.c.b16 %v5227, %v5219
  %v5908 = vpack.c.b16 %v5228, %v5220
  %v5909 = vpack.c.b16 %v5229, %v5221
  %v5910 = vpack.c.b16 %v5230, %v5222
  %v5911 = vpack.c.b16 %v5231, %v5223
  %v5912 = vpack.c.b16 %v5232, %v5224
  %v5913 = vpack.c.b16 %v5233, %v5225
  %v5914 = vpack.c.b16 %v5234, %v5226
  %v5915 = vpack.c.b16 %v5243, %v5235
  %v5916 = vpack.c.b16 %v5244, %v5236
  %v5917 = vpack.c.b16 %v5245, %v5237
  %v5918 = vpack.c.b16 %v5246, %v5238
  %v5919 = vpack.c.b16 %v5247, %v5239
  %v5920 = vpack.c.b16 %v5248, %v5240
  %v5921 = vpack.c.b16 %v5249, %v5241
  %v5922 = vpack.c.b16 %v5250, %v5242
  %v5923 = vpack.c.b16 %v5259, %v5251
  %v5924 = vpack.c.b16 %v5260, %v5252
  %v5925 = vpack.c.b16 %v5261, %v5253
  %v5926 = vpack.c.b16 %v5262, %v5254
  %v5927 = vpack.c.b16 %v5263, %v5255
  %v5928 = vpack.c.b16 %v5264, %v5256
  %v5929 = vpack.c.b16 %v5265, %v5257
  %v5930 = vpack.c.b16 %v5266, %v5258
  %v5931 = vpack.c.b16 %v5275, %v5267
  %v5932 = vpack.c.b16 %v5276, %v5268
  %v5933 = vpack.c.b16 %v5277, %v5269
  %v5934 = vpack.c.b16 %v5278, %v5270
  %v5935 = vpack.c.b16 %v5279, %v5271
  %v5936 = vpack.c.b16 %v5280, %v5272
  %v5937 = vpack.c.b16 %v5281, %v5273
  %v5938 = vpack.c.b16 %v5282, %v5274
  %v5939 = vpack.c.b16 %v5291, %v5283
  %v5940 = vpack.c.b16 %v5292, %v5284
  %v5941 = vpack.c.b16 %v5293, %v5285
  %v5942 = vpack.c.b16 %v5294, %v5286
  %v5943 = vpack.c.b16 %v5295, %v5287
  %v5944 = vpack.c.b16 %v5296, %v5288
  %v5945 = vpack.c.b16 %v5297, %v5289
  %v5946 = vpack.c.b16 %v5298, %v5290
  %v5947 = vpack.c.b16 %v5307, %v5299
  %v5948 = vpack.c.b16 %v5308, %v5300
  %v5949 = vpack.c.b16 %v5309, %v5301
  %v5950 = vpack.c.b16 %v5310, %v5302
  %v5951 = vpack.c.b16 %v5311, %v5303
  %v5952 = vpack.c.b16 %v5312, %v5304
  %v5953 = vpack.c.b16 %v5313, %v5305
  %v5954 = vpack.c.b16 %v5314, %v5306
  %v5955 = vpack.c.b16 %v5323, %v5315
  %v5956 = vpack.c.b16 %v5324, %v5316
  %v5957 = vpack.c.b16 %v5325, %v5317
  %v5958 = vpack.c.b16 %v5326, %v5318
  %v5959 = vpack.c.b16 %v5327, %v5319
  %v5960 = vpack.c.b16 %v5328, %v5320
  %v5961 = vpack.c.b16 %v5329, %v5321
  %v5962 = vpack.c.b16 %v5330, %v5322
  %v5963 = vpack.c.b16 %v5339, %v5331
  %v5964 = vpack.c.b16 %v5340, %v5332
  %v5965 = vpack.c.b16 %v5341, %v5333
  %v5966 = vpack.c.b16 %v5342, %v5334
  %v5967 = vpack.c.b16 %v5343, %v5335
  %v5968 = vpack.c.b16 %v5344, %v5336
  %v5969 = vpack.c.b16 %v5345, %v5337
  %v5970 = vpack.c.b16 %v5346, %v5338
  %v5971 = vpack.c.b16 %v5355, %v5347
  %v5972 = vpack.c.b16 %v5356, %v5348
  %v5973 = vpack.c.b16 %v5357, %v5349
  %v5974 = vpack.c.b16 %v5358, %v5350
  %v5975 = vpack.c.b16 %v5359, %v5351
  %v5976 = vpack.c.b16 %v5360, %v5352
  %v5977 = vpack.c.b16 %v5361, %v5353
  %v5978 = vpack.c.b16 %v5362, %v5354
  %v5979 = vpack.c.b16 %v5371, %v5363
  %v5980 = vpack.c.b16 %v5372, %v5364
  %v5981 = vpack.c.b16 %v5373, %v5365
  %v5982 = vpack.c.b16 %v5374, %v5366
  %v5983 = vpack.c.b16 %v5375, %v5367
  %v5984 = vpack.c.b16 %v5376, %v5368
  %v5985 = vpack.c.b16 %v5377, %v5369
  %v5986 = vpack.c.b16 %v5378, %v5370
  %v5987 = vpack.c.b16 %v5387, %v5379
  %v5988 = vpack.c.b16 %v5388, %v5380
  %v5989 = vpack.c.b16 %v5389, %v5381
  %v5990 = vpack.c.b16 %v5390, %v5382
  %v5991 = vpack.c.b16 %v5391, %v5383
  %v5992 = vpack.c.b16 %v5392, %v5384
  %v5993 = vpack.c.b16 %v5393, %v5385
  %v5994 = vpack.c.b16 %v5394, %v5386
  %v5995 = vpack.c.b16 %v5403, %v5395
  %v5996 = vpack.c.b16 %v5404, %v5396
  %v5997 = vpack.c.b16 %v5405, %v5397
  %v5998 = vpack.c.b16 %v5406, %v5398
  %v5999 = vpack.c.b16 %v5407, %v5399
  %v6000 = vpack.c.b16 %v5408, %v5400
  %v6001 = vpack.c.b16 %v5409, %v5401
  %v6002 = vpack.c.b16 %v5410, %v5402
  %v6003 = vpack.c.b16 %v5419, %v5411
  %v6004 = vpack.c.b16 %v5420, %v5412
  %v6005 = vpack.c.b16 %v5421, %v5413
  %v6006 = vpack.c.b16 %v5422, %v5414
  %v6007 = vpack.c.b16 %v5423, %v5415
  %v6008 = vpack.c.b16 %v5424, %v5416
  %v6009 = vpack.c.b16 %v5425, %v5417
  %v6010 = vpack.c.b16 %v5426, %v5418
  %v6011 = vpack.c.b16 %v5435, %v5427
  %v6012 = vpack.c.b16 %v5436, %v5428
  %v6013 = vpack.c.b16 %v5437, %v5429
  %v6014 = vpack.c.b16 %v5438, %v5430
  %v6015 = vpack.c.b16 %v5439, %v5431
  %v6016 = vpack.c.b16 %v5440, %v5432
  %v6017 = vpack.c.b16 %v5441, %v5433
  %v6018 = vpack.c.b16 %v5442, %v5434
  %v6019 = vpack.c.b16 %v5451, %v5443
  %v6020 = vpack.c.b16 %v5452, %v5444
  %v6021 = vpack.c.b16 %v5453, %v5445
  %v6022 = vpack.c.b16 %v5454, %v5446
  %v6023 = vpack.c.b16 %v5455, %v5447
  %v6024 = vpack.c.b16 %v5456, %v5448
  %v6025 = vpack.c.b16 %v5457, %v5449
  %v6026 = vpack.c.b16 %v5458, %v5450
  %v6027 = vpack.c.b16 %v5467, %v5459
  %v6028 = vpack.c.b16 %v5468, %v5460
  %v6029 = vpack.c.b16 %v5469, %v5461
  %v6030 = vpack.c.b16 %v5470, %v5462
  %v6031 = vpack.c.b16 %v5471, %v5463
  %v6032 = vpack.c.b16 %v5472, %v5464
  %v6033 = vpack.c.b16 %v5473, %v5465
  %v6034 = vpack.c.b16 %v5474, %v5466
  %v6035 = vpack.c.b16 %v5483, %v5475
  %v6036 = vpack.c.b16 %v5484, %v5476
  %v6037 = vpack.c.b16 %v5485, %v5477
  %v6038 = vpack.c.b16 %v5486, %v5478
  %v6039 = vpack.c.b16 %v5487, %v5479
  %v6040 = vpack.c.b16 %v5488, %v5480
  %v6041 = vpack.c.b16 %v5489, %v5481
  %v6042 = vpack.c.b16 %v5490, %v5482
  %v6043 = vpack.c.b16 %v5499, %v5491
  %v6044 = vpack.c.b16 %v5500, %v5492
  %v6045 = vpack.c.b16 %v5501, %v5493
  %v6046 = vpack.c.b16 %v5502, %v5494
  %v6047 = vpack.c.b16 %v5503, %v5495
  %v6048 = vpack.c.b16 %v5504, %v5496
  %v6049 = vpack.c.b16 %v5505, %v5497
  %v6050 = vpack.c.b16 %v5506, %v5498
  %v6051 = vpack.c.b16 %v5515, %v5507
  %v6052 = vpack.c.b16 %v5516, %v5508
  %v6053 = vpack.c.b16 %v5517, %v5509
  %v6054 = vpack.c.b16 %v5518, %v5510
  %v6055 = vpack.c.b16 %v5519, %v5511
  %v6056 = vpack.c.b16 %v5520, %v5512
  %v6057 = vpack.c.b16 %v5521, %v5513
  %v6058 = vpack.c.b16 %v5522, %v5514
  %v6059 = vpack.c.b16 %v5531, %v5523
  %v6060 = vpack.c.b16 %v5532, %v5524
  %v6061 = vpack.c.b16 %v5533, %v5525
  %v6062 = vpack.c.b16 %v5534, %v5526
  %v6063 = vpack.c.b16 %v5535, %v5527
  %v6064 = vpack.c.b16 %v5536, %v5528
  %v6065 = vpack.c.b16 %v5537, %v5529
  %v6066 = vpack.c.b16 %v5538, %v5530
  %v6067 = vpack.c.b16 %v5547, %v5539
  %v6068 = vpack.c.b16 %v5548, %v5540
  %v6069 = vpack.c.b16 %v5549, %v5541
  %v6070 = vpack.c.b16 %v5550, %v5542
  %v6071 = vpack.c.b16 %v5551, %v5543
  %v6072 = vpack.c.b16 %v5552, %v5544
  %v6073 = vpack.c.b16 %v5553, %v5545
  %v6074 = vpack.c.b16 %v5554, %v5546
  %v6075 = vpack.c.b16 %v5563, %v5555
  %v6076 = vpack.c.b16 %v5564, %v5556
  %v6077 = vpack.c.b16 %v5565, %v5557
  %v6078 = vpack.c.b16 %v5566, %v5558
  %v6079 = vpack.c.b16 %v5567, %v5559
  %v6080 = vpack.c.b16 %v5568, %v5560
  %v6081 = vpack.c.b16 %v5569, %v5561
  %v6082 = vpack.c.b16 %v5570, %v5562
  %6595 = vmatprep.subr.bf16.mxu0 %v5628
  %6596 = vmatpush1.bf16.msra.mxu0 %v5627
  %6597 = vmatprep.subr.bf16.mxu0 %v5620
  %6598 = vmatpush1.bf16.msra.mxu0 %v5619
  %6599 = vmatprep.subr.bf16.mxu0 %v5612
  %6600 = vmatpush1.bf16.msra.mxu0 %v5611
  %6601 = vmatprep.subr.bf16.mxu0 %v5604
  %6602 = vmatpush1.bf16.msra.mxu0 %v5603
  %6603 = vmatprep.subr.bf16.mxu0 %v5596
  %6604 = vmatpush1.bf16.msra.mxu0 %v5595
  %6605 = vmatprep.subr.bf16.mxu0 %v5588
  %6606 = vmatpush1.bf16.msra.mxu0 %v5587
  %6607 = vmatprep.subr.bf16.mxu0 %v5580
  %6608 = vmatpush1.bf16.msra.mxu0 %v5579
  %6609 = vmatprep.subr.bf16.mxu0 %v5572
  %6610 = vmatpush1.bf16.msra.mxu0 %v5571
  %6611 = vmatprep.subr.bf16.mxu0 %v5692
  %6612 = vmatpush2.bf16.msra.mxu0 %v5691
  %6613 = vmatprep.subr.bf16.mxu0 %v5684
  %6614 = vmatpush2.bf16.msra.mxu0 %v5683
  %6615 = vmatprep.subr.bf16.mxu0 %v5676
  %6616 = vmatpush2.bf16.msra.mxu0 %v5675
  %6617 = vmatprep.subr.bf16.mxu0 %v5668
  %6618 = vmatpush2.bf16.msra.mxu0 %v5667
  %6619 = vmatprep.subr.bf16.mxu0 %v5660
  %6620 = vmatpush2.bf16.msra.mxu0 %v5659
  %6621 = vmatprep.subr.bf16.mxu0 %v5652
  %6622 = vmatpush2.bf16.msra.mxu0 %v5651
  %6623 = vmatprep.subr.bf16.mxu0 %v5644
  %6624 = vmatpush2.bf16.msra.mxu0 %v5643
  %6625 = vmatprep.subr.bf16.mxu0 %v5636
  %6626 = vmatpush2.bf16.msra.mxu0 %v5635
  %6627 = vmatprep.mubr.bf16.mxu0 %v3474
  %6628 = vmatmul.mubr.bf16.gmra.mxu0 %v3473
  %v6629 = vpop.f32.mrf.mxu0
  %v6630 = vadd.f32 %v3998, %v6629
  %v6631 = vpop.f32.mrf.mxu0
  %v6632 = vadd.f32 %v4002, %v6631
  %v6633 = vpop.f32.mrf.mxu0
  %v6634 = vpop.f32.mrf.mxu0
  %6635 = vdwg.mxu0
  %6636 = vmatprep.subr.bf16.mxu0 %v5756
  %6637 = vmatpush1.bf16.msra.mxu0 %v5755
  %6638 = vmatprep.subr.bf16.mxu0 %v5748
  %6639 = vmatpush1.bf16.msra.mxu0 %v5747
  %6640 = vmatprep.subr.bf16.mxu0 %v5740
  %6641 = vmatpush1.bf16.msra.mxu0 %v5739
  %6642 = vmatprep.subr.bf16.mxu0 %v5732
  %6643 = vmatpush1.bf16.msra.mxu0 %v5731
  %6644 = vmatprep.subr.bf16.mxu0 %v5724
  %6645 = vmatpush1.bf16.msra.mxu0 %v5723
  %6646 = vmatprep.subr.bf16.mxu0 %v5716
  %6647 = vmatpush1.bf16.msra.mxu0 %v5715
  %6648 = vmatprep.subr.bf16.mxu0 %v5708
  %6649 = vmatpush1.bf16.msra.mxu0 %v5707
  %6650 = vmatprep.subr.bf16.mxu0 %v5700
  %6651 = vmatpush1.bf16.msra.mxu0 %v5699
  %6652 = vmatprep.subr.bf16.mxu0 %v5820
  %6653 = vmatpush2.bf16.msra.mxu0 %v5819
  %6654 = vmatprep.subr.bf16.mxu0 %v5812
  %6655 = vmatpush2.bf16.msra.mxu0 %v5811
  %6656 = vmatprep.subr.bf16.mxu0 %v5804
  %6657 = vmatpush2.bf16.msra.mxu0 %v5803
  %6658 = vmatprep.subr.bf16.mxu0 %v5796
  %6659 = vmatpush2.bf16.msra.mxu0 %v5795
  %6660 = vmatprep.subr.bf16.mxu0 %v5788
  %6661 = vmatpush2.bf16.msra.mxu0 %v5787
  %6662 = vmatprep.subr.bf16.mxu0 %v5780
  %6663 = vmatpush2.bf16.msra.mxu0 %v5779
  %6664 = vmatprep.subr.bf16.mxu0 %v5772
  %6665 = vmatpush2.bf16.msra.mxu0 %v5771
  %6666 = vmatprep.subr.bf16.mxu0 %v5764
  %6667 = vmatpush2.bf16.msra.mxu0 %v5763
  %6668 = vmatprep.mubr.bf16.mxu0 %v3476
  %6669 = vmatmul.mubr.bf16.gmra.mxu0 %v3475
  %v6670 = vpop.f32.mrf.mxu0
  %v6671 = vadd.f32 %v6630, %v6670
  %v6672 = vpop.f32.mrf.mxu0
  %v6673 = vadd.f32 %v6632, %v6672
  %v6674 = vpop.f32.mrf.mxu0
  %v6675 = vpop.f32.mrf.mxu0
  %6676 = vdwg.mxu0
  %6677 = vmatprep.subr.bf16.mxu0 %v5884
  %6678 = vmatpush1.bf16.msra.mxu0 %v5883
  %6679 = vmatprep.subr.bf16.mxu0 %v5876
  %6680 = vmatpush1.bf16.msra.mxu0 %v5875
  %6681 = vmatprep.subr.bf16.mxu0 %v5868
  %6682 = vmatpush1.bf16.msra.mxu0 %v5867
  %6683 = vmatprep.subr.bf16.mxu0 %v5860
  %6684 = vmatpush1.bf16.msra.mxu0 %v5859
  %6685 = vmatprep.subr.bf16.mxu0 %v5852
  %6686 = vmatpush1.bf16.msra.mxu0 %v5851
  %6687 = vmatprep.subr.bf16.mxu0 %v5844
  %6688 = vmatpush1.bf16.msra.mxu0 %v5843
  %6689 = vmatprep.subr.bf16.mxu0 %v5836
  %6690 = vmatpush1.bf16.msra.mxu0 %v5835
  %6691 = vmatprep.subr.bf16.mxu0 %v5828
  %6692 = vmatpush1.bf16.msra.mxu0 %v5827
  %6693 = vmatprep.subr.bf16.mxu0 %v5948
  %6694 = vmatpush2.bf16.msra.mxu0 %v5947
  %6695 = vmatprep.subr.bf16.mxu0 %v5940
  %6696 = vmatpush2.bf16.msra.mxu0 %v5939
  %6697 = vmatprep.subr.bf16.mxu0 %v5932
  %6698 = vmatpush2.bf16.msra.mxu0 %v5931
  %6699 = vmatprep.subr.bf16.mxu0 %v5924
  %6700 = vmatpush2.bf16.msra.mxu0 %v5923
  %6701 = vmatprep.subr.bf16.mxu0 %v5916
  %6702 = vmatpush2.bf16.msra.mxu0 %v5915
  %6703 = vmatprep.subr.bf16.mxu0 %v5908
  %6704 = vmatpush2.bf16.msra.mxu0 %v5907
  %6705 = vmatprep.subr.bf16.mxu0 %v5900
  %6706 = vmatpush2.bf16.msra.mxu0 %v5899
  %6707 = vmatprep.subr.bf16.mxu0 %v5892
  %6708 = vmatpush2.bf16.msra.mxu0 %v5891
  %6709 = vmatprep.mubr.bf16.mxu0 %v3478
  %6710 = vmatmul.mubr.bf16.gmra.mxu0 %v3477
  %v6711 = vpop.f32.mrf.mxu0
  %v6712 = vadd.f32 %v6671, %v6711
  %v6713 = vpop.f32.mrf.mxu0
  %v6714 = vadd.f32 %v6673, %v6713
  %v6715 = vpop.f32.mrf.mxu0
  %v6716 = vpop.f32.mrf.mxu0
  %6717 = vdwg.mxu0
  %6718 = vmatprep.subr.bf16.mxu0 %v6012
  %6719 = vmatpush1.bf16.msra.mxu0 %v6011
  %6720 = vmatprep.subr.bf16.mxu0 %v6004
  %6721 = vmatpush1.bf16.msra.mxu0 %v6003
  %6722 = vmatprep.subr.bf16.mxu0 %v5996
  %6723 = vmatpush1.bf16.msra.mxu0 %v5995
  %6724 = vmatprep.subr.bf16.mxu0 %v5988
  %6725 = vmatpush1.bf16.msra.mxu0 %v5987
  %6726 = vmatprep.subr.bf16.mxu0 %v5980
  %6727 = vmatpush1.bf16.msra.mxu0 %v5979
  %6728 = vmatprep.subr.bf16.mxu0 %v5972
  %6729 = vmatpush1.bf16.msra.mxu0 %v5971
  %6730 = vmatprep.subr.bf16.mxu0 %v5964
  %6731 = vmatpush1.bf16.msra.mxu0 %v5963
  %6732 = vmatprep.subr.bf16.mxu0 %v5956
  %6733 = vmatpush1.bf16.msra.mxu0 %v5955
  %6734 = vmatprep.subr.bf16.mxu0 %v6076
  %6735 = vmatpush2.bf16.msra.mxu0 %v6075
  %6736 = vmatprep.subr.bf16.mxu0 %v6068
  %6737 = vmatpush2.bf16.msra.mxu0 %v6067
  %6738 = vmatprep.subr.bf16.mxu0 %v6060
  %6739 = vmatpush2.bf16.msra.mxu0 %v6059
  %6740 = vmatprep.subr.bf16.mxu0 %v6052
  %6741 = vmatpush2.bf16.msra.mxu0 %v6051
  %6742 = vmatprep.subr.bf16.mxu0 %v6044
  %6743 = vmatpush2.bf16.msra.mxu0 %v6043
  %6744 = vmatprep.subr.bf16.mxu0 %v6036
  %6745 = vmatpush2.bf16.msra.mxu0 %v6035
  %6746 = vmatprep.subr.bf16.mxu0 %v6028
  %6747 = vmatpush2.bf16.msra.mxu0 %v6027
  %6748 = vmatprep.subr.bf16.mxu0 %v6020
  %6749 = vmatpush2.bf16.msra.mxu0 %v6019
  %6750 = vmatprep.mubr.bf16.mxu0 %v3480
  %6751 = vmatmul.mubr.bf16.gmra.mxu0 %v3479
  %v6752 = vpop.f32.mrf.mxu0
  %v6753 = vadd.f32 %v6712, %v6752
  %v6754 = vpop.f32.mrf.mxu0
  %v6755 = vadd.f32 %v6714, %v6754
  %v6756 = vpop.f32.mrf.mxu0
  %v6757 = vpop.f32.mrf.mxu0
  %6758 = vdwg.mxu0
  %6759 = vmatprep.subr.bf16.mxu0 %v5630
  %6760 = vmatpush1.bf16.msra.mxu0 %v5629
  %6761 = vmatprep.subr.bf16.mxu0 %v5622
  %6762 = vmatpush1.bf16.msra.mxu0 %v5621
  %6763 = vmatprep.subr.bf16.mxu0 %v5614
  %6764 = vmatpush1.bf16.msra.mxu0 %v5613
  %6765 = vmatprep.subr.bf16.mxu0 %v5606
  %6766 = vmatpush1.bf16.msra.mxu0 %v5605
  %6767 = vmatprep.subr.bf16.mxu0 %v5598
  %6768 = vmatpush1.bf16.msra.mxu0 %v5597
  %6769 = vmatprep.subr.bf16.mxu0 %v5590
  %6770 = vmatpush1.bf16.msra.mxu0 %v5589
  %6771 = vmatprep.subr.bf16.mxu0 %v5582
  %6772 = vmatpush1.bf16.msra.mxu0 %v5581
  %6773 = vmatprep.subr.bf16.mxu0 %v5574
  %6774 = vmatpush1.bf16.msra.mxu0 %v5573
  %6775 = vmatprep.subr.bf16.mxu0 %v5694
  %6776 = vmatpush2.bf16.msra.mxu0 %v5693
  %6777 = vmatprep.subr.bf16.mxu0 %v5686
  %6778 = vmatpush2.bf16.msra.mxu0 %v5685
  %6779 = vmatprep.subr.bf16.mxu0 %v5678
  %6780 = vmatpush2.bf16.msra.mxu0 %v5677
  %6781 = vmatprep.subr.bf16.mxu0 %v5670
  %6782 = vmatpush2.bf16.msra.mxu0 %v5669
  %6783 = vmatprep.subr.bf16.mxu0 %v5662
  %6784 = vmatpush2.bf16.msra.mxu0 %v5661
  %6785 = vmatprep.subr.bf16.mxu0 %v5654
  %6786 = vmatpush2.bf16.msra.mxu0 %v5653
  %6787 = vmatprep.subr.bf16.mxu0 %v5646
  %6788 = vmatpush2.bf16.msra.mxu0 %v5645
  %6789 = vmatprep.subr.bf16.mxu0 %v5638
  %6790 = vmatpush2.bf16.msra.mxu0 %v5637
  %6791 = vmatprep.mubr.bf16.mxu0 %v3474
  %6792 = vmatmul.mubr.bf16.gmra.mxu0 %v3473
  %v6793 = vpop.f32.mrf.mxu0
  %v6794 = vadd.f32 %v4006, %v6793
  %v6795 = vpop.f32.mrf.mxu0
  %v6796 = vadd.f32 %v4010, %v6795
  %v6797 = vpop.f32.mrf.mxu0
  %v6798 = vpop.f32.mrf.mxu0
  %6799 = vdwg.mxu0
  %6800 = vmatprep.subr.bf16.mxu0 %v5758
  %6801 = vmatpush1.bf16.msra.mxu0 %v5757
  %6802 = vmatprep.subr.bf16.mxu0 %v5750
  %6803 = vmatpush1.bf16.msra.mxu0 %v5749
  %6804 = vmatprep.subr.bf16.mxu0 %v5742
  %6805 = vmatpush1.bf16.msra.mxu0 %v5741
  %6806 = vmatprep.subr.bf16.mxu0 %v5734
  %6807 = vmatpush1.bf16.msra.mxu0 %v5733
  %6808 = vmatprep.subr.bf16.mxu0 %v5726
  %6809 = vmatpush1.bf16.msra.mxu0 %v5725
  %6810 = vmatprep.subr.bf16.mxu0 %v5718
  %6811 = vmatpush1.bf16.msra.mxu0 %v5717
  %6812 = vmatprep.subr.bf16.mxu0 %v5710
  %6813 = vmatpush1.bf16.msra.mxu0 %v5709
  %6814 = vmatprep.subr.bf16.mxu0 %v5702
  %6815 = vmatpush1.bf16.msra.mxu0 %v5701
  %6816 = vmatprep.subr.bf16.mxu0 %v5822
  %6817 = vmatpush2.bf16.msra.mxu0 %v5821
  %6818 = vmatprep.subr.bf16.mxu0 %v5814
  %6819 = vmatpush2.bf16.msra.mxu0 %v5813
  %6820 = vmatprep.subr.bf16.mxu0 %v5806
  %6821 = vmatpush2.bf16.msra.mxu0 %v5805
  %6822 = vmatprep.subr.bf16.mxu0 %v5798
  %6823 = vmatpush2.bf16.msra.mxu0 %v5797
  %6824 = vmatprep.subr.bf16.mxu0 %v5790
  %6825 = vmatpush2.bf16.msra.mxu0 %v5789
  %6826 = vmatprep.subr.bf16.mxu0 %v5782
  %6827 = vmatpush2.bf16.msra.mxu0 %v5781
  %6828 = vmatprep.subr.bf16.mxu0 %v5774
  %6829 = vmatpush2.bf16.msra.mxu0 %v5773
  %6830 = vmatprep.subr.bf16.mxu0 %v5766
  %6831 = vmatpush2.bf16.msra.mxu0 %v5765
  %6832 = vmatprep.mubr.bf16.mxu0 %v3476
  %6833 = vmatmul.mubr.bf16.gmra.mxu0 %v3475
  %v6834 = vpop.f32.mrf.mxu0
  %v6835 = vadd.f32 %v6794, %v6834
  %v6836 = vpop.f32.mrf.mxu0
  %v6837 = vadd.f32 %v6796, %v6836
  %v6838 = vpop.f32.mrf.mxu0
  %v6839 = vpop.f32.mrf.mxu0
  %6840 = vdwg.mxu0
  %6841 = vmatprep.subr.bf16.mxu0 %v5886
  %6842 = vmatpush1.bf16.msra.mxu0 %v5885
  %6843 = vmatprep.subr.bf16.mxu0 %v5878
  %6844 = vmatpush1.bf16.msra.mxu0 %v5877
  %6845 = vmatprep.subr.bf16.mxu0 %v5870
  %6846 = vmatpush1.bf16.msra.mxu0 %v5869
  %6847 = vmatprep.subr.bf16.mxu0 %v5862
  %6848 = vmatpush1.bf16.msra.mxu0 %v5861
  %6849 = vmatprep.subr.bf16.mxu0 %v5854
  %6850 = vmatpush1.bf16.msra.mxu0 %v5853
  %6851 = vmatprep.subr.bf16.mxu0 %v5846
  %6852 = vmatpush1.bf16.msra.mxu0 %v5845
  %6853 = vmatprep.subr.bf16.mxu0 %v5838
  %6854 = vmatpush1.bf16.msra.mxu0 %v5837
  %6855 = vmatprep.subr.bf16.mxu0 %v5830
  %6856 = vmatpush1.bf16.msra.mxu0 %v5829
  %6857 = vmatprep.subr.bf16.mxu0 %v5950
  %6858 = vmatpush2.bf16.msra.mxu0 %v5949
  %6859 = vmatprep.subr.bf16.mxu0 %v5942
  %6860 = vmatpush2.bf16.msra.mxu0 %v5941
  %6861 = vmatprep.subr.bf16.mxu0 %v5934
  %6862 = vmatpush2.bf16.msra.mxu0 %v5933
  %6863 = vmatprep.subr.bf16.mxu0 %v5926
  %6864 = vmatpush2.bf16.msra.mxu0 %v5925
  %6865 = vmatprep.subr.bf16.mxu0 %v5918
  %6866 = vmatpush2.bf16.msra.mxu0 %v5917
  %6867 = vmatprep.subr.bf16.mxu0 %v5910
  %6868 = vmatpush2.bf16.msra.mxu0 %v5909
  %6869 = vmatprep.subr.bf16.mxu0 %v5902
  %6870 = vmatpush2.bf16.msra.mxu0 %v5901
  %6871 = vmatprep.subr.bf16.mxu0 %v5894
  %6872 = vmatpush2.bf16.msra.mxu0 %v5893
  %6873 = vmatprep.mubr.bf16.mxu0 %v3478
  %6874 = vmatmul.mubr.bf16.gmra.mxu0 %v3477
  %v6875 = vpop.f32.mrf.mxu0
  %v6876 = vadd.f32 %v6835, %v6875
  %v6877 = vpop.f32.mrf.mxu0
  %v6878 = vadd.f32 %v6837, %v6877
  %v6879 = vpop.f32.mrf.mxu0
  %v6880 = vpop.f32.mrf.mxu0
  %6881 = vdwg.mxu0
  %6882 = vmatprep.subr.bf16.mxu0 %v6014
  %6883 = vmatpush1.bf16.msra.mxu0 %v6013
  %6884 = vmatprep.subr.bf16.mxu0 %v6006
  %6885 = vmatpush1.bf16.msra.mxu0 %v6005
  %6886 = vmatprep.subr.bf16.mxu0 %v5998
  %6887 = vmatpush1.bf16.msra.mxu0 %v5997
  %6888 = vmatprep.subr.bf16.mxu0 %v5990
  %6889 = vmatpush1.bf16.msra.mxu0 %v5989
  %6890 = vmatprep.subr.bf16.mxu0 %v5982
  %6891 = vmatpush1.bf16.msra.mxu0 %v5981
  %6892 = vmatprep.subr.bf16.mxu0 %v5974
  %6893 = vmatpush1.bf16.msra.mxu0 %v5973
  %6894 = vmatprep.subr.bf16.mxu0 %v5966
  %6895 = vmatpush1.bf16.msra.mxu0 %v5965
  %6896 = vmatprep.subr.bf16.mxu0 %v5958
  %6897 = vmatpush1.bf16.msra.mxu0 %v5957
  %6898 = vmatprep.subr.bf16.mxu0 %v6078
  %6899 = vmatpush2.bf16.msra.mxu0 %v6077
  %6900 = vmatprep.subr.bf16.mxu0 %v6070
  %6901 = vmatpush2.bf16.msra.mxu0 %v6069
  %6902 = vmatprep.subr.bf16.mxu0 %v6062
  %6903 = vmatpush2.bf16.msra.mxu0 %v6061
  %6904 = vmatprep.subr.bf16.mxu0 %v6054
  %6905 = vmatpush2.bf16.msra.mxu0 %v6053
  %6906 = vmatprep.subr.bf16.mxu0 %v6046
  %6907 = vmatpush2.bf16.msra.mxu0 %v6045
  %6908 = vmatprep.subr.bf16.mxu0 %v6038
  %6909 = vmatpush2.bf16.msra.mxu0 %v6037
  %6910 = vmatprep.subr.bf16.mxu0 %v6030
  %6911 = vmatpush2.bf16.msra.mxu0 %v6029
  %6912 = vmatprep.subr.bf16.mxu0 %v6022
  %6913 = vmatpush2.bf16.msra.mxu0 %v6021
  %6914 = vmatprep.mubr.bf16.mxu0 %v3480
  %6915 = vmatmul.mubr.bf16.gmra.mxu0 %v3479
  %v6916 = vpop.f32.mrf.mxu0
  %v6917 = vadd.f32 %v6876, %v6916
  %v6918 = vpop.f32.mrf.mxu0
  %v6919 = vadd.f32 %v6878, %v6918
  %v6920 = vpop.f32.mrf.mxu0
  %v6921 = vpop.f32.mrf.mxu0
  %6922 = vdwg.mxu0
  %6923 = vmatprep.subr.bf16.mxu0 %v5632
  %6924 = vmatpush1.bf16.msra.mxu0 %v5631
  %6925 = vmatprep.subr.bf16.mxu0 %v5624
  %6926 = vmatpush1.bf16.msra.mxu0 %v5623
  %6927 = vmatprep.subr.bf16.mxu0 %v5616
  %6928 = vmatpush1.bf16.msra.mxu0 %v5615
  %6929 = vmatprep.subr.bf16.mxu0 %v5608
  %6930 = vmatpush1.bf16.msra.mxu0 %v5607
  %6931 = vmatprep.subr.bf16.mxu0 %v5600
  %6932 = vmatpush1.bf16.msra.mxu0 %v5599
  %6933 = vmatprep.subr.bf16.mxu0 %v5592
  %6934 = vmatpush1.bf16.msra.mxu0 %v5591
  %6935 = vmatprep.subr.bf16.mxu0 %v5584
  %6936 = vmatpush1.bf16.msra.mxu0 %v5583
  %6937 = vmatprep.subr.bf16.mxu0 %v5576
  %6938 = vmatpush1.bf16.msra.mxu0 %v5575
  %6939 = vmatprep.subr.bf16.mxu0 %v5696
  %6940 = vmatpush2.bf16.msra.mxu0 %v5695
  %6941 = vmatprep.subr.bf16.mxu0 %v5688
  %6942 = vmatpush2.bf16.msra.mxu0 %v5687
  %6943 = vmatprep.subr.bf16.mxu0 %v5680
  %6944 = vmatpush2.bf16.msra.mxu0 %v5679
  %6945 = vmatprep.subr.bf16.mxu0 %v5672
  %6946 = vmatpush2.bf16.msra.mxu0 %v5671
  %6947 = vmatprep.subr.bf16.mxu0 %v5664
  %6948 = vmatpush2.bf16.msra.mxu0 %v5663
  %6949 = vmatprep.subr.bf16.mxu0 %v5656
  %6950 = vmatpush2.bf16.msra.mxu0 %v5655
  %6951 = vmatprep.subr.bf16.mxu0 %v5648
  %6952 = vmatpush2.bf16.msra.mxu0 %v5647
  %6953 = vmatprep.subr.bf16.mxu0 %v5640
  %6954 = vmatpush2.bf16.msra.mxu0 %v5639
  %6955 = vmatprep.mubr.bf16.mxu0 %v3474
  %6956 = vmatmul.mubr.bf16.gmra.mxu0 %v3473
  %v6957 = vpop.f32.mrf.mxu0
  %v6958 = vadd.f32 %v4014, %v6957
  %v6959 = vpop.f32.mrf.mxu0
  %v6960 = vadd.f32 %v4018, %v6959
  %v6961 = vpop.f32.mrf.mxu0
  %v6962 = vpop.f32.mrf.mxu0
  %6963 = vdwg.mxu0
  %6964 = vmatprep.subr.bf16.mxu0 %v5760
  %6965 = vmatpush1.bf16.msra.mxu0 %v5759
  %6966 = vmatprep.subr.bf16.mxu0 %v5752
  %6967 = vmatpush1.bf16.msra.mxu0 %v5751
  %6968 = vmatprep.subr.bf16.mxu0 %v5744
  %6969 = vmatpush1.bf16.msra.mxu0 %v5743
  %6970 = vmatprep.subr.bf16.mxu0 %v5736
  %6971 = vmatpush1.bf16.msra.mxu0 %v5735
  %6972 = vmatprep.subr.bf16.mxu0 %v5728
  %6973 = vmatpush1.bf16.msra.mxu0 %v5727
  %6974 = vmatprep.subr.bf16.mxu0 %v5720
  %6975 = vmatpush1.bf16.msra.mxu0 %v5719
  %6976 = vmatprep.subr.bf16.mxu0 %v5712
  %6977 = vmatpush1.bf16.msra.mxu0 %v5711
  %6978 = vmatprep.subr.bf16.mxu0 %v5704
  %6979 = vmatpush1.bf16.msra.mxu0 %v5703
  %6980 = vmatprep.subr.bf16.mxu0 %v5824
  %6981 = vmatpush2.bf16.msra.mxu0 %v5823
  %6982 = vmatprep.subr.bf16.mxu0 %v5816
  %6983 = vmatpush2.bf16.msra.mxu0 %v5815
  %6984 = vmatprep.subr.bf16.mxu0 %v5808
  %6985 = vmatpush2.bf16.msra.mxu0 %v5807
  %6986 = vmatprep.subr.bf16.mxu0 %v5800
  %6987 = vmatpush2.bf16.msra.mxu0 %v5799
  %6988 = vmatprep.subr.bf16.mxu0 %v5792
  %6989 = vmatpush2.bf16.msra.mxu0 %v5791
  %6990 = vmatprep.subr.bf16.mxu0 %v5784
  %6991 = vmatpush2.bf16.msra.mxu0 %v5783
  %6992 = vmatprep.subr.bf16.mxu0 %v5776
  %6993 = vmatpush2.bf16.msra.mxu0 %v5775
  %6994 = vmatprep.subr.bf16.mxu0 %v5768
  %6995 = vmatpush2.bf16.msra.mxu0 %v5767
  %6996 = vmatprep.mubr.bf16.mxu0 %v3476
  %6997 = vmatmul.mubr.bf16.gmra.mxu0 %v3475
  %v6998 = vpop.f32.mrf.mxu0
  %v6999 = vadd.f32 %v6958, %v6998
  %v7000 = vpop.f32.mrf.mxu0
  %v7001 = vadd.f32 %v6960, %v7000
  %v7002 = vpop.f32.mrf.mxu0
  %v7003 = vpop.f32.mrf.mxu0
  %7004 = vdwg.mxu0
  %7005 = vmatprep.subr.bf16.mxu0 %v5888
  %7006 = vmatpush1.bf16.msra.mxu0 %v5887
  %7007 = vmatprep.subr.bf16.mxu0 %v5880
  %7008 = vmatpush1.bf16.msra.mxu0 %v5879
  %7009 = vmatprep.subr.bf16.mxu0 %v5872
  %7010 = vmatpush1.bf16.msra.mxu0 %v5871
  %7011 = vmatprep.subr.bf16.mxu0 %v5864
  %7012 = vmatpush1.bf16.msra.mxu0 %v5863
  %7013 = vmatprep.subr.bf16.mxu0 %v5856
  %7014 = vmatpush1.bf16.msra.mxu0 %v5855
  %7015 = vmatprep.subr.bf16.mxu0 %v5848
  %7016 = vmatpush1.bf16.msra.mxu0 %v5847
  %7017 = vmatprep.subr.bf16.mxu0 %v5840
  %7018 = vmatpush1.bf16.msra.mxu0 %v5839
  %7019 = vmatprep.subr.bf16.mxu0 %v5832
  %7020 = vmatpush1.bf16.msra.mxu0 %v5831
  %7021 = vmatprep.subr.bf16.mxu0 %v5952
  %7022 = vmatpush2.bf16.msra.mxu0 %v5951
  %7023 = vmatprep.subr.bf16.mxu0 %v5944
  %7024 = vmatpush2.bf16.msra.mxu0 %v5943
  %7025 = vmatprep.subr.bf16.mxu0 %v5936
  %7026 = vmatpush2.bf16.msra.mxu0 %v5935
  %7027 = vmatprep.subr.bf16.mxu0 %v5928
  %7028 = vmatpush2.bf16.msra.mxu0 %v5927
  %7029 = vmatprep.subr.bf16.mxu0 %v5920
  %7030 = vmatpush2.bf16.msra.mxu0 %v5919
  %7031 = vmatprep.subr.bf16.mxu0 %v5912
  %7032 = vmatpush2.bf16.msra.mxu0 %v5911
  %7033 = vmatprep.subr.bf16.mxu0 %v5904
  %7034 = vmatpush2.bf16.msra.mxu0 %v5903
  %7035 = vmatprep.subr.bf16.mxu0 %v5896
  %7036 = vmatpush2.bf16.msra.mxu0 %v5895
  %7037 = vmatprep.mubr.bf16.mxu0 %v3478
  %7038 = vmatmul.mubr.bf16.gmra.mxu0 %v3477
  %v7039 = vpop.f32.mrf.mxu0
  %v7040 = vadd.f32 %v6999, %v7039
  %v7041 = vpop.f32.mrf.mxu0
  %v7042 = vadd.f32 %v7001, %v7041
  %v7043 = vpop.f32.mrf.mxu0
  %v7044 = vpop.f32.mrf.mxu0
  %7045 = vdwg.mxu0
  %7046 = vmatprep.subr.bf16.mxu0 %v6016
  %7047 = vmatpush1.bf16.msra.mxu0 %v6015
  %7048 = vmatprep.subr.bf16.mxu0 %v6008
  %7049 = vmatpush1.bf16.msra.mxu0 %v6007
  %7050 = vmatprep.subr.bf16.mxu0 %v6000
  %7051 = vmatpush1.bf16.msra.mxu0 %v5999
  %7052 = vmatprep.subr.bf16.mxu0 %v5992
  %7053 = vmatpush1.bf16.msra.mxu0 %v5991
  %7054 = vmatprep.subr.bf16.mxu0 %v5984
  %7055 = vmatpush1.bf16.msra.mxu0 %v5983
  %7056 = vmatprep.subr.bf16.mxu0 %v5976
  %7057 = vmatpush1.bf16.msra.mxu0 %v5975
  %7058 = vmatprep.subr.bf16.mxu0 %v5968
  %7059 = vmatpush1.bf16.msra.mxu0 %v5967
  %7060 = vmatprep.subr.bf16.mxu0 %v5960
  %7061 = vmatpush1.bf16.msra.mxu0 %v5959
  %7062 = vmatprep.subr.bf16.mxu0 %v6080
  %7063 = vmatpush2.bf16.msra.mxu0 %v6079
  %7064 = vmatprep.subr.bf16.mxu0 %v6072
  %7065 = vmatpush2.bf16.msra.mxu0 %v6071
  %7066 = vmatprep.subr.bf16.mxu0 %v6064
  %7067 = vmatpush2.bf16.msra.mxu0 %v6063
  %7068 = vmatprep.subr.bf16.mxu0 %v6056
  %7069 = vmatpush2.bf16.msra.mxu0 %v6055
  %7070 = vmatprep.subr.bf16.mxu0 %v6048
  %7071 = vmatpush2.bf16.msra.mxu0 %v6047
  %7072 = vmatprep.subr.bf16.mxu0 %v6040
  %7073 = vmatpush2.bf16.msra.mxu0 %v6039
  %7074 = vmatprep.subr.bf16.mxu0 %v6032
  %7075 = vmatpush2.bf16.msra.mxu0 %v6031
  %7076 = vmatprep.subr.bf16.mxu0 %v6024
  %7077 = vmatpush2.bf16.msra.mxu0 %v6023
  %7078 = vmatprep.mubr.bf16.mxu0 %v3480
  %7079 = vmatmul.mubr.bf16.gmra.mxu0 %v3479
  %v7080 = vpop.f32.mrf.mxu0
  %v7081 = vadd.f32 %v7040, %v7080
  %v7082 = vpop.f32.mrf.mxu0
  %v7083 = vadd.f32 %v7042, %v7082
  %v7084 = vpop.f32.mrf.mxu0
  %v7085 = vpop.f32.mrf.mxu0
  %7086 = vdwg.mxu0
  %7087 = vmatprep.subr.bf16.mxu0 %v5634
  %7088 = vmatpush1.bf16.msra.mxu0 %v5633
  %7089 = vmatprep.subr.bf16.mxu0 %v5626
  %7090 = vmatpush1.bf16.msra.mxu0 %v5625
  %7091 = vmatprep.subr.bf16.mxu0 %v5618
  %7092 = vmatpush1.bf16.msra.mxu0 %v5617
  %7093 = vmatprep.subr.bf16.mxu0 %v5610
  %7094 = vmatpush1.bf16.msra.mxu0 %v5609
  %7095 = vmatprep.subr.bf16.mxu0 %v5602
  %7096 = vmatpush1.bf16.msra.mxu0 %v5601
  %7097 = vmatprep.subr.bf16.mxu0 %v5594
  %7098 = vmatpush1.bf16.msra.mxu0 %v5593
  %7099 = vmatprep.subr.bf16.mxu0 %v5586
  %7100 = vmatpush1.bf16.msra.mxu0 %v5585
  %7101 = vmatprep.subr.bf16.mxu0 %v5578
  %7102 = vmatpush1.bf16.msra.mxu0 %v5577
  %7103 = vmatprep.subr.bf16.mxu0 %v5698
  %7104 = vmatpush2.bf16.msra.mxu0 %v5697
  %7105 = vmatprep.subr.bf16.mxu0 %v5690
  %7106 = vmatpush2.bf16.msra.mxu0 %v5689
  %7107 = vmatprep.subr.bf16.mxu0 %v5682
  %7108 = vmatpush2.bf16.msra.mxu0 %v5681
  %7109 = vmatprep.subr.bf16.mxu0 %v5674
  %7110 = vmatpush2.bf16.msra.mxu0 %v5673
  %7111 = vmatprep.subr.bf16.mxu0 %v5666
  %7112 = vmatpush2.bf16.msra.mxu0 %v5665
  %7113 = vmatprep.subr.bf16.mxu0 %v5658
  %7114 = vmatpush2.bf16.msra.mxu0 %v5657
  %7115 = vmatprep.subr.bf16.mxu0 %v5650
  %7116 = vmatpush2.bf16.msra.mxu0 %v5649
  %7117 = vmatprep.subr.bf16.mxu0 %v5642
  %7118 = vmatpush2.bf16.msra.mxu0 %v5641
  %7119 = vmatprep.mubr.bf16.mxu0 %v3474
  %7120 = vmatmul.mubr.bf16.gmra.mxu0 %v3473
  %v7121 = vpop.f32.mrf.mxu0
  %v7122 = vadd.f32 %v4022, %v7121
  %v7123 = vpop.f32.mrf.mxu0
  %v7124 = vadd.f32 %v4026, %v7123
  %v7125 = vpop.f32.mrf.mxu0
  %v7126 = vpop.f32.mrf.mxu0
  %7127 = vdwg.mxu0
  %7128 = vmatprep.subr.bf16.mxu0 %v5762
  %7129 = vmatpush1.bf16.msra.mxu0 %v5761
  %7130 = vmatprep.subr.bf16.mxu0 %v5754
  %7131 = vmatpush1.bf16.msra.mxu0 %v5753
  %7132 = vmatprep.subr.bf16.mxu0 %v5746
  %7133 = vmatpush1.bf16.msra.mxu0 %v5745
  %7134 = vmatprep.subr.bf16.mxu0 %v5738
  %7135 = vmatpush1.bf16.msra.mxu0 %v5737
  %7136 = vmatprep.subr.bf16.mxu0 %v5730
  %7137 = vmatpush1.bf16.msra.mxu0 %v5729
  %7138 = vmatprep.subr.bf16.mxu0 %v5722
  %7139 = vmatpush1.bf16.msra.mxu0 %v5721
  %7140 = vmatprep.subr.bf16.mxu0 %v5714
  %7141 = vmatpush1.bf16.msra.mxu0 %v5713
  %7142 = vmatprep.subr.bf16.mxu0 %v5706
  %7143 = vmatpush1.bf16.msra.mxu0 %v5705
  %7144 = vmatprep.subr.bf16.mxu0 %v5826
  %7145 = vmatpush2.bf16.msra.mxu0 %v5825
  %7146 = vmatprep.subr.bf16.mxu0 %v5818
  %7147 = vmatpush2.bf16.msra.mxu0 %v5817
  %7148 = vmatprep.subr.bf16.mxu0 %v5810
  %7149 = vmatpush2.bf16.msra.mxu0 %v5809
  %7150 = vmatprep.subr.bf16.mxu0 %v5802
  %7151 = vmatpush2.bf16.msra.mxu0 %v5801
  %7152 = vmatprep.subr.bf16.mxu0 %v5794
  %7153 = vmatpush2.bf16.msra.mxu0 %v5793
  %7154 = vmatprep.subr.bf16.mxu0 %v5786
  %7155 = vmatpush2.bf16.msra.mxu0 %v5785
  %7156 = vmatprep.subr.bf16.mxu0 %v5778
  %7157 = vmatpush2.bf16.msra.mxu0 %v5777
  %7158 = vmatprep.subr.bf16.mxu0 %v5770
  %7159 = vmatpush2.bf16.msra.mxu0 %v5769
  %7160 = vmatprep.mubr.bf16.mxu0 %v3476
  %7161 = vmatmul.mubr.bf16.gmra.mxu0 %v3475
  %v7162 = vpop.f32.mrf.mxu0
  %v7163 = vadd.f32 %v7122, %v7162
  %v7164 = vpop.f32.mrf.mxu0
  %v7165 = vadd.f32 %v7124, %v7164
  %v7166 = vpop.f32.mrf.mxu0
  %v7167 = vpop.f32.mrf.mxu0
  %7168 = vdwg.mxu0
  %7169 = vmatprep.subr.bf16.mxu0 %v5890
  %7170 = vmatpush1.bf16.msra.mxu0 %v5889
  %7171 = vmatprep.subr.bf16.mxu0 %v5882
  %7172 = vmatpush1.bf16.msra.mxu0 %v5881
  %7173 = vmatprep.subr.bf16.mxu0 %v5874
  %7174 = vmatpush1.bf16.msra.mxu0 %v5873
  %7175 = vmatprep.subr.bf16.mxu0 %v5866
  %7176 = vmatpush1.bf16.msra.mxu0 %v5865
  %7177 = vmatprep.subr.bf16.mxu0 %v5858
  %7178 = vmatpush1.bf16.msra.mxu0 %v5857
  %7179 = vmatprep.subr.bf16.mxu0 %v5850
  %7180 = vmatpush1.bf16.msra.mxu0 %v5849
  %7181 = vmatprep.subr.bf16.mxu0 %v5842
  %7182 = vmatpush1.bf16.msra.mxu0 %v5841
  %7183 = vmatprep.subr.bf16.mxu0 %v5834
  %7184 = vmatpush1.bf16.msra.mxu0 %v5833
  %7185 = vmatprep.subr.bf16.mxu0 %v5954
  %7186 = vmatpush2.bf16.msra.mxu0 %v5953
  %7187 = vmatprep.subr.bf16.mxu0 %v5946
  %7188 = vmatpush2.bf16.msra.mxu0 %v5945
  %7189 = vmatprep.subr.bf16.mxu0 %v5938
  %7190 = vmatpush2.bf16.msra.mxu0 %v5937
  %7191 = vmatprep.subr.bf16.mxu0 %v5930
  %7192 = vmatpush2.bf16.msra.mxu0 %v5929
  %7193 = vmatprep.subr.bf16.mxu0 %v5922
  %7194 = vmatpush2.bf16.msra.mxu0 %v5921
  %7195 = vmatprep.subr.bf16.mxu0 %v5914
  %7196 = vmatpush2.bf16.msra.mxu0 %v5913
  %7197 = vmatprep.subr.bf16.mxu0 %v5906
  %7198 = vmatpush2.bf16.msra.mxu0 %v5905
  %7199 = vmatprep.subr.bf16.mxu0 %v5898
  %7200 = vmatpush2.bf16.msra.mxu0 %v5897
  %7201 = vmatprep.mubr.bf16.mxu0 %v3478
  %7202 = vmatmul.mubr.bf16.gmra.mxu0 %v3477
  %v7203 = vpop.f32.mrf.mxu0
  %v7204 = vadd.f32 %v7163, %v7203
  %v7205 = vpop.f32.mrf.mxu0
  %v7206 = vadd.f32 %v7165, %v7205
  %v7207 = vpop.f32.mrf.mxu0
  %v7208 = vpop.f32.mrf.mxu0
  %7209 = vdwg.mxu0
  %7210 = vmatprep.subr.bf16.mxu0 %v6018
  %7211 = vmatpush1.bf16.msra.mxu0 %v6017
  %7212 = vmatprep.subr.bf16.mxu0 %v6010
  %7213 = vmatpush1.bf16.msra.mxu0 %v6009
  %7214 = vmatprep.subr.bf16.mxu0 %v6002
  %7215 = vmatpush1.bf16.msra.mxu0 %v6001
  %7216 = vmatprep.subr.bf16.mxu0 %v5994
  %7217 = vmatpush1.bf16.msra.mxu0 %v5993
  %7218 = vmatprep.subr.bf16.mxu0 %v5986
  %7219 = vmatpush1.bf16.msra.mxu0 %v5985
  %7220 = vmatprep.subr.bf16.mxu0 %v5978
  %7221 = vmatpush1.bf16.msra.mxu0 %v5977
  %7222 = vmatprep.subr.bf16.mxu0 %v5970
  %7223 = vmatpush1.bf16.msra.mxu0 %v5969
  %7224 = vmatprep.subr.bf16.mxu0 %v5962
  %7225 = vmatpush1.bf16.msra.mxu0 %v5961
  %7226 = vmatprep.subr.bf16.mxu0 %v6082
  %7227 = vmatpush2.bf16.msra.mxu0 %v6081
  %7228 = vmatprep.subr.bf16.mxu0 %v6074
  %7229 = vmatpush2.bf16.msra.mxu0 %v6073
  %7230 = vmatprep.subr.bf16.mxu0 %v6066
  %7231 = vmatpush2.bf16.msra.mxu0 %v6065
  %7232 = vmatprep.subr.bf16.mxu0 %v6058
  %7233 = vmatpush2.bf16.msra.mxu0 %v6057
  %7234 = vmatprep.subr.bf16.mxu0 %v6050
  %7235 = vmatpush2.bf16.msra.mxu0 %v6049
  %7236 = vmatprep.subr.bf16.mxu0 %v6042
  %7237 = vmatpush2.bf16.msra.mxu0 %v6041
  %7238 = vmatprep.subr.bf16.mxu0 %v6034
  %7239 = vmatpush2.bf16.msra.mxu0 %v6033
  %7240 = vmatprep.subr.bf16.mxu0 %v6026
  %7241 = vmatpush2.bf16.msra.mxu0 %v6025
  %7242 = vmatprep.mubr.bf16.mxu0 %v3480
  %7243 = vmatmul.mubr.bf16.gmra.mxu0 %v3479
  %v7244 = vpop.f32.mrf.mxu0
  %v7245 = vadd.f32 %v7204, %v7244
  %v7246 = vpop.f32.mrf.mxu0
  %v7247 = vadd.f32 %v7206, %v7246
  %v7248 = vpop.f32.mrf.mxu0
  %v7249 = vpop.f32.mrf.mxu0
  %7250 = vdwg.mxu0
  %v7251 = vmax.f32 %v6753, 0.0
  %v7252 = vmax.f32 %v6755, 0.0
  %v7253 = vmax.f32 %v6917, 0.0
  %v7254 = vmax.f32 %v6919, 0.0
  %v7255 = vmax.f32 %v7081, 0.0
  %v7256 = vmax.f32 %v7083, 0.0
  %v7257 = vmax.f32 %v7245, 0.0
  %v7258 = vmax.f32 %v7247, 0.0
  %v7259 = vpack.c.bf16 %v7251, %v7251
  %v7260 = vpack.c.bf16 %v7252, %v7252
  %v7261 = vpack.c.bf16 %v7253, %v7253
  %v7262 = vpack.c.bf16 %v7254, %v7254
  %v7263 = vpack.c.bf16 %v7255, %v7255
  %v7264 = vpack.c.bf16 %v7256, %v7256
  %v7265 = vpack.c.bf16 %v7257, %v7257
  %v7266 = vpack.c.bf16 %v7258, %v7258
  %v7267 = vld [vmem:[%s6] sm:$0xff]
  %v7268 = vld [vmem:[%s6 + $0x8] sm:$0xff]
  %v7269 = vld [vmem:[%s6 + $0x10] sm:$0xff]
  %v7270 = vld [vmem:[%s6 + $0x18] sm:$0xff]
  %v7271 = vld [vmem:[%s6 + $0x20] sm:$0xff]
  %v7272 = vld [vmem:[%s6 + $0x28] sm:$0xff]
  %v7273 = vld [vmem:[%s6 + $0x30] sm:$0xff]
  %v7274 = vld [vmem:[%s6 + $0x38] sm:$0xff]
  %v7275 = vld [vmem:[%s6 + $0x40] sm:$0xff]
  %v7276 = vld [vmem:[%s6 + $0x48] sm:$0xff]
  %v7277 = vld [vmem:[%s6 + $0x50] sm:$0xff]
  %v7278 = vld [vmem:[%s6 + $0x58] sm:$0xff]
  %v7279 = vld [vmem:[%s6 + $0x60] sm:$0xff]
  %v7280 = vld [vmem:[%s6 + $0x68] sm:$0xff]
  %v7281 = vld [vmem:[%s6 + $0x70] sm:$0xff]
  %v7282 = vld [vmem:[%s6 + $0x78] sm:$0xff]
  %v7283 = vld [vmem:[%s6 + $0x80] sm:$0xff]
  %v7284 = vld [vmem:[%s6 + $0x88] sm:$0xff]
  %v7285 = vld [vmem:[%s6 + $0x90] sm:$0xff]
  %v7286 = vld [vmem:[%s6 + $0x98] sm:$0xff]
  %v7287 = vld [vmem:[%s6 + $0xa0] sm:$0xff]
  %v7288 = vld [vmem:[%s6 + $0xa8] sm:$0xff]
  %v7289 = vld [vmem:[%s6 + $0xb0] sm:$0xff]
  %v7290 = vld [vmem:[%s6 + $0xb8] sm:$0xff]
  %v7291 = vld [vmem:[%s6 + $0xc0] sm:$0xff]
  %v7292 = vld [vmem:[%s6 + $0xc8] sm:$0xff]
  %v7293 = vld [vmem:[%s6 + $0xd0] sm:$0xff]
  %v7294 = vld [vmem:[%s6 + $0xd8] sm:$0xff]
  %v7295 = vld [vmem:[%s6 + $0xe0] sm:$0xff]
  %v7296 = vld [vmem:[%s6 + $0xe8] sm:$0xff]
  %v7297 = vld [vmem:[%s6 + $0xf0] sm:$0xff]
  %v7298 = vld [vmem:[%s6 + $0xf8] sm:$0xff]
  %v7299 = vld [vmem:[%s6 + $0x100] sm:$0xff]
  %v7300 = vld [vmem:[%s6 + $0x108] sm:$0xff]
  %v7301 = vld [vmem:[%s6 + $0x110] sm:$0xff]
  %v7302 = vld [vmem:[%s6 + $0x118] sm:$0xff]
  %v7303 = vld [vmem:[%s6 + $0x120] sm:$0xff]
  %v7304 = vld [vmem:[%s6 + $0x128] sm:$0xff]
  %v7305 = vld [vmem:[%s6 + $0x130] sm:$0xff]
  %v7306 = vld [vmem:[%s6 + $0x138] sm:$0xff]
  %v7307 = vld [vmem:[%s6 + $0x140] sm:$0xff]
  %v7308 = vld [vmem:[%s6 + $0x148] sm:$0xff]
  %v7309 = vld [vmem:[%s6 + $0x150] sm:$0xff]
  %v7310 = vld [vmem:[%s6 + $0x158] sm:$0xff]
  %v7311 = vld [vmem:[%s6 + $0x160] sm:$0xff]
  %v7312 = vld [vmem:[%s6 + $0x168] sm:$0xff]
  %v7313 = vld [vmem:[%s6 + $0x170] sm:$0xff]
  %v7314 = vld [vmem:[%s6 + $0x178] sm:$0xff]
  %v7315 = vld [vmem:[%s6 + $0x180] sm:$0xff]
  %v7316 = vld [vmem:[%s6 + $0x188] sm:$0xff]
  %v7317 = vld [vmem:[%s6 + $0x190] sm:$0xff]
  %v7318 = vld [vmem:[%s6 + $0x198] sm:$0xff]
  %v7319 = vld [vmem:[%s6 + $0x1a0] sm:$0xff]
  %v7320 = vld [vmem:[%s6 + $0x1a8] sm:$0xff]
  %v7321 = vld [vmem:[%s6 + $0x1b0] sm:$0xff]
  %v7322 = vld [vmem:[%s6 + $0x1b8] sm:$0xff]
  %v7323 = vld [vmem:[%s6 + $0x1c0] sm:$0xff]
  %v7324 = vld [vmem:[%s6 + $0x1c8] sm:$0xff]
  %v7325 = vld [vmem:[%s6 + $0x1d0] sm:$0xff]
  %v7326 = vld [vmem:[%s6 + $0x1d8] sm:$0xff]
  %v7327 = vld [vmem:[%s6 + $0x1e0] sm:$0xff]
  %v7328 = vld [vmem:[%s6 + $0x1e8] sm:$0xff]
  %v7329 = vld [vmem:[%s6 + $0x1f0] sm:$0xff]
  %v7330 = vld [vmem:[%s6 + $0x1f8] sm:$0xff]
  %v7331 = vld [vmem:[%s6 + $0x200] sm:$0xff]
  %v7332 = vld [vmem:[%s6 + $0x208] sm:$0xff]
  %v7333 = vld [vmem:[%s6 + $0x210] sm:$0xff]
  %v7334 = vld [vmem:[%s6 + $0x218] sm:$0xff]
  %v7335 = vld [vmem:[%s6 + $0x220] sm:$0xff]
  %v7336 = vld [vmem:[%s6 + $0x228] sm:$0xff]
  %v7337 = vld [vmem:[%s6 + $0x230] sm:$0xff]
  %v7338 = vld [vmem:[%s6 + $0x238] sm:$0xff]
  %v7339 = vld [vmem:[%s6 + $0x240] sm:$0xff]
  %v7340 = vld [vmem:[%s6 + $0x248] sm:$0xff]
  %v7341 = vld [vmem:[%s6 + $0x250] sm:$0xff]
  %v7342 = vld [vmem:[%s6 + $0x258] sm:$0xff]
  %v7343 = vld [vmem:[%s6 + $0x260] sm:$0xff]
  %v7344 = vld [vmem:[%s6 + $0x268] sm:$0xff]
  %v7345 = vld [vmem:[%s6 + $0x270] sm:$0xff]
  %v7346 = vld [vmem:[%s6 + $0x278] sm:$0xff]
  %v7347 = vld [vmem:[%s6 + $0x280] sm:$0xff]
  %v7348 = vld [vmem:[%s6 + $0x288] sm:$0xff]
  %v7349 = vld [vmem:[%s6 + $0x290] sm:$0xff]
  %v7350 = vld [vmem:[%s6 + $0x298] sm:$0xff]
  %v7351 = vld [vmem:[%s6 + $0x2a0] sm:$0xff]
  %v7352 = vld [vmem:[%s6 + $0x2a8] sm:$0xff]
  %v7353 = vld [vmem:[%s6 + $0x2b0] sm:$0xff]
  %v7354 = vld [vmem:[%s6 + $0x2b8] sm:$0xff]
  %v7355 = vld [vmem:[%s6 + $0x2c0] sm:$0xff]
  %v7356 = vld [vmem:[%s6 + $0x2c8] sm:$0xff]
  %v7357 = vld [vmem:[%s6 + $0x2d0] sm:$0xff]
  %v7358 = vld [vmem:[%s6 + $0x2d8] sm:$0xff]
  %v7359 = vld [vmem:[%s6 + $0x2e0] sm:$0xff]
  %v7360 = vld [vmem:[%s6 + $0x2e8] sm:$0xff]
  %v7361 = vld [vmem:[%s6 + $0x2f0] sm:$0xff]
  %v7362 = vld [vmem:[%s6 + $0x2f8] sm:$0xff]
  %v7363 = vld [vmem:[%s6 + $0x300] sm:$0xff]
  %v7364 = vld [vmem:[%s6 + $0x308] sm:$0xff]
  %v7365 = vld [vmem:[%s6 + $0x310] sm:$0xff]
  %v7366 = vld [vmem:[%s6 + $0x318] sm:$0xff]
  %v7367 = vld [vmem:[%s6 + $0x320] sm:$0xff]
  %v7368 = vld [vmem:[%s6 + $0x328] sm:$0xff]
  %v7369 = vld [vmem:[%s6 + $0x330] sm:$0xff]
  %v7370 = vld [vmem:[%s6 + $0x338] sm:$0xff]
  %v7371 = vld [vmem:[%s6 + $0x340] sm:$0xff]
  %v7372 = vld [vmem:[%s6 + $0x348] sm:$0xff]
  %v7373 = vld [vmem:[%s6 + $0x350] sm:$0xff]
  %v7374 = vld [vmem:[%s6 + $0x358] sm:$0xff]
  %v7375 = vld [vmem:[%s6 + $0x360] sm:$0xff]
  %v7376 = vld [vmem:[%s6 + $0x368] sm:$0xff]
  %v7377 = vld [vmem:[%s6 + $0x370] sm:$0xff]
  %v7378 = vld [vmem:[%s6 + $0x378] sm:$0xff]
  %v7379 = vld [vmem:[%s6 + $0x380] sm:$0xff]
  %v7380 = vld [vmem:[%s6 + $0x388] sm:$0xff]
  %v7381 = vld [vmem:[%s6 + $0x390] sm:$0xff]
  %v7382 = vld [vmem:[%s6 + $0x398] sm:$0xff]
  %v7383 = vld [vmem:[%s6 + $0x3a0] sm:$0xff]
  %v7384 = vld [vmem:[%s6 + $0x3a8] sm:$0xff]
  %v7385 = vld [vmem:[%s6 + $0x3b0] sm:$0xff]
  %v7386 = vld [vmem:[%s6 + $0x3b8] sm:$0xff]
  %v7387 = vld [vmem:[%s6 + $0x3c0] sm:$0xff]
  %v7388 = vld [vmem:[%s6 + $0x3c8] sm:$0xff]
  %v7389 = vld [vmem:[%s6 + $0x3d0] sm:$0xff]
  %v7390 = vld [vmem:[%s6 + $0x3d8] sm:$0xff]
  %v7391 = vld [vmem:[%s6 + $0x3e0] sm:$0xff]
  %v7392 = vld [vmem:[%s6 + $0x3e8] sm:$0xff]
  %v7393 = vld [vmem:[%s6 + $0x3f0] sm:$0xff]
  %v7394 = vld [vmem:[%s6 + $0x3f8] sm:$0xff]
  %v7395 = vld [vmem:[%s7] sm:$0x3]
  %v7397 = vlaneseq
  %v7398 = vshrl.u32 %v7397, 7
  %v7399 = vsub.s32 0, %v7398
  %v7400 = vrot.slane %v7395, %v7399
  %v7401 = vlaneseq
  %v7402 = vshrl.u32 %v7401, 7
  %v7403 = vsub.s32 1, %v7402
  %v7404 = vrot.slane %v7395, %v7403
  %v7535 = vunpack.c.l.b16 %v7267
  %v7536 = vunpack.c.h.b16 %v7267
  %v7537 = vunpack.c.l.b16 %v7268
  %v7538 = vunpack.c.h.b16 %v7268
  %v7539 = vunpack.c.l.b16 %v7269
  %v7540 = vunpack.c.h.b16 %v7269
  %v7541 = vunpack.c.l.b16 %v7270
  %v7542 = vunpack.c.h.b16 %v7270
  %v7543 = vunpack.c.l.b16 %v7271
  %v7544 = vunpack.c.h.b16 %v7271
  %v7545 = vunpack.c.l.b16 %v7272
  %v7546 = vunpack.c.h.b16 %v7272
  %v7547 = vunpack.c.l.b16 %v7273
  %v7548 = vunpack.c.h.b16 %v7273
  %v7549 = vunpack.c.l.b16 %v7274
  %v7550 = vunpack.c.h.b16 %v7274
  %v7551 = vunpack.c.l.b16 %v7275
  %v7552 = vunpack.c.h.b16 %v7275
  %v7553 = vunpack.c.l.b16 %v7276
  %v7554 = vunpack.c.h.b16 %v7276
  %v7555 = vunpack.c.l.b16 %v7277
  %v7556 = vunpack.c.h.b16 %v7277
  %v7557 = vunpack.c.l.b16 %v7278
  %v7558 = vunpack.c.h.b16 %v7278
  %v7559 = vunpack.c.l.b16 %v7279
  %v7560 = vunpack.c.h.b16 %v7279
  %v7561 = vunpack.c.l.b16 %v7280
  %v7562 = vunpack.c.h.b16 %v7280
  %v7563 = vunpack.c.l.b16 %v7281
  %v7564 = vunpack.c.h.b16 %v7281
  %v7565 = vunpack.c.l.b16 %v7282
  %v7566 = vunpack.c.h.b16 %v7282
  %v7567 = vunpack.c.l.b16 %v7283
  %v7568 = vunpack.c.h.b16 %v7283
  %v7569 = vunpack.c.l.b16 %v7284
  %v7570 = vunpack.c.h.b16 %v7284
  %v7571 = vunpack.c.l.b16 %v7285
  %v7572 = vunpack.c.h.b16 %v7285
  %v7573 = vunpack.c.l.b16 %v7286
  %v7574 = vunpack.c.h.b16 %v7286
  %v7575 = vunpack.c.l.b16 %v7287
  %v7576 = vunpack.c.h.b16 %v7287
  %v7577 = vunpack.c.l.b16 %v7288
  %v7578 = vunpack.c.h.b16 %v7288
  %v7579 = vunpack.c.l.b16 %v7289
  %v7580 = vunpack.c.h.b16 %v7289
  %v7581 = vunpack.c.l.b16 %v7290
  %v7582 = vunpack.c.h.b16 %v7290
  %v7583 = vunpack.c.l.b16 %v7291
  %v7584 = vunpack.c.h.b16 %v7291
  %v7585 = vunpack.c.l.b16 %v7292
  %v7586 = vunpack.c.h.b16 %v7292
  %v7587 = vunpack.c.l.b16 %v7293
  %v7588 = vunpack.c.h.b16 %v7293
  %v7589 = vunpack.c.l.b16 %v7294
  %v7590 = vunpack.c.h.b16 %v7294
  %v7591 = vunpack.c.l.b16 %v7295
  %v7592 = vunpack.c.h.b16 %v7295
  %v7593 = vunpack.c.l.b16 %v7296
  %v7594 = vunpack.c.h.b16 %v7296
  %v7595 = vunpack.c.l.b16 %v7297
  %v7596 = vunpack.c.h.b16 %v7297
  %v7597 = vunpack.c.l.b16 %v7298
  %v7598 = vunpack.c.h.b16 %v7298
  %v7599 = vunpack.c.l.b16 %v7299
  %v7600 = vunpack.c.h.b16 %v7299
  %v7601 = vunpack.c.l.b16 %v7300
  %v7602 = vunpack.c.h.b16 %v7300
  %v7603 = vunpack.c.l.b16 %v7301
  %v7604 = vunpack.c.h.b16 %v7301
  %v7605 = vunpack.c.l.b16 %v7302
  %v7606 = vunpack.c.h.b16 %v7302
  %v7607 = vunpack.c.l.b16 %v7303
  %v7608 = vunpack.c.h.b16 %v7303
  %v7609 = vunpack.c.l.b16 %v7304
  %v7610 = vunpack.c.h.b16 %v7304
  %v7611 = vunpack.c.l.b16 %v7305
  %v7612 = vunpack.c.h.b16 %v7305
  %v7613 = vunpack.c.l.b16 %v7306
  %v7614 = vunpack.c.h.b16 %v7306
  %v7615 = vunpack.c.l.b16 %v7307
  %v7616 = vunpack.c.h.b16 %v7307
  %v7617 = vunpack.c.l.b16 %v7308
  %v7618 = vunpack.c.h.b16 %v7308
  %v7619 = vunpack.c.l.b16 %v7309
  %v7620 = vunpack.c.h.b16 %v7309
  %v7621 = vunpack.c.l.b16 %v7310
  %v7622 = vunpack.c.h.b16 %v7310
  %v7623 = vunpack.c.l.b16 %v7311
  %v7624 = vunpack.c.h.b16 %v7311
  %v7625 = vunpack.c.l.b16 %v7312
  %v7626 = vunpack.c.h.b16 %v7312
  %v7627 = vunpack.c.l.b16 %v7313
  %v7628 = vunpack.c.h.b16 %v7313
  %v7629 = vunpack.c.l.b16 %v7314
  %v7630 = vunpack.c.h.b16 %v7314
  %v7631 = vunpack.c.l.b16 %v7315
  %v7632 = vunpack.c.h.b16 %v7315
  %v7633 = vunpack.c.l.b16 %v7316
  %v7634 = vunpack.c.h.b16 %v7316
  %v7635 = vunpack.c.l.b16 %v7317
  %v7636 = vunpack.c.h.b16 %v7317
  %v7637 = vunpack.c.l.b16 %v7318
  %v7638 = vunpack.c.h.b16 %v7318
  %v7639 = vunpack.c.l.b16 %v7319
  %v7640 = vunpack.c.h.b16 %v7319
  %v7641 = vunpack.c.l.b16 %v7320
  %v7642 = vunpack.c.h.b16 %v7320
  %v7643 = vunpack.c.l.b16 %v7321
  %v7644 = vunpack.c.h.b16 %v7321
  %v7645 = vunpack.c.l.b16 %v7322
  %v7646 = vunpack.c.h.b16 %v7322
  %v7647 = vunpack.c.l.b16 %v7323
  %v7648 = vunpack.c.h.b16 %v7323
  %v7649 = vunpack.c.l.b16 %v7324
  %v7650 = vunpack.c.h.b16 %v7324
  %v7651 = vunpack.c.l.b16 %v7325
  %v7652 = vunpack.c.h.b16 %v7325
  %v7653 = vunpack.c.l.b16 %v7326
  %v7654 = vunpack.c.h.b16 %v7326
  %v7655 = vunpack.c.l.b16 %v7327
  %v7656 = vunpack.c.h.b16 %v7327
  %v7657 = vunpack.c.l.b16 %v7328
  %v7658 = vunpack.c.h.b16 %v7328
  %v7659 = vunpack.c.l.b16 %v7329
  %v7660 = vunpack.c.h.b16 %v7329
  %v7661 = vunpack.c.l.b16 %v7330
  %v7662 = vunpack.c.h.b16 %v7330
  %v7663 = vunpack.c.l.b16 %v7331
  %v7664 = vunpack.c.h.b16 %v7331
  %v7665 = vunpack.c.l.b16 %v7332
  %v7666 = vunpack.c.h.b16 %v7332
  %v7667 = vunpack.c.l.b16 %v7333
  %v7668 = vunpack.c.h.b16 %v7333
  %v7669 = vunpack.c.l.b16 %v7334
  %v7670 = vunpack.c.h.b16 %v7334
  %v7671 = vunpack.c.l.b16 %v7335
  %v7672 = vunpack.c.h.b16 %v7335
  %v7673 = vunpack.c.l.b16 %v7336
  %v7674 = vunpack.c.h.b16 %v7336
  %v7675 = vunpack.c.l.b16 %v7337
  %v7676 = vunpack.c.h.b16 %v7337
  %v7677 = vunpack.c.l.b16 %v7338
  %v7678 = vunpack.c.h.b16 %v7338
  %v7679 = vunpack.c.l.b16 %v7339
  %v7680 = vunpack.c.h.b16 %v7339
  %v7681 = vunpack.c.l.b16 %v7340
  %v7682 = vunpack.c.h.b16 %v7340
  %v7683 = vunpack.c.l.b16 %v7341
  %v7684 = vunpack.c.h.b16 %v7341
  %v7685 = vunpack.c.l.b16 %v7342
  %v7686 = vunpack.c.h.b16 %v7342
  %v7687 = vunpack.c.l.b16 %v7343
  %v7688 = vunpack.c.h.b16 %v7343
  %v7689 = vunpack.c.l.b16 %v7344
  %v7690 = vunpack.c.h.b16 %v7344
  %v7691 = vunpack.c.l.b16 %v7345
  %v7692 = vunpack.c.h.b16 %v7345
  %v7693 = vunpack.c.l.b16 %v7346
  %v7694 = vunpack.c.h.b16 %v7346
  %v7695 = vunpack.c.l.b16 %v7347
  %v7696 = vunpack.c.h.b16 %v7347
  %v7697 = vunpack.c.l.b16 %v7348
  %v7698 = vunpack.c.h.b16 %v7348
  %v7699 = vunpack.c.l.b16 %v7349
  %v7700 = vunpack.c.h.b16 %v7349
  %v7701 = vunpack.c.l.b16 %v7350
  %v7702 = vunpack.c.h.b16 %v7350
  %v7703 = vunpack.c.l.b16 %v7351
  %v7704 = vunpack.c.h.b16 %v7351
  %v7705 = vunpack.c.l.b16 %v7352
  %v7706 = vunpack.c.h.b16 %v7352
  %v7707 = vunpack.c.l.b16 %v7353
  %v7708 = vunpack.c.h.b16 %v7353
  %v7709 = vunpack.c.l.b16 %v7354
  %v7710 = vunpack.c.h.b16 %v7354
  %v7711 = vunpack.c.l.b16 %v7355
  %v7712 = vunpack.c.h.b16 %v7355
  %v7713 = vunpack.c.l.b16 %v7356
  %v7714 = vunpack.c.h.b16 %v7356
  %v7715 = vunpack.c.l.b16 %v7357
  %v7716 = vunpack.c.h.b16 %v7357
  %v7717 = vunpack.c.l.b16 %v7358
  %v7718 = vunpack.c.h.b16 %v7358
  %v7719 = vunpack.c.l.b16 %v7359
  %v7720 = vunpack.c.h.b16 %v7359
  %v7721 = vunpack.c.l.b16 %v7360
  %v7722 = vunpack.c.h.b16 %v7360
  %v7723 = vunpack.c.l.b16 %v7361
  %v7724 = vunpack.c.h.b16 %v7361
  %v7725 = vunpack.c.l.b16 %v7362
  %v7726 = vunpack.c.h.b16 %v7362
  %v7727 = vunpack.c.l.b16 %v7363
  %v7728 = vunpack.c.h.b16 %v7363
  %v7729 = vunpack.c.l.b16 %v7364
  %v7730 = vunpack.c.h.b16 %v7364
  %v7731 = vunpack.c.l.b16 %v7365
  %v7732 = vunpack.c.h.b16 %v7365
  %v7733 = vunpack.c.l.b16 %v7366
  %v7734 = vunpack.c.h.b16 %v7366
  %v7735 = vunpack.c.l.b16 %v7367
  %v7736 = vunpack.c.h.b16 %v7367
  %v7737 = vunpack.c.l.b16 %v7368
  %v7738 = vunpack.c.h.b16 %v7368
  %v7739 = vunpack.c.l.b16 %v7369
  %v7740 = vunpack.c.h.b16 %v7369
  %v7741 = vunpack.c.l.b16 %v7370
  %v7742 = vunpack.c.h.b16 %v7370
  %v7743 = vunpack.c.l.b16 %v7371
  %v7744 = vunpack.c.h.b16 %v7371
  %v7745 = vunpack.c.l.b16 %v7372
  %v7746 = vunpack.c.h.b16 %v7372
  %v7747 = vunpack.c.l.b16 %v7373
  %v7748 = vunpack.c.h.b16 %v7373
  %v7749 = vunpack.c.l.b16 %v7374
  %v7750 = vunpack.c.h.b16 %v7374
  %v7751 = vunpack.c.l.b16 %v7375
  %v7752 = vunpack.c.h.b16 %v7375
  %v7753 = vunpack.c.l.b16 %v7376
  %v7754 = vunpack.c.h.b16 %v7376
  %v7755 = vunpack.c.l.b16 %v7377
  %v7756 = vunpack.c.h.b16 %v7377
  %v7757 = vunpack.c.l.b16 %v7378
  %v7758 = vunpack.c.h.b16 %v7378
  %v7759 = vunpack.c.l.b16 %v7379
  %v7760 = vunpack.c.h.b16 %v7379
  %v7761 = vunpack.c.l.b16 %v7380
  %v7762 = vunpack.c.h.b16 %v7380
  %v7763 = vunpack.c.l.b16 %v7381
  %v7764 = vunpack.c.h.b16 %v7381
  %v7765 = vunpack.c.l.b16 %v7382
  %v7766 = vunpack.c.h.b16 %v7382
  %v7767 = vunpack.c.l.b16 %v7383
  %v7768 = vunpack.c.h.b16 %v7383
  %v7769 = vunpack.c.l.b16 %v7384
  %v7770 = vunpack.c.h.b16 %v7384
  %v7771 = vunpack.c.l.b16 %v7385
  %v7772 = vunpack.c.h.b16 %v7385
  %v7773 = vunpack.c.l.b16 %v7386
  %v7774 = vunpack.c.h.b16 %v7386
  %v7775 = vunpack.c.l.b16 %v7387
  %v7776 = vunpack.c.h.b16 %v7387
  %v7777 = vunpack.c.l.b16 %v7388
  %v7778 = vunpack.c.h.b16 %v7388
  %v7779 = vunpack.c.l.b16 %v7389
  %v7780 = vunpack.c.h.b16 %v7389
  %v7781 = vunpack.c.l.b16 %v7390
  %v7782 = vunpack.c.h.b16 %v7390
  %v7783 = vunpack.c.l.b16 %v7391
  %v7784 = vunpack.c.h.b16 %v7391
  %v7785 = vunpack.c.l.b16 %v7392
  %v7786 = vunpack.c.h.b16 %v7392
  %v7787 = vunpack.c.l.b16 %v7393
  %v7788 = vunpack.c.h.b16 %v7393
  %v7789 = vunpack.c.l.b16 %v7394
  %v7790 = vunpack.c.h.b16 %v7394
  %v7791 = vpack.c.b16 %v7537, %v7535
  %v7792 = vpack.c.b16 %v7538, %v7536
  %v7793 = vpack.c.b16 %v7541, %v7539
  %v7794 = vpack.c.b16 %v7542, %v7540
  %v7795 = vpack.c.b16 %v7545, %v7543
  %v7796 = vpack.c.b16 %v7546, %v7544
  %v7797 = vpack.c.b16 %v7549, %v7547
  %v7798 = vpack.c.b16 %v7550, %v7548
  %v7799 = vpack.c.b16 %v7553, %v7551
  %v7800 = vpack.c.b16 %v7554, %v7552
  %v7801 = vpack.c.b16 %v7557, %v7555
  %v7802 = vpack.c.b16 %v7558, %v7556
  %v7803 = vpack.c.b16 %v7561, %v7559
  %v7804 = vpack.c.b16 %v7562, %v7560
  %v7805 = vpack.c.b16 %v7565, %v7563
  %v7806 = vpack.c.b16 %v7566, %v7564
  %v7807 = vpack.c.b16 %v7569, %v7567
  %v7808 = vpack.c.b16 %v7570, %v7568
  %v7809 = vpack.c.b16 %v7573, %v7571
  %v7810 = vpack.c.b16 %v7574, %v7572
  %v7811 = vpack.c.b16 %v7577, %v7575
  %v7812 = vpack.c.b16 %v7578, %v7576
  %v7813 = vpack.c.b16 %v7581, %v7579
  %v7814 = vpack.c.b16 %v7582, %v7580
  %v7815 = vpack.c.b16 %v7585, %v7583
  %v7816 = vpack.c.b16 %v7586, %v7584
  %v7817 = vpack.c.b16 %v7589, %v7587
  %v7818 = vpack.c.b16 %v7590, %v7588
  %v7819 = vpack.c.b16 %v7593, %v7591
  %v7820 = vpack.c.b16 %v7594, %v7592
  %v7821 = vpack.c.b16 %v7597, %v7595
  %v7822 = vpack.c.b16 %v7598, %v7596
  %v7823 = vpack.c.b16 %v7601, %v7599
  %v7824 = vpack.c.b16 %v7602, %v7600
  %v7825 = vpack.c.b16 %v7605, %v7603
  %v7826 = vpack.c.b16 %v7606, %v7604
  %v7827 = vpack.c.b16 %v7609, %v7607
  %v7828 = vpack.c.b16 %v7610, %v7608
  %v7829 = vpack.c.b16 %v7613, %v7611
  %v7830 = vpack.c.b16 %v7614, %v7612
  %v7831 = vpack.c.b16 %v7617, %v7615
  %v7832 = vpack.c.b16 %v7618, %v7616
  %v7833 = vpack.c.b16 %v7621, %v7619
  %v7834 = vpack.c.b16 %v7622, %v7620
  %v7835 = vpack.c.b16 %v7625, %v7623
  %v7836 = vpack.c.b16 %v7626, %v7624
  %v7837 = vpack.c.b16 %v7629, %v7627
  %v7838 = vpack.c.b16 %v7630, %v7628
  %v7839 = vpack.c.b16 %v7633, %v7631
  %v7840 = vpack.c.b16 %v7634, %v7632
  %v7841 = vpack.c.b16 %v7637, %v7635
  %v7842 = vpack.c.b16 %v7638, %v7636
  %v7843 = vpack.c.b16 %v7641, %v7639
  %v7844 = vpack.c.b16 %v7642, %v7640
  %v7845 = vpack.c.b16 %v7645, %v7643
  %v7846 = vpack.c.b16 %v7646, %v7644
  %v7847 = vpack.c.b16 %v7649, %v7647
  %v7848 = vpack.c.b16 %v7650, %v7648
  %v7849 = vpack.c.b16 %v7653, %v7651
  %v7850 = vpack.c.b16 %v7654, %v7652
  %v7851 = vpack.c.b16 %v7657, %v7655
  %v7852 = vpack.c.b16 %v7658, %v7656
  %v7853 = vpack.c.b16 %v7661, %v7659
  %v7854 = vpack.c.b16 %v7662, %v7660
  %v7855 = vpack.c.b16 %v7665, %v7663
  %v7856 = vpack.c.b16 %v7666, %v7664
  %v7857 = vpack.c.b16 %v7669, %v7667
  %v7858 = vpack.c.b16 %v7670, %v7668
  %v7859 = vpack.c.b16 %v7673, %v7671
  %v7860 = vpack.c.b16 %v7674, %v7672
  %v7861 = vpack.c.b16 %v7677, %v7675
  %v7862 = vpack.c.b16 %v7678, %v7676
  %v7863 = vpack.c.b16 %v7681, %v7679
  %v7864 = vpack.c.b16 %v7682, %v7680
  %v7865 = vpack.c.b16 %v7685, %v7683
  %v7866 = vpack.c.b16 %v7686, %v7684
  %v7867 = vpack.c.b16 %v7689, %v7687
  %v7868 = vpack.c.b16 %v7690, %v7688
  %v7869 = vpack.c.b16 %v7693, %v7691
  %v7870 = vpack.c.b16 %v7694, %v7692
  %v7871 = vpack.c.b16 %v7697, %v7695
  %v7872 = vpack.c.b16 %v7698, %v7696
  %v7873 = vpack.c.b16 %v7701, %v7699
  %v7874 = vpack.c.b16 %v7702, %v7700
  %v7875 = vpack.c.b16 %v7705, %v7703
  %v7876 = vpack.c.b16 %v7706, %v7704
  %v7877 = vpack.c.b16 %v7709, %v7707
  %v7878 = vpack.c.b16 %v7710, %v7708
  %v7879 = vpack.c.b16 %v7713, %v7711
  %v7880 = vpack.c.b16 %v7714, %v7712
  %v7881 = vpack.c.b16 %v7717, %v7715
  %v7882 = vpack.c.b16 %v7718, %v7716
  %v7883 = vpack.c.b16 %v7721, %v7719
  %v7884 = vpack.c.b16 %v7722, %v7720
  %v7885 = vpack.c.b16 %v7725, %v7723
  %v7886 = vpack.c.b16 %v7726, %v7724
  %v7887 = vpack.c.b16 %v7729, %v7727
  %v7888 = vpack.c.b16 %v7730, %v7728
  %v7889 = vpack.c.b16 %v7733, %v7731
  %v7890 = vpack.c.b16 %v7734, %v7732
  %v7891 = vpack.c.b16 %v7737, %v7735
  %v7892 = vpack.c.b16 %v7738, %v7736
  %v7893 = vpack.c.b16 %v7741, %v7739
  %v7894 = vpack.c.b16 %v7742, %v7740
  %v7895 = vpack.c.b16 %v7745, %v7743
  %v7896 = vpack.c.b16 %v7746, %v7744
  %v7897 = vpack.c.b16 %v7749, %v7747
  %v7898 = vpack.c.b16 %v7750, %v7748
  %v7899 = vpack.c.b16 %v7753, %v7751
  %v7900 = vpack.c.b16 %v7754, %v7752
  %v7901 = vpack.c.b16 %v7757, %v7755
  %v7902 = vpack.c.b16 %v7758, %v7756
  %v7903 = vpack.c.b16 %v7761, %v7759
  %v7904 = vpack.c.b16 %v7762, %v7760
  %v7905 = vpack.c.b16 %v7765, %v7763
  %v7906 = vpack.c.b16 %v7766, %v7764
  %v7907 = vpack.c.b16 %v7769, %v7767
  %v7908 = vpack.c.b16 %v7770, %v7768
  %v7909 = vpack.c.b16 %v7773, %v7771
  %v7910 = vpack.c.b16 %v7774, %v7772
  %v7911 = vpack.c.b16 %v7777, %v7775
  %v7912 = vpack.c.b16 %v7778, %v7776
  %v7913 = vpack.c.b16 %v7781, %v7779
  %v7914 = vpack.c.b16 %v7782, %v7780
  %v7915 = vpack.c.b16 %v7785, %v7783
  %v7916 = vpack.c.b16 %v7786, %v7784
  %v7917 = vpack.c.b16 %v7789, %v7787
  %v7918 = vpack.c.b16 %v7790, %v7788
  %8047 = vmatprep.subr.bf16.mxu0 %v7806
  %8048 = vmatpush1.bf16.msra.mxu0 %v7805
  %8049 = vmatprep.subr.bf16.mxu0 %v7804
  %8050 = vmatpush1.bf16.msra.mxu0 %v7803
  %8051 = vmatprep.subr.bf16.mxu0 %v7802
  %8052 = vmatpush1.bf16.msra.mxu0 %v7801
  %8053 = vmatprep.subr.bf16.mxu0 %v7800
  %8054 = vmatpush1.bf16.msra.mxu0 %v7799
  %8055 = vmatprep.subr.bf16.mxu0 %v7798
  %8056 = vmatpush1.bf16.msra.mxu0 %v7797
  %8057 = vmatprep.subr.bf16.mxu0 %v7796
  %8058 = vmatpush1.bf16.msra.mxu0 %v7795
  %8059 = vmatprep.subr.bf16.mxu0 %v7794
  %8060 = vmatpush1.bf16.msra.mxu0 %v7793
  %8061 = vmatprep.subr.bf16.mxu0 %v7792
  %8062 = vmatpush1.bf16.msra.mxu0 %v7791
  %8063 = vmatprep.subr.bf16.mxu0 %v7822
  %8064 = vmatpush2.bf16.msra.mxu0 %v7821
  %8065 = vmatprep.subr.bf16.mxu0 %v7820
  %8066 = vmatpush2.bf16.msra.mxu0 %v7819
  %8067 = vmatprep.subr.bf16.mxu0 %v7818
  %8068 = vmatpush2.bf16.msra.mxu0 %v7817
  %8069 = vmatprep.subr.bf16.mxu0 %v7816
  %8070 = vmatpush2.bf16.msra.mxu0 %v7815
  %8071 = vmatprep.subr.bf16.mxu0 %v7814
  %8072 = vmatpush2.bf16.msra.mxu0 %v7813
  %8073 = vmatprep.subr.bf16.mxu0 %v7812
  %8074 = vmatpush2.bf16.msra.mxu0 %v7811
  %8075 = vmatprep.subr.bf16.mxu0 %v7810
  %8076 = vmatpush2.bf16.msra.mxu0 %v7809
  %8077 = vmatprep.subr.bf16.mxu0 %v7808
  %8078 = vmatpush2.bf16.msra.mxu0 %v7807
  %8079 = vmatprep.mubr.bf16.mxu0 %v7260
  %8080 = vmatmul.mubr.bf16.gmra.mxu0 %v7259
  %v8081 = vpop.f32.mrf.mxu0
  %v8082 = vadd.f32 %v7400, %v8081
  %v8083 = vpop.f32.mrf.mxu0
  %v8084 = vadd.f32 %v7404, %v8083
  %v8085 = vpop.f32.mrf.mxu0
  %v8086 = vpop.f32.mrf.mxu0
  %8087 = vdwg.mxu0
  %8088 = vmatprep.subr.bf16.mxu0 %v7838
  %8089 = vmatpush1.bf16.msra.mxu0 %v7837
  %8090 = vmatprep.subr.bf16.mxu0 %v7836
  %8091 = vmatpush1.bf16.msra.mxu0 %v7835
  %8092 = vmatprep.subr.bf16.mxu0 %v7834
  %8093 = vmatpush1.bf16.msra.mxu0 %v7833
  %8094 = vmatprep.subr.bf16.mxu0 %v7832
  %8095 = vmatpush1.bf16.msra.mxu0 %v7831
  %8096 = vmatprep.subr.bf16.mxu0 %v7830
  %8097 = vmatpush1.bf16.msra.mxu0 %v7829
  %8098 = vmatprep.subr.bf16.mxu0 %v7828
  %8099 = vmatpush1.bf16.msra.mxu0 %v7827
  %8100 = vmatprep.subr.bf16.mxu0 %v7826
  %8101 = vmatpush1.bf16.msra.mxu0 %v7825
  %8102 = vmatprep.subr.bf16.mxu0 %v7824
  %8103 = vmatpush1.bf16.msra.mxu0 %v7823
  %8104 = vmatprep.subr.bf16.mxu0 %v7854
  %8105 = vmatpush2.bf16.msra.mxu0 %v7853
  %8106 = vmatprep.subr.bf16.mxu0 %v7852
  %8107 = vmatpush2.bf16.msra.mxu0 %v7851
  %8108 = vmatprep.subr.bf16.mxu0 %v7850
  %8109 = vmatpush2.bf16.msra.mxu0 %v7849
  %8110 = vmatprep.subr.bf16.mxu0 %v7848
  %8111 = vmatpush2.bf16.msra.mxu0 %v7847
  %8112 = vmatprep.subr.bf16.mxu0 %v7846
  %8113 = vmatpush2.bf16.msra.mxu0 %v7845
  %8114 = vmatprep.subr.bf16.mxu0 %v7844
  %8115 = vmatpush2.bf16.msra.mxu0 %v7843
  %8116 = vmatprep.subr.bf16.mxu0 %v7842
  %8117 = vmatpush2.bf16.msra.mxu0 %v7841
  %8118 = vmatprep.subr.bf16.mxu0 %v7840
  %8119 = vmatpush2.bf16.msra.mxu0 %v7839
  %8120 = vmatprep.mubr.bf16.mxu0 %v7262
  %8121 = vmatmul.mubr.bf16.gmra.mxu0 %v7261
  %v8122 = vpop.f32.mrf.mxu0
  %v8123 = vadd.f32 %v8082, %v8122
  %v8124 = vpop.f32.mrf.mxu0
  %v8125 = vadd.f32 %v8084, %v8124
  %v8126 = vpop.f32.mrf.mxu0
  %v8127 = vpop.f32.mrf.mxu0
  %8128 = vdwg.mxu0
  %8129 = vmatprep.subr.bf16.mxu0 %v7870
  %8130 = vmatpush1.bf16.msra.mxu0 %v7869
  %8131 = vmatprep.subr.bf16.mxu0 %v7868
  %8132 = vmatpush1.bf16.msra.mxu0 %v7867
  %8133 = vmatprep.subr.bf16.mxu0 %v7866
  %8134 = vmatpush1.bf16.msra.mxu0 %v7865
  %8135 = vmatprep.subr.bf16.mxu0 %v7864
  %8136 = vmatpush1.bf16.msra.mxu0 %v7863
  %8137 = vmatprep.subr.bf16.mxu0 %v7862
  %8138 = vmatpush1.bf16.msra.mxu0 %v7861
  %8139 = vmatprep.subr.bf16.mxu0 %v7860
  %8140 = vmatpush1.bf16.msra.mxu0 %v7859
  %8141 = vmatprep.subr.bf16.mxu0 %v7858
  %8142 = vmatpush1.bf16.msra.mxu0 %v7857
  %8143 = vmatprep.subr.bf16.mxu0 %v7856
  %8144 = vmatpush1.bf16.msra.mxu0 %v7855
  %8145 = vmatprep.subr.bf16.mxu0 %v7886
  %8146 = vmatpush2.bf16.msra.mxu0 %v7885
  %8147 = vmatprep.subr.bf16.mxu0 %v7884
  %8148 = vmatpush2.bf16.msra.mxu0 %v7883
  %8149 = vmatprep.subr.bf16.mxu0 %v7882
  %8150 = vmatpush2.bf16.msra.mxu0 %v7881
  %8151 = vmatprep.subr.bf16.mxu0 %v7880
  %8152 = vmatpush2.bf16.msra.mxu0 %v7879
  %8153 = vmatprep.subr.bf16.mxu0 %v7878
  %8154 = vmatpush2.bf16.msra.mxu0 %v7877
  %8155 = vmatprep.subr.bf16.mxu0 %v7876
  %8156 = vmatpush2.bf16.msra.mxu0 %v7875
  %8157 = vmatprep.subr.bf16.mxu0 %v7874
  %8158 = vmatpush2.bf16.msra.mxu0 %v7873
  %8159 = vmatprep.subr.bf16.mxu0 %v7872
  %8160 = vmatpush2.bf16.msra.mxu0 %v7871
  %8161 = vmatprep.mubr.bf16.mxu0 %v7264
  %8162 = vmatmul.mubr.bf16.gmra.mxu0 %v7263
  %v8163 = vpop.f32.mrf.mxu0
  %v8164 = vadd.f32 %v8123, %v8163
  %v8165 = vpop.f32.mrf.mxu0
  %v8166 = vadd.f32 %v8125, %v8165
  %v8167 = vpop.f32.mrf.mxu0
  %v8168 = vpop.f32.mrf.mxu0
  %8169 = vdwg.mxu0
  %8170 = vmatprep.subr.bf16.mxu0 %v7902
  %8171 = vmatpush1.bf16.msra.mxu0 %v7901
  %8172 = vmatprep.subr.bf16.mxu0 %v7900
  %8173 = vmatpush1.bf16.msra.mxu0 %v7899
  %8174 = vmatprep.subr.bf16.mxu0 %v7898
  %8175 = vmatpush1.bf16.msra.mxu0 %v7897
  %8176 = vmatprep.subr.bf16.mxu0 %v7896
  %8177 = vmatpush1.bf16.msra.mxu0 %v7895
  %8178 = vmatprep.subr.bf16.mxu0 %v7894
  %8179 = vmatpush1.bf16.msra.mxu0 %v7893
  %8180 = vmatprep.subr.bf16.mxu0 %v7892
  %8181 = vmatpush1.bf16.msra.mxu0 %v7891
  %8182 = vmatprep.subr.bf16.mxu0 %v7890
  %8183 = vmatpush1.bf16.msra.mxu0 %v7889
  %8184 = vmatprep.subr.bf16.mxu0 %v7888
  %8185 = vmatpush1.bf16.msra.mxu0 %v7887
  %8186 = vmatprep.subr.bf16.mxu0 %v7918
  %8187 = vmatpush2.bf16.msra.mxu0 %v7917
  %8188 = vmatprep.subr.bf16.mxu0 %v7916
  %8189 = vmatpush2.bf16.msra.mxu0 %v7915
  %8190 = vmatprep.subr.bf16.mxu0 %v7914
  %8191 = vmatpush2.bf16.msra.mxu0 %v7913
  %8192 = vmatprep.subr.bf16.mxu0 %v7912
  %8193 = vmatpush2.bf16.msra.mxu0 %v7911
  %8194 = vmatprep.subr.bf16.mxu0 %v7910
  %8195 = vmatpush2.bf16.msra.mxu0 %v7909
  %8196 = vmatprep.subr.bf16.mxu0 %v7908
  %8197 = vmatpush2.bf16.msra.mxu0 %v7907
  %8198 = vmatprep.subr.bf16.mxu0 %v7906
  %8199 = vmatpush2.bf16.msra.mxu0 %v7905
  %8200 = vmatprep.subr.bf16.mxu0 %v7904
  %8201 = vmatpush2.bf16.msra.mxu0 %v7903
  %8202 = vmatprep.mubr.bf16.mxu0 %v7266
  %8203 = vmatmul.mubr.bf16.gmra.mxu0 %v7265
  %v8204 = vpop.f32.mrf.mxu0
  %v8205 = vadd.f32 %v8164, %v8204
  %v8206 = vpop.f32.mrf.mxu0
  %v8207 = vadd.f32 %v8166, %v8206
  %v8208 = vpop.f32.mrf.mxu0
  %v8209 = vpop.f32.mrf.mxu0
  %8210 = vdwg.mxu0
  %8211 = vst [vmem:[%s15] sm:$0xff] %v8205
  %8212 = vst [vmem:[%s15 + $0x8] sm:$0xff] %v8207
  %v8213 = vmul.f32 %v8207, 0.5
  %v8214 = vmul.f32 %v8213, 1.442695
  %v8215 = vpow.pop %v8214
  %v8216 = vld [vmem:[%s1] sm:$0xff]
  %v8217 = vmul.f32 %v8215, %v8216
  %v8218 = vadd.f32 %v8205, %v8217
  %v8219 = vpack.c.bf16 %v8218, %v8218
  %v8220 = vld [vmem:[%s8] sm:$0xff]
  %v8221 = vld [vmem:[%s8 + $0x8] sm:$0xff]
  %v8222 = vld [vmem:[%s8 + $0x10] sm:$0xff]
  %v8223 = vld [vmem:[%s8 + $0x18] sm:$0xff]
  %v8224 = vld [vmem:[%s8 + $0x20] sm:$0xff]
  %v8225 = vld [vmem:[%s8 + $0x28] sm:$0xff]
  %v8226 = vld [vmem:[%s8 + $0x30] sm:$0xff]
  %v8227 = vld [vmem:[%s8 + $0x38] sm:$0xff]
  %v8228 = vld [vmem:[%s8 + $0x40] sm:$0xff]
  %v8229 = vld [vmem:[%s8 + $0x48] sm:$0xff]
  %v8230 = vld [vmem:[%s8 + $0x50] sm:$0xff]
  %v8231 = vld [vmem:[%s8 + $0x58] sm:$0xff]
  %v8232 = vld [vmem:[%s8 + $0x60] sm:$0xff]
  %v8233 = vld [vmem:[%s8 + $0x68] sm:$0xff]
  %v8234 = vld [vmem:[%s8 + $0x70] sm:$0xff]
  %v8235 = vld [vmem:[%s8 + $0x78] sm:$0xff]
  %v8236 = vld [vmem:[%s8 + $0x80] sm:$0xff]
  %v8237 = vld [vmem:[%s8 + $0x88] sm:$0xff]
  %v8238 = vld [vmem:[%s8 + $0x90] sm:$0xff]
  %v8239 = vld [vmem:[%s8 + $0x98] sm:$0xff]
  %v8240 = vld [vmem:[%s8 + $0xa0] sm:$0xff]
  %v8241 = vld [vmem:[%s8 + $0xa8] sm:$0xff]
  %v8242 = vld [vmem:[%s8 + $0xb0] sm:$0xff]
  %v8243 = vld [vmem:[%s8 + $0xb8] sm:$0xff]
  %v8244 = vld [vmem:[%s8 + $0xc0] sm:$0xff]
  %v8245 = vld [vmem:[%s8 + $0xc8] sm:$0xff]
  %v8246 = vld [vmem:[%s8 + $0xd0] sm:$0xff]
  %v8247 = vld [vmem:[%s8 + $0xd8] sm:$0xff]
  %v8248 = vld [vmem:[%s8 + $0xe0] sm:$0xff]
  %v8249 = vld [vmem:[%s8 + $0xe8] sm:$0xff]
  %v8250 = vld [vmem:[%s8 + $0xf0] sm:$0xff]
  %v8251 = vld [vmem:[%s8 + $0xf8] sm:$0xff]
  %v8252 = vld [vmem:[%s8 + $0x100] sm:$0xff]
  %v8253 = vld [vmem:[%s8 + $0x108] sm:$0xff]
  %v8254 = vld [vmem:[%s8 + $0x110] sm:$0xff]
  %v8255 = vld [vmem:[%s8 + $0x118] sm:$0xff]
  %v8256 = vld [vmem:[%s8 + $0x120] sm:$0xff]
  %v8257 = vld [vmem:[%s8 + $0x128] sm:$0xff]
  %v8258 = vld [vmem:[%s8 + $0x130] sm:$0xff]
  %v8259 = vld [vmem:[%s8 + $0x138] sm:$0xff]
  %v8260 = vld [vmem:[%s8 + $0x140] sm:$0xff]
  %v8261 = vld [vmem:[%s8 + $0x148] sm:$0xff]
  %v8262 = vld [vmem:[%s8 + $0x150] sm:$0xff]
  %v8263 = vld [vmem:[%s8 + $0x158] sm:$0xff]
  %v8264 = vld [vmem:[%s8 + $0x160] sm:$0xff]
  %v8265 = vld [vmem:[%s8 + $0x168] sm:$0xff]
  %v8266 = vld [vmem:[%s8 + $0x170] sm:$0xff]
  %v8267 = vld [vmem:[%s8 + $0x178] sm:$0xff]
  %v8268 = vld [vmem:[%s8 + $0x180] sm:$0xff]
  %v8269 = vld [vmem:[%s8 + $0x188] sm:$0xff]
  %v8270 = vld [vmem:[%s8 + $0x190] sm:$0xff]
  %v8271 = vld [vmem:[%s8 + $0x198] sm:$0xff]
  %v8272 = vld [vmem:[%s8 + $0x1a0] sm:$0xff]
  %v8273 = vld [vmem:[%s8 + $0x1a8] sm:$0xff]
  %v8274 = vld [vmem:[%s8 + $0x1b0] sm:$0xff]
  %v8275 = vld [vmem:[%s8 + $0x1b8] sm:$0xff]
  %v8276 = vld [vmem:[%s8 + $0x1c0] sm:$0xff]
  %v8277 = vld [vmem:[%s8 + $0x1c8] sm:$0xff]
  %v8278 = vld [vmem:[%s8 + $0x1d0] sm:$0xff]
  %v8279 = vld [vmem:[%s8 + $0x1d8] sm:$0xff]
  %v8280 = vld [vmem:[%s8 + $0x1e0] sm:$0xff]
  %v8281 = vld [vmem:[%s8 + $0x1e8] sm:$0xff]
  %v8282 = vld [vmem:[%s8 + $0x1f0] sm:$0xff]
  %v8283 = vld [vmem:[%s8 + $0x1f8] sm:$0xff]
  %v8284 = vld [vmem:[%s9] sm:$0xff]
  %v8286 = vlaneseq
  %v8287 = vshrl.u32 %v8286, 7
  %v8288 = vsub.s32 0, %v8287
  %v8289 = vrot.slane %v8284, %v8288
  %v8290 = vlaneseq
  %v8291 = vshrl.u32 %v8290, 7
  %v8292 = vsub.s32 1, %v8291
  %v8293 = vrot.slane %v8284, %v8292
  %v8294 = vlaneseq
  %v8295 = vshrl.u32 %v8294, 7
  %v8296 = vsub.s32 2, %v8295
  %v8297 = vrot.slane %v8284, %v8296
  %v8298 = vlaneseq
  %v8299 = vshrl.u32 %v8298, 7
  %v8300 = vsub.s32 3, %v8299
  %v8301 = vrot.slane %v8284, %v8300
  %v8302 = vlaneseq
  %v8303 = vshrl.u32 %v8302, 7
  %v8304 = vsub.s32 4, %v8303
  %v8305 = vrot.slane %v8284, %v8304
  %v8306 = vlaneseq
  %v8307 = vshrl.u32 %v8306, 7
  %v8308 = vsub.s32 5, %v8307
  %v8309 = vrot.slane %v8284, %v8308
  %v8310 = vlaneseq
  %v8311 = vshrl.u32 %v8310, 7
  %v8312 = vsub.s32 6, %v8311
  %v8313 = vrot.slane %v8284, %v8312
  %v8314 = vlaneseq
  %v8315 = vshrl.u32 %v8314, 7
  %v8316 = vsub.s32 7, %v8315
  %v8317 = vrot.slane %v8284, %v8316
  %v8390 = vunpack.c.l.b16 %v8220
  %v8391 = vunpack.c.h.b16 %v8220
  %v8392 = vunpack.c.l.b16 %v8221
  %v8393 = vunpack.c.h.b16 %v8221
  %v8394 = vunpack.c.l.b16 %v8222
  %v8395 = vunpack.c.h.b16 %v8222
  %v8396 = vunpack.c.l.b16 %v8223
  %v8397 = vunpack.c.h.b16 %v8223
  %v8398 = vunpack.c.l.b16 %v8224
  %v8399 = vunpack.c.h.b16 %v8224
  %v8400 = vunpack.c.l.b16 %v8225
  %v8401 = vunpack.c.h.b16 %v8225
  %v8402 = vunpack.c.l.b16 %v8226
  %v8403 = vunpack.c.h.b16 %v8226
  %v8404 = vunpack.c.l.b16 %v8227
  %v8405 = vunpack.c.h.b16 %v8227
  %v8406 = vunpack.c.l.b16 %v8228
  %v8407 = vunpack.c.h.b16 %v8228
  %v8408 = vunpack.c.l.b16 %v8229
  %v8409 = vunpack.c.h.b16 %v8229
  %v8410 = vunpack.c.l.b16 %v8230
  %v8411 = vunpack.c.h.b16 %v8230
  %v8412 = vunpack.c.l.b16 %v8231
  %v8413 = vunpack.c.h.b16 %v8231
  %v8414 = vunpack.c.l.b16 %v8232
  %v8415 = vunpack.c.h.b16 %v8232
  %v8416 = vunpack.c.l.b16 %v8233
  %v8417 = vunpack.c.h.b16 %v8233
  %v8418 = vunpack.c.l.b16 %v8234
  %v8419 = vunpack.c.h.b16 %v8234
  %v8420 = vunpack.c.l.b16 %v8235
  %v8421 = vunpack.c.h.b16 %v8235
  %v8422 = vunpack.c.l.b16 %v8236
  %v8423 = vunpack.c.h.b16 %v8236
  %v8424 = vunpack.c.l.b16 %v8237
  %v8425 = vunpack.c.h.b16 %v8237
  %v8426 = vunpack.c.l.b16 %v8238
  %v8427 = vunpack.c.h.b16 %v8238
  %v8428 = vunpack.c.l.b16 %v8239
  %v8429 = vunpack.c.h.b16 %v8239
  %v8430 = vunpack.c.l.b16 %v8240
  %v8431 = vunpack.c.h.b16 %v8240
  %v8432 = vunpack.c.l.b16 %v8241
  %v8433 = vunpack.c.h.b16 %v8241
  %v8434 = vunpack.c.l.b16 %v8242
  %v8435 = vunpack.c.h.b16 %v8242
  %v8436 = vunpack.c.l.b16 %v8243
  %v8437 = vunpack.c.h.b16 %v8243
  %v8438 = vunpack.c.l.b16 %v8244
  %v8439 = vunpack.c.h.b16 %v8244
  %v8440 = vunpack.c.l.b16 %v8245
  %v8441 = vunpack.c.h.b16 %v8245
  %v8442 = vunpack.c.l.b16 %v8246
  %v8443 = vunpack.c.h.b16 %v8246
  %v8444 = vunpack.c.l.b16 %v8247
  %v8445 = vunpack.c.h.b16 %v8247
  %v8446 = vunpack.c.l.b16 %v8248
  %v8447 = vunpack.c.h.b16 %v8248
  %v8448 = vunpack.c.l.b16 %v8249
  %v8449 = vunpack.c.h.b16 %v8249
  %v8450 = vunpack.c.l.b16 %v8250
  %v8451 = vunpack.c.h.b16 %v8250
  %v8452 = vunpack.c.l.b16 %v8251
  %v8453 = vunpack.c.h.b16 %v8251
  %v8454 = vunpack.c.l.b16 %v8252
  %v8455 = vunpack.c.h.b16 %v8252
  %v8456 = vunpack.c.l.b16 %v8253
  %v8457 = vunpack.c.h.b16 %v8253
  %v8458 = vunpack.c.l.b16 %v8254
  %v8459 = vunpack.c.h.b16 %v8254
  %v8460 = vunpack.c.l.b16 %v8255
  %v8461 = vunpack.c.h.b16 %v8255
  %v8462 = vunpack.c.l.b16 %v8256
  %v8463 = vunpack.c.h.b16 %v8256
  %v8464 = vunpack.c.l.b16 %v8257
  %v8465 = vunpack.c.h.b16 %v8257
  %v8466 = vunpack.c.l.b16 %v8258
  %v8467 = vunpack.c.h.b16 %v8258
  %v8468 = vunpack.c.l.b16 %v8259
  %v8469 = vunpack.c.h.b16 %v8259
  %v8470 = vunpack.c.l.b16 %v8260
  %v8471 = vunpack.c.h.b16 %v8260
  %v8472 = vunpack.c.l.b16 %v8261
  %v8473 = vunpack.c.h.b16 %v8261
  %v8474 = vunpack.c.l.b16 %v8262
  %v8475 = vunpack.c.h.b16 %v8262
  %v8476 = vunpack.c.l.b16 %v8263
  %v8477 = vunpack.c.h.b16 %v8263
  %v8478 = vunpack.c.l.b16 %v8264
  %v8479 = vunpack.c.h.b16 %v8264
  %v8480 = vunpack.c.l.b16 %v8265
  %v8481 = vunpack.c.h.b16 %v8265
  %v8482 = vunpack.c.l.b16 %v8266
  %v8483 = vunpack.c.h.b16 %v8266
  %v8484 = vunpack.c.l.b16 %v8267
  %v8485 = vunpack.c.h.b16 %v8267
  %v8486 = vunpack.c.l.b16 %v8268
  %v8487 = vunpack.c.h.b16 %v8268
  %v8488 = vunpack.c.l.b16 %v8269
  %v8489 = vunpack.c.h.b16 %v8269
  %v8490 = vunpack.c.l.b16 %v8270
  %v8491 = vunpack.c.h.b16 %v8270
  %v8492 = vunpack.c.l.b16 %v8271
  %v8493 = vunpack.c.h.b16 %v8271
  %v8494 = vunpack.c.l.b16 %v8272
  %v8495 = vunpack.c.h.b16 %v8272
  %v8496 = vunpack.c.l.b16 %v8273
  %v8497 = vunpack.c.h.b16 %v8273
  %v8498 = vunpack.c.l.b16 %v8274
  %v8499 = vunpack.c.h.b16 %v8274
  %v8500 = vunpack.c.l.b16 %v8275
  %v8501 = vunpack.c.h.b16 %v8275
  %v8502 = vunpack.c.l.b16 %v8276
  %v8503 = vunpack.c.h.b16 %v8276
  %v8504 = vunpack.c.l.b16 %v8277
  %v8505 = vunpack.c.h.b16 %v8277
  %v8506 = vunpack.c.l.b16 %v8278
  %v8507 = vunpack.c.h.b16 %v8278
  %v8508 = vunpack.c.l.b16 %v8279
  %v8509 = vunpack.c.h.b16 %v8279
  %v8510 = vunpack.c.l.b16 %v8280
  %v8511 = vunpack.c.h.b16 %v8280
  %v8512 = vunpack.c.l.b16 %v8281
  %v8513 = vunpack.c.h.b16 %v8281
  %v8514 = vunpack.c.l.b16 %v8282
  %v8515 = vunpack.c.h.b16 %v8282
  %v8516 = vunpack.c.l.b16 %v8283
  %v8517 = vunpack.c.h.b16 %v8283
  %v8518 = vpack.c.b16 %v8398, %v8390
  %v8519 = vpack.c.b16 %v8399, %v8391
  %v8520 = vpack.c.b16 %v8400, %v8392
  %v8521 = vpack.c.b16 %v8401, %v8393
  %v8522 = vpack.c.b16 %v8402, %v8394
  %v8523 = vpack.c.b16 %v8403, %v8395
  %v8524 = vpack.c.b16 %v8404, %v8396
  %v8525 = vpack.c.b16 %v8405, %v8397
  %v8526 = vpack.c.b16 %v8414, %v8406
  %v8527 = vpack.c.b16 %v8415, %v8407
  %v8528 = vpack.c.b16 %v8416, %v8408
  %v8529 = vpack.c.b16 %v8417, %v8409
  %v8530 = vpack.c.b16 %v8418, %v8410
  %v8531 = vpack.c.b16 %v8419, %v8411
  %v8532 = vpack.c.b16 %v8420, %v8412
  %v8533 = vpack.c.b16 %v8421, %v8413
  %v8534 = vpack.c.b16 %v8430, %v8422
  %v8535 = vpack.c.b16 %v8431, %v8423
  %v8536 = vpack.c.b16 %v8432, %v8424
  %v8537 = vpack.c.b16 %v8433, %v8425
  %v8538 = vpack.c.b16 %v8434, %v8426
  %v8539 = vpack.c.b16 %v8435, %v8427
  %v8540 = vpack.c.b16 %v8436, %v8428
  %v8541 = vpack.c.b16 %v8437, %v8429
  %v8542 = vpack.c.b16 %v8446, %v8438
  %v8543 = vpack.c.b16 %v8447, %v8439
  %v8544 = vpack.c.b16 %v8448, %v8440
  %v8545 = vpack.c.b16 %v8449, %v8441
  %v8546 = vpack.c.b16 %v8450, %v8442
  %v8547 = vpack.c.b16 %v8451, %v8443
  %v8548 = vpack.c.b16 %v8452, %v8444
  %v8549 = vpack.c.b16 %v8453, %v8445
  %v8550 = vpack.c.b16 %v8462, %v8454
  %v8551 = vpack.c.b16 %v8463, %v8455
  %v8552 = vpack.c.b16 %v8464, %v8456
  %v8553 = vpack.c.b16 %v8465, %v8457
  %v8554 = vpack.c.b16 %v8466, %v8458
  %v8555 = vpack.c.b16 %v8467, %v8459
  %v8556 = vpack.c.b16 %v8468, %v8460
  %v8557 = vpack.c.b16 %v8469, %v8461
  %v8558 = vpack.c.b16 %v8478, %v8470
  %v8559 = vpack.c.b16 %v8479, %v8471
  %v8560 = vpack.c.b16 %v8480, %v8472
  %v8561 = vpack.c.b16 %v8481, %v8473
  %v8562 = vpack.c.b16 %v8482, %v8474
  %v8563 = vpack.c.b16 %v8483, %v8475
  %v8564 = vpack.c.b16 %v8484, %v8476
  %v8565 = vpack.c.b16 %v8485, %v8477
  %v8566 = vpack.c.b16 %v8494, %v8486
  %v8567 = vpack.c.b16 %v8495, %v8487
  %v8568 = vpack.c.b16 %v8496, %v8488
  %v8569 = vpack.c.b16 %v8497, %v8489
  %v8570 = vpack.c.b16 %v8498, %v8490
  %v8571 = vpack.c.b16 %v8499, %v8491
  %v8572 = vpack.c.b16 %v8500, %v8492
  %v8573 = vpack.c.b16 %v8501, %v8493
  %v8574 = vpack.c.b16 %v8510, %v8502
  %v8575 = vpack.c.b16 %v8511, %v8503
  %v8576 = vpack.c.b16 %v8512, %v8504
  %v8577 = vpack.c.b16 %v8513, %v8505
  %v8578 = vpack.c.b16 %v8514, %v8506
  %v8579 = vpack.c.b16 %v8515, %v8507
  %v8580 = vpack.c.b16 %v8516, %v8508
  %v8581 = vpack.c.b16 %v8517, %v8509
  %8646 = vmatprep.subr.bf16.mxu0 %v8575
  %8647 = vmatpush1.bf16.msra.mxu0 %v8574
  %8648 = vmatprep.subr.bf16.mxu0 %v8567
  %8649 = vmatpush1.bf16.msra.mxu0 %v8566
  %8650 = vmatprep.subr.bf16.mxu0 %v8559
  %8651 = vmatpush1.bf16.msra.mxu0 %v8558
  %8652 = vmatprep.subr.bf16.mxu0 %v8551
  %8653 = vmatpush1.bf16.msra.mxu0 %v8550
  %8654 = vmatprep.subr.bf16.mxu0 %v8543
  %8655 = vmatpush1.bf16.msra.mxu0 %v8542
  %8656 = vmatprep.subr.bf16.mxu0 %v8535
  %8657 = vmatpush1.bf16.msra.mxu0 %v8534
  %8658 = vmatprep.subr.bf16.mxu0 %v8527
  %8659 = vmatpush1.bf16.msra.mxu0 %v8526
  %8660 = vmatprep.subr.bf16.mxu0 %v8519
  %8661 = vmatpush1.bf16.msra.mxu0 %v8518
  %8662 = vmatprep.subr.bf16.mxu0 0
  %8663 = vmatpush2.bf16.msra.mxu0 0
  %8664 = vmatprep.subr.bf16.mxu0 0
  %8665 = vmatpush2.bf16.msra.mxu0 0
  %8666 = vmatprep.subr.bf16.mxu0 0
  %8667 = vmatpush2.bf16.msra.mxu0 0
  %8668 = vmatprep.subr.bf16.mxu0 0
  %8669 = vmatpush2.bf16.msra.mxu0 0
  %8670 = vmatprep.subr.bf16.mxu0 0
  %8671 = vmatpush2.bf16.msra.mxu0 0
  %8672 = vmatprep.subr.bf16.mxu0 0
  %8673 = vmatpush2.bf16.msra.mxu0 0
  %8674 = vmatprep.subr.bf16.mxu0 0
  %8675 = vmatpush2.bf16.msra.mxu0 0
  %8676 = vmatprep.subr.bf16.mxu0 0
  %8677 = vmatpush2.bf16.msra.mxu0 0
  %8678 = vmatprep.mubr.bf16.mxu0 0
  %8679 = vmatmul.mubr.bf16.gmra.mxu0 %v8219
  %v8680 = vpop.f32.mrf.mxu0
  %v8681 = vadd.f32 %v8289, %v8680
  %v8682 = vpop.f32.mrf.mxu0
  %v8683 = vadd.f32 %v8293, %v8682
  %v8684 = vpop.f32.mrf.mxu0
  %v8685 = vpop.f32.mrf.mxu0
  %8686 = vdwg.mxu0
  %8687 = vmatprep.subr.bf16.mxu0 %v8577
  %8688 = vmatpush1.bf16.msra.mxu0 %v8576
  %8689 = vmatprep.subr.bf16.mxu0 %v8569
  %8690 = vmatpush1.bf16.msra.mxu0 %v8568
  %8691 = vmatprep.subr.bf16.mxu0 %v8561
  %8692 = vmatpush1.bf16.msra.mxu0 %v8560
  %8693 = vmatprep.subr.bf16.mxu0 %v8553
  %8694 = vmatpush1.bf16.msra.mxu0 %v8552
  %8695 = vmatprep.subr.bf16.mxu0 %v8545
  %8696 = vmatpush1.bf16.msra.mxu0 %v8544
  %8697 = vmatprep.subr.bf16.mxu0 %v8537
  %8698 = vmatpush1.bf16.msra.mxu0 %v8536
  %8699 = vmatprep.subr.bf16.mxu0 %v8529
  %8700 = vmatpush1.bf16.msra.mxu0 %v8528
  %8701 = vmatprep.subr.bf16.mxu0 %v8521
  %8702 = vmatpush1.bf16.msra.mxu0 %v8520
  %8703 = vmatprep.subr.bf16.mxu0 0
  %8704 = vmatpush2.bf16.msra.mxu0 0
  %8705 = vmatprep.subr.bf16.mxu0 0
  %8706 = vmatpush2.bf16.msra.mxu0 0
  %8707 = vmatprep.subr.bf16.mxu0 0
  %8708 = vmatpush2.bf16.msra.mxu0 0
  %8709 = vmatprep.subr.bf16.mxu0 0
  %8710 = vmatpush2.bf16.msra.mxu0 0
  %8711 = vmatprep.subr.bf16.mxu0 0
  %8712 = vmatpush2.bf16.msra.mxu0 0
  %8713 = vmatprep.subr.bf16.mxu0 0
  %8714 = vmatpush2.bf16.msra.mxu0 0
  %8715 = vmatprep.subr.bf16.mxu0 0
  %8716 = vmatpush2.bf16.msra.mxu0 0
  %8717 = vmatprep.subr.bf16.mxu0 0
  %8718 = vmatpush2.bf16.msra.mxu0 0
  %8719 = vmatprep.mubr.bf16.mxu0 0
  %8720 = vmatmul.mubr.bf16.gmra.mxu0 %v8219
  %v8721 = vpop.f32.mrf.mxu0
  %v8722 = vadd.f32 %v8297, %v8721
  %v8723 = vpop.f32.mrf.mxu0
  %v8724 = vadd.f32 %v8301, %v8723
  %v8725 = vpop.f32.mrf.mxu0
  %v8726 = vpop.f32.mrf.mxu0
  %8727 = vdwg.mxu0
  %8728 = vmatprep.subr.bf16.mxu0 %v8579
  %8729 = vmatpush1.bf16.msra.mxu0 %v8578
  %8730 = vmatprep.subr.bf16.mxu0 %v8571
  %8731 = vmatpush1.bf16.msra.mxu0 %v8570
  %8732 = vmatprep.subr.bf16.mxu0 %v8563
  %8733 = vmatpush1.bf16.msra.mxu0 %v8562
  %8734 = vmatprep.subr.bf16.mxu0 %v8555
  %8735 = vmatpush1.bf16.msra.mxu0 %v8554
  %8736 = vmatprep.subr.bf16.mxu0 %v8547
  %8737 = vmatpush1.bf16.msra.mxu0 %v8546
  %8738 = vmatprep.subr.bf16.mxu0 %v8539
  %8739 = vmatpush1.bf16.msra.mxu0 %v8538
  %8740 = vmatprep.subr.bf16.mxu0 %v8531
  %8741 = vmatpush1.bf16.msra.mxu0 %v8530
  %8742 = vmatprep.subr.bf16.mxu0 %v8523
  %8743 = vmatpush1.bf16.msra.mxu0 %v8522
  %8744 = vmatprep.subr.bf16.mxu0 0
  %8745 = vmatpush2.bf16.msra.mxu0 0
  %8746 = vmatprep.subr.bf16.mxu0 0
  %8747 = vmatpush2.bf16.msra.mxu0 0
  %8748 = vmatprep.subr.bf16.mxu0 0
  %8749 = vmatpush2.bf16.msra.mxu0 0
  %8750 = vmatprep.subr.bf16.mxu0 0
  %8751 = vmatpush2.bf16.msra.mxu0 0
  %8752 = vmatprep.subr.bf16.mxu0 0
  %8753 = vmatpush2.bf16.msra.mxu0 0
  %8754 = vmatprep.subr.bf16.mxu0 0
  %8755 = vmatpush2.bf16.msra.mxu0 0
  %8756 = vmatprep.subr.bf16.mxu0 0
  %8757 = vmatpush2.bf16.msra.mxu0 0
  %8758 = vmatprep.subr.bf16.mxu0 0
  %8759 = vmatpush2.bf16.msra.mxu0 0
  %8760 = vmatprep.mubr.bf16.mxu0 0
  %8761 = vmatmul.mubr.bf16.gmra.mxu0 %v8219
  %v8762 = vpop.f32.mrf.mxu0
  %v8763 = vadd.f32 %v8305, %v8762
  %v8764 = vpop.f32.mrf.mxu0
  %v8765 = vadd.f32 %v8309, %v8764
  %v8766 = vpop.f32.mrf.mxu0
  %v8767 = vpop.f32.mrf.mxu0
  %8768 = vdwg.mxu0
  %8769 = vmatprep.subr.bf16.mxu0 %v8581
  %8770 = vmatpush1.bf16.msra.mxu0 %v8580
  %8771 = vmatprep.subr.bf16.mxu0 %v8573
  %8772 = vmatpush1.bf16.msra.mxu0 %v8572
  %8773 = vmatprep.subr.bf16.mxu0 %v8565
  %8774 = vmatpush1.bf16.msra.mxu0 %v8564
  %8775 = vmatprep.subr.bf16.mxu0 %v8557
  %8776 = vmatpush1.bf16.msra.mxu0 %v8556
  %8777 = vmatprep.subr.bf16.mxu0 %v8549
  %8778 = vmatpush1.bf16.msra.mxu0 %v8548
  %8779 = vmatprep.subr.bf16.mxu0 %v8541
  %8780 = vmatpush1.bf16.msra.mxu0 %v8540
  %8781 = vmatprep.subr.bf16.mxu0 %v8533
  %8782 = vmatpush1.bf16.msra.mxu0 %v8532
  %8783 = vmatprep.subr.bf16.mxu0 %v8525
  %8784 = vmatpush1.bf16.msra.mxu0 %v8524
  %8785 = vmatprep.subr.bf16.mxu0 0
  %8786 = vmatpush2.bf16.msra.mxu0 0
  %8787 = vmatprep.subr.bf16.mxu0 0
  %8788 = vmatpush2.bf16.msra.mxu0 0
  %8789 = vmatprep.subr.bf16.mxu0 0
  %8790 = vmatpush2.bf16.msra.mxu0 0
  %8791 = vmatprep.subr.bf16.mxu0 0
  %8792 = vmatpush2.bf16.msra.mxu0 0
  %8793 = vmatprep.subr.bf16.mxu0 0
  %8794 = vmatpush2.bf16.msra.mxu0 0
  %8795 = vmatprep.subr.bf16.mxu0 0
  %8796 = vmatpush2.bf16.msra.mxu0 0
  %8797 = vmatprep.subr.bf16.mxu0 0
  %8798 = vmatpush2.bf16.msra.mxu0 0
  %8799 = vmatprep.subr.bf16.mxu0 0
  %8800 = vmatpush2.bf16.msra.mxu0 0
  %8801 = vmatprep.mubr.bf16.mxu0 0
  %8802 = vmatmul.mubr.bf16.gmra.mxu0 %v8219
  %v8803 = vpop.f32.mrf.mxu0
  %v8804 = vadd.f32 %v8313, %v8803
  %v8805 = vpop.f32.mrf.mxu0
  %v8806 = vadd.f32 %v8317, %v8805
  %v8807 = vpop.f32.mrf.mxu0
  %v8808 = vpop.f32.mrf.mxu0
  %8809 = vdwg.mxu0
  %v8810 = vmax.f32 %v8681, 0.0
  %v8811 = vmax.f32 %v8683, 0.0
  %v8812 = vmax.f32 %v8722, 0.0
  %v8813 = vmax.f32 %v8724, 0.0
  %v8814 = vmax.f32 %v8763, 0.0
  %v8815 = vmax.f32 %v8765, 0.0
  %v8816 = vmax.f32 %v8804, 0.0
  %v8817 = vmax.f32 %v8806, 0.0
  %v8818 = vpack.c.bf16 %v8810, %v8810
  %v8819 = vpack.c.bf16 %v8811, %v8811
  %v8820 = vpack.c.bf16 %v8812, %v8812
  %v8821 = vpack.c.bf16 %v8813, %v8813
  %v8822 = vpack.c.bf16 %v8814, %v8814
  %v8823 = vpack.c.bf16 %v8815, %v8815
  %v8824 = vpack.c.bf16 %v8816, %v8816
  %v8825 = vpack.c.bf16 %v8817, %v8817
  %v8826 = vld [vmem:[%s10] sm:$0xff]
  %v8827 = vld [vmem:[%s10 + $0x8] sm:$0xff]
  %v8828 = vld [vmem:[%s10 + $0x10] sm:$0xff]
  %v8829 = vld [vmem:[%s10 + $0x18] sm:$0xff]
  %v8830 = vld [vmem:[%s10 + $0x20] sm:$0xff]
  %v8831 = vld [vmem:[%s10 + $0x28] sm:$0xff]
  %v8832 = vld [vmem:[%s10 + $0x30] sm:$0xff]
  %v8833 = vld [vmem:[%s10 + $0x38] sm:$0xff]
  %v8834 = vld [vmem:[%s10 + $0x40] sm:$0xff]
  %v8835 = vld [vmem:[%s10 + $0x48] sm:$0xff]
  %v8836 = vld [vmem:[%s10 + $0x50] sm:$0xff]
  %v8837 = vld [vmem:[%s10 + $0x58] sm:$0xff]
  %v8838 = vld [vmem:[%s10 + $0x60] sm:$0xff]
  %v8839 = vld [vmem:[%s10 + $0x68] sm:$0xff]
  %v8840 = vld [vmem:[%s10 + $0x70] sm:$0xff]
  %v8841 = vld [vmem:[%s10 + $0x78] sm:$0xff]
  %v8842 = vld [vmem:[%s10 + $0x80] sm:$0xff]
  %v8843 = vld [vmem:[%s10 + $0x88] sm:$0xff]
  %v8844 = vld [vmem:[%s10 + $0x90] sm:$0xff]
  %v8845 = vld [vmem:[%s10 + $0x98] sm:$0xff]
  %v8846 = vld [vmem:[%s10 + $0xa0] sm:$0xff]
  %v8847 = vld [vmem:[%s10 + $0xa8] sm:$0xff]
  %v8848 = vld [vmem:[%s10 + $0xb0] sm:$0xff]
  %v8849 = vld [vmem:[%s10 + $0xb8] sm:$0xff]
  %v8850 = vld [vmem:[%s10 + $0xc0] sm:$0xff]
  %v8851 = vld [vmem:[%s10 + $0xc8] sm:$0xff]
  %v8852 = vld [vmem:[%s10 + $0xd0] sm:$0xff]
  %v8853 = vld [vmem:[%s10 + $0xd8] sm:$0xff]
  %v8854 = vld [vmem:[%s10 + $0xe0] sm:$0xff]
  %v8855 = vld [vmem:[%s10 + $0xe8] sm:$0xff]
  %v8856 = vld [vmem:[%s10 + $0xf0] sm:$0xff]
  %v8857 = vld [vmem:[%s10 + $0xf8] sm:$0xff]
  %v8858 = vld [vmem:[%s10 + $0x100] sm:$0xff]
  %v8859 = vld [vmem:[%s10 + $0x108] sm:$0xff]
  %v8860 = vld [vmem:[%s10 + $0x110] sm:$0xff]
  %v8861 = vld [vmem:[%s10 + $0x118] sm:$0xff]
  %v8862 = vld [vmem:[%s10 + $0x120] sm:$0xff]
  %v8863 = vld [vmem:[%s10 + $0x128] sm:$0xff]
  %v8864 = vld [vmem:[%s10 + $0x130] sm:$0xff]
  %v8865 = vld [vmem:[%s10 + $0x138] sm:$0xff]
  %v8866 = vld [vmem:[%s10 + $0x140] sm:$0xff]
  %v8867 = vld [vmem:[%s10 + $0x148] sm:$0xff]
  %v8868 = vld [vmem:[%s10 + $0x150] sm:$0xff]
  %v8869 = vld [vmem:[%s10 + $0x158] sm:$0xff]
  %v8870 = vld [vmem:[%s10 + $0x160] sm:$0xff]
  %v8871 = vld [vmem:[%s10 + $0x168] sm:$0xff]
  %v8872 = vld [vmem:[%s10 + $0x170] sm:$0xff]
  %v8873 = vld [vmem:[%s10 + $0x178] sm:$0xff]
  %v8874 = vld [vmem:[%s10 + $0x180] sm:$0xff]
  %v8875 = vld [vmem:[%s10 + $0x188] sm:$0xff]
  %v8876 = vld [vmem:[%s10 + $0x190] sm:$0xff]
  %v8877 = vld [vmem:[%s10 + $0x198] sm:$0xff]
  %v8878 = vld [vmem:[%s10 + $0x1a0] sm:$0xff]
  %v8879 = vld [vmem:[%s10 + $0x1a8] sm:$0xff]
  %v8880 = vld [vmem:[%s10 + $0x1b0] sm:$0xff]
  %v8881 = vld [vmem:[%s10 + $0x1b8] sm:$0xff]
  %v8882 = vld [vmem:[%s10 + $0x1c0] sm:$0xff]
  %v8883 = vld [vmem:[%s10 + $0x1c8] sm:$0xff]
  %v8884 = vld [vmem:[%s10 + $0x1d0] sm:$0xff]
  %v8885 = vld [vmem:[%s10 + $0x1d8] sm:$0xff]
  %v8886 = vld [vmem:[%s10 + $0x1e0] sm:$0xff]
  %v8887 = vld [vmem:[%s10 + $0x1e8] sm:$0xff]
  %v8888 = vld [vmem:[%s10 + $0x1f0] sm:$0xff]
  %v8889 = vld [vmem:[%s10 + $0x1f8] sm:$0xff]
  %v8890 = vld [vmem:[%s10 + $0x200] sm:$0xff]
  %v8891 = vld [vmem:[%s10 + $0x208] sm:$0xff]
  %v8892 = vld [vmem:[%s10 + $0x210] sm:$0xff]
  %v8893 = vld [vmem:[%s10 + $0x218] sm:$0xff]
  %v8894 = vld [vmem:[%s10 + $0x220] sm:$0xff]
  %v8895 = vld [vmem:[%s10 + $0x228] sm:$0xff]
  %v8896 = vld [vmem:[%s10 + $0x230] sm:$0xff]
  %v8897 = vld [vmem:[%s10 + $0x238] sm:$0xff]
  %v8898 = vld [vmem:[%s10 + $0x240] sm:$0xff]
  %v8899 = vld [vmem:[%s10 + $0x248] sm:$0xff]
  %v8900 = vld [vmem:[%s10 + $0x250] sm:$0xff]
  %v8901 = vld [vmem:[%s10 + $0x258] sm:$0xff]
  %v8902 = vld [vmem:[%s10 + $0x260] sm:$0xff]
  %v8903 = vld [vmem:[%s10 + $0x268] sm:$0xff]
  %v8904 = vld [vmem:[%s10 + $0x270] sm:$0xff]
  %v8905 = vld [vmem:[%s10 + $0x278] sm:$0xff]
  %v8906 = vld [vmem:[%s10 + $0x280] sm:$0xff]
  %v8907 = vld [vmem:[%s10 + $0x288] sm:$0xff]
  %v8908 = vld [vmem:[%s10 + $0x290] sm:$0xff]
  %v8909 = vld [vmem:[%s10 + $0x298] sm:$0xff]
  %v8910 = vld [vmem:[%s10 + $0x2a0] sm:$0xff]
  %v8911 = vld [vmem:[%s10 + $0x2a8] sm:$0xff]
  %v8912 = vld [vmem:[%s10 + $0x2b0] sm:$0xff]
  %v8913 = vld [vmem:[%s10 + $0x2b8] sm:$0xff]
  %v8914 = vld [vmem:[%s10 + $0x2c0] sm:$0xff]
  %v8915 = vld [vmem:[%s10 + $0x2c8] sm:$0xff]
  %v8916 = vld [vmem:[%s10 + $0x2d0] sm:$0xff]
  %v8917 = vld [vmem:[%s10 + $0x2d8] sm:$0xff]
  %v8918 = vld [vmem:[%s10 + $0x2e0] sm:$0xff]
  %v8919 = vld [vmem:[%s10 + $0x2e8] sm:$0xff]
  %v8920 = vld [vmem:[%s10 + $0x2f0] sm:$0xff]
  %v8921 = vld [vmem:[%s10 + $0x2f8] sm:$0xff]
  %v8922 = vld [vmem:[%s10 + $0x300] sm:$0xff]
  %v8923 = vld [vmem:[%s10 + $0x308] sm:$0xff]
  %v8924 = vld [vmem:[%s10 + $0x310] sm:$0xff]
  %v8925 = vld [vmem:[%s10 + $0x318] sm:$0xff]
  %v8926 = vld [vmem:[%s10 + $0x320] sm:$0xff]
  %v8927 = vld [vmem:[%s10 + $0x328] sm:$0xff]
  %v8928 = vld [vmem:[%s10 + $0x330] sm:$0xff]
  %v8929 = vld [vmem:[%s10 + $0x338] sm:$0xff]
  %v8930 = vld [vmem:[%s10 + $0x340] sm:$0xff]
  %v8931 = vld [vmem:[%s10 + $0x348] sm:$0xff]
  %v8932 = vld [vmem:[%s10 + $0x350] sm:$0xff]
  %v8933 = vld [vmem:[%s10 + $0x358] sm:$0xff]
  %v8934 = vld [vmem:[%s10 + $0x360] sm:$0xff]
  %v8935 = vld [vmem:[%s10 + $0x368] sm:$0xff]
  %v8936 = vld [vmem:[%s10 + $0x370] sm:$0xff]
  %v8937 = vld [vmem:[%s10 + $0x378] sm:$0xff]
  %v8938 = vld [vmem:[%s10 + $0x380] sm:$0xff]
  %v8939 = vld [vmem:[%s10 + $0x388] sm:$0xff]
  %v8940 = vld [vmem:[%s10 + $0x390] sm:$0xff]
  %v8941 = vld [vmem:[%s10 + $0x398] sm:$0xff]
  %v8942 = vld [vmem:[%s10 + $0x3a0] sm:$0xff]
  %v8943 = vld [vmem:[%s10 + $0x3a8] sm:$0xff]
  %v8944 = vld [vmem:[%s10 + $0x3b0] sm:$0xff]
  %v8945 = vld [vmem:[%s10 + $0x3b8] sm:$0xff]
  %v8946 = vld [vmem:[%s10 + $0x3c0] sm:$0xff]
  %v8947 = vld [vmem:[%s10 + $0x3c8] sm:$0xff]
  %v8948 = vld [vmem:[%s10 + $0x3d0] sm:$0xff]
  %v8949 = vld [vmem:[%s10 + $0x3d8] sm:$0xff]
  %v8950 = vld [vmem:[%s10 + $0x3e0] sm:$0xff]
  %v8951 = vld [vmem:[%s10 + $0x3e8] sm:$0xff]
  %v8952 = vld [vmem:[%s10 + $0x3f0] sm:$0xff]
  %v8953 = vld [vmem:[%s10 + $0x3f8] sm:$0xff]
  %v8954 = vld [vmem:[%s10 + $0x400] sm:$0xff]
  %v8955 = vld [vmem:[%s10 + $0x408] sm:$0xff]
  %v8956 = vld [vmem:[%s10 + $0x410] sm:$0xff]
  %v8957 = vld [vmem:[%s10 + $0x418] sm:$0xff]
  %v8958 = vld [vmem:[%s10 + $0x420] sm:$0xff]
  %v8959 = vld [vmem:[%s10 + $0x428] sm:$0xff]
  %v8960 = vld [vmem:[%s10 + $0x430] sm:$0xff]
  %v8961 = vld [vmem:[%s10 + $0x438] sm:$0xff]
  %v8962 = vld [vmem:[%s10 + $0x440] sm:$0xff]
  %v8963 = vld [vmem:[%s10 + $0x448] sm:$0xff]
  %v8964 = vld [vmem:[%s10 + $0x450] sm:$0xff]
  %v8965 = vld [vmem:[%s10 + $0x458] sm:$0xff]
  %v8966 = vld [vmem:[%s10 + $0x460] sm:$0xff]
  %v8967 = vld [vmem:[%s10 + $0x468] sm:$0xff]
  %v8968 = vld [vmem:[%s10 + $0x470] sm:$0xff]
  %v8969 = vld [vmem:[%s10 + $0x478] sm:$0xff]
  %v8970 = vld [vmem:[%s10 + $0x480] sm:$0xff]
  %v8971 = vld [vmem:[%s10 + $0x488] sm:$0xff]
  %v8972 = vld [vmem:[%s10 + $0x490] sm:$0xff]
  %v8973 = vld [vmem:[%s10 + $0x498] sm:$0xff]
  %v8974 = vld [vmem:[%s10 + $0x4a0] sm:$0xff]
  %v8975 = vld [vmem:[%s10 + $0x4a8] sm:$0xff]
  %v8976 = vld [vmem:[%s10 + $0x4b0] sm:$0xff]
  %v8977 = vld [vmem:[%s10 + $0x4b8] sm:$0xff]
  %v8978 = vld [vmem:[%s10 + $0x4c0] sm:$0xff]
  %v8979 = vld [vmem:[%s10 + $0x4c8] sm:$0xff]
  %v8980 = vld [vmem:[%s10 + $0x4d0] sm:$0xff]
  %v8981 = vld [vmem:[%s10 + $0x4d8] sm:$0xff]
  %v8982 = vld [vmem:[%s10 + $0x4e0] sm:$0xff]
  %v8983 = vld [vmem:[%s10 + $0x4e8] sm:$0xff]
  %v8984 = vld [vmem:[%s10 + $0x4f0] sm:$0xff]
  %v8985 = vld [vmem:[%s10 + $0x4f8] sm:$0xff]
  %v8986 = vld [vmem:[%s10 + $0x500] sm:$0xff]
  %v8987 = vld [vmem:[%s10 + $0x508] sm:$0xff]
  %v8988 = vld [vmem:[%s10 + $0x510] sm:$0xff]
  %v8989 = vld [vmem:[%s10 + $0x518] sm:$0xff]
  %v8990 = vld [vmem:[%s10 + $0x520] sm:$0xff]
  %v8991 = vld [vmem:[%s10 + $0x528] sm:$0xff]
  %v8992 = vld [vmem:[%s10 + $0x530] sm:$0xff]
  %v8993 = vld [vmem:[%s10 + $0x538] sm:$0xff]
  %v8994 = vld [vmem:[%s10 + $0x540] sm:$0xff]
  %v8995 = vld [vmem:[%s10 + $0x548] sm:$0xff]
  %v8996 = vld [vmem:[%s10 + $0x550] sm:$0xff]
  %v8997 = vld [vmem:[%s10 + $0x558] sm:$0xff]
  %v8998 = vld [vmem:[%s10 + $0x560] sm:$0xff]
  %v8999 = vld [vmem:[%s10 + $0x568] sm:$0xff]
  %v9000 = vld [vmem:[%s10 + $0x570] sm:$0xff]
  %v9001 = vld [vmem:[%s10 + $0x578] sm:$0xff]
  %v9002 = vld [vmem:[%s10 + $0x580] sm:$0xff]
  %v9003 = vld [vmem:[%s10 + $0x588] sm:$0xff]
  %v9004 = vld [vmem:[%s10 + $0x590] sm:$0xff]
  %v9005 = vld [vmem:[%s10 + $0x598] sm:$0xff]
  %v9006 = vld [vmem:[%s10 + $0x5a0] sm:$0xff]
  %v9007 = vld [vmem:[%s10 + $0x5a8] sm:$0xff]
  %v9008 = vld [vmem:[%s10 + $0x5b0] sm:$0xff]
  %v9009 = vld [vmem:[%s10 + $0x5b8] sm:$0xff]
  %v9010 = vld [vmem:[%s10 + $0x5c0] sm:$0xff]
  %v9011 = vld [vmem:[%s10 + $0x5c8] sm:$0xff]
  %v9012 = vld [vmem:[%s10 + $0x5d0] sm:$0xff]
  %v9013 = vld [vmem:[%s10 + $0x5d8] sm:$0xff]
  %v9014 = vld [vmem:[%s10 + $0x5e0] sm:$0xff]
  %v9015 = vld [vmem:[%s10 + $0x5e8] sm:$0xff]
  %v9016 = vld [vmem:[%s10 + $0x5f0] sm:$0xff]
  %v9017 = vld [vmem:[%s10 + $0x5f8] sm:$0xff]
  %v9018 = vld [vmem:[%s10 + $0x600] sm:$0xff]
  %v9019 = vld [vmem:[%s10 + $0x608] sm:$0xff]
  %v9020 = vld [vmem:[%s10 + $0x610] sm:$0xff]
  %v9021 = vld [vmem:[%s10 + $0x618] sm:$0xff]
  %v9022 = vld [vmem:[%s10 + $0x620] sm:$0xff]
  %v9023 = vld [vmem:[%s10 + $0x628] sm:$0xff]
  %v9024 = vld [vmem:[%s10 + $0x630] sm:$0xff]
  %v9025 = vld [vmem:[%s10 + $0x638] sm:$0xff]
  %v9026 = vld [vmem:[%s10 + $0x640] sm:$0xff]
  %v9027 = vld [vmem:[%s10 + $0x648] sm:$0xff]
  %v9028 = vld [vmem:[%s10 + $0x650] sm:$0xff]
  %v9029 = vld [vmem:[%s10 + $0x658] sm:$0xff]
  %v9030 = vld [vmem:[%s10 + $0x660] sm:$0xff]
  %v9031 = vld [vmem:[%s10 + $0x668] sm:$0xff]
  %v9032 = vld [vmem:[%s10 + $0x670] sm:$0xff]
  %v9033 = vld [vmem:[%s10 + $0x678] sm:$0xff]
  %v9034 = vld [vmem:[%s10 + $0x680] sm:$0xff]
  %v9035 = vld [vmem:[%s10 + $0x688] sm:$0xff]
  %v9036 = vld [vmem:[%s10 + $0x690] sm:$0xff]
  %v9037 = vld [vmem:[%s10 + $0x698] sm:$0xff]
  %v9038 = vld [vmem:[%s10 + $0x6a0] sm:$0xff]
  %v9039 = vld [vmem:[%s10 + $0x6a8] sm:$0xff]
  %v9040 = vld [vmem:[%s10 + $0x6b0] sm:$0xff]
  %v9041 = vld [vmem:[%s10 + $0x6b8] sm:$0xff]
  %v9042 = vld [vmem:[%s10 + $0x6c0] sm:$0xff]
  %v9043 = vld [vmem:[%s10 + $0x6c8] sm:$0xff]
  %v9044 = vld [vmem:[%s10 + $0x6d0] sm:$0xff]
  %v9045 = vld [vmem:[%s10 + $0x6d8] sm:$0xff]
  %v9046 = vld [vmem:[%s10 + $0x6e0] sm:$0xff]
  %v9047 = vld [vmem:[%s10 + $0x6e8] sm:$0xff]
  %v9048 = vld [vmem:[%s10 + $0x6f0] sm:$0xff]
  %v9049 = vld [vmem:[%s10 + $0x6f8] sm:$0xff]
  %v9050 = vld [vmem:[%s10 + $0x700] sm:$0xff]
  %v9051 = vld [vmem:[%s10 + $0x708] sm:$0xff]
  %v9052 = vld [vmem:[%s10 + $0x710] sm:$0xff]
  %v9053 = vld [vmem:[%s10 + $0x718] sm:$0xff]
  %v9054 = vld [vmem:[%s10 + $0x720] sm:$0xff]
  %v9055 = vld [vmem:[%s10 + $0x728] sm:$0xff]
  %v9056 = vld [vmem:[%s10 + $0x730] sm:$0xff]
  %v9057 = vld [vmem:[%s10 + $0x738] sm:$0xff]
  %v9058 = vld [vmem:[%s10 + $0x740] sm:$0xff]
  %v9059 = vld [vmem:[%s10 + $0x748] sm:$0xff]
  %v9060 = vld [vmem:[%s10 + $0x750] sm:$0xff]
  %v9061 = vld [vmem:[%s10 + $0x758] sm:$0xff]
  %v9062 = vld [vmem:[%s10 + $0x760] sm:$0xff]
  %v9063 = vld [vmem:[%s10 + $0x768] sm:$0xff]
  %v9064 = vld [vmem:[%s10 + $0x770] sm:$0xff]
  %v9065 = vld [vmem:[%s10 + $0x778] sm:$0xff]
  %v9066 = vld [vmem:[%s10 + $0x780] sm:$0xff]
  %v9067 = vld [vmem:[%s10 + $0x788] sm:$0xff]
  %v9068 = vld [vmem:[%s10 + $0x790] sm:$0xff]
  %v9069 = vld [vmem:[%s10 + $0x798] sm:$0xff]
  %v9070 = vld [vmem:[%s10 + $0x7a0] sm:$0xff]
  %v9071 = vld [vmem:[%s10 + $0x7a8] sm:$0xff]
  %v9072 = vld [vmem:[%s10 + $0x7b0] sm:$0xff]
  %v9073 = vld [vmem:[%s10 + $0x7b8] sm:$0xff]
  %v9074 = vld [vmem:[%s10 + $0x7c0] sm:$0xff]
  %v9075 = vld [vmem:[%s10 + $0x7c8] sm:$0xff]
  %v9076 = vld [vmem:[%s10 + $0x7d0] sm:$0xff]
  %v9077 = vld [vmem:[%s10 + $0x7d8] sm:$0xff]
  %v9078 = vld [vmem:[%s10 + $0x7e0] sm:$0xff]
  %v9079 = vld [vmem:[%s10 + $0x7e8] sm:$0xff]
  %v9080 = vld [vmem:[%s10 + $0x7f0] sm:$0xff]
  %v9081 = vld [vmem:[%s10 + $0x7f8] sm:$0xff]
  %v9082 = vld [vmem:[%s10 + $0x800] sm:$0xff]
  %v9083 = vld [vmem:[%s10 + $0x808] sm:$0xff]
  %v9084 = vld [vmem:[%s10 + $0x810] sm:$0xff]
  %v9085 = vld [vmem:[%s10 + $0x818] sm:$0xff]
  %v9086 = vld [vmem:[%s10 + $0x820] sm:$0xff]
  %v9087 = vld [vmem:[%s10 + $0x828] sm:$0xff]
  %v9088 = vld [vmem:[%s10 + $0x830] sm:$0xff]
  %v9089 = vld [vmem:[%s10 + $0x838] sm:$0xff]
  %v9090 = vld [vmem:[%s10 + $0x840] sm:$0xff]
  %v9091 = vld [vmem:[%s10 + $0x848] sm:$0xff]
  %v9092 = vld [vmem:[%s10 + $0x850] sm:$0xff]
  %v9093 = vld [vmem:[%s10 + $0x858] sm:$0xff]
  %v9094 = vld [vmem:[%s10 + $0x860] sm:$0xff]
  %v9095 = vld [vmem:[%s10 + $0x868] sm:$0xff]
  %v9096 = vld [vmem:[%s10 + $0x870] sm:$0xff]
  %v9097 = vld [vmem:[%s10 + $0x878] sm:$0xff]
  %v9098 = vld [vmem:[%s10 + $0x880] sm:$0xff]
  %v9099 = vld [vmem:[%s10 + $0x888] sm:$0xff]
  %v9100 = vld [vmem:[%s10 + $0x890] sm:$0xff]
  %v9101 = vld [vmem:[%s10 + $0x898] sm:$0xff]
  %v9102 = vld [vmem:[%s10 + $0x8a0] sm:$0xff]
  %v9103 = vld [vmem:[%s10 + $0x8a8] sm:$0xff]
  %v9104 = vld [vmem:[%s10 + $0x8b0] sm:$0xff]
  %v9105 = vld [vmem:[%s10 + $0x8b8] sm:$0xff]
  %v9106 = vld [vmem:[%s10 + $0x8c0] sm:$0xff]
  %v9107 = vld [vmem:[%s10 + $0x8c8] sm:$0xff]
  %v9108 = vld [vmem:[%s10 + $0x8d0] sm:$0xff]
  %v9109 = vld [vmem:[%s10 + $0x8d8] sm:$0xff]
  %v9110 = vld [vmem:[%s10 + $0x8e0] sm:$0xff]
  %v9111 = vld [vmem:[%s10 + $0x8e8] sm:$0xff]
  %v9112 = vld [vmem:[%s10 + $0x8f0] sm:$0xff]
  %v9113 = vld [vmem:[%s10 + $0x8f8] sm:$0xff]
  %v9114 = vld [vmem:[%s10 + $0x900] sm:$0xff]
  %v9115 = vld [vmem:[%s10 + $0x908] sm:$0xff]
  %v9116 = vld [vmem:[%s10 + $0x910] sm:$0xff]
  %v9117 = vld [vmem:[%s10 + $0x918] sm:$0xff]
  %v9118 = vld [vmem:[%s10 + $0x920] sm:$0xff]
  %v9119 = vld [vmem:[%s10 + $0x928] sm:$0xff]
  %v9120 = vld [vmem:[%s10 + $0x930] sm:$0xff]
  %v9121 = vld [vmem:[%s10 + $0x938] sm:$0xff]
  %v9122 = vld [vmem:[%s10 + $0x940] sm:$0xff]
  %v9123 = vld [vmem:[%s10 + $0x948] sm:$0xff]
  %v9124 = vld [vmem:[%s10 + $0x950] sm:$0xff]
  %v9125 = vld [vmem:[%s10 + $0x958] sm:$0xff]
  %v9126 = vld [vmem:[%s10 + $0x960] sm:$0xff]
  %v9127 = vld [vmem:[%s10 + $0x968] sm:$0xff]
  %v9128 = vld [vmem:[%s10 + $0x970] sm:$0xff]
  %v9129 = vld [vmem:[%s10 + $0x978] sm:$0xff]
  %v9130 = vld [vmem:[%s10 + $0x980] sm:$0xff]
  %v9131 = vld [vmem:[%s10 + $0x988] sm:$0xff]
  %v9132 = vld [vmem:[%s10 + $0x990] sm:$0xff]
  %v9133 = vld [vmem:[%s10 + $0x998] sm:$0xff]
  %v9134 = vld [vmem:[%s10 + $0x9a0] sm:$0xff]
  %v9135 = vld [vmem:[%s10 + $0x9a8] sm:$0xff]
  %v9136 = vld [vmem:[%s10 + $0x9b0] sm:$0xff]
  %v9137 = vld [vmem:[%s10 + $0x9b8] sm:$0xff]
  %v9138 = vld [vmem:[%s10 + $0x9c0] sm:$0xff]
  %v9139 = vld [vmem:[%s10 + $0x9c8] sm:$0xff]
  %v9140 = vld [vmem:[%s10 + $0x9d0] sm:$0xff]
  %v9141 = vld [vmem:[%s10 + $0x9d8] sm:$0xff]
  %v9142 = vld [vmem:[%s10 + $0x9e0] sm:$0xff]
  %v9143 = vld [vmem:[%s10 + $0x9e8] sm:$0xff]
  %v9144 = vld [vmem:[%s10 + $0x9f0] sm:$0xff]
  %v9145 = vld [vmem:[%s10 + $0x9f8] sm:$0xff]
  %v9146 = vld [vmem:[%s10 + $0xa00] sm:$0xff]
  %v9147 = vld [vmem:[%s10 + $0xa08] sm:$0xff]
  %v9148 = vld [vmem:[%s10 + $0xa10] sm:$0xff]
  %v9149 = vld [vmem:[%s10 + $0xa18] sm:$0xff]
  %v9150 = vld [vmem:[%s10 + $0xa20] sm:$0xff]
  %v9151 = vld [vmem:[%s10 + $0xa28] sm:$0xff]
  %v9152 = vld [vmem:[%s10 + $0xa30] sm:$0xff]
  %v9153 = vld [vmem:[%s10 + $0xa38] sm:$0xff]
  %v9154 = vld [vmem:[%s10 + $0xa40] sm:$0xff]
  %v9155 = vld [vmem:[%s10 + $0xa48] sm:$0xff]
  %v9156 = vld [vmem:[%s10 + $0xa50] sm:$0xff]
  %v9157 = vld [vmem:[%s10 + $0xa58] sm:$0xff]
  %v9158 = vld [vmem:[%s10 + $0xa60] sm:$0xff]
  %v9159 = vld [vmem:[%s10 + $0xa68] sm:$0xff]
  %v9160 = vld [vmem:[%s10 + $0xa70] sm:$0xff]
  %v9161 = vld [vmem:[%s10 + $0xa78] sm:$0xff]
  %v9162 = vld [vmem:[%s10 + $0xa80] sm:$0xff]
  %v9163 = vld [vmem:[%s10 + $0xa88] sm:$0xff]
  %v9164 = vld [vmem:[%s10 + $0xa90] sm:$0xff]
  %v9165 = vld [vmem:[%s10 + $0xa98] sm:$0xff]
  %v9166 = vld [vmem:[%s10 + $0xaa0] sm:$0xff]
  %v9167 = vld [vmem:[%s10 + $0xaa8] sm:$0xff]
  %v9168 = vld [vmem:[%s10 + $0xab0] sm:$0xff]
  %v9169 = vld [vmem:[%s10 + $0xab8] sm:$0xff]
  %v9170 = vld [vmem:[%s10 + $0xac0] sm:$0xff]
  %v9171 = vld [vmem:[%s10 + $0xac8] sm:$0xff]
  %v9172 = vld [vmem:[%s10 + $0xad0] sm:$0xff]
  %v9173 = vld [vmem:[%s10 + $0xad8] sm:$0xff]
  %v9174 = vld [vmem:[%s10 + $0xae0] sm:$0xff]
  %v9175 = vld [vmem:[%s10 + $0xae8] sm:$0xff]
  %v9176 = vld [vmem:[%s10 + $0xaf0] sm:$0xff]
  %v9177 = vld [vmem:[%s10 + $0xaf8] sm:$0xff]
  %v9178 = vld [vmem:[%s10 + $0xb00] sm:$0xff]
  %v9179 = vld [vmem:[%s10 + $0xb08] sm:$0xff]
  %v9180 = vld [vmem:[%s10 + $0xb10] sm:$0xff]
  %v9181 = vld [vmem:[%s10 + $0xb18] sm:$0xff]
  %v9182 = vld [vmem:[%s10 + $0xb20] sm:$0xff]
  %v9183 = vld [vmem:[%s10 + $0xb28] sm:$0xff]
  %v9184 = vld [vmem:[%s10 + $0xb30] sm:$0xff]
  %v9185 = vld [vmem:[%s10 + $0xb38] sm:$0xff]
  %v9186 = vld [vmem:[%s10 + $0xb40] sm:$0xff]
  %v9187 = vld [vmem:[%s10 + $0xb48] sm:$0xff]
  %v9188 = vld [vmem:[%s10 + $0xb50] sm:$0xff]
  %v9189 = vld [vmem:[%s10 + $0xb58] sm:$0xff]
  %v9190 = vld [vmem:[%s10 + $0xb60] sm:$0xff]
  %v9191 = vld [vmem:[%s10 + $0xb68] sm:$0xff]
  %v9192 = vld [vmem:[%s10 + $0xb70] sm:$0xff]
  %v9193 = vld [vmem:[%s10 + $0xb78] sm:$0xff]
  %v9194 = vld [vmem:[%s10 + $0xb80] sm:$0xff]
  %v9195 = vld [vmem:[%s10 + $0xb88] sm:$0xff]
  %v9196 = vld [vmem:[%s10 + $0xb90] sm:$0xff]
  %v9197 = vld [vmem:[%s10 + $0xb98] sm:$0xff]
  %v9198 = vld [vmem:[%s10 + $0xba0] sm:$0xff]
  %v9199 = vld [vmem:[%s10 + $0xba8] sm:$0xff]
  %v9200 = vld [vmem:[%s10 + $0xbb0] sm:$0xff]
  %v9201 = vld [vmem:[%s10 + $0xbb8] sm:$0xff]
  %v9202 = vld [vmem:[%s10 + $0xbc0] sm:$0xff]
  %v9203 = vld [vmem:[%s10 + $0xbc8] sm:$0xff]
  %v9204 = vld [vmem:[%s10 + $0xbd0] sm:$0xff]
  %v9205 = vld [vmem:[%s10 + $0xbd8] sm:$0xff]
  %v9206 = vld [vmem:[%s10 + $0xbe0] sm:$0xff]
  %v9207 = vld [vmem:[%s10 + $0xbe8] sm:$0xff]
  %v9208 = vld [vmem:[%s10 + $0xbf0] sm:$0xff]
  %v9209 = vld [vmem:[%s10 + $0xbf8] sm:$0xff]
  %v9210 = vld [vmem:[%s10 + $0xc00] sm:$0xff]
  %v9211 = vld [vmem:[%s10 + $0xc08] sm:$0xff]
  %v9212 = vld [vmem:[%s10 + $0xc10] sm:$0xff]
  %v9213 = vld [vmem:[%s10 + $0xc18] sm:$0xff]
  %v9214 = vld [vmem:[%s10 + $0xc20] sm:$0xff]
  %v9215 = vld [vmem:[%s10 + $0xc28] sm:$0xff]
  %v9216 = vld [vmem:[%s10 + $0xc30] sm:$0xff]
  %v9217 = vld [vmem:[%s10 + $0xc38] sm:$0xff]
  %v9218 = vld [vmem:[%s10 + $0xc40] sm:$0xff]
  %v9219 = vld [vmem:[%s10 + $0xc48] sm:$0xff]
  %v9220 = vld [vmem:[%s10 + $0xc50] sm:$0xff]
  %v9221 = vld [vmem:[%s10 + $0xc58] sm:$0xff]
  %v9222 = vld [vmem:[%s10 + $0xc60] sm:$0xff]
  %v9223 = vld [vmem:[%s10 + $0xc68] sm:$0xff]
  %v9224 = vld [vmem:[%s10 + $0xc70] sm:$0xff]
  %v9225 = vld [vmem:[%s10 + $0xc78] sm:$0xff]
  %v9226 = vld [vmem:[%s10 + $0xc80] sm:$0xff]
  %v9227 = vld [vmem:[%s10 + $0xc88] sm:$0xff]
  %v9228 = vld [vmem:[%s10 + $0xc90] sm:$0xff]
  %v9229 = vld [vmem:[%s10 + $0xc98] sm:$0xff]
  %v9230 = vld [vmem:[%s10 + $0xca0] sm:$0xff]
  %v9231 = vld [vmem:[%s10 + $0xca8] sm:$0xff]
  %v9232 = vld [vmem:[%s10 + $0xcb0] sm:$0xff]
  %v9233 = vld [vmem:[%s10 + $0xcb8] sm:$0xff]
  %v9234 = vld [vmem:[%s10 + $0xcc0] sm:$0xff]
  %v9235 = vld [vmem:[%s10 + $0xcc8] sm:$0xff]
  %v9236 = vld [vmem:[%s10 + $0xcd0] sm:$0xff]
  %v9237 = vld [vmem:[%s10 + $0xcd8] sm:$0xff]
  %v9238 = vld [vmem:[%s10 + $0xce0] sm:$0xff]
  %v9239 = vld [vmem:[%s10 + $0xce8] sm:$0xff]
  %v9240 = vld [vmem:[%s10 + $0xcf0] sm:$0xff]
  %v9241 = vld [vmem:[%s10 + $0xcf8] sm:$0xff]
  %v9242 = vld [vmem:[%s10 + $0xd00] sm:$0xff]
  %v9243 = vld [vmem:[%s10 + $0xd08] sm:$0xff]
  %v9244 = vld [vmem:[%s10 + $0xd10] sm:$0xff]
  %v9245 = vld [vmem:[%s10 + $0xd18] sm:$0xff]
  %v9246 = vld [vmem:[%s10 + $0xd20] sm:$0xff]
  %v9247 = vld [vmem:[%s10 + $0xd28] sm:$0xff]
  %v9248 = vld [vmem:[%s10 + $0xd30] sm:$0xff]
  %v9249 = vld [vmem:[%s10 + $0xd38] sm:$0xff]
  %v9250 = vld [vmem:[%s10 + $0xd40] sm:$0xff]
  %v9251 = vld [vmem:[%s10 + $0xd48] sm:$0xff]
  %v9252 = vld [vmem:[%s10 + $0xd50] sm:$0xff]
  %v9253 = vld [vmem:[%s10 + $0xd58] sm:$0xff]
  %v9254 = vld [vmem:[%s10 + $0xd60] sm:$0xff]
  %v9255 = vld [vmem:[%s10 + $0xd68] sm:$0xff]
  %v9256 = vld [vmem:[%s10 + $0xd70] sm:$0xff]
  %v9257 = vld [vmem:[%s10 + $0xd78] sm:$0xff]
  %v9258 = vld [vmem:[%s10 + $0xd80] sm:$0xff]
  %v9259 = vld [vmem:[%s10 + $0xd88] sm:$0xff]
  %v9260 = vld [vmem:[%s10 + $0xd90] sm:$0xff]
  %v9261 = vld [vmem:[%s10 + $0xd98] sm:$0xff]
  %v9262 = vld [vmem:[%s10 + $0xda0] sm:$0xff]
  %v9263 = vld [vmem:[%s10 + $0xda8] sm:$0xff]
  %v9264 = vld [vmem:[%s10 + $0xdb0] sm:$0xff]
  %v9265 = vld [vmem:[%s10 + $0xdb8] sm:$0xff]
  %v9266 = vld [vmem:[%s10 + $0xdc0] sm:$0xff]
  %v9267 = vld [vmem:[%s10 + $0xdc8] sm:$0xff]
  %v9268 = vld [vmem:[%s10 + $0xdd0] sm:$0xff]
  %v9269 = vld [vmem:[%s10 + $0xdd8] sm:$0xff]
  %v9270 = vld [vmem:[%s10 + $0xde0] sm:$0xff]
  %v9271 = vld [vmem:[%s10 + $0xde8] sm:$0xff]
  %v9272 = vld [vmem:[%s10 + $0xdf0] sm:$0xff]
  %v9273 = vld [vmem:[%s10 + $0xdf8] sm:$0xff]
  %v9274 = vld [vmem:[%s10 + $0xe00] sm:$0xff]
  %v9275 = vld [vmem:[%s10 + $0xe08] sm:$0xff]
  %v9276 = vld [vmem:[%s10 + $0xe10] sm:$0xff]
  %v9277 = vld [vmem:[%s10 + $0xe18] sm:$0xff]
  %v9278 = vld [vmem:[%s10 + $0xe20] sm:$0xff]
  %v9279 = vld [vmem:[%s10 + $0xe28] sm:$0xff]
  %v9280 = vld [vmem:[%s10 + $0xe30] sm:$0xff]
  %v9281 = vld [vmem:[%s10 + $0xe38] sm:$0xff]
  %v9282 = vld [vmem:[%s10 + $0xe40] sm:$0xff]
  %v9283 = vld [vmem:[%s10 + $0xe48] sm:$0xff]
  %v9284 = vld [vmem:[%s10 + $0xe50] sm:$0xff]
  %v9285 = vld [vmem:[%s10 + $0xe58] sm:$0xff]
  %v9286 = vld [vmem:[%s10 + $0xe60] sm:$0xff]
  %v9287 = vld [vmem:[%s10 + $0xe68] sm:$0xff]
  %v9288 = vld [vmem:[%s10 + $0xe70] sm:$0xff]
  %v9289 = vld [vmem:[%s10 + $0xe78] sm:$0xff]
  %v9290 = vld [vmem:[%s10 + $0xe80] sm:$0xff]
  %v9291 = vld [vmem:[%s10 + $0xe88] sm:$0xff]
  %v9292 = vld [vmem:[%s10 + $0xe90] sm:$0xff]
  %v9293 = vld [vmem:[%s10 + $0xe98] sm:$0xff]
  %v9294 = vld [vmem:[%s10 + $0xea0] sm:$0xff]
  %v9295 = vld [vmem:[%s10 + $0xea8] sm:$0xff]
  %v9296 = vld [vmem:[%s10 + $0xeb0] sm:$0xff]
  %v9297 = vld [vmem:[%s10 + $0xeb8] sm:$0xff]
  %v9298 = vld [vmem:[%s10 + $0xec0] sm:$0xff]
  %v9299 = vld [vmem:[%s10 + $0xec8] sm:$0xff]
  %v9300 = vld [vmem:[%s10 + $0xed0] sm:$0xff]
  %v9301 = vld [vmem:[%s10 + $0xed8] sm:$0xff]
  %v9302 = vld [vmem:[%s10 + $0xee0] sm:$0xff]
  %v9303 = vld [vmem:[%s10 + $0xee8] sm:$0xff]
  %v9304 = vld [vmem:[%s10 + $0xef0] sm:$0xff]
  %v9305 = vld [vmem:[%s10 + $0xef8] sm:$0xff]
  %v9306 = vld [vmem:[%s10 + $0xf00] sm:$0xff]
  %v9307 = vld [vmem:[%s10 + $0xf08] sm:$0xff]
  %v9308 = vld [vmem:[%s10 + $0xf10] sm:$0xff]
  %v9309 = vld [vmem:[%s10 + $0xf18] sm:$0xff]
  %v9310 = vld [vmem:[%s10 + $0xf20] sm:$0xff]
  %v9311 = vld [vmem:[%s10 + $0xf28] sm:$0xff]
  %v9312 = vld [vmem:[%s10 + $0xf30] sm:$0xff]
  %v9313 = vld [vmem:[%s10 + $0xf38] sm:$0xff]
  %v9314 = vld [vmem:[%s10 + $0xf40] sm:$0xff]
  %v9315 = vld [vmem:[%s10 + $0xf48] sm:$0xff]
  %v9316 = vld [vmem:[%s10 + $0xf50] sm:$0xff]
  %v9317 = vld [vmem:[%s10 + $0xf58] sm:$0xff]
  %v9318 = vld [vmem:[%s10 + $0xf60] sm:$0xff]
  %v9319 = vld [vmem:[%s10 + $0xf68] sm:$0xff]
  %v9320 = vld [vmem:[%s10 + $0xf70] sm:$0xff]
  %v9321 = vld [vmem:[%s10 + $0xf78] sm:$0xff]
  %v9322 = vld [vmem:[%s10 + $0xf80] sm:$0xff]
  %v9323 = vld [vmem:[%s10 + $0xf88] sm:$0xff]
  %v9324 = vld [vmem:[%s10 + $0xf90] sm:$0xff]
  %v9325 = vld [vmem:[%s10 + $0xf98] sm:$0xff]
  %v9326 = vld [vmem:[%s10 + $0xfa0] sm:$0xff]
  %v9327 = vld [vmem:[%s10 + $0xfa8] sm:$0xff]
  %v9328 = vld [vmem:[%s10 + $0xfb0] sm:$0xff]
  %v9329 = vld [vmem:[%s10 + $0xfb8] sm:$0xff]
  %v9330 = vld [vmem:[%s10 + $0xfc0] sm:$0xff]
  %v9331 = vld [vmem:[%s10 + $0xfc8] sm:$0xff]
  %v9332 = vld [vmem:[%s10 + $0xfd0] sm:$0xff]
  %v9333 = vld [vmem:[%s10 + $0xfd8] sm:$0xff]
  %v9334 = vld [vmem:[%s10 + $0xfe0] sm:$0xff]
  %v9335 = vld [vmem:[%s10 + $0xfe8] sm:$0xff]
  %v9336 = vld [vmem:[%s10 + $0xff0] sm:$0xff]
  %v9337 = vld [vmem:[%s10 + $0xff8] sm:$0xff]
  %v9338 = vld [vmem:[%s11] sm:$0xff]
  %v9340 = vlaneseq
  %v9341 = vshrl.u32 %v9340, 7
  %v9342 = vsub.s32 0, %v9341
  %v9343 = vrot.slane %v9338, %v9342
  %v9344 = vlaneseq
  %v9345 = vshrl.u32 %v9344, 7
  %v9346 = vsub.s32 1, %v9345
  %v9347 = vrot.slane %v9338, %v9346
  %v9348 = vlaneseq
  %v9349 = vshrl.u32 %v9348, 7
  %v9350 = vsub.s32 2, %v9349
  %v9351 = vrot.slane %v9338, %v9350
  %v9352 = vlaneseq
  %v9353 = vshrl.u32 %v9352, 7
  %v9354 = vsub.s32 3, %v9353
  %v9355 = vrot.slane %v9338, %v9354
  %v9356 = vlaneseq
  %v9357 = vshrl.u32 %v9356, 7
  %v9358 = vsub.s32 4, %v9357
  %v9359 = vrot.slane %v9338, %v9358
  %v9360 = vlaneseq
  %v9361 = vshrl.u32 %v9360, 7
  %v9362 = vsub.s32 5, %v9361
  %v9363 = vrot.slane %v9338, %v9362
  %v9364 = vlaneseq
  %v9365 = vshrl.u32 %v9364, 7
  %v9366 = vsub.s32 6, %v9365
  %v9367 = vrot.slane %v9338, %v9366
  %v9368 = vlaneseq
  %v9369 = vshrl.u32 %v9368, 7
  %v9370 = vsub.s32 7, %v9369
  %v9371 = vrot.slane %v9338, %v9370
  %v9892 = vunpack.c.l.b16 %v8826
  %v9893 = vunpack.c.h.b16 %v8826
  %v9894 = vunpack.c.l.b16 %v8827
  %v9895 = vunpack.c.h.b16 %v8827
  %v9896 = vunpack.c.l.b16 %v8828
  %v9897 = vunpack.c.h.b16 %v8828
  %v9898 = vunpack.c.l.b16 %v8829
  %v9899 = vunpack.c.h.b16 %v8829
  %v9900 = vunpack.c.l.b16 %v8830
  %v9901 = vunpack.c.h.b16 %v8830
  %v9902 = vunpack.c.l.b16 %v8831
  %v9903 = vunpack.c.h.b16 %v8831
  %v9904 = vunpack.c.l.b16 %v8832
  %v9905 = vunpack.c.h.b16 %v8832
  %v9906 = vunpack.c.l.b16 %v8833
  %v9907 = vunpack.c.h.b16 %v8833
  %v9908 = vunpack.c.l.b16 %v8834
  %v9909 = vunpack.c.h.b16 %v8834
  %v9910 = vunpack.c.l.b16 %v8835
  %v9911 = vunpack.c.h.b16 %v8835
  %v9912 = vunpack.c.l.b16 %v8836
  %v9913 = vunpack.c.h.b16 %v8836
  %v9914 = vunpack.c.l.b16 %v8837
  %v9915 = vunpack.c.h.b16 %v8837
  %v9916 = vunpack.c.l.b16 %v8838
  %v9917 = vunpack.c.h.b16 %v8838
  %v9918 = vunpack.c.l.b16 %v8839
  %v9919 = vunpack.c.h.b16 %v8839
  %v9920 = vunpack.c.l.b16 %v8840
  %v9921 = vunpack.c.h.b16 %v8840
  %v9922 = vunpack.c.l.b16 %v8841
  %v9923 = vunpack.c.h.b16 %v8841
  %v9924 = vunpack.c.l.b16 %v8842
  %v9925 = vunpack.c.h.b16 %v8842
  %v9926 = vunpack.c.l.b16 %v8843
  %v9927 = vunpack.c.h.b16 %v8843
  %v9928 = vunpack.c.l.b16 %v8844
  %v9929 = vunpack.c.h.b16 %v8844
  %v9930 = vunpack.c.l.b16 %v8845
  %v9931 = vunpack.c.h.b16 %v8845
  %v9932 = vunpack.c.l.b16 %v8846
  %v9933 = vunpack.c.h.b16 %v8846
  %v9934 = vunpack.c.l.b16 %v8847
  %v9935 = vunpack.c.h.b16 %v8847
  %v9936 = vunpack.c.l.b16 %v8848
  %v9937 = vunpack.c.h.b16 %v8848
  %v9938 = vunpack.c.l.b16 %v8849
  %v9939 = vunpack.c.h.b16 %v8849
  %v9940 = vunpack.c.l.b16 %v8850
  %v9941 = vunpack.c.h.b16 %v8850
  %v9942 = vunpack.c.l.b16 %v8851
  %v9943 = vunpack.c.h.b16 %v8851
  %v9944 = vunpack.c.l.b16 %v8852
  %v9945 = vunpack.c.h.b16 %v8852
  %v9946 = vunpack.c.l.b16 %v8853
  %v9947 = vunpack.c.h.b16 %v8853
  %v9948 = vunpack.c.l.b16 %v8854
  %v9949 = vunpack.c.h.b16 %v8854
  %v9950 = vunpack.c.l.b16 %v8855
  %v9951 = vunpack.c.h.b16 %v8855
  %v9952 = vunpack.c.l.b16 %v8856
  %v9953 = vunpack.c.h.b16 %v8856
  %v9954 = vunpack.c.l.b16 %v8857
  %v9955 = vunpack.c.h.b16 %v8857
  %v9956 = vunpack.c.l.b16 %v8858
  %v9957 = vunpack.c.h.b16 %v8858
  %v9958 = vunpack.c.l.b16 %v8859
  %v9959 = vunpack.c.h.b16 %v8859
  %v9960 = vunpack.c.l.b16 %v8860
  %v9961 = vunpack.c.h.b16 %v8860
  %v9962 = vunpack.c.l.b16 %v8861
  %v9963 = vunpack.c.h.b16 %v8861
  %v9964 = vunpack.c.l.b16 %v8862
  %v9965 = vunpack.c.h.b16 %v8862
  %v9966 = vunpack.c.l.b16 %v8863
  %v9967 = vunpack.c.h.b16 %v8863
  %v9968 = vunpack.c.l.b16 %v8864
  %v9969 = vunpack.c.h.b16 %v8864
  %v9970 = vunpack.c.l.b16 %v8865
  %v9971 = vunpack.c.h.b16 %v8865
  %v9972 = vunpack.c.l.b16 %v8866
  %v9973 = vunpack.c.h.b16 %v8866
  %v9974 = vunpack.c.l.b16 %v8867
  %v9975 = vunpack.c.h.b16 %v8867
  %v9976 = vunpack.c.l.b16 %v8868
  %v9977 = vunpack.c.h.b16 %v8868
  %v9978 = vunpack.c.l.b16 %v8869
  %v9979 = vunpack.c.h.b16 %v8869
  %v9980 = vunpack.c.l.b16 %v8870
  %v9981 = vunpack.c.h.b16 %v8870
  %v9982 = vunpack.c.l.b16 %v8871
  %v9983 = vunpack.c.h.b16 %v8871
  %v9984 = vunpack.c.l.b16 %v8872
  %v9985 = vunpack.c.h.b16 %v8872
  %v9986 = vunpack.c.l.b16 %v8873
  %v9987 = vunpack.c.h.b16 %v8873
  %v9988 = vunpack.c.l.b16 %v8874
  %v9989 = vunpack.c.h.b16 %v8874
  %v9990 = vunpack.c.l.b16 %v8875
  %v9991 = vunpack.c.h.b16 %v8875
  %v9992 = vunpack.c.l.b16 %v8876
  %v9993 = vunpack.c.h.b16 %v8876
  %v9994 = vunpack.c.l.b16 %v8877
  %v9995 = vunpack.c.h.b16 %v8877
  %v9996 = vunpack.c.l.b16 %v8878
  %v9997 = vunpack.c.h.b16 %v8878
  %v9998 = vunpack.c.l.b16 %v8879
  %v9999 = vunpack.c.h.b16 %v8879
  %v10000 = vunpack.c.l.b16 %v8880
  %v10001 = vunpack.c.h.b16 %v8880
  %v10002 = vunpack.c.l.b16 %v8881
  %v10003 = vunpack.c.h.b16 %v8881
  %v10004 = vunpack.c.l.b16 %v8882
  %v10005 = vunpack.c.h.b16 %v8882
  %v10006 = vunpack.c.l.b16 %v8883
  %v10007 = vunpack.c.h.b16 %v8883
  %v10008 = vunpack.c.l.b16 %v8884
  %v10009 = vunpack.c.h.b16 %v8884
  %v10010 = vunpack.c.l.b16 %v8885
  %v10011 = vunpack.c.h.b16 %v8885
  %v10012 = vunpack.c.l.b16 %v8886
  %v10013 = vunpack.c.h.b16 %v8886
  %v10014 = vunpack.c.l.b16 %v8887
  %v10015 = vunpack.c.h.b16 %v8887
  %v10016 = vunpack.c.l.b16 %v8888
  %v10017 = vunpack.c.h.b16 %v8888
  %v10018 = vunpack.c.l.b16 %v8889
  %v10019 = vunpack.c.h.b16 %v8889
  %v10020 = vunpack.c.l.b16 %v8890
  %v10021 = vunpack.c.h.b16 %v8890
  %v10022 = vunpack.c.l.b16 %v8891
  %v10023 = vunpack.c.h.b16 %v8891
  %v10024 = vunpack.c.l.b16 %v8892
  %v10025 = vunpack.c.h.b16 %v8892
  %v10026 = vunpack.c.l.b16 %v8893
  %v10027 = vunpack.c.h.b16 %v8893
  %v10028 = vunpack.c.l.b16 %v8894
  %v10029 = vunpack.c.h.b16 %v8894
  %v10030 = vunpack.c.l.b16 %v8895
  %v10031 = vunpack.c.h.b16 %v8895
  %v10032 = vunpack.c.l.b16 %v8896
  %v10033 = vunpack.c.h.b16 %v8896
  %v10034 = vunpack.c.l.b16 %v8897
  %v10035 = vunpack.c.h.b16 %v8897
  %v10036 = vunpack.c.l.b16 %v8898
  %v10037 = vunpack.c.h.b16 %v8898
  %v10038 = vunpack.c.l.b16 %v8899
  %v10039 = vunpack.c.h.b16 %v8899
  %v10040 = vunpack.c.l.b16 %v8900
  %v10041 = vunpack.c.h.b16 %v8900
  %v10042 = vunpack.c.l.b16 %v8901
  %v10043 = vunpack.c.h.b16 %v8901
  %v10044 = vunpack.c.l.b16 %v8902
  %v10045 = vunpack.c.h.b16 %v8902
  %v10046 = vunpack.c.l.b16 %v8903
  %v10047 = vunpack.c.h.b16 %v8903
  %v10048 = vunpack.c.l.b16 %v8904
  %v10049 = vunpack.c.h.b16 %v8904
  %v10050 = vunpack.c.l.b16 %v8905
  %v10051 = vunpack.c.h.b16 %v8905
  %v10052 = vunpack.c.l.b16 %v8906
  %v10053 = vunpack.c.h.b16 %v8906
  %v10054 = vunpack.c.l.b16 %v8907
  %v10055 = vunpack.c.h.b16 %v8907
  %v10056 = vunpack.c.l.b16 %v8908
  %v10057 = vunpack.c.h.b16 %v8908
  %v10058 = vunpack.c.l.b16 %v8909
  %v10059 = vunpack.c.h.b16 %v8909
  %v10060 = vunpack.c.l.b16 %v8910
  %v10061 = vunpack.c.h.b16 %v8910
  %v10062 = vunpack.c.l.b16 %v8911
  %v10063 = vunpack.c.h.b16 %v8911
  %v10064 = vunpack.c.l.b16 %v8912
  %v10065 = vunpack.c.h.b16 %v8912
  %v10066 = vunpack.c.l.b16 %v8913
  %v10067 = vunpack.c.h.b16 %v8913
  %v10068 = vunpack.c.l.b16 %v8914
  %v10069 = vunpack.c.h.b16 %v8914
  %v10070 = vunpack.c.l.b16 %v8915
  %v10071 = vunpack.c.h.b16 %v8915
  %v10072 = vunpack.c.l.b16 %v8916
  %v10073 = vunpack.c.h.b16 %v8916
  %v10074 = vunpack.c.l.b16 %v8917
  %v10075 = vunpack.c.h.b16 %v8917
  %v10076 = vunpack.c.l.b16 %v8918
  %v10077 = vunpack.c.h.b16 %v8918
  %v10078 = vunpack.c.l.b16 %v8919
  %v10079 = vunpack.c.h.b16 %v8919
  %v10080 = vunpack.c.l.b16 %v8920
  %v10081 = vunpack.c.h.b16 %v8920
  %v10082 = vunpack.c.l.b16 %v8921
  %v10083 = vunpack.c.h.b16 %v8921
  %v10084 = vunpack.c.l.b16 %v8922
  %v10085 = vunpack.c.h.b16 %v8922
  %v10086 = vunpack.c.l.b16 %v8923
  %v10087 = vunpack.c.h.b16 %v8923
  %v10088 = vunpack.c.l.b16 %v8924
  %v10089 = vunpack.c.h.b16 %v8924
  %v10090 = vunpack.c.l.b16 %v8925
  %v10091 = vunpack.c.h.b16 %v8925
  %v10092 = vunpack.c.l.b16 %v8926
  %v10093 = vunpack.c.h.b16 %v8926
  %v10094 = vunpack.c.l.b16 %v8927
  %v10095 = vunpack.c.h.b16 %v8927
  %v10096 = vunpack.c.l.b16 %v8928
  %v10097 = vunpack.c.h.b16 %v8928
  %v10098 = vunpack.c.l.b16 %v8929
  %v10099 = vunpack.c.h.b16 %v8929
  %v10100 = vunpack.c.l.b16 %v8930
  %v10101 = vunpack.c.h.b16 %v8930
  %v10102 = vunpack.c.l.b16 %v8931
  %v10103 = vunpack.c.h.b16 %v8931
  %v10104 = vunpack.c.l.b16 %v8932
  %v10105 = vunpack.c.h.b16 %v8932
  %v10106 = vunpack.c.l.b16 %v8933
  %v10107 = vunpack.c.h.b16 %v8933
  %v10108 = vunpack.c.l.b16 %v8934
  %v10109 = vunpack.c.h.b16 %v8934
  %v10110 = vunpack.c.l.b16 %v8935
  %v10111 = vunpack.c.h.b16 %v8935
  %v10112 = vunpack.c.l.b16 %v8936
  %v10113 = vunpack.c.h.b16 %v8936
  %v10114 = vunpack.c.l.b16 %v8937
  %v10115 = vunpack.c.h.b16 %v8937
  %v10116 = vunpack.c.l.b16 %v8938
  %v10117 = vunpack.c.h.b16 %v8938
  %v10118 = vunpack.c.l.b16 %v8939
  %v10119 = vunpack.c.h.b16 %v8939
  %v10120 = vunpack.c.l.b16 %v8940
  %v10121 = vunpack.c.h.b16 %v8940
  %v10122 = vunpack.c.l.b16 %v8941
  %v10123 = vunpack.c.h.b16 %v8941
  %v10124 = vunpack.c.l.b16 %v8942
  %v10125 = vunpack.c.h.b16 %v8942
  %v10126 = vunpack.c.l.b16 %v8943
  %v10127 = vunpack.c.h.b16 %v8943
  %v10128 = vunpack.c.l.b16 %v8944
  %v10129 = vunpack.c.h.b16 %v8944
  %v10130 = vunpack.c.l.b16 %v8945
  %v10131 = vunpack.c.h.b16 %v8945
  %v10132 = vunpack.c.l.b16 %v8946
  %v10133 = vunpack.c.h.b16 %v8946
  %v10134 = vunpack.c.l.b16 %v8947
  %v10135 = vunpack.c.h.b16 %v8947
  %v10136 = vunpack.c.l.b16 %v8948
  %v10137 = vunpack.c.h.b16 %v8948
  %v10138 = vunpack.c.l.b16 %v8949
  %v10139 = vunpack.c.h.b16 %v8949
  %v10140 = vunpack.c.l.b16 %v8950
  %v10141 = vunpack.c.h.b16 %v8950
  %v10142 = vunpack.c.l.b16 %v8951
  %v10143 = vunpack.c.h.b16 %v8951
  %v10144 = vunpack.c.l.b16 %v8952
  %v10145 = vunpack.c.h.b16 %v8952
  %v10146 = vunpack.c.l.b16 %v8953
  %v10147 = vunpack.c.h.b16 %v8953
  %v10148 = vunpack.c.l.b16 %v8954
  %v10149 = vunpack.c.h.b16 %v8954
  %v10150 = vunpack.c.l.b16 %v8955
  %v10151 = vunpack.c.h.b16 %v8955
  %v10152 = vunpack.c.l.b16 %v8956
  %v10153 = vunpack.c.h.b16 %v8956
  %v10154 = vunpack.c.l.b16 %v8957
  %v10155 = vunpack.c.h.b16 %v8957
  %v10156 = vunpack.c.l.b16 %v8958
  %v10157 = vunpack.c.h.b16 %v8958
  %v10158 = vunpack.c.l.b16 %v8959
  %v10159 = vunpack.c.h.b16 %v8959
  %v10160 = vunpack.c.l.b16 %v8960
  %v10161 = vunpack.c.h.b16 %v8960
  %v10162 = vunpack.c.l.b16 %v8961
  %v10163 = vunpack.c.h.b16 %v8961
  %v10164 = vunpack.c.l.b16 %v8962
  %v10165 = vunpack.c.h.b16 %v8962
  %v10166 = vunpack.c.l.b16 %v8963
  %v10167 = vunpack.c.h.b16 %v8963
  %v10168 = vunpack.c.l.b16 %v8964
  %v10169 = vunpack.c.h.b16 %v8964
  %v10170 = vunpack.c.l.b16 %v8965
  %v10171 = vunpack.c.h.b16 %v8965
  %v10172 = vunpack.c.l.b16 %v8966
  %v10173 = vunpack.c.h.b16 %v8966
  %v10174 = vunpack.c.l.b16 %v8967
  %v10175 = vunpack.c.h.b16 %v8967
  %v10176 = vunpack.c.l.b16 %v8968
  %v10177 = vunpack.c.h.b16 %v8968
  %v10178 = vunpack.c.l.b16 %v8969
  %v10179 = vunpack.c.h.b16 %v8969
  %v10180 = vunpack.c.l.b16 %v8970
  %v10181 = vunpack.c.h.b16 %v8970
  %v10182 = vunpack.c.l.b16 %v8971
  %v10183 = vunpack.c.h.b16 %v8971
  %v10184 = vunpack.c.l.b16 %v8972
  %v10185 = vunpack.c.h.b16 %v8972
  %v10186 = vunpack.c.l.b16 %v8973
  %v10187 = vunpack.c.h.b16 %v8973
  %v10188 = vunpack.c.l.b16 %v8974
  %v10189 = vunpack.c.h.b16 %v8974
  %v10190 = vunpack.c.l.b16 %v8975
  %v10191 = vunpack.c.h.b16 %v8975
  %v10192 = vunpack.c.l.b16 %v8976
  %v10193 = vunpack.c.h.b16 %v8976
  %v10194 = vunpack.c.l.b16 %v8977
  %v10195 = vunpack.c.h.b16 %v8977
  %v10196 = vunpack.c.l.b16 %v8978
  %v10197 = vunpack.c.h.b16 %v8978
  %v10198 = vunpack.c.l.b16 %v8979
  %v10199 = vunpack.c.h.b16 %v8979
  %v10200 = vunpack.c.l.b16 %v8980
  %v10201 = vunpack.c.h.b16 %v8980
  %v10202 = vunpack.c.l.b16 %v8981
  %v10203 = vunpack.c.h.b16 %v8981
  %v10204 = vunpack.c.l.b16 %v8982
  %v10205 = vunpack.c.h.b16 %v8982
  %v10206 = vunpack.c.l.b16 %v8983
  %v10207 = vunpack.c.h.b16 %v8983
  %v10208 = vunpack.c.l.b16 %v8984
  %v10209 = vunpack.c.h.b16 %v8984
  %v10210 = vunpack.c.l.b16 %v8985
  %v10211 = vunpack.c.h.b16 %v8985
  %v10212 = vunpack.c.l.b16 %v8986
  %v10213 = vunpack.c.h.b16 %v8986
  %v10214 = vunpack.c.l.b16 %v8987
  %v10215 = vunpack.c.h.b16 %v8987
  %v10216 = vunpack.c.l.b16 %v8988
  %v10217 = vunpack.c.h.b16 %v8988
  %v10218 = vunpack.c.l.b16 %v8989
  %v10219 = vunpack.c.h.b16 %v8989
  %v10220 = vunpack.c.l.b16 %v8990
  %v10221 = vunpack.c.h.b16 %v8990
  %v10222 = vunpack.c.l.b16 %v8991
  %v10223 = vunpack.c.h.b16 %v8991
  %v10224 = vunpack.c.l.b16 %v8992
  %v10225 = vunpack.c.h.b16 %v8992
  %v10226 = vunpack.c.l.b16 %v8993
  %v10227 = vunpack.c.h.b16 %v8993
  %v10228 = vunpack.c.l.b16 %v8994
  %v10229 = vunpack.c.h.b16 %v8994
  %v10230 = vunpack.c.l.b16 %v8995
  %v10231 = vunpack.c.h.b16 %v8995
  %v10232 = vunpack.c.l.b16 %v8996
  %v10233 = vunpack.c.h.b16 %v8996
  %v10234 = vunpack.c.l.b16 %v8997
  %v10235 = vunpack.c.h.b16 %v8997
  %v10236 = vunpack.c.l.b16 %v8998
  %v10237 = vunpack.c.h.b16 %v8998
  %v10238 = vunpack.c.l.b16 %v8999
  %v10239 = vunpack.c.h.b16 %v8999
  %v10240 = vunpack.c.l.b16 %v9000
  %v10241 = vunpack.c.h.b16 %v9000
  %v10242 = vunpack.c.l.b16 %v9001
  %v10243 = vunpack.c.h.b16 %v9001
  %v10244 = vunpack.c.l.b16 %v9002
  %v10245 = vunpack.c.h.b16 %v9002
  %v10246 = vunpack.c.l.b16 %v9003
  %v10247 = vunpack.c.h.b16 %v9003
  %v10248 = vunpack.c.l.b16 %v9004
  %v10249 = vunpack.c.h.b16 %v9004
  %v10250 = vunpack.c.l.b16 %v9005
  %v10251 = vunpack.c.h.b16 %v9005
  %v10252 = vunpack.c.l.b16 %v9006
  %v10253 = vunpack.c.h.b16 %v9006
  %v10254 = vunpack.c.l.b16 %v9007
  %v10255 = vunpack.c.h.b16 %v9007
  %v10256 = vunpack.c.l.b16 %v9008
  %v10257 = vunpack.c.h.b16 %v9008
  %v10258 = vunpack.c.l.b16 %v9009
  %v10259 = vunpack.c.h.b16 %v9009
  %v10260 = vunpack.c.l.b16 %v9010
  %v10261 = vunpack.c.h.b16 %v9010
  %v10262 = vunpack.c.l.b16 %v9011
  %v10263 = vunpack.c.h.b16 %v9011
  %v10264 = vunpack.c.l.b16 %v9012
  %v10265 = vunpack.c.h.b16 %v9012
  %v10266 = vunpack.c.l.b16 %v9013
  %v10267 = vunpack.c.h.b16 %v9013
  %v10268 = vunpack.c.l.b16 %v9014
  %v10269 = vunpack.c.h.b16 %v9014
  %v10270 = vunpack.c.l.b16 %v9015
  %v10271 = vunpack.c.h.b16 %v9015
  %v10272 = vunpack.c.l.b16 %v9016
  %v10273 = vunpack.c.h.b16 %v9016
  %v10274 = vunpack.c.l.b16 %v9017
  %v10275 = vunpack.c.h.b16 %v9017
  %v10276 = vunpack.c.l.b16 %v9018
  %v10277 = vunpack.c.h.b16 %v9018
  %v10278 = vunpack.c.l.b16 %v9019
  %v10279 = vunpack.c.h.b16 %v9019
  %v10280 = vunpack.c.l.b16 %v9020
  %v10281 = vunpack.c.h.b16 %v9020
  %v10282 = vunpack.c.l.b16 %v9021
  %v10283 = vunpack.c.h.b16 %v9021
  %v10284 = vunpack.c.l.b16 %v9022
  %v10285 = vunpack.c.h.b16 %v9022
  %v10286 = vunpack.c.l.b16 %v9023
  %v10287 = vunpack.c.h.b16 %v9023
  %v10288 = vunpack.c.l.b16 %v9024
  %v10289 = vunpack.c.h.b16 %v9024
  %v10290 = vunpack.c.l.b16 %v9025
  %v10291 = vunpack.c.h.b16 %v9025
  %v10292 = vunpack.c.l.b16 %v9026
  %v10293 = vunpack.c.h.b16 %v9026
  %v10294 = vunpack.c.l.b16 %v9027
  %v10295 = vunpack.c.h.b16 %v9027
  %v10296 = vunpack.c.l.b16 %v9028
  %v10297 = vunpack.c.h.b16 %v9028
  %v10298 = vunpack.c.l.b16 %v9029
  %v10299 = vunpack.c.h.b16 %v9029
  %v10300 = vunpack.c.l.b16 %v9030
  %v10301 = vunpack.c.h.b16 %v9030
  %v10302 = vunpack.c.l.b16 %v9031
  %v10303 = vunpack.c.h.b16 %v9031
  %v10304 = vunpack.c.l.b16 %v9032
  %v10305 = vunpack.c.h.b16 %v9032
  %v10306 = vunpack.c.l.b16 %v9033
  %v10307 = vunpack.c.h.b16 %v9033
  %v10308 = vunpack.c.l.b16 %v9034
  %v10309 = vunpack.c.h.b16 %v9034
  %v10310 = vunpack.c.l.b16 %v9035
  %v10311 = vunpack.c.h.b16 %v9035
  %v10312 = vunpack.c.l.b16 %v9036
  %v10313 = vunpack.c.h.b16 %v9036
  %v10314 = vunpack.c.l.b16 %v9037
  %v10315 = vunpack.c.h.b16 %v9037
  %v10316 = vunpack.c.l.b16 %v9038
  %v10317 = vunpack.c.h.b16 %v9038
  %v10318 = vunpack.c.l.b16 %v9039
  %v10319 = vunpack.c.h.b16 %v9039
  %v10320 = vunpack.c.l.b16 %v9040
  %v10321 = vunpack.c.h.b16 %v9040
  %v10322 = vunpack.c.l.b16 %v9041
  %v10323 = vunpack.c.h.b16 %v9041
  %v10324 = vunpack.c.l.b16 %v9042
  %v10325 = vunpack.c.h.b16 %v9042
  %v10326 = vunpack.c.l.b16 %v9043
  %v10327 = vunpack.c.h.b16 %v9043
  %v10328 = vunpack.c.l.b16 %v9044
  %v10329 = vunpack.c.h.b16 %v9044
  %v10330 = vunpack.c.l.b16 %v9045
  %v10331 = vunpack.c.h.b16 %v9045
  %v10332 = vunpack.c.l.b16 %v9046
  %v10333 = vunpack.c.h.b16 %v9046
  %v10334 = vunpack.c.l.b16 %v9047
  %v10335 = vunpack.c.h.b16 %v9047
  %v10336 = vunpack.c.l.b16 %v9048
  %v10337 = vunpack.c.h.b16 %v9048
  %v10338 = vunpack.c.l.b16 %v9049
  %v10339 = vunpack.c.h.b16 %v9049
  %v10340 = vunpack.c.l.b16 %v9050
  %v10341 = vunpack.c.h.b16 %v9050
  %v10342 = vunpack.c.l.b16 %v9051
  %v10343 = vunpack.c.h.b16 %v9051
  %v10344 = vunpack.c.l.b16 %v9052
  %v10345 = vunpack.c.h.b16 %v9052
  %v10346 = vunpack.c.l.b16 %v9053
  %v10347 = vunpack.c.h.b16 %v9053
  %v10348 = vunpack.c.l.b16 %v9054
  %v10349 = vunpack.c.h.b16 %v9054
  %v10350 = vunpack.c.l.b16 %v9055
  %v10351 = vunpack.c.h.b16 %v9055
  %v10352 = vunpack.c.l.b16 %v9056
  %v10353 = vunpack.c.h.b16 %v9056
  %v10354 = vunpack.c.l.b16 %v9057
  %v10355 = vunpack.c.h.b16 %v9057
  %v10356 = vunpack.c.l.b16 %v9058
  %v10357 = vunpack.c.h.b16 %v9058
  %v10358 = vunpack.c.l.b16 %v9059
  %v10359 = vunpack.c.h.b16 %v9059
  %v10360 = vunpack.c.l.b16 %v9060
  %v10361 = vunpack.c.h.b16 %v9060
  %v10362 = vunpack.c.l.b16 %v9061
  %v10363 = vunpack.c.h.b16 %v9061
  %v10364 = vunpack.c.l.b16 %v9062
  %v10365 = vunpack.c.h.b16 %v9062
  %v10366 = vunpack.c.l.b16 %v9063
  %v10367 = vunpack.c.h.b16 %v9063
  %v10368 = vunpack.c.l.b16 %v9064
  %v10369 = vunpack.c.h.b16 %v9064
  %v10370 = vunpack.c.l.b16 %v9065
  %v10371 = vunpack.c.h.b16 %v9065
  %v10372 = vunpack.c.l.b16 %v9066
  %v10373 = vunpack.c.h.b16 %v9066
  %v10374 = vunpack.c.l.b16 %v9067
  %v10375 = vunpack.c.h.b16 %v9067
  %v10376 = vunpack.c.l.b16 %v9068
  %v10377 = vunpack.c.h.b16 %v9068
  %v10378 = vunpack.c.l.b16 %v9069
  %v10379 = vunpack.c.h.b16 %v9069
  %v10380 = vunpack.c.l.b16 %v9070
  %v10381 = vunpack.c.h.b16 %v9070
  %v10382 = vunpack.c.l.b16 %v9071
  %v10383 = vunpack.c.h.b16 %v9071
  %v10384 = vunpack.c.l.b16 %v9072
  %v10385 = vunpack.c.h.b16 %v9072
  %v10386 = vunpack.c.l.b16 %v9073
  %v10387 = vunpack.c.h.b16 %v9073
  %v10388 = vunpack.c.l.b16 %v9074
  %v10389 = vunpack.c.h.b16 %v9074
  %v10390 = vunpack.c.l.b16 %v9075
  %v10391 = vunpack.c.h.b16 %v9075
  %v10392 = vunpack.c.l.b16 %v9076
  %v10393 = vunpack.c.h.b16 %v9076
  %v10394 = vunpack.c.l.b16 %v9077
  %v10395 = vunpack.c.h.b16 %v9077
  %v10396 = vunpack.c.l.b16 %v9078
  %v10397 = vunpack.c.h.b16 %v9078
  %v10398 = vunpack.c.l.b16 %v9079
  %v10399 = vunpack.c.h.b16 %v9079
  %v10400 = vunpack.c.l.b16 %v9080
  %v10401 = vunpack.c.h.b16 %v9080
  %v10402 = vunpack.c.l.b16 %v9081
  %v10403 = vunpack.c.h.b16 %v9081
  %v10404 = vunpack.c.l.b16 %v9082
  %v10405 = vunpack.c.h.b16 %v9082
  %v10406 = vunpack.c.l.b16 %v9083
  %v10407 = vunpack.c.h.b16 %v9083
  %v10408 = vunpack.c.l.b16 %v9084
  %v10409 = vunpack.c.h.b16 %v9084
  %v10410 = vunpack.c.l.b16 %v9085
  %v10411 = vunpack.c.h.b16 %v9085
  %v10412 = vunpack.c.l.b16 %v9086
  %v10413 = vunpack.c.h.b16 %v9086
  %v10414 = vunpack.c.l.b16 %v9087
  %v10415 = vunpack.c.h.b16 %v9087
  %v10416 = vunpack.c.l.b16 %v9088
  %v10417 = vunpack.c.h.b16 %v9088
  %v10418 = vunpack.c.l.b16 %v9089
  %v10419 = vunpack.c.h.b16 %v9089
  %v10420 = vunpack.c.l.b16 %v9090
  %v10421 = vunpack.c.h.b16 %v9090
  %v10422 = vunpack.c.l.b16 %v9091
  %v10423 = vunpack.c.h.b16 %v9091
  %v10424 = vunpack.c.l.b16 %v9092
  %v10425 = vunpack.c.h.b16 %v9092
  %v10426 = vunpack.c.l.b16 %v9093
  %v10427 = vunpack.c.h.b16 %v9093
  %v10428 = vunpack.c.l.b16 %v9094
  %v10429 = vunpack.c.h.b16 %v9094
  %v10430 = vunpack.c.l.b16 %v9095
  %v10431 = vunpack.c.h.b16 %v9095
  %v10432 = vunpack.c.l.b16 %v9096
  %v10433 = vunpack.c.h.b16 %v9096
  %v10434 = vunpack.c.l.b16 %v9097
  %v10435 = vunpack.c.h.b16 %v9097
  %v10436 = vunpack.c.l.b16 %v9098
  %v10437 = vunpack.c.h.b16 %v9098
  %v10438 = vunpack.c.l.b16 %v9099
  %v10439 = vunpack.c.h.b16 %v9099
  %v10440 = vunpack.c.l.b16 %v9100
  %v10441 = vunpack.c.h.b16 %v9100
  %v10442 = vunpack.c.l.b16 %v9101
  %v10443 = vunpack.c.h.b16 %v9101
  %v10444 = vunpack.c.l.b16 %v9102
  %v10445 = vunpack.c.h.b16 %v9102
  %v10446 = vunpack.c.l.b16 %v9103
  %v10447 = vunpack.c.h.b16 %v9103
  %v10448 = vunpack.c.l.b16 %v9104
  %v10449 = vunpack.c.h.b16 %v9104
  %v10450 = vunpack.c.l.b16 %v9105
  %v10451 = vunpack.c.h.b16 %v9105
  %v10452 = vunpack.c.l.b16 %v9106
  %v10453 = vunpack.c.h.b16 %v9106
  %v10454 = vunpack.c.l.b16 %v9107
  %v10455 = vunpack.c.h.b16 %v9107
  %v10456 = vunpack.c.l.b16 %v9108
  %v10457 = vunpack.c.h.b16 %v9108
  %v10458 = vunpack.c.l.b16 %v9109
  %v10459 = vunpack.c.h.b16 %v9109
  %v10460 = vunpack.c.l.b16 %v9110
  %v10461 = vunpack.c.h.b16 %v9110
  %v10462 = vunpack.c.l.b16 %v9111
  %v10463 = vunpack.c.h.b16 %v9111
  %v10464 = vunpack.c.l.b16 %v9112
  %v10465 = vunpack.c.h.b16 %v9112
  %v10466 = vunpack.c.l.b16 %v9113
  %v10467 = vunpack.c.h.b16 %v9113
  %v10468 = vunpack.c.l.b16 %v9114
  %v10469 = vunpack.c.h.b16 %v9114
  %v10470 = vunpack.c.l.b16 %v9115
  %v10471 = vunpack.c.h.b16 %v9115
  %v10472 = vunpack.c.l.b16 %v9116
  %v10473 = vunpack.c.h.b16 %v9116
  %v10474 = vunpack.c.l.b16 %v9117
  %v10475 = vunpack.c.h.b16 %v9117
  %v10476 = vunpack.c.l.b16 %v9118
  %v10477 = vunpack.c.h.b16 %v9118
  %v10478 = vunpack.c.l.b16 %v9119
  %v10479 = vunpack.c.h.b16 %v9119
  %v10480 = vunpack.c.l.b16 %v9120
  %v10481 = vunpack.c.h.b16 %v9120
  %v10482 = vunpack.c.l.b16 %v9121
  %v10483 = vunpack.c.h.b16 %v9121
  %v10484 = vunpack.c.l.b16 %v9122
  %v10485 = vunpack.c.h.b16 %v9122
  %v10486 = vunpack.c.l.b16 %v9123
  %v10487 = vunpack.c.h.b16 %v9123
  %v10488 = vunpack.c.l.b16 %v9124
  %v10489 = vunpack.c.h.b16 %v9124
  %v10490 = vunpack.c.l.b16 %v9125
  %v10491 = vunpack.c.h.b16 %v9125
  %v10492 = vunpack.c.l.b16 %v9126
  %v10493 = vunpack.c.h.b16 %v9126
  %v10494 = vunpack.c.l.b16 %v9127
  %v10495 = vunpack.c.h.b16 %v9127
  %v10496 = vunpack.c.l.b16 %v9128
  %v10497 = vunpack.c.h.b16 %v9128
  %v10498 = vunpack.c.l.b16 %v9129
  %v10499 = vunpack.c.h.b16 %v9129
  %v10500 = vunpack.c.l.b16 %v9130
  %v10501 = vunpack.c.h.b16 %v9130
  %v10502 = vunpack.c.l.b16 %v9131
  %v10503 = vunpack.c.h.b16 %v9131
  %v10504 = vunpack.c.l.b16 %v9132
  %v10505 = vunpack.c.h.b16 %v9132
  %v10506 = vunpack.c.l.b16 %v9133
  %v10507 = vunpack.c.h.b16 %v9133
  %v10508 = vunpack.c.l.b16 %v9134
  %v10509 = vunpack.c.h.b16 %v9134
  %v10510 = vunpack.c.l.b16 %v9135
  %v10511 = vunpack.c.h.b16 %v9135
  %v10512 = vunpack.c.l.b16 %v9136
  %v10513 = vunpack.c.h.b16 %v9136
  %v10514 = vunpack.c.l.b16 %v9137
  %v10515 = vunpack.c.h.b16 %v9137
  %v10516 = vunpack.c.l.b16 %v9138
  %v10517 = vunpack.c.h.b16 %v9138
  %v10518 = vunpack.c.l.b16 %v9139
  %v10519 = vunpack.c.h.b16 %v9139
  %v10520 = vunpack.c.l.b16 %v9140
  %v10521 = vunpack.c.h.b16 %v9140
  %v10522 = vunpack.c.l.b16 %v9141
  %v10523 = vunpack.c.h.b16 %v9141
  %v10524 = vunpack.c.l.b16 %v9142
  %v10525 = vunpack.c.h.b16 %v9142
  %v10526 = vunpack.c.l.b16 %v9143
  %v10527 = vunpack.c.h.b16 %v9143
  %v10528 = vunpack.c.l.b16 %v9144
  %v10529 = vunpack.c.h.b16 %v9144
  %v10530 = vunpack.c.l.b16 %v9145
  %v10531 = vunpack.c.h.b16 %v9145
  %v10532 = vunpack.c.l.b16 %v9146
  %v10533 = vunpack.c.h.b16 %v9146
  %v10534 = vunpack.c.l.b16 %v9147
  %v10535 = vunpack.c.h.b16 %v9147
  %v10536 = vunpack.c.l.b16 %v9148
  %v10537 = vunpack.c.h.b16 %v9148
  %v10538 = vunpack.c.l.b16 %v9149
  %v10539 = vunpack.c.h.b16 %v9149
  %v10540 = vunpack.c.l.b16 %v9150
  %v10541 = vunpack.c.h.b16 %v9150
  %v10542 = vunpack.c.l.b16 %v9151
  %v10543 = vunpack.c.h.b16 %v9151
  %v10544 = vunpack.c.l.b16 %v9152
  %v10545 = vunpack.c.h.b16 %v9152
  %v10546 = vunpack.c.l.b16 %v9153
  %v10547 = vunpack.c.h.b16 %v9153
  %v10548 = vunpack.c.l.b16 %v9154
  %v10549 = vunpack.c.h.b16 %v9154
  %v10550 = vunpack.c.l.b16 %v9155
  %v10551 = vunpack.c.h.b16 %v9155
  %v10552 = vunpack.c.l.b16 %v9156
  %v10553 = vunpack.c.h.b16 %v9156
  %v10554 = vunpack.c.l.b16 %v9157
  %v10555 = vunpack.c.h.b16 %v9157
  %v10556 = vunpack.c.l.b16 %v9158
  %v10557 = vunpack.c.h.b16 %v9158
  %v10558 = vunpack.c.l.b16 %v9159
  %v10559 = vunpack.c.h.b16 %v9159
  %v10560 = vunpack.c.l.b16 %v9160
  %v10561 = vunpack.c.h.b16 %v9160
  %v10562 = vunpack.c.l.b16 %v9161
  %v10563 = vunpack.c.h.b16 %v9161
  %v10564 = vunpack.c.l.b16 %v9162
  %v10565 = vunpack.c.h.b16 %v9162
  %v10566 = vunpack.c.l.b16 %v9163
  %v10567 = vunpack.c.h.b16 %v9163
  %v10568 = vunpack.c.l.b16 %v9164
  %v10569 = vunpack.c.h.b16 %v9164
  %v10570 = vunpack.c.l.b16 %v9165
  %v10571 = vunpack.c.h.b16 %v9165
  %v10572 = vunpack.c.l.b16 %v9166
  %v10573 = vunpack.c.h.b16 %v9166
  %v10574 = vunpack.c.l.b16 %v9167
  %v10575 = vunpack.c.h.b16 %v9167
  %v10576 = vunpack.c.l.b16 %v9168
  %v10577 = vunpack.c.h.b16 %v9168
  %v10578 = vunpack.c.l.b16 %v9169
  %v10579 = vunpack.c.h.b16 %v9169
  %v10580 = vunpack.c.l.b16 %v9170
  %v10581 = vunpack.c.h.b16 %v9170
  %v10582 = vunpack.c.l.b16 %v9171
  %v10583 = vunpack.c.h.b16 %v9171
  %v10584 = vunpack.c.l.b16 %v9172
  %v10585 = vunpack.c.h.b16 %v9172
  %v10586 = vunpack.c.l.b16 %v9173
  %v10587 = vunpack.c.h.b16 %v9173
  %v10588 = vunpack.c.l.b16 %v9174
  %v10589 = vunpack.c.h.b16 %v9174
  %v10590 = vunpack.c.l.b16 %v9175
  %v10591 = vunpack.c.h.b16 %v9175
  %v10592 = vunpack.c.l.b16 %v9176
  %v10593 = vunpack.c.h.b16 %v9176
  %v10594 = vunpack.c.l.b16 %v9177
  %v10595 = vunpack.c.h.b16 %v9177
  %v10596 = vunpack.c.l.b16 %v9178
  %v10597 = vunpack.c.h.b16 %v9178
  %v10598 = vunpack.c.l.b16 %v9179
  %v10599 = vunpack.c.h.b16 %v9179
  %v10600 = vunpack.c.l.b16 %v9180
  %v10601 = vunpack.c.h.b16 %v9180
  %v10602 = vunpack.c.l.b16 %v9181
  %v10603 = vunpack.c.h.b16 %v9181
  %v10604 = vunpack.c.l.b16 %v9182
  %v10605 = vunpack.c.h.b16 %v9182
  %v10606 = vunpack.c.l.b16 %v9183
  %v10607 = vunpack.c.h.b16 %v9183
  %v10608 = vunpack.c.l.b16 %v9184
  %v10609 = vunpack.c.h.b16 %v9184
  %v10610 = vunpack.c.l.b16 %v9185
  %v10611 = vunpack.c.h.b16 %v9185
  %v10612 = vunpack.c.l.b16 %v9186
  %v10613 = vunpack.c.h.b16 %v9186
  %v10614 = vunpack.c.l.b16 %v9187
  %v10615 = vunpack.c.h.b16 %v9187
  %v10616 = vunpack.c.l.b16 %v9188
  %v10617 = vunpack.c.h.b16 %v9188
  %v10618 = vunpack.c.l.b16 %v9189
  %v10619 = vunpack.c.h.b16 %v9189
  %v10620 = vunpack.c.l.b16 %v9190
  %v10621 = vunpack.c.h.b16 %v9190
  %v10622 = vunpack.c.l.b16 %v9191
  %v10623 = vunpack.c.h.b16 %v9191
  %v10624 = vunpack.c.l.b16 %v9192
  %v10625 = vunpack.c.h.b16 %v9192
  %v10626 = vunpack.c.l.b16 %v9193
  %v10627 = vunpack.c.h.b16 %v9193
  %v10628 = vunpack.c.l.b16 %v9194
  %v10629 = vunpack.c.h.b16 %v9194
  %v10630 = vunpack.c.l.b16 %v9195
  %v10631 = vunpack.c.h.b16 %v9195
  %v10632 = vunpack.c.l.b16 %v9196
  %v10633 = vunpack.c.h.b16 %v9196
  %v10634 = vunpack.c.l.b16 %v9197
  %v10635 = vunpack.c.h.b16 %v9197
  %v10636 = vunpack.c.l.b16 %v9198
  %v10637 = vunpack.c.h.b16 %v9198
  %v10638 = vunpack.c.l.b16 %v9199
  %v10639 = vunpack.c.h.b16 %v9199
  %v10640 = vunpack.c.l.b16 %v9200
  %v10641 = vunpack.c.h.b16 %v9200
  %v10642 = vunpack.c.l.b16 %v9201
  %v10643 = vunpack.c.h.b16 %v9201
  %v10644 = vunpack.c.l.b16 %v9202
  %v10645 = vunpack.c.h.b16 %v9202
  %v10646 = vunpack.c.l.b16 %v9203
  %v10647 = vunpack.c.h.b16 %v9203
  %v10648 = vunpack.c.l.b16 %v9204
  %v10649 = vunpack.c.h.b16 %v9204
  %v10650 = vunpack.c.l.b16 %v9205
  %v10651 = vunpack.c.h.b16 %v9205
  %v10652 = vunpack.c.l.b16 %v9206
  %v10653 = vunpack.c.h.b16 %v9206
  %v10654 = vunpack.c.l.b16 %v9207
  %v10655 = vunpack.c.h.b16 %v9207
  %v10656 = vunpack.c.l.b16 %v9208
  %v10657 = vunpack.c.h.b16 %v9208
  %v10658 = vunpack.c.l.b16 %v9209
  %v10659 = vunpack.c.h.b16 %v9209
  %v10660 = vunpack.c.l.b16 %v9210
  %v10661 = vunpack.c.h.b16 %v9210
  %v10662 = vunpack.c.l.b16 %v9211
  %v10663 = vunpack.c.h.b16 %v9211
  %v10664 = vunpack.c.l.b16 %v9212
  %v10665 = vunpack.c.h.b16 %v9212
  %v10666 = vunpack.c.l.b16 %v9213
  %v10667 = vunpack.c.h.b16 %v9213
  %v10668 = vunpack.c.l.b16 %v9214
  %v10669 = vunpack.c.h.b16 %v9214
  %v10670 = vunpack.c.l.b16 %v9215
  %v10671 = vunpack.c.h.b16 %v9215
  %v10672 = vunpack.c.l.b16 %v9216
  %v10673 = vunpack.c.h.b16 %v9216
  %v10674 = vunpack.c.l.b16 %v9217
  %v10675 = vunpack.c.h.b16 %v9217
  %v10676 = vunpack.c.l.b16 %v9218
  %v10677 = vunpack.c.h.b16 %v9218
  %v10678 = vunpack.c.l.b16 %v9219
  %v10679 = vunpack.c.h.b16 %v9219
  %v10680 = vunpack.c.l.b16 %v9220
  %v10681 = vunpack.c.h.b16 %v9220
  %v10682 = vunpack.c.l.b16 %v9221
  %v10683 = vunpack.c.h.b16 %v9221
  %v10684 = vunpack.c.l.b16 %v9222
  %v10685 = vunpack.c.h.b16 %v9222
  %v10686 = vunpack.c.l.b16 %v9223
  %v10687 = vunpack.c.h.b16 %v9223
  %v10688 = vunpack.c.l.b16 %v9224
  %v10689 = vunpack.c.h.b16 %v9224
  %v10690 = vunpack.c.l.b16 %v9225
  %v10691 = vunpack.c.h.b16 %v9225
  %v10692 = vunpack.c.l.b16 %v9226
  %v10693 = vunpack.c.h.b16 %v9226
  %v10694 = vunpack.c.l.b16 %v9227
  %v10695 = vunpack.c.h.b16 %v9227
  %v10696 = vunpack.c.l.b16 %v9228
  %v10697 = vunpack.c.h.b16 %v9228
  %v10698 = vunpack.c.l.b16 %v9229
  %v10699 = vunpack.c.h.b16 %v9229
  %v10700 = vunpack.c.l.b16 %v9230
  %v10701 = vunpack.c.h.b16 %v9230
  %v10702 = vunpack.c.l.b16 %v9231
  %v10703 = vunpack.c.h.b16 %v9231
  %v10704 = vunpack.c.l.b16 %v9232
  %v10705 = vunpack.c.h.b16 %v9232
  %v10706 = vunpack.c.l.b16 %v9233
  %v10707 = vunpack.c.h.b16 %v9233
  %v10708 = vunpack.c.l.b16 %v9234
  %v10709 = vunpack.c.h.b16 %v9234
  %v10710 = vunpack.c.l.b16 %v9235
  %v10711 = vunpack.c.h.b16 %v9235
  %v10712 = vunpack.c.l.b16 %v9236
  %v10713 = vunpack.c.h.b16 %v9236
  %v10714 = vunpack.c.l.b16 %v9237
  %v10715 = vunpack.c.h.b16 %v9237
  %v10716 = vunpack.c.l.b16 %v9238
  %v10717 = vunpack.c.h.b16 %v9238
  %v10718 = vunpack.c.l.b16 %v9239
  %v10719 = vunpack.c.h.b16 %v9239
  %v10720 = vunpack.c.l.b16 %v9240
  %v10721 = vunpack.c.h.b16 %v9240
  %v10722 = vunpack.c.l.b16 %v9241
  %v10723 = vunpack.c.h.b16 %v9241
  %v10724 = vunpack.c.l.b16 %v9242
  %v10725 = vunpack.c.h.b16 %v9242
  %v10726 = vunpack.c.l.b16 %v9243
  %v10727 = vunpack.c.h.b16 %v9243
  %v10728 = vunpack.c.l.b16 %v9244
  %v10729 = vunpack.c.h.b16 %v9244
  %v10730 = vunpack.c.l.b16 %v9245
  %v10731 = vunpack.c.h.b16 %v9245
  %v10732 = vunpack.c.l.b16 %v9246
  %v10733 = vunpack.c.h.b16 %v9246
  %v10734 = vunpack.c.l.b16 %v9247
  %v10735 = vunpack.c.h.b16 %v9247
  %v10736 = vunpack.c.l.b16 %v9248
  %v10737 = vunpack.c.h.b16 %v9248
  %v10738 = vunpack.c.l.b16 %v9249
  %v10739 = vunpack.c.h.b16 %v9249
  %v10740 = vunpack.c.l.b16 %v9250
  %v10741 = vunpack.c.h.b16 %v9250
  %v10742 = vunpack.c.l.b16 %v9251
  %v10743 = vunpack.c.h.b16 %v9251
  %v10744 = vunpack.c.l.b16 %v9252
  %v10745 = vunpack.c.h.b16 %v9252
  %v10746 = vunpack.c.l.b16 %v9253
  %v10747 = vunpack.c.h.b16 %v9253
  %v10748 = vunpack.c.l.b16 %v9254
  %v10749 = vunpack.c.h.b16 %v9254
  %v10750 = vunpack.c.l.b16 %v9255
  %v10751 = vunpack.c.h.b16 %v9255
  %v10752 = vunpack.c.l.b16 %v9256
  %v10753 = vunpack.c.h.b16 %v9256
  %v10754 = vunpack.c.l.b16 %v9257
  %v10755 = vunpack.c.h.b16 %v9257
  %v10756 = vunpack.c.l.b16 %v9258
  %v10757 = vunpack.c.h.b16 %v9258
  %v10758 = vunpack.c.l.b16 %v9259
  %v10759 = vunpack.c.h.b16 %v9259
  %v10760 = vunpack.c.l.b16 %v9260
  %v10761 = vunpack.c.h.b16 %v9260
  %v10762 = vunpack.c.l.b16 %v9261
  %v10763 = vunpack.c.h.b16 %v9261
  %v10764 = vunpack.c.l.b16 %v9262
  %v10765 = vunpack.c.h.b16 %v9262
  %v10766 = vunpack.c.l.b16 %v9263
  %v10767 = vunpack.c.h.b16 %v9263
  %v10768 = vunpack.c.l.b16 %v9264
  %v10769 = vunpack.c.h.b16 %v9264
  %v10770 = vunpack.c.l.b16 %v9265
  %v10771 = vunpack.c.h.b16 %v9265
  %v10772 = vunpack.c.l.b16 %v9266
  %v10773 = vunpack.c.h.b16 %v9266
  %v10774 = vunpack.c.l.b16 %v9267
  %v10775 = vunpack.c.h.b16 %v9267
  %v10776 = vunpack.c.l.b16 %v9268
  %v10777 = vunpack.c.h.b16 %v9268
  %v10778 = vunpack.c.l.b16 %v9269
  %v10779 = vunpack.c.h.b16 %v9269
  %v10780 = vunpack.c.l.b16 %v9270
  %v10781 = vunpack.c.h.b16 %v9270
  %v10782 = vunpack.c.l.b16 %v9271
  %v10783 = vunpack.c.h.b16 %v9271
  %v10784 = vunpack.c.l.b16 %v9272
  %v10785 = vunpack.c.h.b16 %v9272
  %v10786 = vunpack.c.l.b16 %v9273
  %v10787 = vunpack.c.h.b16 %v9273
  %v10788 = vunpack.c.l.b16 %v9274
  %v10789 = vunpack.c.h.b16 %v9274
  %v10790 = vunpack.c.l.b16 %v9275
  %v10791 = vunpack.c.h.b16 %v9275
  %v10792 = vunpack.c.l.b16 %v9276
  %v10793 = vunpack.c.h.b16 %v9276
  %v10794 = vunpack.c.l.b16 %v9277
  %v10795 = vunpack.c.h.b16 %v9277
  %v10796 = vunpack.c.l.b16 %v9278
  %v10797 = vunpack.c.h.b16 %v9278
  %v10798 = vunpack.c.l.b16 %v9279
  %v10799 = vunpack.c.h.b16 %v9279
  %v10800 = vunpack.c.l.b16 %v9280
  %v10801 = vunpack.c.h.b16 %v9280
  %v10802 = vunpack.c.l.b16 %v9281
  %v10803 = vunpack.c.h.b16 %v9281
  %v10804 = vunpack.c.l.b16 %v9282
  %v10805 = vunpack.c.h.b16 %v9282
  %v10806 = vunpack.c.l.b16 %v9283
  %v10807 = vunpack.c.h.b16 %v9283
  %v10808 = vunpack.c.l.b16 %v9284
  %v10809 = vunpack.c.h.b16 %v9284
  %v10810 = vunpack.c.l.b16 %v9285
  %v10811 = vunpack.c.h.b16 %v9285
  %v10812 = vunpack.c.l.b16 %v9286
  %v10813 = vunpack.c.h.b16 %v9286
  %v10814 = vunpack.c.l.b16 %v9287
  %v10815 = vunpack.c.h.b16 %v9287
  %v10816 = vunpack.c.l.b16 %v9288
  %v10817 = vunpack.c.h.b16 %v9288
  %v10818 = vunpack.c.l.b16 %v9289
  %v10819 = vunpack.c.h.b16 %v9289
  %v10820 = vunpack.c.l.b16 %v9290
  %v10821 = vunpack.c.h.b16 %v9290
  %v10822 = vunpack.c.l.b16 %v9291
  %v10823 = vunpack.c.h.b16 %v9291
  %v10824 = vunpack.c.l.b16 %v9292
  %v10825 = vunpack.c.h.b16 %v9292
  %v10826 = vunpack.c.l.b16 %v9293
  %v10827 = vunpack.c.h.b16 %v9293
  %v10828 = vunpack.c.l.b16 %v9294
  %v10829 = vunpack.c.h.b16 %v9294
  %v10830 = vunpack.c.l.b16 %v9295
  %v10831 = vunpack.c.h.b16 %v9295
  %v10832 = vunpack.c.l.b16 %v9296
  %v10833 = vunpack.c.h.b16 %v9296
  %v10834 = vunpack.c.l.b16 %v9297
  %v10835 = vunpack.c.h.b16 %v9297
  %v10836 = vunpack.c.l.b16 %v9298
  %v10837 = vunpack.c.h.b16 %v9298
  %v10838 = vunpack.c.l.b16 %v9299
  %v10839 = vunpack.c.h.b16 %v9299
  %v10840 = vunpack.c.l.b16 %v9300
  %v10841 = vunpack.c.h.b16 %v9300
  %v10842 = vunpack.c.l.b16 %v9301
  %v10843 = vunpack.c.h.b16 %v9301
  %v10844 = vunpack.c.l.b16 %v9302
  %v10845 = vunpack.c.h.b16 %v9302
  %v10846 = vunpack.c.l.b16 %v9303
  %v10847 = vunpack.c.h.b16 %v9303
  %v10848 = vunpack.c.l.b16 %v9304
  %v10849 = vunpack.c.h.b16 %v9304
  %v10850 = vunpack.c.l.b16 %v9305
  %v10851 = vunpack.c.h.b16 %v9305
  %v10852 = vunpack.c.l.b16 %v9306
  %v10853 = vunpack.c.h.b16 %v9306
  %v10854 = vunpack.c.l.b16 %v9307
  %v10855 = vunpack.c.h.b16 %v9307
  %v10856 = vunpack.c.l.b16 %v9308
  %v10857 = vunpack.c.h.b16 %v9308
  %v10858 = vunpack.c.l.b16 %v9309
  %v10859 = vunpack.c.h.b16 %v9309
  %v10860 = vunpack.c.l.b16 %v9310
  %v10861 = vunpack.c.h.b16 %v9310
  %v10862 = vunpack.c.l.b16 %v9311
  %v10863 = vunpack.c.h.b16 %v9311
  %v10864 = vunpack.c.l.b16 %v9312
  %v10865 = vunpack.c.h.b16 %v9312
  %v10866 = vunpack.c.l.b16 %v9313
  %v10867 = vunpack.c.h.b16 %v9313
  %v10868 = vunpack.c.l.b16 %v9314
  %v10869 = vunpack.c.h.b16 %v9314
  %v10870 = vunpack.c.l.b16 %v9315
  %v10871 = vunpack.c.h.b16 %v9315
  %v10872 = vunpack.c.l.b16 %v9316
  %v10873 = vunpack.c.h.b16 %v9316
  %v10874 = vunpack.c.l.b16 %v9317
  %v10875 = vunpack.c.h.b16 %v9317
  %v10876 = vunpack.c.l.b16 %v9318
  %v10877 = vunpack.c.h.b16 %v9318
  %v10878 = vunpack.c.l.b16 %v9319
  %v10879 = vunpack.c.h.b16 %v9319
  %v10880 = vunpack.c.l.b16 %v9320
  %v10881 = vunpack.c.h.b16 %v9320
  %v10882 = vunpack.c.l.b16 %v9321
  %v10883 = vunpack.c.h.b16 %v9321
  %v10884 = vunpack.c.l.b16 %v9322
  %v10885 = vunpack.c.h.b16 %v9322
  %v10886 = vunpack.c.l.b16 %v9323
  %v10887 = vunpack.c.h.b16 %v9323
  %v10888 = vunpack.c.l.b16 %v9324
  %v10889 = vunpack.c.h.b16 %v9324
  %v10890 = vunpack.c.l.b16 %v9325
  %v10891 = vunpack.c.h.b16 %v9325
  %v10892 = vunpack.c.l.b16 %v9326
  %v10893 = vunpack.c.h.b16 %v9326
  %v10894 = vunpack.c.l.b16 %v9327
  %v10895 = vunpack.c.h.b16 %v9327
  %v10896 = vunpack.c.l.b16 %v9328
  %v10897 = vunpack.c.h.b16 %v9328
  %v10898 = vunpack.c.l.b16 %v9329
  %v10899 = vunpack.c.h.b16 %v9329
  %v10900 = vunpack.c.l.b16 %v9330
  %v10901 = vunpack.c.h.b16 %v9330
  %v10902 = vunpack.c.l.b16 %v9331
  %v10903 = vunpack.c.h.b16 %v9331
  %v10904 = vunpack.c.l.b16 %v9332
  %v10905 = vunpack.c.h.b16 %v9332
  %v10906 = vunpack.c.l.b16 %v9333
  %v10907 = vunpack.c.h.b16 %v9333
  %v10908 = vunpack.c.l.b16 %v9334
  %v10909 = vunpack.c.h.b16 %v9334
  %v10910 = vunpack.c.l.b16 %v9335
  %v10911 = vunpack.c.h.b16 %v9335
  %v10912 = vunpack.c.l.b16 %v9336
  %v10913 = vunpack.c.h.b16 %v9336
  %v10914 = vunpack.c.l.b16 %v9337
  %v10915 = vunpack.c.h.b16 %v9337
  %v10916 = vpack.c.b16 %v9900, %v9892
  %v10917 = vpack.c.b16 %v9901, %v9893
  %v10918 = vpack.c.b16 %v9902, %v9894
  %v10919 = vpack.c.b16 %v9903, %v9895
  %v10920 = vpack.c.b16 %v9904, %v9896
  %v10921 = vpack.c.b16 %v9905, %v9897
  %v10922 = vpack.c.b16 %v9906, %v9898
  %v10923 = vpack.c.b16 %v9907, %v9899
  %v10924 = vpack.c.b16 %v9916, %v9908
  %v10925 = vpack.c.b16 %v9917, %v9909
  %v10926 = vpack.c.b16 %v9918, %v9910
  %v10927 = vpack.c.b16 %v9919, %v9911
  %v10928 = vpack.c.b16 %v9920, %v9912
  %v10929 = vpack.c.b16 %v9921, %v9913
  %v10930 = vpack.c.b16 %v9922, %v9914
  %v10931 = vpack.c.b16 %v9923, %v9915
  %v10932 = vpack.c.b16 %v9932, %v9924
  %v10933 = vpack.c.b16 %v9933, %v9925
  %v10934 = vpack.c.b16 %v9934, %v9926
  %v10935 = vpack.c.b16 %v9935, %v9927
  %v10936 = vpack.c.b16 %v9936, %v9928
  %v10937 = vpack.c.b16 %v9937, %v9929
  %v10938 = vpack.c.b16 %v9938, %v9930
  %v10939 = vpack.c.b16 %v9939, %v9931
  %v10940 = vpack.c.b16 %v9948, %v9940
  %v10941 = vpack.c.b16 %v9949, %v9941
  %v10942 = vpack.c.b16 %v9950, %v9942
  %v10943 = vpack.c.b16 %v9951, %v9943
  %v10944 = vpack.c.b16 %v9952, %v9944
  %v10945 = vpack.c.b16 %v9953, %v9945
  %v10946 = vpack.c.b16 %v9954, %v9946
  %v10947 = vpack.c.b16 %v9955, %v9947
  %v10948 = vpack.c.b16 %v9964, %v9956
  %v10949 = vpack.c.b16 %v9965, %v9957
  %v10950 = vpack.c.b16 %v9966, %v9958
  %v10951 = vpack.c.b16 %v9967, %v9959
  %v10952 = vpack.c.b16 %v9968, %v9960
  %v10953 = vpack.c.b16 %v9969, %v9961
  %v10954 = vpack.c.b16 %v9970, %v9962
  %v10955 = vpack.c.b16 %v9971, %v9963
  %v10956 = vpack.c.b16 %v9980, %v9972
  %v10957 = vpack.c.b16 %v9981, %v9973
  %v10958 = vpack.c.b16 %v9982, %v9974
  %v10959 = vpack.c.b16 %v9983, %v9975
  %v10960 = vpack.c.b16 %v9984, %v9976
  %v10961 = vpack.c.b16 %v9985, %v9977
  %v10962 = vpack.c.b16 %v9986, %v9978
  %v10963 = vpack.c.b16 %v9987, %v9979
  %v10964 = vpack.c.b16 %v9996, %v9988
  %v10965 = vpack.c.b16 %v9997, %v9989
  %v10966 = vpack.c.b16 %v9998, %v9990
  %v10967 = vpack.c.b16 %v9999, %v9991
  %v10968 = vpack.c.b16 %v10000, %v9992
  %v10969 = vpack.c.b16 %v10001, %v9993
  %v10970 = vpack.c.b16 %v10002, %v9994
  %v10971 = vpack.c.b16 %v10003, %v9995
  %v10972 = vpack.c.b16 %v10012, %v10004
  %v10973 = vpack.c.b16 %v10013, %v10005
  %v10974 = vpack.c.b16 %v10014, %v10006
  %v10975 = vpack.c.b16 %v10015, %v10007
  %v10976 = vpack.c.b16 %v10016, %v10008
  %v10977 = vpack.c.b16 %v10017, %v10009
  %v10978 = vpack.c.b16 %v10018, %v10010
  %v10979 = vpack.c.b16 %v10019, %v10011
  %v10980 = vpack.c.b16 %v10028, %v10020
  %v10981 = vpack.c.b16 %v10029, %v10021
  %v10982 = vpack.c.b16 %v10030, %v10022
  %v10983 = vpack.c.b16 %v10031, %v10023
  %v10984 = vpack.c.b16 %v10032, %v10024
  %v10985 = vpack.c.b16 %v10033, %v10025
  %v10986 = vpack.c.b16 %v10034, %v10026
  %v10987 = vpack.c.b16 %v10035, %v10027
  %v10988 = vpack.c.b16 %v10044, %v10036
  %v10989 = vpack.c.b16 %v10045, %v10037
  %v10990 = vpack.c.b16 %v10046, %v10038
  %v10991 = vpack.c.b16 %v10047, %v10039
  %v10992 = vpack.c.b16 %v10048, %v10040
  %v10993 = vpack.c.b16 %v10049, %v10041
  %v10994 = vpack.c.b16 %v10050, %v10042
  %v10995 = vpack.c.b16 %v10051, %v10043
  %v10996 = vpack.c.b16 %v10060, %v10052
  %v10997 = vpack.c.b16 %v10061, %v10053
  %v10998 = vpack.c.b16 %v10062, %v10054
  %v10999 = vpack.c.b16 %v10063, %v10055
  %v11000 = vpack.c.b16 %v10064, %v10056
  %v11001 = vpack.c.b16 %v10065, %v10057
  %v11002 = vpack.c.b16 %v10066, %v10058
  %v11003 = vpack.c.b16 %v10067, %v10059
  %v11004 = vpack.c.b16 %v10076, %v10068
  %v11005 = vpack.c.b16 %v10077, %v10069
  %v11006 = vpack.c.b16 %v10078, %v10070
  %v11007 = vpack.c.b16 %v10079, %v10071
  %v11008 = vpack.c.b16 %v10080, %v10072
  %v11009 = vpack.c.b16 %v10081, %v10073
  %v11010 = vpack.c.b16 %v10082, %v10074
  %v11011 = vpack.c.b16 %v10083, %v10075
  %v11012 = vpack.c.b16 %v10092, %v10084
  %v11013 = vpack.c.b16 %v10093, %v10085
  %v11014 = vpack.c.b16 %v10094, %v10086
  %v11015 = vpack.c.b16 %v10095, %v10087
  %v11016 = vpack.c.b16 %v10096, %v10088
  %v11017 = vpack.c.b16 %v10097, %v10089
  %v11018 = vpack.c.b16 %v10098, %v10090
  %v11019 = vpack.c.b16 %v10099, %v10091
  %v11020 = vpack.c.b16 %v10108, %v10100
  %v11021 = vpack.c.b16 %v10109, %v10101
  %v11022 = vpack.c.b16 %v10110, %v10102
  %v11023 = vpack.c.b16 %v10111, %v10103
  %v11024 = vpack.c.b16 %v10112, %v10104
  %v11025 = vpack.c.b16 %v10113, %v10105
  %v11026 = vpack.c.b16 %v10114, %v10106
  %v11027 = vpack.c.b16 %v10115, %v10107
  %v11028 = vpack.c.b16 %v10124, %v10116
  %v11029 = vpack.c.b16 %v10125, %v10117
  %v11030 = vpack.c.b16 %v10126, %v10118
  %v11031 = vpack.c.b16 %v10127, %v10119
  %v11032 = vpack.c.b16 %v10128, %v10120
  %v11033 = vpack.c.b16 %v10129, %v10121
  %v11034 = vpack.c.b16 %v10130, %v10122
  %v11035 = vpack.c.b16 %v10131, %v10123
  %v11036 = vpack.c.b16 %v10140, %v10132
  %v11037 = vpack.c.b16 %v10141, %v10133
  %v11038 = vpack.c.b16 %v10142, %v10134
  %v11039 = vpack.c.b16 %v10143, %v10135
  %v11040 = vpack.c.b16 %v10144, %v10136
  %v11041 = vpack.c.b16 %v10145, %v10137
  %v11042 = vpack.c.b16 %v10146, %v10138
  %v11043 = vpack.c.b16 %v10147, %v10139
  %v11044 = vpack.c.b16 %v10156, %v10148
  %v11045 = vpack.c.b16 %v10157, %v10149
  %v11046 = vpack.c.b16 %v10158, %v10150
  %v11047 = vpack.c.b16 %v10159, %v10151
  %v11048 = vpack.c.b16 %v10160, %v10152
  %v11049 = vpack.c.b16 %v10161, %v10153
  %v11050 = vpack.c.b16 %v10162, %v10154
  %v11051 = vpack.c.b16 %v10163, %v10155
  %v11052 = vpack.c.b16 %v10172, %v10164
  %v11053 = vpack.c.b16 %v10173, %v10165
  %v11054 = vpack.c.b16 %v10174, %v10166
  %v11055 = vpack.c.b16 %v10175, %v10167
  %v11056 = vpack.c.b16 %v10176, %v10168
  %v11057 = vpack.c.b16 %v10177, %v10169
  %v11058 = vpack.c.b16 %v10178, %v10170
  %v11059 = vpack.c.b16 %v10179, %v10171
  %v11060 = vpack.c.b16 %v10188, %v10180
  %v11061 = vpack.c.b16 %v10189, %v10181
  %v11062 = vpack.c.b16 %v10190, %v10182
  %v11063 = vpack.c.b16 %v10191, %v10183
  %v11064 = vpack.c.b16 %v10192, %v10184
  %v11065 = vpack.c.b16 %v10193, %v10185
  %v11066 = vpack.c.b16 %v10194, %v10186
  %v11067 = vpack.c.b16 %v10195, %v10187
  %v11068 = vpack.c.b16 %v10204, %v10196
  %v11069 = vpack.c.b16 %v10205, %v10197
  %v11070 = vpack.c.b16 %v10206, %v10198
  %v11071 = vpack.c.b16 %v10207, %v10199
  %v11072 = vpack.c.b16 %v10208, %v10200
  %v11073 = vpack.c.b16 %v10209, %v10201
  %v11074 = vpack.c.b16 %v10210, %v10202
  %v11075 = vpack.c.b16 %v10211, %v10203
  %v11076 = vpack.c.b16 %v10220, %v10212
  %v11077 = vpack.c.b16 %v10221, %v10213
  %v11078 = vpack.c.b16 %v10222, %v10214
  %v11079 = vpack.c.b16 %v10223, %v10215
  %v11080 = vpack.c.b16 %v10224, %v10216
  %v11081 = vpack.c.b16 %v10225, %v10217
  %v11082 = vpack.c.b16 %v10226, %v10218
  %v11083 = vpack.c.b16 %v10227, %v10219
  %v11084 = vpack.c.b16 %v10236, %v10228
  %v11085 = vpack.c.b16 %v10237, %v10229
  %v11086 = vpack.c.b16 %v10238, %v10230
  %v11087 = vpack.c.b16 %v10239, %v10231
  %v11088 = vpack.c.b16 %v10240, %v10232
  %v11089 = vpack.c.b16 %v10241, %v10233
  %v11090 = vpack.c.b16 %v10242, %v10234
  %v11091 = vpack.c.b16 %v10243, %v10235
  %v11092 = vpack.c.b16 %v10252, %v10244
  %v11093 = vpack.c.b16 %v10253, %v10245
  %v11094 = vpack.c.b16 %v10254, %v10246
  %v11095 = vpack.c.b16 %v10255, %v10247
  %v11096 = vpack.c.b16 %v10256, %v10248
  %v11097 = vpack.c.b16 %v10257, %v10249
  %v11098 = vpack.c.b16 %v10258, %v10250
  %v11099 = vpack.c.b16 %v10259, %v10251
  %v11100 = vpack.c.b16 %v10268, %v10260
  %v11101 = vpack.c.b16 %v10269, %v10261
  %v11102 = vpack.c.b16 %v10270, %v10262
  %v11103 = vpack.c.b16 %v10271, %v10263
  %v11104 = vpack.c.b16 %v10272, %v10264
  %v11105 = vpack.c.b16 %v10273, %v10265
  %v11106 = vpack.c.b16 %v10274, %v10266
  %v11107 = vpack.c.b16 %v10275, %v10267
  %v11108 = vpack.c.b16 %v10284, %v10276
  %v11109 = vpack.c.b16 %v10285, %v10277
  %v11110 = vpack.c.b16 %v10286, %v10278
  %v11111 = vpack.c.b16 %v10287, %v10279
  %v11112 = vpack.c.b16 %v10288, %v10280
  %v11113 = vpack.c.b16 %v10289, %v10281
  %v11114 = vpack.c.b16 %v10290, %v10282
  %v11115 = vpack.c.b16 %v10291, %v10283
  %v11116 = vpack.c.b16 %v10300, %v10292
  %v11117 = vpack.c.b16 %v10301, %v10293
  %v11118 = vpack.c.b16 %v10302, %v10294
  %v11119 = vpack.c.b16 %v10303, %v10295
  %v11120 = vpack.c.b16 %v10304, %v10296
  %v11121 = vpack.c.b16 %v10305, %v10297
  %v11122 = vpack.c.b16 %v10306, %v10298
  %v11123 = vpack.c.b16 %v10307, %v10299
  %v11124 = vpack.c.b16 %v10316, %v10308
  %v11125 = vpack.c.b16 %v10317, %v10309
  %v11126 = vpack.c.b16 %v10318, %v10310
  %v11127 = vpack.c.b16 %v10319, %v10311
  %v11128 = vpack.c.b16 %v10320, %v10312
  %v11129 = vpack.c.b16 %v10321, %v10313
  %v11130 = vpack.c.b16 %v10322, %v10314
  %v11131 = vpack.c.b16 %v10323, %v10315
  %v11132 = vpack.c.b16 %v10332, %v10324
  %v11133 = vpack.c.b16 %v10333, %v10325
  %v11134 = vpack.c.b16 %v10334, %v10326
  %v11135 = vpack.c.b16 %v10335, %v10327
  %v11136 = vpack.c.b16 %v10336, %v10328
  %v11137 = vpack.c.b16 %v10337, %v10329
  %v11138 = vpack.c.b16 %v10338, %v10330
  %v11139 = vpack.c.b16 %v10339, %v10331
  %v11140 = vpack.c.b16 %v10348, %v10340
  %v11141 = vpack.c.b16 %v10349, %v10341
  %v11142 = vpack.c.b16 %v10350, %v10342
  %v11143 = vpack.c.b16 %v10351, %v10343
  %v11144 = vpack.c.b16 %v10352, %v10344
  %v11145 = vpack.c.b16 %v10353, %v10345
  %v11146 = vpack.c.b16 %v10354, %v10346
  %v11147 = vpack.c.b16 %v10355, %v10347
  %v11148 = vpack.c.b16 %v10364, %v10356
  %v11149 = vpack.c.b16 %v10365, %v10357
  %v11150 = vpack.c.b16 %v10366, %v10358
  %v11151 = vpack.c.b16 %v10367, %v10359
  %v11152 = vpack.c.b16 %v10368, %v10360
  %v11153 = vpack.c.b16 %v10369, %v10361
  %v11154 = vpack.c.b16 %v10370, %v10362
  %v11155 = vpack.c.b16 %v10371, %v10363
  %v11156 = vpack.c.b16 %v10380, %v10372
  %v11157 = vpack.c.b16 %v10381, %v10373
  %v11158 = vpack.c.b16 %v10382, %v10374
  %v11159 = vpack.c.b16 %v10383, %v10375
  %v11160 = vpack.c.b16 %v10384, %v10376
  %v11161 = vpack.c.b16 %v10385, %v10377
  %v11162 = vpack.c.b16 %v10386, %v10378
  %v11163 = vpack.c.b16 %v10387, %v10379
  %v11164 = vpack.c.b16 %v10396, %v10388
  %v11165 = vpack.c.b16 %v10397, %v10389
  %v11166 = vpack.c.b16 %v10398, %v10390
  %v11167 = vpack.c.b16 %v10399, %v10391
  %v11168 = vpack.c.b16 %v10400, %v10392
  %v11169 = vpack.c.b16 %v10401, %v10393
  %v11170 = vpack.c.b16 %v10402, %v10394
  %v11171 = vpack.c.b16 %v10403, %v10395
  %v11172 = vpack.c.b16 %v10412, %v10404
  %v11173 = vpack.c.b16 %v10413, %v10405
  %v11174 = vpack.c.b16 %v10414, %v10406
  %v11175 = vpack.c.b16 %v10415, %v10407
  %v11176 = vpack.c.b16 %v10416, %v10408
  %v11177 = vpack.c.b16 %v10417, %v10409
  %v11178 = vpack.c.b16 %v10418, %v10410
  %v11179 = vpack.c.b16 %v10419, %v10411
  %v11180 = vpack.c.b16 %v10428, %v10420
  %v11181 = vpack.c.b16 %v10429, %v10421
  %v11182 = vpack.c.b16 %v10430, %v10422
  %v11183 = vpack.c.b16 %v10431, %v10423
  %v11184 = vpack.c.b16 %v10432, %v10424
  %v11185 = vpack.c.b16 %v10433, %v10425
  %v11186 = vpack.c.b16 %v10434, %v10426
  %v11187 = vpack.c.b16 %v10435, %v10427
  %v11188 = vpack.c.b16 %v10444, %v10436
  %v11189 = vpack.c.b16 %v10445, %v10437
  %v11190 = vpack.c.b16 %v10446, %v10438
  %v11191 = vpack.c.b16 %v10447, %v10439
  %v11192 = vpack.c.b16 %v10448, %v10440
  %v11193 = vpack.c.b16 %v10449, %v10441
  %v11194 = vpack.c.b16 %v10450, %v10442
  %v11195 = vpack.c.b16 %v10451, %v10443
  %v11196 = vpack.c.b16 %v10460, %v10452
  %v11197 = vpack.c.b16 %v10461, %v10453
  %v11198 = vpack.c.b16 %v10462, %v10454
  %v11199 = vpack.c.b16 %v10463, %v10455
  %v11200 = vpack.c.b16 %v10464, %v10456
  %v11201 = vpack.c.b16 %v10465, %v10457
  %v11202 = vpack.c.b16 %v10466, %v10458
  %v11203 = vpack.c.b16 %v10467, %v10459
  %v11204 = vpack.c.b16 %v10476, %v10468
  %v11205 = vpack.c.b16 %v10477, %v10469
  %v11206 = vpack.c.b16 %v10478, %v10470
  %v11207 = vpack.c.b16 %v10479, %v10471
  %v11208 = vpack.c.b16 %v10480, %v10472
  %v11209 = vpack.c.b16 %v10481, %v10473
  %v11210 = vpack.c.b16 %v10482, %v10474
  %v11211 = vpack.c.b16 %v10483, %v10475
  %v11212 = vpack.c.b16 %v10492, %v10484
  %v11213 = vpack.c.b16 %v10493, %v10485
  %v11214 = vpack.c.b16 %v10494, %v10486
  %v11215 = vpack.c.b16 %v10495, %v10487
  %v11216 = vpack.c.b16 %v10496, %v10488
  %v11217 = vpack.c.b16 %v10497, %v10489
  %v11218 = vpack.c.b16 %v10498, %v10490
  %v11219 = vpack.c.b16 %v10499, %v10491
  %v11220 = vpack.c.b16 %v10508, %v10500
  %v11221 = vpack.c.b16 %v10509, %v10501
  %v11222 = vpack.c.b16 %v10510, %v10502
  %v11223 = vpack.c.b16 %v10511, %v10503
  %v11224 = vpack.c.b16 %v10512, %v10504
  %v11225 = vpack.c.b16 %v10513, %v10505
  %v11226 = vpack.c.b16 %v10514, %v10506
  %v11227 = vpack.c.b16 %v10515, %v10507
  %v11228 = vpack.c.b16 %v10524, %v10516
  %v11229 = vpack.c.b16 %v10525, %v10517
  %v11230 = vpack.c.b16 %v10526, %v10518
  %v11231 = vpack.c.b16 %v10527, %v10519
  %v11232 = vpack.c.b16 %v10528, %v10520
  %v11233 = vpack.c.b16 %v10529, %v10521
  %v11234 = vpack.c.b16 %v10530, %v10522
  %v11235 = vpack.c.b16 %v10531, %v10523
  %v11236 = vpack.c.b16 %v10540, %v10532
  %v11237 = vpack.c.b16 %v10541, %v10533
  %v11238 = vpack.c.b16 %v10542, %v10534
  %v11239 = vpack.c.b16 %v10543, %v10535
  %v11240 = vpack.c.b16 %v10544, %v10536
  %v11241 = vpack.c.b16 %v10545, %v10537
  %v11242 = vpack.c.b16 %v10546, %v10538
  %v11243 = vpack.c.b16 %v10547, %v10539
  %v11244 = vpack.c.b16 %v10556, %v10548
  %v11245 = vpack.c.b16 %v10557, %v10549
  %v11246 = vpack.c.b16 %v10558, %v10550
  %v11247 = vpack.c.b16 %v10559, %v10551
  %v11248 = vpack.c.b16 %v10560, %v10552
  %v11249 = vpack.c.b16 %v10561, %v10553
  %v11250 = vpack.c.b16 %v10562, %v10554
  %v11251 = vpack.c.b16 %v10563, %v10555
  %v11252 = vpack.c.b16 %v10572, %v10564
  %v11253 = vpack.c.b16 %v10573, %v10565
  %v11254 = vpack.c.b16 %v10574, %v10566
  %v11255 = vpack.c.b16 %v10575, %v10567
  %v11256 = vpack.c.b16 %v10576, %v10568
  %v11257 = vpack.c.b16 %v10577, %v10569
  %v11258 = vpack.c.b16 %v10578, %v10570
  %v11259 = vpack.c.b16 %v10579, %v10571
  %v11260 = vpack.c.b16 %v10588, %v10580
  %v11261 = vpack.c.b16 %v10589, %v10581
  %v11262 = vpack.c.b16 %v10590, %v10582
  %v11263 = vpack.c.b16 %v10591, %v10583
  %v11264 = vpack.c.b16 %v10592, %v10584
  %v11265 = vpack.c.b16 %v10593, %v10585
  %v11266 = vpack.c.b16 %v10594, %v10586
  %v11267 = vpack.c.b16 %v10595, %v10587
  %v11268 = vpack.c.b16 %v10604, %v10596
  %v11269 = vpack.c.b16 %v10605, %v10597
  %v11270 = vpack.c.b16 %v10606, %v10598
  %v11271 = vpack.c.b16 %v10607, %v10599
  %v11272 = vpack.c.b16 %v10608, %v10600
  %v11273 = vpack.c.b16 %v10609, %v10601
  %v11274 = vpack.c.b16 %v10610, %v10602
  %v11275 = vpack.c.b16 %v10611, %v10603
  %v11276 = vpack.c.b16 %v10620, %v10612
  %v11277 = vpack.c.b16 %v10621, %v10613
  %v11278 = vpack.c.b16 %v10622, %v10614
  %v11279 = vpack.c.b16 %v10623, %v10615
  %v11280 = vpack.c.b16 %v10624, %v10616
  %v11281 = vpack.c.b16 %v10625, %v10617
  %v11282 = vpack.c.b16 %v10626, %v10618
  %v11283 = vpack.c.b16 %v10627, %v10619
  %v11284 = vpack.c.b16 %v10636, %v10628
  %v11285 = vpack.c.b16 %v10637, %v10629
  %v11286 = vpack.c.b16 %v10638, %v10630
  %v11287 = vpack.c.b16 %v10639, %v10631
  %v11288 = vpack.c.b16 %v10640, %v10632
  %v11289 = vpack.c.b16 %v10641, %v10633
  %v11290 = vpack.c.b16 %v10642, %v10634
  %v11291 = vpack.c.b16 %v10643, %v10635
  %v11292 = vpack.c.b16 %v10652, %v10644
  %v11293 = vpack.c.b16 %v10653, %v10645
  %v11294 = vpack.c.b16 %v10654, %v10646
  %v11295 = vpack.c.b16 %v10655, %v10647
  %v11296 = vpack.c.b16 %v10656, %v10648
  %v11297 = vpack.c.b16 %v10657, %v10649
  %v11298 = vpack.c.b16 %v10658, %v10650
  %v11299 = vpack.c.b16 %v10659, %v10651
  %v11300 = vpack.c.b16 %v10668, %v10660
  %v11301 = vpack.c.b16 %v10669, %v10661
  %v11302 = vpack.c.b16 %v10670, %v10662
  %v11303 = vpack.c.b16 %v10671, %v10663
  %v11304 = vpack.c.b16 %v10672, %v10664
  %v11305 = vpack.c.b16 %v10673, %v10665
  %v11306 = vpack.c.b16 %v10674, %v10666
  %v11307 = vpack.c.b16 %v10675, %v10667
  %v11308 = vpack.c.b16 %v10684, %v10676
  %v11309 = vpack.c.b16 %v10685, %v10677
  %v11310 = vpack.c.b16 %v10686, %v10678
  %v11311 = vpack.c.b16 %v10687, %v10679
  %v11312 = vpack.c.b16 %v10688, %v10680
  %v11313 = vpack.c.b16 %v10689, %v10681
  %v11314 = vpack.c.b16 %v10690, %v10682
  %v11315 = vpack.c.b16 %v10691, %v10683
  %v11316 = vpack.c.b16 %v10700, %v10692
  %v11317 = vpack.c.b16 %v10701, %v10693
  %v11318 = vpack.c.b16 %v10702, %v10694
  %v11319 = vpack.c.b16 %v10703, %v10695
  %v11320 = vpack.c.b16 %v10704, %v10696
  %v11321 = vpack.c.b16 %v10705, %v10697
  %v11322 = vpack.c.b16 %v10706, %v10698
  %v11323 = vpack.c.b16 %v10707, %v10699
  %v11324 = vpack.c.b16 %v10716, %v10708
  %v11325 = vpack.c.b16 %v10717, %v10709
  %v11326 = vpack.c.b16 %v10718, %v10710
  %v11327 = vpack.c.b16 %v10719, %v10711
  %v11328 = vpack.c.b16 %v10720, %v10712
  %v11329 = vpack.c.b16 %v10721, %v10713
  %v11330 = vpack.c.b16 %v10722, %v10714
  %v11331 = vpack.c.b16 %v10723, %v10715
  %v11332 = vpack.c.b16 %v10732, %v10724
  %v11333 = vpack.c.b16 %v10733, %v10725
  %v11334 = vpack.c.b16 %v10734, %v10726
  %v11335 = vpack.c.b16 %v10735, %v10727
  %v11336 = vpack.c.b16 %v10736, %v10728
  %v11337 = vpack.c.b16 %v10737, %v10729
  %v11338 = vpack.c.b16 %v10738, %v10730
  %v11339 = vpack.c.b16 %v10739, %v10731
  %v11340 = vpack.c.b16 %v10748, %v10740
  %v11341 = vpack.c.b16 %v10749, %v10741
  %v11342 = vpack.c.b16 %v10750, %v10742
  %v11343 = vpack.c.b16 %v10751, %v10743
  %v11344 = vpack.c.b16 %v10752, %v10744
  %v11345 = vpack.c.b16 %v10753, %v10745
  %v11346 = vpack.c.b16 %v10754, %v10746
  %v11347 = vpack.c.b16 %v10755, %v10747
  %v11348 = vpack.c.b16 %v10764, %v10756
  %v11349 = vpack.c.b16 %v10765, %v10757
  %v11350 = vpack.c.b16 %v10766, %v10758
  %v11351 = vpack.c.b16 %v10767, %v10759
  %v11352 = vpack.c.b16 %v10768, %v10760
  %v11353 = vpack.c.b16 %v10769, %v10761
  %v11354 = vpack.c.b16 %v10770, %v10762
  %v11355 = vpack.c.b16 %v10771, %v10763
  %v11356 = vpack.c.b16 %v10780, %v10772
  %v11357 = vpack.c.b16 %v10781, %v10773
  %v11358 = vpack.c.b16 %v10782, %v10774
  %v11359 = vpack.c.b16 %v10783, %v10775
  %v11360 = vpack.c.b16 %v10784, %v10776
  %v11361 = vpack.c.b16 %v10785, %v10777
  %v11362 = vpack.c.b16 %v10786, %v10778
  %v11363 = vpack.c.b16 %v10787, %v10779
  %v11364 = vpack.c.b16 %v10796, %v10788
  %v11365 = vpack.c.b16 %v10797, %v10789
  %v11366 = vpack.c.b16 %v10798, %v10790
  %v11367 = vpack.c.b16 %v10799, %v10791
  %v11368 = vpack.c.b16 %v10800, %v10792
  %v11369 = vpack.c.b16 %v10801, %v10793
  %v11370 = vpack.c.b16 %v10802, %v10794
  %v11371 = vpack.c.b16 %v10803, %v10795
  %v11372 = vpack.c.b16 %v10812, %v10804
  %v11373 = vpack.c.b16 %v10813, %v10805
  %v11374 = vpack.c.b16 %v10814, %v10806
  %v11375 = vpack.c.b16 %v10815, %v10807
  %v11376 = vpack.c.b16 %v10816, %v10808
  %v11377 = vpack.c.b16 %v10817, %v10809
  %v11378 = vpack.c.b16 %v10818, %v10810
  %v11379 = vpack.c.b16 %v10819, %v10811
  %v11380 = vpack.c.b16 %v10828, %v10820
  %v11381 = vpack.c.b16 %v10829, %v10821
  %v11382 = vpack.c.b16 %v10830, %v10822
  %v11383 = vpack.c.b16 %v10831, %v10823
  %v11384 = vpack.c.b16 %v10832, %v10824
  %v11385 = vpack.c.b16 %v10833, %v10825
  %v11386 = vpack.c.b16 %v10834, %v10826
  %v11387 = vpack.c.b16 %v10835, %v10827
  %v11388 = vpack.c.b16 %v10844, %v10836
  %v11389 = vpack.c.b16 %v10845, %v10837
  %v11390 = vpack.c.b16 %v10846, %v10838
  %v11391 = vpack.c.b16 %v10847, %v10839
  %v11392 = vpack.c.b16 %v10848, %v10840
  %v11393 = vpack.c.b16 %v10849, %v10841
  %v11394 = vpack.c.b16 %v10850, %v10842
  %v11395 = vpack.c.b16 %v10851, %v10843
  %v11396 = vpack.c.b16 %v10860, %v10852
  %v11397 = vpack.c.b16 %v10861, %v10853
  %v11398 = vpack.c.b16 %v10862, %v10854
  %v11399 = vpack.c.b16 %v10863, %v10855
  %v11400 = vpack.c.b16 %v10864, %v10856
  %v11401 = vpack.c.b16 %v10865, %v10857
  %v11402 = vpack.c.b16 %v10866, %v10858
  %v11403 = vpack.c.b16 %v10867, %v10859
  %v11404 = vpack.c.b16 %v10876, %v10868
  %v11405 = vpack.c.b16 %v10877, %v10869
  %v11406 = vpack.c.b16 %v10878, %v10870
  %v11407 = vpack.c.b16 %v10879, %v10871
  %v11408 = vpack.c.b16 %v10880, %v10872
  %v11409 = vpack.c.b16 %v10881, %v10873
  %v11410 = vpack.c.b16 %v10882, %v10874
  %v11411 = vpack.c.b16 %v10883, %v10875
  %v11412 = vpack.c.b16 %v10892, %v10884
  %v11413 = vpack.c.b16 %v10893, %v10885
  %v11414 = vpack.c.b16 %v10894, %v10886
  %v11415 = vpack.c.b16 %v10895, %v10887
  %v11416 = vpack.c.b16 %v10896, %v10888
  %v11417 = vpack.c.b16 %v10897, %v10889
  %v11418 = vpack.c.b16 %v10898, %v10890
  %v11419 = vpack.c.b16 %v10899, %v10891
  %v11420 = vpack.c.b16 %v10908, %v10900
  %v11421 = vpack.c.b16 %v10909, %v10901
  %v11422 = vpack.c.b16 %v10910, %v10902
  %v11423 = vpack.c.b16 %v10911, %v10903
  %v11424 = vpack.c.b16 %v10912, %v10904
  %v11425 = vpack.c.b16 %v10913, %v10905
  %v11426 = vpack.c.b16 %v10914, %v10906
  %v11427 = vpack.c.b16 %v10915, %v10907
  %11940 = vmatprep.subr.bf16.mxu0 %v10973
  %11941 = vmatpush1.bf16.msra.mxu0 %v10972
  %11942 = vmatprep.subr.bf16.mxu0 %v10965
  %11943 = vmatpush1.bf16.msra.mxu0 %v10964
  %11944 = vmatprep.subr.bf16.mxu0 %v10957
  %11945 = vmatpush1.bf16.msra.mxu0 %v10956
  %11946 = vmatprep.subr.bf16.mxu0 %v10949
  %11947 = vmatpush1.bf16.msra.mxu0 %v10948
  %11948 = vmatprep.subr.bf16.mxu0 %v10941
  %11949 = vmatpush1.bf16.msra.mxu0 %v10940
  %11950 = vmatprep.subr.bf16.mxu0 %v10933
  %11951 = vmatpush1.bf16.msra.mxu0 %v10932
  %11952 = vmatprep.subr.bf16.mxu0 %v10925
  %11953 = vmatpush1.bf16.msra.mxu0 %v10924
  %11954 = vmatprep.subr.bf16.mxu0 %v10917
  %11955 = vmatpush1.bf16.msra.mxu0 %v10916
  %11956 = vmatprep.subr.bf16.mxu0 %v11037
  %11957 = vmatpush2.bf16.msra.mxu0 %v11036
  %11958 = vmatprep.subr.bf16.mxu0 %v11029
  %11959 = vmatpush2.bf16.msra.mxu0 %v11028
  %11960 = vmatprep.subr.bf16.mxu0 %v11021
  %11961 = vmatpush2.bf16.msra.mxu0 %v11020
  %11962 = vmatprep.subr.bf16.mxu0 %v11013
  %11963 = vmatpush2.bf16.msra.mxu0 %v11012
  %11964 = vmatprep.subr.bf16.mxu0 %v11005
  %11965 = vmatpush2.bf16.msra.mxu0 %v11004
  %11966 = vmatprep.subr.bf16.mxu0 %v10997
  %11967 = vmatpush2.bf16.msra.mxu0 %v10996
  %11968 = vmatprep.subr.bf16.mxu0 %v10989
  %11969 = vmatpush2.bf16.msra.mxu0 %v10988
  %11970 = vmatprep.subr.bf16.mxu0 %v10981
  %11971 = vmatpush2.bf16.msra.mxu0 %v10980
  %11972 = vmatprep.mubr.bf16.mxu0 %v8819
  %11973 = vmatmul.mubr.bf16.gmra.mxu0 %v8818
  %v11974 = vpop.f32.mrf.mxu0
  %v11975 = vadd.f32 %v9343, %v11974
  %v11976 = vpop.f32.mrf.mxu0
  %v11977 = vadd.f32 %v9347, %v11976
  %v11978 = vpop.f32.mrf.mxu0
  %v11979 = vpop.f32.mrf.mxu0
  %11980 = vdwg.mxu0
  %11981 = vmatprep.subr.bf16.mxu0 %v11101
  %11982 = vmatpush1.bf16.msra.mxu0 %v11100
  %11983 = vmatprep.subr.bf16.mxu0 %v11093
  %11984 = vmatpush1.bf16.msra.mxu0 %v11092
  %11985 = vmatprep.subr.bf16.mxu0 %v11085
  %11986 = vmatpush1.bf16.msra.mxu0 %v11084
  %11987 = vmatprep.subr.bf16.mxu0 %v11077
  %11988 = vmatpush1.bf16.msra.mxu0 %v11076
  %11989 = vmatprep.subr.bf16.mxu0 %v11069
  %11990 = vmatpush1.bf16.msra.mxu0 %v11068
  %11991 = vmatprep.subr.bf16.mxu0 %v11061
  %11992 = vmatpush1.bf16.msra.mxu0 %v11060
  %11993 = vmatprep.subr.bf16.mxu0 %v11053
  %11994 = vmatpush1.bf16.msra.mxu0 %v11052
  %11995 = vmatprep.subr.bf16.mxu0 %v11045
  %11996 = vmatpush1.bf16.msra.mxu0 %v11044
  %11997 = vmatprep.subr.bf16.mxu0 %v11165
  %11998 = vmatpush2.bf16.msra.mxu0 %v11164
  %11999 = vmatprep.subr.bf16.mxu0 %v11157
  %12000 = vmatpush2.bf16.msra.mxu0 %v11156
  %12001 = vmatprep.subr.bf16.mxu0 %v11149
  %12002 = vmatpush2.bf16.msra.mxu0 %v11148
  %12003 = vmatprep.subr.bf16.mxu0 %v11141
  %12004 = vmatpush2.bf16.msra.mxu0 %v11140
  %12005 = vmatprep.subr.bf16.mxu0 %v11133
  %12006 = vmatpush2.bf16.msra.mxu0 %v11132
  %12007 = vmatprep.subr.bf16.mxu0 %v11125
  %12008 = vmatpush2.bf16.msra.mxu0 %v11124
  %12009 = vmatprep.subr.bf16.mxu0 %v11117
  %12010 = vmatpush2.bf16.msra.mxu0 %v11116
  %12011 = vmatprep.subr.bf16.mxu0 %v11109
  %12012 = vmatpush2.bf16.msra.mxu0 %v11108
  %12013 = vmatprep.mubr.bf16.mxu0 %v8821
  %12014 = vmatmul.mubr.bf16.gmra.mxu0 %v8820
  %v12015 = vpop.f32.mrf.mxu0
  %v12016 = vadd.f32 %v11975, %v12015
  %v12017 = vpop.f32.mrf.mxu0
  %v12018 = vadd.f32 %v11977, %v12017
  %v12019 = vpop.f32.mrf.mxu0
  %v12020 = vpop.f32.mrf.mxu0
  %12021 = vdwg.mxu0
  %12022 = vmatprep.subr.bf16.mxu0 %v11229
  %12023 = vmatpush1.bf16.msra.mxu0 %v11228
  %12024 = vmatprep.subr.bf16.mxu0 %v11221
  %12025 = vmatpush1.bf16.msra.mxu0 %v11220
  %12026 = vmatprep.subr.bf16.mxu0 %v11213
  %12027 = vmatpush1.bf16.msra.mxu0 %v11212
  %12028 = vmatprep.subr.bf16.mxu0 %v11205
  %12029 = vmatpush1.bf16.msra.mxu0 %v11204
  %12030 = vmatprep.subr.bf16.mxu0 %v11197
  %12031 = vmatpush1.bf16.msra.mxu0 %v11196
  %12032 = vmatprep.subr.bf16.mxu0 %v11189
  %12033 = vmatpush1.bf16.msra.mxu0 %v11188
  %12034 = vmatprep.subr.bf16.mxu0 %v11181
  %12035 = vmatpush1.bf16.msra.mxu0 %v11180
  %12036 = vmatprep.subr.bf16.mxu0 %v11173
  %12037 = vmatpush1.bf16.msra.mxu0 %v11172
  %12038 = vmatprep.subr.bf16.mxu0 %v11293
  %12039 = vmatpush2.bf16.msra.mxu0 %v11292
  %12040 = vmatprep.subr.bf16.mxu0 %v11285
  %12041 = vmatpush2.bf16.msra.mxu0 %v11284
  %12042 = vmatprep.subr.bf16.mxu0 %v11277
  %12043 = vmatpush2.bf16.msra.mxu0 %v11276
  %12044 = vmatprep.subr.bf16.mxu0 %v11269
  %12045 = vmatpush2.bf16.msra.mxu0 %v11268
  %12046 = vmatprep.subr.bf16.mxu0 %v11261
  %12047 = vmatpush2.bf16.msra.mxu0 %v11260
  %12048 = vmatprep.subr.bf16.mxu0 %v11253
  %12049 = vmatpush2.bf16.msra.mxu0 %v11252
  %12050 = vmatprep.subr.bf16.mxu0 %v11245
  %12051 = vmatpush2.bf16.msra.mxu0 %v11244
  %12052 = vmatprep.subr.bf16.mxu0 %v11237
  %12053 = vmatpush2.bf16.msra.mxu0 %v11236
  %12054 = vmatprep.mubr.bf16.mxu0 %v8823
  %12055 = vmatmul.mubr.bf16.gmra.mxu0 %v8822
  %v12056 = vpop.f32.mrf.mxu0
  %v12057 = vadd.f32 %v12016, %v12056
  %v12058 = vpop.f32.mrf.mxu0
  %v12059 = vadd.f32 %v12018, %v12058
  %v12060 = vpop.f32.mrf.mxu0
  %v12061 = vpop.f32.mrf.mxu0
  %12062 = vdwg.mxu0
  %12063 = vmatprep.subr.bf16.mxu0 %v11357
  %12064 = vmatpush1.bf16.msra.mxu0 %v11356
  %12065 = vmatprep.subr.bf16.mxu0 %v11349
  %12066 = vmatpush1.bf16.msra.mxu0 %v11348
  %12067 = vmatprep.subr.bf16.mxu0 %v11341
  %12068 = vmatpush1.bf16.msra.mxu0 %v11340
  %12069 = vmatprep.subr.bf16.mxu0 %v11333
  %12070 = vmatpush1.bf16.msra.mxu0 %v11332
  %12071 = vmatprep.subr.bf16.mxu0 %v11325
  %12072 = vmatpush1.bf16.msra.mxu0 %v11324
  %12073 = vmatprep.subr.bf16.mxu0 %v11317
  %12074 = vmatpush1.bf16.msra.mxu0 %v11316
  %12075 = vmatprep.subr.bf16.mxu0 %v11309
  %12076 = vmatpush1.bf16.msra.mxu0 %v11308
  %12077 = vmatprep.subr.bf16.mxu0 %v11301
  %12078 = vmatpush1.bf16.msra.mxu0 %v11300
  %12079 = vmatprep.subr.bf16.mxu0 %v11421
  %12080 = vmatpush2.bf16.msra.mxu0 %v11420
  %12081 = vmatprep.subr.bf16.mxu0 %v11413
  %12082 = vmatpush2.bf16.msra.mxu0 %v11412
  %12083 = vmatprep.subr.bf16.mxu0 %v11405
  %12084 = vmatpush2.bf16.msra.mxu0 %v11404
  %12085 = vmatprep.subr.bf16.mxu0 %v11397
  %12086 = vmatpush2.bf16.msra.mxu0 %v11396
  %12087 = vmatprep.subr.bf16.mxu0 %v11389
  %12088 = vmatpush2.bf16.msra.mxu0 %v11388
  %12089 = vmatprep.subr.bf16.mxu0 %v11381
  %12090 = vmatpush2.bf16.msra.mxu0 %v11380
  %12091 = vmatprep.subr.bf16.mxu0 %v11373
  %12092 = vmatpush2.bf16.msra.mxu0 %v11372
  %12093 = vmatprep.subr.bf16.mxu0 %v11365
  %12094 = vmatpush2.bf16.msra.mxu0 %v11364
  %12095 = vmatprep.mubr.bf16.mxu0 %v8825
  %12096 = vmatmul.mubr.bf16.gmra.mxu0 %v8824
  %v12097 = vpop.f32.mrf.mxu0
  %v12098 = vadd.f32 %v12057, %v12097
  %v12099 = vpop.f32.mrf.mxu0
  %v12100 = vadd.f32 %v12059, %v12099
  %v12101 = vpop.f32.mrf.mxu0
  %v12102 = vpop.f32.mrf.mxu0
  %12103 = vdwg.mxu0
  %12104 = vmatprep.subr.bf16.mxu0 %v10975
  %12105 = vmatpush1.bf16.msra.mxu0 %v10974
  %12106 = vmatprep.subr.bf16.mxu0 %v10967
  %12107 = vmatpush1.bf16.msra.mxu0 %v10966
  %12108 = vmatprep.subr.bf16.mxu0 %v10959
  %12109 = vmatpush1.bf16.msra.mxu0 %v10958
  %12110 = vmatprep.subr.bf16.mxu0 %v10951
  %12111 = vmatpush1.bf16.msra.mxu0 %v10950
  %12112 = vmatprep.subr.bf16.mxu0 %v10943
  %12113 = vmatpush1.bf16.msra.mxu0 %v10942
  %12114 = vmatprep.subr.bf16.mxu0 %v10935
  %12115 = vmatpush1.bf16.msra.mxu0 %v10934
  %12116 = vmatprep.subr.bf16.mxu0 %v10927
  %12117 = vmatpush1.bf16.msra.mxu0 %v10926
  %12118 = vmatprep.subr.bf16.mxu0 %v10919
  %12119 = vmatpush1.bf16.msra.mxu0 %v10918
  %12120 = vmatprep.subr.bf16.mxu0 %v11039
  %12121 = vmatpush2.bf16.msra.mxu0 %v11038
  %12122 = vmatprep.subr.bf16.mxu0 %v11031
  %12123 = vmatpush2.bf16.msra.mxu0 %v11030
  %12124 = vmatprep.subr.bf16.mxu0 %v11023
  %12125 = vmatpush2.bf16.msra.mxu0 %v11022
  %12126 = vmatprep.subr.bf16.mxu0 %v11015
  %12127 = vmatpush2.bf16.msra.mxu0 %v11014
  %12128 = vmatprep.subr.bf16.mxu0 %v11007
  %12129 = vmatpush2.bf16.msra.mxu0 %v11006
  %12130 = vmatprep.subr.bf16.mxu0 %v10999
  %12131 = vmatpush2.bf16.msra.mxu0 %v10998
  %12132 = vmatprep.subr.bf16.mxu0 %v10991
  %12133 = vmatpush2.bf16.msra.mxu0 %v10990
  %12134 = vmatprep.subr.bf16.mxu0 %v10983
  %12135 = vmatpush2.bf16.msra.mxu0 %v10982
  %12136 = vmatprep.mubr.bf16.mxu0 %v8819
  %12137 = vmatmul.mubr.bf16.gmra.mxu0 %v8818
  %v12138 = vpop.f32.mrf.mxu0
  %v12139 = vadd.f32 %v9351, %v12138
  %v12140 = vpop.f32.mrf.mxu0
  %v12141 = vadd.f32 %v9355, %v12140
  %v12142 = vpop.f32.mrf.mxu0
  %v12143 = vpop.f32.mrf.mxu0
  %12144 = vdwg.mxu0
  %12145 = vmatprep.subr.bf16.mxu0 %v11103
  %12146 = vmatpush1.bf16.msra.mxu0 %v11102
  %12147 = vmatprep.subr.bf16.mxu0 %v11095
  %12148 = vmatpush1.bf16.msra.mxu0 %v11094
  %12149 = vmatprep.subr.bf16.mxu0 %v11087
  %12150 = vmatpush1.bf16.msra.mxu0 %v11086
  %12151 = vmatprep.subr.bf16.mxu0 %v11079
  %12152 = vmatpush1.bf16.msra.mxu0 %v11078
  %12153 = vmatprep.subr.bf16.mxu0 %v11071
  %12154 = vmatpush1.bf16.msra.mxu0 %v11070
  %12155 = vmatprep.subr.bf16.mxu0 %v11063
  %12156 = vmatpush1.bf16.msra.mxu0 %v11062
  %12157 = vmatprep.subr.bf16.mxu0 %v11055
  %12158 = vmatpush1.bf16.msra.mxu0 %v11054
  %12159 = vmatprep.subr.bf16.mxu0 %v11047
  %12160 = vmatpush1.bf16.msra.mxu0 %v11046
  %12161 = vmatprep.subr.bf16.mxu0 %v11167
  %12162 = vmatpush2.bf16.msra.mxu0 %v11166
  %12163 = vmatprep.subr.bf16.mxu0 %v11159
  %12164 = vmatpush2.bf16.msra.mxu0 %v11158
  %12165 = vmatprep.subr.bf16.mxu0 %v11151
  %12166 = vmatpush2.bf16.msra.mxu0 %v11150
  %12167 = vmatprep.subr.bf16.mxu0 %v11143
  %12168 = vmatpush2.bf16.msra.mxu0 %v11142
  %12169 = vmatprep.subr.bf16.mxu0 %v11135
  %12170 = vmatpush2.bf16.msra.mxu0 %v11134
  %12171 = vmatprep.subr.bf16.mxu0 %v11127
  %12172 = vmatpush2.bf16.msra.mxu0 %v11126
  %12173 = vmatprep.subr.bf16.mxu0 %v11119
  %12174 = vmatpush2.bf16.msra.mxu0 %v11118
  %12175 = vmatprep.subr.bf16.mxu0 %v11111
  %12176 = vmatpush2.bf16.msra.mxu0 %v11110
  %12177 = vmatprep.mubr.bf16.mxu0 %v8821
  %12178 = vmatmul.mubr.bf16.gmra.mxu0 %v8820
  %v12179 = vpop.f32.mrf.mxu0
  %v12180 = vadd.f32 %v12139, %v12179
  %v12181 = vpop.f32.mrf.mxu0
  %v12182 = vadd.f32 %v12141, %v12181
  %v12183 = vpop.f32.mrf.mxu0
  %v12184 = vpop.f32.mrf.mxu0
  %12185 = vdwg.mxu0
  %12186 = vmatprep.subr.bf16.mxu0 %v11231
  %12187 = vmatpush1.bf16.msra.mxu0 %v11230
  %12188 = vmatprep.subr.bf16.mxu0 %v11223
  %12189 = vmatpush1.bf16.msra.mxu0 %v11222
  %12190 = vmatprep.subr.bf16.mxu0 %v11215
  %12191 = vmatpush1.bf16.msra.mxu0 %v11214
  %12192 = vmatprep.subr.bf16.mxu0 %v11207
  %12193 = vmatpush1.bf16.msra.mxu0 %v11206
  %12194 = vmatprep.subr.bf16.mxu0 %v11199
  %12195 = vmatpush1.bf16.msra.mxu0 %v11198
  %12196 = vmatprep.subr.bf16.mxu0 %v11191
  %12197 = vmatpush1.bf16.msra.mxu0 %v11190
  %12198 = vmatprep.subr.bf16.mxu0 %v11183
  %12199 = vmatpush1.bf16.msra.mxu0 %v11182
  %12200 = vmatprep.subr.bf16.mxu0 %v11175
  %12201 = vmatpush1.bf16.msra.mxu0 %v11174
  %12202 = vmatprep.subr.bf16.mxu0 %v11295
  %12203 = vmatpush2.bf16.msra.mxu0 %v11294
  %12204 = vmatprep.subr.bf16.mxu0 %v11287
  %12205 = vmatpush2.bf16.msra.mxu0 %v11286
  %12206 = vmatprep.subr.bf16.mxu0 %v11279
  %12207 = vmatpush2.bf16.msra.mxu0 %v11278
  %12208 = vmatprep.subr.bf16.mxu0 %v11271
  %12209 = vmatpush2.bf16.msra.mxu0 %v11270
  %12210 = vmatprep.subr.bf16.mxu0 %v11263
  %12211 = vmatpush2.bf16.msra.mxu0 %v11262
  %12212 = vmatprep.subr.bf16.mxu0 %v11255
  %12213 = vmatpush2.bf16.msra.mxu0 %v11254
  %12214 = vmatprep.subr.bf16.mxu0 %v11247
  %12215 = vmatpush2.bf16.msra.mxu0 %v11246
  %12216 = vmatprep.subr.bf16.mxu0 %v11239
  %12217 = vmatpush2.bf16.msra.mxu0 %v11238
  %12218 = vmatprep.mubr.bf16.mxu0 %v8823
  %12219 = vmatmul.mubr.bf16.gmra.mxu0 %v8822
  %v12220 = vpop.f32.mrf.mxu0
  %v12221 = vadd.f32 %v12180, %v12220
  %v12222 = vpop.f32.mrf.mxu0
  %v12223 = vadd.f32 %v12182, %v12222
  %v12224 = vpop.f32.mrf.mxu0
  %v12225 = vpop.f32.mrf.mxu0
  %12226 = vdwg.mxu0
  %12227 = vmatprep.subr.bf16.mxu0 %v11359
  %12228 = vmatpush1.bf16.msra.mxu0 %v11358
  %12229 = vmatprep.subr.bf16.mxu0 %v11351
  %12230 = vmatpush1.bf16.msra.mxu0 %v11350
  %12231 = vmatprep.subr.bf16.mxu0 %v11343
  %12232 = vmatpush1.bf16.msra.mxu0 %v11342
  %12233 = vmatprep.subr.bf16.mxu0 %v11335
  %12234 = vmatpush1.bf16.msra.mxu0 %v11334
  %12235 = vmatprep.subr.bf16.mxu0 %v11327
  %12236 = vmatpush1.bf16.msra.mxu0 %v11326
  %12237 = vmatprep.subr.bf16.mxu0 %v11319
  %12238 = vmatpush1.bf16.msra.mxu0 %v11318
  %12239 = vmatprep.subr.bf16.mxu0 %v11311
  %12240 = vmatpush1.bf16.msra.mxu0 %v11310
  %12241 = vmatprep.subr.bf16.mxu0 %v11303
  %12242 = vmatpush1.bf16.msra.mxu0 %v11302
  %12243 = vmatprep.subr.bf16.mxu0 %v11423
  %12244 = vmatpush2.bf16.msra.mxu0 %v11422
  %12245 = vmatprep.subr.bf16.mxu0 %v11415
  %12246 = vmatpush2.bf16.msra.mxu0 %v11414
  %12247 = vmatprep.subr.bf16.mxu0 %v11407
  %12248 = vmatpush2.bf16.msra.mxu0 %v11406
  %12249 = vmatprep.subr.bf16.mxu0 %v11399
  %12250 = vmatpush2.bf16.msra.mxu0 %v11398
  %12251 = vmatprep.subr.bf16.mxu0 %v11391
  %12252 = vmatpush2.bf16.msra.mxu0 %v11390
  %12253 = vmatprep.subr.bf16.mxu0 %v11383
  %12254 = vmatpush2.bf16.msra.mxu0 %v11382
  %12255 = vmatprep.subr.bf16.mxu0 %v11375
  %12256 = vmatpush2.bf16.msra.mxu0 %v11374
  %12257 = vmatprep.subr.bf16.mxu0 %v11367
  %12258 = vmatpush2.bf16.msra.mxu0 %v11366
  %12259 = vmatprep.mubr.bf16.mxu0 %v8825
  %12260 = vmatmul.mubr.bf16.gmra.mxu0 %v8824
  %v12261 = vpop.f32.mrf.mxu0
  %v12262 = vadd.f32 %v12221, %v12261
  %v12263 = vpop.f32.mrf.mxu0
  %v12264 = vadd.f32 %v12223, %v12263
  %v12265 = vpop.f32.mrf.mxu0
  %v12266 = vpop.f32.mrf.mxu0
  %12267 = vdwg.mxu0
  %12268 = vmatprep.subr.bf16.mxu0 %v10977
  %12269 = vmatpush1.bf16.msra.mxu0 %v10976
  %12270 = vmatprep.subr.bf16.mxu0 %v10969
  %12271 = vmatpush1.bf16.msra.mxu0 %v10968
  %12272 = vmatprep.subr.bf16.mxu0 %v10961
  %12273 = vmatpush1.bf16.msra.mxu0 %v10960
  %12274 = vmatprep.subr.bf16.mxu0 %v10953
  %12275 = vmatpush1.bf16.msra.mxu0 %v10952
  %12276 = vmatprep.subr.bf16.mxu0 %v10945
  %12277 = vmatpush1.bf16.msra.mxu0 %v10944
  %12278 = vmatprep.subr.bf16.mxu0 %v10937
  %12279 = vmatpush1.bf16.msra.mxu0 %v10936
  %12280 = vmatprep.subr.bf16.mxu0 %v10929
  %12281 = vmatpush1.bf16.msra.mxu0 %v10928
  %12282 = vmatprep.subr.bf16.mxu0 %v10921
  %12283 = vmatpush1.bf16.msra.mxu0 %v10920
  %12284 = vmatprep.subr.bf16.mxu0 %v11041
  %12285 = vmatpush2.bf16.msra.mxu0 %v11040
  %12286 = vmatprep.subr.bf16.mxu0 %v11033
  %12287 = vmatpush2.bf16.msra.mxu0 %v11032
  %12288 = vmatprep.subr.bf16.mxu0 %v11025
  %12289 = vmatpush2.bf16.msra.mxu0 %v11024
  %12290 = vmatprep.subr.bf16.mxu0 %v11017
  %12291 = vmatpush2.bf16.msra.mxu0 %v11016
  %12292 = vmatprep.subr.bf16.mxu0 %v11009
  %12293 = vmatpush2.bf16.msra.mxu0 %v11008
  %12294 = vmatprep.subr.bf16.mxu0 %v11001
  %12295 = vmatpush2.bf16.msra.mxu0 %v11000
  %12296 = vmatprep.subr.bf16.mxu0 %v10993
  %12297 = vmatpush2.bf16.msra.mxu0 %v10992
  %12298 = vmatprep.subr.bf16.mxu0 %v10985
  %12299 = vmatpush2.bf16.msra.mxu0 %v10984
  %12300 = vmatprep.mubr.bf16.mxu0 %v8819
  %12301 = vmatmul.mubr.bf16.gmra.mxu0 %v8818
  %v12302 = vpop.f32.mrf.mxu0
  %v12303 = vadd.f32 %v9359, %v12302
  %v12304 = vpop.f32.mrf.mxu0
  %v12305 = vadd.f32 %v9363, %v12304
  %v12306 = vpop.f32.mrf.mxu0
  %v12307 = vpop.f32.mrf.mxu0
  %12308 = vdwg.mxu0
  %12309 = vmatprep.subr.bf16.mxu0 %v11105
  %12310 = vmatpush1.bf16.msra.mxu0 %v11104
  %12311 = vmatprep.subr.bf16.mxu0 %v11097
  %12312 = vmatpush1.bf16.msra.mxu0 %v11096
  %12313 = vmatprep.subr.bf16.mxu0 %v11089
  %12314 = vmatpush1.bf16.msra.mxu0 %v11088
  %12315 = vmatprep.subr.bf16.mxu0 %v11081
  %12316 = vmatpush1.bf16.msra.mxu0 %v11080
  %12317 = vmatprep.subr.bf16.mxu0 %v11073
  %12318 = vmatpush1.bf16.msra.mxu0 %v11072
  %12319 = vmatprep.subr.bf16.mxu0 %v11065
  %12320 = vmatpush1.bf16.msra.mxu0 %v11064
  %12321 = vmatprep.subr.bf16.mxu0 %v11057
  %12322 = vmatpush1.bf16.msra.mxu0 %v11056
  %12323 = vmatprep.subr.bf16.mxu0 %v11049
  %12324 = vmatpush1.bf16.msra.mxu0 %v11048
  %12325 = vmatprep.subr.bf16.mxu0 %v11169
  %12326 = vmatpush2.bf16.msra.mxu0 %v11168
  %12327 = vmatprep.subr.bf16.mxu0 %v11161
  %12328 = vmatpush2.bf16.msra.mxu0 %v11160
  %12329 = vmatprep.subr.bf16.mxu0 %v11153
  %12330 = vmatpush2.bf16.msra.mxu0 %v11152
  %12331 = vmatprep.subr.bf16.mxu0 %v11145
  %12332 = vmatpush2.bf16.msra.mxu0 %v11144
  %12333 = vmatprep.subr.bf16.mxu0 %v11137
  %12334 = vmatpush2.bf16.msra.mxu0 %v11136
  %12335 = vmatprep.subr.bf16.mxu0 %v11129
  %12336 = vmatpush2.bf16.msra.mxu0 %v11128
  %12337 = vmatprep.subr.bf16.mxu0 %v11121
  %12338 = vmatpush2.bf16.msra.mxu0 %v11120
  %12339 = vmatprep.subr.bf16.mxu0 %v11113
  %12340 = vmatpush2.bf16.msra.mxu0 %v11112
  %12341 = vmatprep.mubr.bf16.mxu0 %v8821
  %12342 = vmatmul.mubr.bf16.gmra.mxu0 %v8820
  %v12343 = vpop.f32.mrf.mxu0
  %v12344 = vadd.f32 %v12303, %v12343
  %v12345 = vpop.f32.mrf.mxu0
  %v12346 = vadd.f32 %v12305, %v12345
  %v12347 = vpop.f32.mrf.mxu0
  %v12348 = vpop.f32.mrf.mxu0
  %12349 = vdwg.mxu0
  %12350 = vmatprep.subr.bf16.mxu0 %v11233
  %12351 = vmatpush1.bf16.msra.mxu0 %v11232
  %12352 = vmatprep.subr.bf16.mxu0 %v11225
  %12353 = vmatpush1.bf16.msra.mxu0 %v11224
  %12354 = vmatprep.subr.bf16.mxu0 %v11217
  %12355 = vmatpush1.bf16.msra.mxu0 %v11216
  %12356 = vmatprep.subr.bf16.mxu0 %v11209
  %12357 = vmatpush1.bf16.msra.mxu0 %v11208
  %12358 = vmatprep.subr.bf16.mxu0 %v11201
  %12359 = vmatpush1.bf16.msra.mxu0 %v11200
  %12360 = vmatprep.subr.bf16.mxu0 %v11193
  %12361 = vmatpush1.bf16.msra.mxu0 %v11192
  %12362 = vmatprep.subr.bf16.mxu0 %v11185
  %12363 = vmatpush1.bf16.msra.mxu0 %v11184
  %12364 = vmatprep.subr.bf16.mxu0 %v11177
  %12365 = vmatpush1.bf16.msra.mxu0 %v11176
  %12366 = vmatprep.subr.bf16.mxu0 %v11297
  %12367 = vmatpush2.bf16.msra.mxu0 %v11296
  %12368 = vmatprep.subr.bf16.mxu0 %v11289
  %12369 = vmatpush2.bf16.msra.mxu0 %v11288
  %12370 = vmatprep.subr.bf16.mxu0 %v11281
  %12371 = vmatpush2.bf16.msra.mxu0 %v11280
  %12372 = vmatprep.subr.bf16.mxu0 %v11273
  %12373 = vmatpush2.bf16.msra.mxu0 %v11272
  %12374 = vmatprep.subr.bf16.mxu0 %v11265
  %12375 = vmatpush2.bf16.msra.mxu0 %v11264
  %12376 = vmatprep.subr.bf16.mxu0 %v11257
  %12377 = vmatpush2.bf16.msra.mxu0 %v11256
  %12378 = vmatprep.subr.bf16.mxu0 %v11249
  %12379 = vmatpush2.bf16.msra.mxu0 %v11248
  %12380 = vmatprep.subr.bf16.mxu0 %v11241
  %12381 = vmatpush2.bf16.msra.mxu0 %v11240
  %12382 = vmatprep.mubr.bf16.mxu0 %v8823
  %12383 = vmatmul.mubr.bf16.gmra.mxu0 %v8822
  %v12384 = vpop.f32.mrf.mxu0
  %v12385 = vadd.f32 %v12344, %v12384
  %v12386 = vpop.f32.mrf.mxu0
  %v12387 = vadd.f32 %v12346, %v12386
  %v12388 = vpop.f32.mrf.mxu0
  %v12389 = vpop.f32.mrf.mxu0
  %12390 = vdwg.mxu0
  %12391 = vmatprep.subr.bf16.mxu0 %v11361
  %12392 = vmatpush1.bf16.msra.mxu0 %v11360
  %12393 = vmatprep.subr.bf16.mxu0 %v11353
  %12394 = vmatpush1.bf16.msra.mxu0 %v11352
  %12395 = vmatprep.subr.bf16.mxu0 %v11345
  %12396 = vmatpush1.bf16.msra.mxu0 %v11344
  %12397 = vmatprep.subr.bf16.mxu0 %v11337
  %12398 = vmatpush1.bf16.msra.mxu0 %v11336
  %12399 = vmatprep.subr.bf16.mxu0 %v11329
  %12400 = vmatpush1.bf16.msra.mxu0 %v11328
  %12401 = vmatprep.subr.bf16.mxu0 %v11321
  %12402 = vmatpush1.bf16.msra.mxu0 %v11320
  %12403 = vmatprep.subr.bf16.mxu0 %v11313
  %12404 = vmatpush1.bf16.msra.mxu0 %v11312
  %12405 = vmatprep.subr.bf16.mxu0 %v11305
  %12406 = vmatpush1.bf16.msra.mxu0 %v11304
  %12407 = vmatprep.subr.bf16.mxu0 %v11425
  %12408 = vmatpush2.bf16.msra.mxu0 %v11424
  %12409 = vmatprep.subr.bf16.mxu0 %v11417
  %12410 = vmatpush2.bf16.msra.mxu0 %v11416
  %12411 = vmatprep.subr.bf16.mxu0 %v11409
  %12412 = vmatpush2.bf16.msra.mxu0 %v11408
  %12413 = vmatprep.subr.bf16.mxu0 %v11401
  %12414 = vmatpush2.bf16.msra.mxu0 %v11400
  %12415 = vmatprep.subr.bf16.mxu0 %v11393
  %12416 = vmatpush2.bf16.msra.mxu0 %v11392
  %12417 = vmatprep.subr.bf16.mxu0 %v11385
  %12418 = vmatpush2.bf16.msra.mxu0 %v11384
  %12419 = vmatprep.subr.bf16.mxu0 %v11377
  %12420 = vmatpush2.bf16.msra.mxu0 %v11376
  %12421 = vmatprep.subr.bf16.mxu0 %v11369
  %12422 = vmatpush2.bf16.msra.mxu0 %v11368
  %12423 = vmatprep.mubr.bf16.mxu0 %v8825
  %12424 = vmatmul.mubr.bf16.gmra.mxu0 %v8824
  %v12425 = vpop.f32.mrf.mxu0
  %v12426 = vadd.f32 %v12385, %v12425
  %v12427 = vpop.f32.mrf.mxu0
  %v12428 = vadd.f32 %v12387, %v12427
  %v12429 = vpop.f32.mrf.mxu0
  %v12430 = vpop.f32.mrf.mxu0
  %12431 = vdwg.mxu0
  %12432 = vmatprep.subr.bf16.mxu0 %v10979
  %12433 = vmatpush1.bf16.msra.mxu0 %v10978
  %12434 = vmatprep.subr.bf16.mxu0 %v10971
  %12435 = vmatpush1.bf16.msra.mxu0 %v10970
  %12436 = vmatprep.subr.bf16.mxu0 %v10963
  %12437 = vmatpush1.bf16.msra.mxu0 %v10962
  %12438 = vmatprep.subr.bf16.mxu0 %v10955
  %12439 = vmatpush1.bf16.msra.mxu0 %v10954
  %12440 = vmatprep.subr.bf16.mxu0 %v10947
  %12441 = vmatpush1.bf16.msra.mxu0 %v10946
  %12442 = vmatprep.subr.bf16.mxu0 %v10939
  %12443 = vmatpush1.bf16.msra.mxu0 %v10938
  %12444 = vmatprep.subr.bf16.mxu0 %v10931
  %12445 = vmatpush1.bf16.msra.mxu0 %v10930
  %12446 = vmatprep.subr.bf16.mxu0 %v10923
  %12447 = vmatpush1.bf16.msra.mxu0 %v10922
  %12448 = vmatprep.subr.bf16.mxu0 %v11043
  %12449 = vmatpush2.bf16.msra.mxu0 %v11042
  %12450 = vmatprep.subr.bf16.mxu0 %v11035
  %12451 = vmatpush2.bf16.msra.mxu0 %v11034
  %12452 = vmatprep.subr.bf16.mxu0 %v11027
  %12453 = vmatpush2.bf16.msra.mxu0 %v11026
  %12454 = vmatprep.subr.bf16.mxu0 %v11019
  %12455 = vmatpush2.bf16.msra.mxu0 %v11018
  %12456 = vmatprep.subr.bf16.mxu0 %v11011
  %12457 = vmatpush2.bf16.msra.mxu0 %v11010
  %12458 = vmatprep.subr.bf16.mxu0 %v11003
  %12459 = vmatpush2.bf16.msra.mxu0 %v11002
  %12460 = vmatprep.subr.bf16.mxu0 %v10995
  %12461 = vmatpush2.bf16.msra.mxu0 %v10994
  %12462 = vmatprep.subr.bf16.mxu0 %v10987
  %12463 = vmatpush2.bf16.msra.mxu0 %v10986
  %12464 = vmatprep.mubr.bf16.mxu0 %v8819
  %12465 = vmatmul.mubr.bf16.gmra.mxu0 %v8818
  %v12466 = vpop.f32.mrf.mxu0
  %v12467 = vadd.f32 %v9367, %v12466
  %v12468 = vpop.f32.mrf.mxu0
  %v12469 = vadd.f32 %v9371, %v12468
  %v12470 = vpop.f32.mrf.mxu0
  %v12471 = vpop.f32.mrf.mxu0
  %12472 = vdwg.mxu0
  %12473 = vmatprep.subr.bf16.mxu0 %v11107
  %12474 = vmatpush1.bf16.msra.mxu0 %v11106
  %12475 = vmatprep.subr.bf16.mxu0 %v11099
  %12476 = vmatpush1.bf16.msra.mxu0 %v11098
  %12477 = vmatprep.subr.bf16.mxu0 %v11091
  %12478 = vmatpush1.bf16.msra.mxu0 %v11090
  %12479 = vmatprep.subr.bf16.mxu0 %v11083
  %12480 = vmatpush1.bf16.msra.mxu0 %v11082
  %12481 = vmatprep.subr.bf16.mxu0 %v11075
  %12482 = vmatpush1.bf16.msra.mxu0 %v11074
  %12483 = vmatprep.subr.bf16.mxu0 %v11067
  %12484 = vmatpush1.bf16.msra.mxu0 %v11066
  %12485 = vmatprep.subr.bf16.mxu0 %v11059
  %12486 = vmatpush1.bf16.msra.mxu0 %v11058
  %12487 = vmatprep.subr.bf16.mxu0 %v11051
  %12488 = vmatpush1.bf16.msra.mxu0 %v11050
  %12489 = vmatprep.subr.bf16.mxu0 %v11171
  %12490 = vmatpush2.bf16.msra.mxu0 %v11170
  %12491 = vmatprep.subr.bf16.mxu0 %v11163
  %12492 = vmatpush2.bf16.msra.mxu0 %v11162
  %12493 = vmatprep.subr.bf16.mxu0 %v11155
  %12494 = vmatpush2.bf16.msra.mxu0 %v11154
  %12495 = vmatprep.subr.bf16.mxu0 %v11147
  %12496 = vmatpush2.bf16.msra.mxu0 %v11146
  %12497 = vmatprep.subr.bf16.mxu0 %v11139
  %12498 = vmatpush2.bf16.msra.mxu0 %v11138
  %12499 = vmatprep.subr.bf16.mxu0 %v11131
  %12500 = vmatpush2.bf16.msra.mxu0 %v11130
  %12501 = vmatprep.subr.bf16.mxu0 %v11123
  %12502 = vmatpush2.bf16.msra.mxu0 %v11122
  %12503 = vmatprep.subr.bf16.mxu0 %v11115
  %12504 = vmatpush2.bf16.msra.mxu0 %v11114
  %12505 = vmatprep.mubr.bf16.mxu0 %v8821
  %12506 = vmatmul.mubr.bf16.gmra.mxu0 %v8820
  %v12507 = vpop.f32.mrf.mxu0
  %v12508 = vadd.f32 %v12467, %v12507
  %v12509 = vpop.f32.mrf.mxu0
  %v12510 = vadd.f32 %v12469, %v12509
  %v12511 = vpop.f32.mrf.mxu0
  %v12512 = vpop.f32.mrf.mxu0
  %12513 = vdwg.mxu0
  %12514 = vmatprep.subr.bf16.mxu0 %v11235
  %12515 = vmatpush1.bf16.msra.mxu0 %v11234
  %12516 = vmatprep.subr.bf16.mxu0 %v11227
  %12517 = vmatpush1.bf16.msra.mxu0 %v11226
  %12518 = vmatprep.subr.bf16.mxu0 %v11219
  %12519 = vmatpush1.bf16.msra.mxu0 %v11218
  %12520 = vmatprep.subr.bf16.mxu0 %v11211
  %12521 = vmatpush1.bf16.msra.mxu0 %v11210
  %12522 = vmatprep.subr.bf16.mxu0 %v11203
  %12523 = vmatpush1.bf16.msra.mxu0 %v11202
  %12524 = vmatprep.subr.bf16.mxu0 %v11195
  %12525 = vmatpush1.bf16.msra.mxu0 %v11194
  %12526 = vmatprep.subr.bf16.mxu0 %v11187
  %12527 = vmatpush1.bf16.msra.mxu0 %v11186
  %12528 = vmatprep.subr.bf16.mxu0 %v11179
  %12529 = vmatpush1.bf16.msra.mxu0 %v11178
  %12530 = vmatprep.subr.bf16.mxu0 %v11299
  %12531 = vmatpush2.bf16.msra.mxu0 %v11298
  %12532 = vmatprep.subr.bf16.mxu0 %v11291
  %12533 = vmatpush2.bf16.msra.mxu0 %v11290
  %12534 = vmatprep.subr.bf16.mxu0 %v11283
  %12535 = vmatpush2.bf16.msra.mxu0 %v11282
  %12536 = vmatprep.subr.bf16.mxu0 %v11275
  %12537 = vmatpush2.bf16.msra.mxu0 %v11274
  %12538 = vmatprep.subr.bf16.mxu0 %v11267
  %12539 = vmatpush2.bf16.msra.mxu0 %v11266
  %12540 = vmatprep.subr.bf16.mxu0 %v11259
  %12541 = vmatpush2.bf16.msra.mxu0 %v11258
  %12542 = vmatprep.subr.bf16.mxu0 %v11251
  %12543 = vmatpush2.bf16.msra.mxu0 %v11250
  %12544 = vmatprep.subr.bf16.mxu0 %v11243
  %12545 = vmatpush2.bf16.msra.mxu0 %v11242
  %12546 = vmatprep.mubr.bf16.mxu0 %v8823
  %12547 = vmatmul.mubr.bf16.gmra.mxu0 %v8822
  %v12548 = vpop.f32.mrf.mxu0
  %v12549 = vadd.f32 %v12508, %v12548
  %v12550 = vpop.f32.mrf.mxu0
  %v12551 = vadd.f32 %v12510, %v12550
  %v12552 = vpop.f32.mrf.mxu0
  %v12553 = vpop.f32.mrf.mxu0
  %12554 = vdwg.mxu0
  %12555 = vmatprep.subr.bf16.mxu0 %v11363
  %12556 = vmatpush1.bf16.msra.mxu0 %v11362
  %12557 = vmatprep.subr.bf16.mxu0 %v11355
  %12558 = vmatpush1.bf16.msra.mxu0 %v11354
  %12559 = vmatprep.subr.bf16.mxu0 %v11347
  %12560 = vmatpush1.bf16.msra.mxu0 %v11346
  %12561 = vmatprep.subr.bf16.mxu0 %v11339
  %12562 = vmatpush1.bf16.msra.mxu0 %v11338
  %12563 = vmatprep.subr.bf16.mxu0 %v11331
  %12564 = vmatpush1.bf16.msra.mxu0 %v11330
  %12565 = vmatprep.subr.bf16.mxu0 %v11323
  %12566 = vmatpush1.bf16.msra.mxu0 %v11322
  %12567 = vmatprep.subr.bf16.mxu0 %v11315
  %12568 = vmatpush1.bf16.msra.mxu0 %v11314
  %12569 = vmatprep.subr.bf16.mxu0 %v11307
  %12570 = vmatpush1.bf16.msra.mxu0 %v11306
  %12571 = vmatprep.subr.bf16.mxu0 %v11427
  %12572 = vmatpush2.bf16.msra.mxu0 %v11426
  %12573 = vmatprep.subr.bf16.mxu0 %v11419
  %12574 = vmatpush2.bf16.msra.mxu0 %v11418
  %12575 = vmatprep.subr.bf16.mxu0 %v11411
  %12576 = vmatpush2.bf16.msra.mxu0 %v11410
  %12577 = vmatprep.subr.bf16.mxu0 %v11403
  %12578 = vmatpush2.bf16.msra.mxu0 %v11402
  %12579 = vmatprep.subr.bf16.mxu0 %v11395
  %12580 = vmatpush2.bf16.msra.mxu0 %v11394
  %12581 = vmatprep.subr.bf16.mxu0 %v11387
  %12582 = vmatpush2.bf16.msra.mxu0 %v11386
  %12583 = vmatprep.subr.bf16.mxu0 %v11379
  %12584 = vmatpush2.bf16.msra.mxu0 %v11378
  %12585 = vmatprep.subr.bf16.mxu0 %v11371
  %12586 = vmatpush2.bf16.msra.mxu0 %v11370
  %12587 = vmatprep.mubr.bf16.mxu0 %v8825
  %12588 = vmatmul.mubr.bf16.gmra.mxu0 %v8824
  %v12589 = vpop.f32.mrf.mxu0
  %v12590 = vadd.f32 %v12549, %v12589
  %v12591 = vpop.f32.mrf.mxu0
  %v12592 = vadd.f32 %v12551, %v12591
  %v12593 = vpop.f32.mrf.mxu0
  %v12594 = vpop.f32.mrf.mxu0
  %12595 = vdwg.mxu0
  %v12596 = vmax.f32 %v12098, 0.0
  %v12597 = vmax.f32 %v12100, 0.0
  %v12598 = vmax.f32 %v12262, 0.0
  %v12599 = vmax.f32 %v12264, 0.0
  %v12600 = vmax.f32 %v12426, 0.0
  %v12601 = vmax.f32 %v12428, 0.0
  %v12602 = vmax.f32 %v12590, 0.0
  %v12603 = vmax.f32 %v12592, 0.0
  %v12604 = vpack.c.bf16 %v12596, %v12596
  %v12605 = vpack.c.bf16 %v12597, %v12597
  %v12606 = vpack.c.bf16 %v12598, %v12598
  %v12607 = vpack.c.bf16 %v12599, %v12599
  %v12608 = vpack.c.bf16 %v12600, %v12600
  %v12609 = vpack.c.bf16 %v12601, %v12601
  %v12610 = vpack.c.bf16 %v12602, %v12602
  %v12611 = vpack.c.bf16 %v12603, %v12603
  %v12612 = vld [vmem:[%s12] sm:$0xff]
  %v12613 = vld [vmem:[%s12 + $0x8] sm:$0xff]
  %v12614 = vld [vmem:[%s12 + $0x10] sm:$0xff]
  %v12615 = vld [vmem:[%s12 + $0x18] sm:$0xf]
  %v12616 = vld [vmem:[%s12 + $0x1c] sm:$0xff]
  %v12617 = vld [vmem:[%s12 + $0x24] sm:$0xff]
  %v12618 = vld [vmem:[%s12 + $0x2c] sm:$0xff]
  %v12619 = vld [vmem:[%s12 + $0x34] sm:$0xf]
  %v12620 = vld [vmem:[%s12 + $0x38] sm:$0xff]
  %v12621 = vld [vmem:[%s12 + $0x40] sm:$0xff]
  %v12622 = vld [vmem:[%s12 + $0x48] sm:$0xff]
  %v12623 = vld [vmem:[%s12 + $0x50] sm:$0xf]
  %v12624 = vld [vmem:[%s12 + $0x54] sm:$0xff]
  %v12625 = vld [vmem:[%s12 + $0x5c] sm:$0xff]
  %v12626 = vld [vmem:[%s12 + $0x64] sm:$0xff]
  %v12627 = vld [vmem:[%s12 + $0x6c] sm:$0xf]
  %v12628 = vld [vmem:[%s12 + $0x70] sm:$0xff]
  %v12629 = vld [vmem:[%s12 + $0x78] sm:$0xff]
  %v12630 = vld [vmem:[%s12 + $0x80] sm:$0xff]
  %v12631 = vld [vmem:[%s12 + $0x88] sm:$0xf]
  %v12632 = vld [vmem:[%s12 + $0x8c] sm:$0xff]
  %v12633 = vld [vmem:[%s12 + $0x94] sm:$0xff]
  %v12634 = vld [vmem:[%s12 + $0x9c] sm:$0xff]
  %v12635 = vld [vmem:[%s12 + $0xa4] sm:$0xf]
  %v12636 = vld [vmem:[%s12 + $0xa8] sm:$0xff]
  %v12637 = vld [vmem:[%s12 + $0xb0] sm:$0xff]
  %v12638 = vld [vmem:[%s12 + $0xb8] sm:$0xff]
  %v12639 = vld [vmem:[%s12 + $0xc0] sm:$0xf]
  %v12640 = vld [vmem:[%s12 + $0xc4] sm:$0xff]
  %v12641 = vld [vmem:[%s12 + $0xcc] sm:$0xff]
  %v12642 = vld [vmem:[%s12 + $0xd4] sm:$0xff]
  %v12643 = vld [vmem:[%s12 + $0xdc] sm:$0xf]
  %v12644 = vld [vmem:[%s12 + $0xe0] sm:$0xff]
  %v12645 = vld [vmem:[%s12 + $0xe8] sm:$0xff]
  %v12646 = vld [vmem:[%s12 + $0xf0] sm:$0xff]
  %v12647 = vld [vmem:[%s12 + $0xf8] sm:$0xf]
  %v12648 = vld [vmem:[%s12 + $0xfc] sm:$0xff]
  %v12649 = vld [vmem:[%s12 + $0x104] sm:$0xff]
  %v12650 = vld [vmem:[%s12 + $0x10c] sm:$0xff]
  %v12651 = vld [vmem:[%s12 + $0x114] sm:$0xf]
  %v12652 = vld [vmem:[%s12 + $0x118] sm:$0xff]
  %v12653 = vld [vmem:[%s12 + $0x120] sm:$0xff]
  %v12654 = vld [vmem:[%s12 + $0x128] sm:$0xff]
  %v12655 = vld [vmem:[%s12 + $0x130] sm:$0xf]
  %v12656 = vld [vmem:[%s12 + $0x134] sm:$0xff]
  %v12657 = vld [vmem:[%s12 + $0x13c] sm:$0xff]
  %v12658 = vld [vmem:[%s12 + $0x144] sm:$0xff]
  %v12659 = vld [vmem:[%s12 + $0x14c] sm:$0xf]
  %v12660 = vld [vmem:[%s12 + $0x150] sm:$0xff]
  %v12661 = vld [vmem:[%s12 + $0x158] sm:$0xff]
  %v12662 = vld [vmem:[%s12 + $0x160] sm:$0xff]
  %v12663 = vld [vmem:[%s12 + $0x168] sm:$0xf]
  %v12664 = vld [vmem:[%s12 + $0x16c] sm:$0xff]
  %v12665 = vld [vmem:[%s12 + $0x174] sm:$0xff]
  %v12666 = vld [vmem:[%s12 + $0x17c] sm:$0xff]
  %v12667 = vld [vmem:[%s12 + $0x184] sm:$0xf]
  %v12668 = vld [vmem:[%s12 + $0x188] sm:$0xff]
  %v12669 = vld [vmem:[%s12 + $0x190] sm:$0xff]
  %v12670 = vld [vmem:[%s12 + $0x198] sm:$0xff]
  %v12671 = vld [vmem:[%s12 + $0x1a0] sm:$0xf]
  %v12672 = vld [vmem:[%s12 + $0x1a4] sm:$0xff]
  %v12673 = vld [vmem:[%s12 + $0x1ac] sm:$0xff]
  %v12674 = vld [vmem:[%s12 + $0x1b4] sm:$0xff]
  %v12675 = vld [vmem:[%s12 + $0x1bc] sm:$0xf]
  %v12676 = vld [vmem:[%s12 + $0x1c0] sm:$0xff]
  %v12677 = vld [vmem:[%s12 + $0x1c8] sm:$0xff]
  %v12678 = vld [vmem:[%s12 + $0x1d0] sm:$0xff]
  %v12679 = vld [vmem:[%s12 + $0x1d8] sm:$0xf]
  %v12680 = vld [vmem:[%s12 + $0x1dc] sm:$0xff]
  %v12681 = vld [vmem:[%s12 + $0x1e4] sm:$0xff]
  %v12682 = vld [vmem:[%s12 + $0x1ec] sm:$0xff]
  %v12683 = vld [vmem:[%s12 + $0x1f4] sm:$0xf]
  %v12684 = vld [vmem:[%s12 + $0x1f8] sm:$0xff]
  %v12685 = vld [vmem:[%s12 + $0x200] sm:$0xff]
  %v12686 = vld [vmem:[%s12 + $0x208] sm:$0xff]
  %v12687 = vld [vmem:[%s12 + $0x210] sm:$0xf]
  %v12688 = vld [vmem:[%s12 + $0x214] sm:$0xff]
  %v12689 = vld [vmem:[%s12 + $0x21c] sm:$0xff]
  %v12690 = vld [vmem:[%s12 + $0x224] sm:$0xff]
  %v12691 = vld [vmem:[%s12 + $0x22c] sm:$0xf]
  %v12692 = vld [vmem:[%s12 + $0x230] sm:$0xff]
  %v12693 = vld [vmem:[%s12 + $0x238] sm:$0xff]
  %v12694 = vld [vmem:[%s12 + $0x240] sm:$0xff]
  %v12695 = vld [vmem:[%s12 + $0x248] sm:$0xf]
  %v12696 = vld [vmem:[%s12 + $0x24c] sm:$0xff]
  %v12697 = vld [vmem:[%s12 + $0x254] sm:$0xff]
  %v12698 = vld [vmem:[%s12 + $0x25c] sm:$0xff]
  %v12699 = vld [vmem:[%s12 + $0x264] sm:$0xf]
  %v12700 = vld [vmem:[%s12 + $0x268] sm:$0xff]
  %v12701 = vld [vmem:[%s12 + $0x270] sm:$0xff]
  %v12702 = vld [vmem:[%s12 + $0x278] sm:$0xff]
  %v12703 = vld [vmem:[%s12 + $0x280] sm:$0xf]
  %v12704 = vld [vmem:[%s12 + $0x284] sm:$0xff]
  %v12705 = vld [vmem:[%s12 + $0x28c] sm:$0xff]
  %v12706 = vld [vmem:[%s12 + $0x294] sm:$0xff]
  %v12707 = vld [vmem:[%s12 + $0x29c] sm:$0xf]
  %v12708 = vld [vmem:[%s12 + $0x2a0] sm:$0xff]
  %v12709 = vld [vmem:[%s12 + $0x2a8] sm:$0xff]
  %v12710 = vld [vmem:[%s12 + $0x2b0] sm:$0xff]
  %v12711 = vld [vmem:[%s12 + $0x2b8] sm:$0xf]
  %v12712 = vld [vmem:[%s12 + $0x2bc] sm:$0xff]
  %v12713 = vld [vmem:[%s12 + $0x2c4] sm:$0xff]
  %v12714 = vld [vmem:[%s12 + $0x2cc] sm:$0xff]
  %v12715 = vld [vmem:[%s12 + $0x2d4] sm:$0xf]
  %v12716 = vld [vmem:[%s12 + $0x2d8] sm:$0xff]
  %v12717 = vld [vmem:[%s12 + $0x2e0] sm:$0xff]
  %v12718 = vld [vmem:[%s12 + $0x2e8] sm:$0xff]
  %v12719 = vld [vmem:[%s12 + $0x2f0] sm:$0xf]
  %v12720 = vld [vmem:[%s12 + $0x2f4] sm:$0xff]
  %v12721 = vld [vmem:[%s12 + $0x2fc] sm:$0xff]
  %v12722 = vld [vmem:[%s12 + $0x304] sm:$0xff]
  %v12723 = vld [vmem:[%s12 + $0x30c] sm:$0xf]
  %v12724 = vld [vmem:[%s12 + $0x310] sm:$0xff]
  %v12725 = vld [vmem:[%s12 + $0x318] sm:$0xff]
  %v12726 = vld [vmem:[%s12 + $0x320] sm:$0xff]
  %v12727 = vld [vmem:[%s12 + $0x328] sm:$0xf]
  %v12728 = vld [vmem:[%s12 + $0x32c] sm:$0xff]
  %v12729 = vld [vmem:[%s12 + $0x334] sm:$0xff]
  %v12730 = vld [vmem:[%s12 + $0x33c] sm:$0xff]
  %v12731 = vld [vmem:[%s12 + $0x344] sm:$0xf]
  %v12732 = vld [vmem:[%s12 + $0x348] sm:$0xff]
  %v12733 = vld [vmem:[%s12 + $0x350] sm:$0xff]
  %v12734 = vld [vmem:[%s12 + $0x358] sm:$0xff]
  %v12735 = vld [vmem:[%s12 + $0x360] sm:$0xf]
  %v12736 = vld [vmem:[%s12 + $0x364] sm:$0xff]
  %v12737 = vld [vmem:[%s12 + $0x36c] sm:$0xff]
  %v12738 = vld [vmem:[%s12 + $0x374] sm:$0xff]
  %v12739 = vld [vmem:[%s12 + $0x37c] sm:$0xf]
  %v12740 = vld [vmem:[%s12 + $0x380] sm:$0xff]
  %v12741 = vld [vmem:[%s12 + $0x388] sm:$0xff]
  %v12742 = vld [vmem:[%s12 + $0x390] sm:$0xff]
  %v12743 = vld [vmem:[%s12 + $0x398] sm:$0xf]
  %v12744 = vld [vmem:[%s12 + $0x39c] sm:$0xff]
  %v12745 = vld [vmem:[%s12 + $0x3a4] sm:$0xff]
  %v12746 = vld [vmem:[%s12 + $0x3ac] sm:$0xff]
  %v12747 = vld [vmem:[%s12 + $0x3b4] sm:$0xf]
  %v12748 = vld [vmem:[%s12 + $0x3b8] sm:$0xff]
  %v12749 = vld [vmem:[%s12 + $0x3c0] sm:$0xff]
  %v12750 = vld [vmem:[%s12 + $0x3c8] sm:$0xff]
  %v12751 = vld [vmem:[%s12 + $0x3d0] sm:$0xf]
  %v12752 = vld [vmem:[%s12 + $0x3d4] sm:$0xff]
  %v12753 = vld [vmem:[%s12 + $0x3dc] sm:$0xff]
  %v12754 = vld [vmem:[%s12 + $0x3e4] sm:$0xff]
  %v12755 = vld [vmem:[%s12 + $0x3ec] sm:$0xf]
  %v12756 = vld [vmem:[%s12 + $0x3f0] sm:$0xff]
  %v12757 = vld [vmem:[%s12 + $0x3f8] sm:$0xff]
  %v12758 = vld [vmem:[%s12 + $0x400] sm:$0xff]
  %v12759 = vld [vmem:[%s12 + $0x408] sm:$0xf]
  %v12760 = vld [vmem:[%s12 + $0x40c] sm:$0xff]
  %v12761 = vld [vmem:[%s12 + $0x414] sm:$0xff]
  %v12762 = vld [vmem:[%s12 + $0x41c] sm:$0xff]
  %v12763 = vld [vmem:[%s12 + $0x424] sm:$0xf]
  %v12764 = vld [vmem:[%s12 + $0x428] sm:$0xff]
  %v12765 = vld [vmem:[%s12 + $0x430] sm:$0xff]
  %v12766 = vld [vmem:[%s12 + $0x438] sm:$0xff]
  %v12767 = vld [vmem:[%s12 + $0x440] sm:$0xf]
  %v12768 = vld [vmem:[%s12 + $0x444] sm:$0xff]
  %v12769 = vld [vmem:[%s12 + $0x44c] sm:$0xff]
  %v12770 = vld [vmem:[%s12 + $0x454] sm:$0xff]
  %v12771 = vld [vmem:[%s12 + $0x45c] sm:$0xf]
  %v12772 = vld [vmem:[%s12 + $0x460] sm:$0xff]
  %v12773 = vld [vmem:[%s12 + $0x468] sm:$0xff]
  %v12774 = vld [vmem:[%s12 + $0x470] sm:$0xff]
  %v12775 = vld [vmem:[%s12 + $0x478] sm:$0xf]
  %v12776 = vld [vmem:[%s12 + $0x47c] sm:$0xff]
  %v12777 = vld [vmem:[%s12 + $0x484] sm:$0xff]
  %v12778 = vld [vmem:[%s12 + $0x48c] sm:$0xff]
  %v12779 = vld [vmem:[%s12 + $0x494] sm:$0xf]
  %v12780 = vld [vmem:[%s12 + $0x498] sm:$0xff]
  %v12781 = vld [vmem:[%s12 + $0x4a0] sm:$0xff]
  %v12782 = vld [vmem:[%s12 + $0x4a8] sm:$0xff]
  %v12783 = vld [vmem:[%s12 + $0x4b0] sm:$0xf]
  %v12784 = vld [vmem:[%s12 + $0x4b4] sm:$0xff]
  %v12785 = vld [vmem:[%s12 + $0x4bc] sm:$0xff]
  %v12786 = vld [vmem:[%s12 + $0x4c4] sm:$0xff]
  %v12787 = vld [vmem:[%s12 + $0x4cc] sm:$0xf]
  %v12788 = vld [vmem:[%s12 + $0x4d0] sm:$0xff]
  %v12789 = vld [vmem:[%s12 + $0x4d8] sm:$0xff]
  %v12790 = vld [vmem:[%s12 + $0x4e0] sm:$0xff]
  %v12791 = vld [vmem:[%s12 + $0x4e8] sm:$0xf]
  %v12792 = vld [vmem:[%s12 + $0x4ec] sm:$0xff]
  %v12793 = vld [vmem:[%s12 + $0x4f4] sm:$0xff]
  %v12794 = vld [vmem:[%s12 + $0x4fc] sm:$0xff]
  %v12795 = vld [vmem:[%s12 + $0x504] sm:$0xf]
  %v12796 = vld [vmem:[%s12 + $0x508] sm:$0xff]
  %v12797 = vld [vmem:[%s12 + $0x510] sm:$0xff]
  %v12798 = vld [vmem:[%s12 + $0x518] sm:$0xff]
  %v12799 = vld [vmem:[%s12 + $0x520] sm:$0xf]
  %v12800 = vld [vmem:[%s12 + $0x524] sm:$0xff]
  %v12801 = vld [vmem:[%s12 + $0x52c] sm:$0xff]
  %v12802 = vld [vmem:[%s12 + $0x534] sm:$0xff]
  %v12803 = vld [vmem:[%s12 + $0x53c] sm:$0xf]
  %v12804 = vld [vmem:[%s12 + $0x540] sm:$0xff]
  %v12805 = vld [vmem:[%s12 + $0x548] sm:$0xff]
  %v12806 = vld [vmem:[%s12 + $0x550] sm:$0xff]
  %v12807 = vld [vmem:[%s12 + $0x558] sm:$0xf]
  %v12808 = vld [vmem:[%s12 + $0x55c] sm:$0xff]
  %v12809 = vld [vmem:[%s12 + $0x564] sm:$0xff]
  %v12810 = vld [vmem:[%s12 + $0x56c] sm:$0xff]
  %v12811 = vld [vmem:[%s12 + $0x574] sm:$0xf]
  %v12812 = vld [vmem:[%s12 + $0x578] sm:$0xff]
  %v12813 = vld [vmem:[%s12 + $0x580] sm:$0xff]
  %v12814 = vld [vmem:[%s12 + $0x588] sm:$0xff]
  %v12815 = vld [vmem:[%s12 + $0x590] sm:$0xf]
  %v12816 = vld [vmem:[%s12 + $0x594] sm:$0xff]
  %v12817 = vld [vmem:[%s12 + $0x59c] sm:$0xff]
  %v12818 = vld [vmem:[%s12 + $0x5a4] sm:$0xff]
  %v12819 = vld [vmem:[%s12 + $0x5ac] sm:$0xf]
  %v12820 = vld [vmem:[%s12 + $0x5b0] sm:$0xff]
  %v12821 = vld [vmem:[%s12 + $0x5b8] sm:$0xff]
  %v12822 = vld [vmem:[%s12 + $0x5c0] sm:$0xff]
  %v12823 = vld [vmem:[%s12 + $0x5c8] sm:$0xf]
  %v12824 = vld [vmem:[%s12 + $0x5cc] sm:$0xff]
  %v12825 = vld [vmem:[%s12 + $0x5d4] sm:$0xff]
  %v12826 = vld [vmem:[%s12 + $0x5dc] sm:$0xff]
  %v12827 = vld [vmem:[%s12 + $0x5e4] sm:$0xf]
  %v12828 = vld [vmem:[%s12 + $0x5e8] sm:$0xff]
  %v12829 = vld [vmem:[%s12 + $0x5f0] sm:$0xff]
  %v12830 = vld [vmem:[%s12 + $0x5f8] sm:$0xff]
  %v12831 = vld [vmem:[%s12 + $0x600] sm:$0xf]
  %v12832 = vld [vmem:[%s12 + $0x604] sm:$0xff]
  %v12833 = vld [vmem:[%s12 + $0x60c] sm:$0xff]
  %v12834 = vld [vmem:[%s12 + $0x614] sm:$0xff]
  %v12835 = vld [vmem:[%s12 + $0x61c] sm:$0xf]
  %v12836 = vld [vmem:[%s12 + $0x620] sm:$0xff]
  %v12837 = vld [vmem:[%s12 + $0x628] sm:$0xff]
  %v12838 = vld [vmem:[%s12 + $0x630] sm:$0xff]
  %v12839 = vld [vmem:[%s12 + $0x638] sm:$0xf]
  %v12840 = vld [vmem:[%s12 + $0x63c] sm:$0xff]
  %v12841 = vld [vmem:[%s12 + $0x644] sm:$0xff]
  %v12842 = vld [vmem:[%s12 + $0x64c] sm:$0xff]
  %v12843 = vld [vmem:[%s12 + $0x654] sm:$0xf]
  %v12844 = vld [vmem:[%s12 + $0x658] sm:$0xff]
  %v12845 = vld [vmem:[%s12 + $0x660] sm:$0xff]
  %v12846 = vld [vmem:[%s12 + $0x668] sm:$0xff]
  %v12847 = vld [vmem:[%s12 + $0x670] sm:$0xf]
  %v12848 = vld [vmem:[%s12 + $0x674] sm:$0xff]
  %v12849 = vld [vmem:[%s12 + $0x67c] sm:$0xff]
  %v12850 = vld [vmem:[%s12 + $0x684] sm:$0xff]
  %v12851 = vld [vmem:[%s12 + $0x68c] sm:$0xf]
  %v12852 = vld [vmem:[%s12 + $0x690] sm:$0xff]
  %v12853 = vld [vmem:[%s12 + $0x698] sm:$0xff]
  %v12854 = vld [vmem:[%s12 + $0x6a0] sm:$0xff]
  %v12855 = vld [vmem:[%s12 + $0x6a8] sm:$0xf]
  %v12856 = vld [vmem:[%s12 + $0x6ac] sm:$0xff]
  %v12857 = vld [vmem:[%s12 + $0x6b4] sm:$0xff]
  %v12858 = vld [vmem:[%s12 + $0x6bc] sm:$0xff]
  %v12859 = vld [vmem:[%s12 + $0x6c4] sm:$0xf]
  %v12860 = vld [vmem:[%s12 + $0x6c8] sm:$0xff]
  %v12861 = vld [vmem:[%s12 + $0x6d0] sm:$0xff]
  %v12862 = vld [vmem:[%s12 + $0x6d8] sm:$0xff]
  %v12863 = vld [vmem:[%s12 + $0x6e0] sm:$0xf]
  %v12864 = vld [vmem:[%s12 + $0x6e4] sm:$0xff]
  %v12865 = vld [vmem:[%s12 + $0x6ec] sm:$0xff]
  %v12866 = vld [vmem:[%s12 + $0x6f4] sm:$0xff]
  %v12867 = vld [vmem:[%s12 + $0x6fc] sm:$0xf]
  %v12868 = vld [vmem:[%s12 + $0x700] sm:$0xff]
  %v12869 = vld [vmem:[%s12 + $0x708] sm:$0xff]
  %v12870 = vld [vmem:[%s12 + $0x710] sm:$0xff]
  %v12871 = vld [vmem:[%s12 + $0x718] sm:$0xf]
  %v12872 = vld [vmem:[%s12 + $0x71c] sm:$0xff]
  %v12873 = vld [vmem:[%s12 + $0x724] sm:$0xff]
  %v12874 = vld [vmem:[%s12 + $0x72c] sm:$0xff]
  %v12875 = vld [vmem:[%s12 + $0x734] sm:$0xf]
  %v12876 = vld [vmem:[%s12 + $0x738] sm:$0xff]
  %v12877 = vld [vmem:[%s12 + $0x740] sm:$0xff]
  %v12878 = vld [vmem:[%s12 + $0x748] sm:$0xff]
  %v12879 = vld [vmem:[%s12 + $0x750] sm:$0xf]
  %v12880 = vld [vmem:[%s12 + $0x754] sm:$0xff]
  %v12881 = vld [vmem:[%s12 + $0x75c] sm:$0xff]
  %v12882 = vld [vmem:[%s12 + $0x764] sm:$0xff]
  %v12883 = vld [vmem:[%s12 + $0x76c] sm:$0xf]
  %v12884 = vld [vmem:[%s12 + $0x770] sm:$0xff]
  %v12885 = vld [vmem:[%s12 + $0x778] sm:$0xff]
  %v12886 = vld [vmem:[%s12 + $0x780] sm:$0xff]
  %v12887 = vld [vmem:[%s12 + $0x788] sm:$0xf]
  %v12888 = vld [vmem:[%s12 + $0x78c] sm:$0xff]
  %v12889 = vld [vmem:[%s12 + $0x794] sm:$0xff]
  %v12890 = vld [vmem:[%s12 + $0x79c] sm:$0xff]
  %v12891 = vld [vmem:[%s12 + $0x7a4] sm:$0xf]
  %v12892 = vld [vmem:[%s12 + $0x7a8] sm:$0xff]
  %v12893 = vld [vmem:[%s12 + $0x7b0] sm:$0xff]
  %v12894 = vld [vmem:[%s12 + $0x7b8] sm:$0xff]
  %v12895 = vld [vmem:[%s12 + $0x7c0] sm:$0xf]
  %v12896 = vld [vmem:[%s12 + $0x7c4] sm:$0xff]
  %v12897 = vld [vmem:[%s12 + $0x7cc] sm:$0xff]
  %v12898 = vld [vmem:[%s12 + $0x7d4] sm:$0xff]
  %v12899 = vld [vmem:[%s12 + $0x7dc] sm:$0xf]
  %v12900 = vld [vmem:[%s12 + $0x7e0] sm:$0xff]
  %v12901 = vld [vmem:[%s12 + $0x7e8] sm:$0xff]
  %v12902 = vld [vmem:[%s12 + $0x7f0] sm:$0xff]
  %v12903 = vld [vmem:[%s12 + $0x7f8] sm:$0xf]
  %v12904 = vld [vmem:[%s12 + $0x7fc] sm:$0xff]
  %v12905 = vld [vmem:[%s12 + $0x804] sm:$0xff]
  %v12906 = vld [vmem:[%s12 + $0x80c] sm:$0xff]
  %v12907 = vld [vmem:[%s12 + $0x814] sm:$0xf]
  %v12908 = vld [vmem:[%s12 + $0x818] sm:$0xff]
  %v12909 = vld [vmem:[%s12 + $0x820] sm:$0xff]
  %v12910 = vld [vmem:[%s12 + $0x828] sm:$0xff]
  %v12911 = vld [vmem:[%s12 + $0x830] sm:$0xf]
  %v12912 = vld [vmem:[%s12 + $0x834] sm:$0xff]
  %v12913 = vld [vmem:[%s12 + $0x83c] sm:$0xff]
  %v12914 = vld [vmem:[%s12 + $0x844] sm:$0xff]
  %v12915 = vld [vmem:[%s12 + $0x84c] sm:$0xf]
  %v12916 = vld [vmem:[%s12 + $0x850] sm:$0xff]
  %v12917 = vld [vmem:[%s12 + $0x858] sm:$0xff]
  %v12918 = vld [vmem:[%s12 + $0x860] sm:$0xff]
  %v12919 = vld [vmem:[%s12 + $0x868] sm:$0xf]
  %v12920 = vld [vmem:[%s12 + $0x86c] sm:$0xff]
  %v12921 = vld [vmem:[%s12 + $0x874] sm:$0xff]
  %v12922 = vld [vmem:[%s12 + $0x87c] sm:$0xff]
  %v12923 = vld [vmem:[%s12 + $0x884] sm:$0xf]
  %v12924 = vld [vmem:[%s12 + $0x888] sm:$0xff]
  %v12925 = vld [vmem:[%s12 + $0x890] sm:$0xff]
  %v12926 = vld [vmem:[%s12 + $0x898] sm:$0xff]
  %v12927 = vld [vmem:[%s12 + $0x8a0] sm:$0xf]
  %v12928 = vld [vmem:[%s12 + $0x8a4] sm:$0xff]
  %v12929 = vld [vmem:[%s12 + $0x8ac] sm:$0xff]
  %v12930 = vld [vmem:[%s12 + $0x8b4] sm:$0xff]
  %v12931 = vld [vmem:[%s12 + $0x8bc] sm:$0xf]
  %v12932 = vld [vmem:[%s12 + $0x8c0] sm:$0xff]
  %v12933 = vld [vmem:[%s12 + $0x8c8] sm:$0xff]
  %v12934 = vld [vmem:[%s12 + $0x8d0] sm:$0xff]
  %v12935 = vld [vmem:[%s12 + $0x8d8] sm:$0xf]
  %v12936 = vld [vmem:[%s12 + $0x8dc] sm:$0xff]
  %v12937 = vld [vmem:[%s12 + $0x8e4] sm:$0xff]
  %v12938 = vld [vmem:[%s12 + $0x8ec] sm:$0xff]
  %v12939 = vld [vmem:[%s12 + $0x8f4] sm:$0xf]
  %v12940 = vld [vmem:[%s12 + $0x8f8] sm:$0xff]
  %v12941 = vld [vmem:[%s12 + $0x900] sm:$0xff]
  %v12942 = vld [vmem:[%s12 + $0x908] sm:$0xff]
  %v12943 = vld [vmem:[%s12 + $0x910] sm:$0xf]
  %v12944 = vld [vmem:[%s12 + $0x914] sm:$0xff]
  %v12945 = vld [vmem:[%s12 + $0x91c] sm:$0xff]
  %v12946 = vld [vmem:[%s12 + $0x924] sm:$0xff]
  %v12947 = vld [vmem:[%s12 + $0x92c] sm:$0xf]
  %v12948 = vld [vmem:[%s12 + $0x930] sm:$0xff]
  %v12949 = vld [vmem:[%s12 + $0x938] sm:$0xff]
  %v12950 = vld [vmem:[%s12 + $0x940] sm:$0xff]
  %v12951 = vld [vmem:[%s12 + $0x948] sm:$0xf]
  %v12952 = vld [vmem:[%s12 + $0x94c] sm:$0xff]
  %v12953 = vld [vmem:[%s12 + $0x954] sm:$0xff]
  %v12954 = vld [vmem:[%s12 + $0x95c] sm:$0xff]
  %v12955 = vld [vmem:[%s12 + $0x964] sm:$0xf]
  %v12956 = vld [vmem:[%s12 + $0x968] sm:$0xff]
  %v12957 = vld [vmem:[%s12 + $0x970] sm:$0xff]
  %v12958 = vld [vmem:[%s12 + $0x978] sm:$0xff]
  %v12959 = vld [vmem:[%s12 + $0x980] sm:$0xf]
  %v12960 = vld [vmem:[%s12 + $0x984] sm:$0xff]
  %v12961 = vld [vmem:[%s12 + $0x98c] sm:$0xff]
  %v12962 = vld [vmem:[%s12 + $0x994] sm:$0xff]
  %v12963 = vld [vmem:[%s12 + $0x99c] sm:$0xf]
  %v12964 = vld [vmem:[%s12 + $0x9a0] sm:$0xff]
  %v12965 = vld [vmem:[%s12 + $0x9a8] sm:$0xff]
  %v12966 = vld [vmem:[%s12 + $0x9b0] sm:$0xff]
  %v12967 = vld [vmem:[%s12 + $0x9b8] sm:$0xf]
  %v12968 = vld [vmem:[%s12 + $0x9bc] sm:$0xff]
  %v12969 = vld [vmem:[%s12 + $0x9c4] sm:$0xff]
  %v12970 = vld [vmem:[%s12 + $0x9cc] sm:$0xff]
  %v12971 = vld [vmem:[%s12 + $0x9d4] sm:$0xf]
  %v12972 = vld [vmem:[%s12 + $0x9d8] sm:$0xff]
  %v12973 = vld [vmem:[%s12 + $0x9e0] sm:$0xff]
  %v12974 = vld [vmem:[%s12 + $0x9e8] sm:$0xff]
  %v12975 = vld [vmem:[%s12 + $0x9f0] sm:$0xf]
  %v12976 = vld [vmem:[%s12 + $0x9f4] sm:$0xff]
  %v12977 = vld [vmem:[%s12 + $0x9fc] sm:$0xff]
  %v12978 = vld [vmem:[%s12 + $0xa04] sm:$0xff]
  %v12979 = vld [vmem:[%s12 + $0xa0c] sm:$0xf]
  %v12980 = vld [vmem:[%s12 + $0xa10] sm:$0xff]
  %v12981 = vld [vmem:[%s12 + $0xa18] sm:$0xff]
  %v12982 = vld [vmem:[%s12 + $0xa20] sm:$0xff]
  %v12983 = vld [vmem:[%s12 + $0xa28] sm:$0xf]
  %v12984 = vld [vmem:[%s12 + $0xa2c] sm:$0xff]
  %v12985 = vld [vmem:[%s12 + $0xa34] sm:$0xff]
  %v12986 = vld [vmem:[%s12 + $0xa3c] sm:$0xff]
  %v12987 = vld [vmem:[%s12 + $0xa44] sm:$0xf]
  %v12988 = vld [vmem:[%s12 + $0xa48] sm:$0xff]
  %v12989 = vld [vmem:[%s12 + $0xa50] sm:$0xff]
  %v12990 = vld [vmem:[%s12 + $0xa58] sm:$0xff]
  %v12991 = vld [vmem:[%s12 + $0xa60] sm:$0xf]
  %v12992 = vld [vmem:[%s12 + $0xa64] sm:$0xff]
  %v12993 = vld [vmem:[%s12 + $0xa6c] sm:$0xff]
  %v12994 = vld [vmem:[%s12 + $0xa74] sm:$0xff]
  %v12995 = vld [vmem:[%s12 + $0xa7c] sm:$0xf]
  %v12996 = vld [vmem:[%s12 + $0xa80] sm:$0xff]
  %v12997 = vld [vmem:[%s12 + $0xa88] sm:$0xff]
  %v12998 = vld [vmem:[%s12 + $0xa90] sm:$0xff]
  %v12999 = vld [vmem:[%s12 + $0xa98] sm:$0xf]
  %v13000 = vld [vmem:[%s12 + $0xa9c] sm:$0xff]
  %v13001 = vld [vmem:[%s12 + $0xaa4] sm:$0xff]
  %v13002 = vld [vmem:[%s12 + $0xaac] sm:$0xff]
  %v13003 = vld [vmem:[%s12 + $0xab4] sm:$0xf]
  %v13004 = vld [vmem:[%s12 + $0xab8] sm:$0xff]
  %v13005 = vld [vmem:[%s12 + $0xac0] sm:$0xff]
  %v13006 = vld [vmem:[%s12 + $0xac8] sm:$0xff]
  %v13007 = vld [vmem:[%s12 + $0xad0] sm:$0xf]
  %v13008 = vld [vmem:[%s12 + $0xad4] sm:$0xff]
  %v13009 = vld [vmem:[%s12 + $0xadc] sm:$0xff]
  %v13010 = vld [vmem:[%s12 + $0xae4] sm:$0xff]
  %v13011 = vld [vmem:[%s12 + $0xaec] sm:$0xf]
  %v13012 = vld [vmem:[%s12 + $0xaf0] sm:$0xff]
  %v13013 = vld [vmem:[%s12 + $0xaf8] sm:$0xff]
  %v13014 = vld [vmem:[%s12 + $0xb00] sm:$0xff]
  %v13015 = vld [vmem:[%s12 + $0xb08] sm:$0xf]
  %v13016 = vld [vmem:[%s12 + $0xb0c] sm:$0xff]
  %v13017 = vld [vmem:[%s12 + $0xb14] sm:$0xff]
  %v13018 = vld [vmem:[%s12 + $0xb1c] sm:$0xff]
  %v13019 = vld [vmem:[%s12 + $0xb24] sm:$0xf]
  %v13020 = vld [vmem:[%s12 + $0xb28] sm:$0xff]
  %v13021 = vld [vmem:[%s12 + $0xb30] sm:$0xff]
  %v13022 = vld [vmem:[%s12 + $0xb38] sm:$0xff]
  %v13023 = vld [vmem:[%s12 + $0xb40] sm:$0xf]
  %v13024 = vld [vmem:[%s12 + $0xb44] sm:$0xff]
  %v13025 = vld [vmem:[%s12 + $0xb4c] sm:$0xff]
  %v13026 = vld [vmem:[%s12 + $0xb54] sm:$0xff]
  %v13027 = vld [vmem:[%s12 + $0xb5c] sm:$0xf]
  %v13028 = vld [vmem:[%s12 + $0xb60] sm:$0xff]
  %v13029 = vld [vmem:[%s12 + $0xb68] sm:$0xff]
  %v13030 = vld [vmem:[%s12 + $0xb70] sm:$0xff]
  %v13031 = vld [vmem:[%s12 + $0xb78] sm:$0xf]
  %v13032 = vld [vmem:[%s12 + $0xb7c] sm:$0xff]
  %v13033 = vld [vmem:[%s12 + $0xb84] sm:$0xff]
  %v13034 = vld [vmem:[%s12 + $0xb8c] sm:$0xff]
  %v13035 = vld [vmem:[%s12 + $0xb94] sm:$0xf]
  %v13036 = vld [vmem:[%s12 + $0xb98] sm:$0xff]
  %v13037 = vld [vmem:[%s12 + $0xba0] sm:$0xff]
  %v13038 = vld [vmem:[%s12 + $0xba8] sm:$0xff]
  %v13039 = vld [vmem:[%s12 + $0xbb0] sm:$0xf]
  %v13040 = vld [vmem:[%s12 + $0xbb4] sm:$0xff]
  %v13041 = vld [vmem:[%s12 + $0xbbc] sm:$0xff]
  %v13042 = vld [vmem:[%s12 + $0xbc4] sm:$0xff]
  %v13043 = vld [vmem:[%s12 + $0xbcc] sm:$0xf]
  %v13044 = vld [vmem:[%s12 + $0xbd0] sm:$0xff]
  %v13045 = vld [vmem:[%s12 + $0xbd8] sm:$0xff]
  %v13046 = vld [vmem:[%s12 + $0xbe0] sm:$0xff]
  %v13047 = vld [vmem:[%s12 + $0xbe8] sm:$0xf]
  %v13048 = vld [vmem:[%s12 + $0xbec] sm:$0xff]
  %v13049 = vld [vmem:[%s12 + $0xbf4] sm:$0xff]
  %v13050 = vld [vmem:[%s12 + $0xbfc] sm:$0xff]
  %v13051 = vld [vmem:[%s12 + $0xc04] sm:$0xf]
  %v13052 = vld [vmem:[%s12 + $0xc08] sm:$0xff]
  %v13053 = vld [vmem:[%s12 + $0xc10] sm:$0xff]
  %v13054 = vld [vmem:[%s12 + $0xc18] sm:$0xff]
  %v13055 = vld [vmem:[%s12 + $0xc20] sm:$0xf]
  %v13056 = vld [vmem:[%s12 + $0xc24] sm:$0xff]
  %v13057 = vld [vmem:[%s12 + $0xc2c] sm:$0xff]
  %v13058 = vld [vmem:[%s12 + $0xc34] sm:$0xff]
  %v13059 = vld [vmem:[%s12 + $0xc3c] sm:$0xf]
  %v13060 = vld [vmem:[%s12 + $0xc40] sm:$0xff]
  %v13061 = vld [vmem:[%s12 + $0xc48] sm:$0xff]
  %v13062 = vld [vmem:[%s12 + $0xc50] sm:$0xff]
  %v13063 = vld [vmem:[%s12 + $0xc58] sm:$0xf]
  %v13064 = vld [vmem:[%s12 + $0xc5c] sm:$0xff]
  %v13065 = vld [vmem:[%s12 + $0xc64] sm:$0xff]
  %v13066 = vld [vmem:[%s12 + $0xc6c] sm:$0xff]
  %v13067 = vld [vmem:[%s12 + $0xc74] sm:$0xf]
  %v13068 = vld [vmem:[%s12 + $0xc78] sm:$0xff]
  %v13069 = vld [vmem:[%s12 + $0xc80] sm:$0xff]
  %v13070 = vld [vmem:[%s12 + $0xc88] sm:$0xff]
  %v13071 = vld [vmem:[%s12 + $0xc90] sm:$0xf]
  %v13072 = vld [vmem:[%s12 + $0xc94] sm:$0xff]
  %v13073 = vld [vmem:[%s12 + $0xc9c] sm:$0xff]
  %v13074 = vld [vmem:[%s12 + $0xca4] sm:$0xff]
  %v13075 = vld [vmem:[%s12 + $0xcac] sm:$0xf]
  %v13076 = vld [vmem:[%s12 + $0xcb0] sm:$0xff]
  %v13077 = vld [vmem:[%s12 + $0xcb8] sm:$0xff]
  %v13078 = vld [vmem:[%s12 + $0xcc0] sm:$0xff]
  %v13079 = vld [vmem:[%s12 + $0xcc8] sm:$0xf]
  %v13080 = vld [vmem:[%s12 + $0xccc] sm:$0xff]
  %v13081 = vld [vmem:[%s12 + $0xcd4] sm:$0xff]
  %v13082 = vld [vmem:[%s12 + $0xcdc] sm:$0xff]
  %v13083 = vld [vmem:[%s12 + $0xce4] sm:$0xf]
  %v13084 = vld [vmem:[%s12 + $0xce8] sm:$0xff]
  %v13085 = vld [vmem:[%s12 + $0xcf0] sm:$0xff]
  %v13086 = vld [vmem:[%s12 + $0xcf8] sm:$0xff]
  %v13087 = vld [vmem:[%s12 + $0xd00] sm:$0xf]
  %v13088 = vld [vmem:[%s12 + $0xd04] sm:$0xff]
  %v13089 = vld [vmem:[%s12 + $0xd0c] sm:$0xff]
  %v13090 = vld [vmem:[%s12 + $0xd14] sm:$0xff]
  %v13091 = vld [vmem:[%s12 + $0xd1c] sm:$0xf]
  %v13092 = vld [vmem:[%s12 + $0xd20] sm:$0xff]
  %v13093 = vld [vmem:[%s12 + $0xd28] sm:$0xff]
  %v13094 = vld [vmem:[%s12 + $0xd30] sm:$0xff]
  %v13095 = vld [vmem:[%s12 + $0xd38] sm:$0xf]
  %v13096 = vld [vmem:[%s12 + $0xd3c] sm:$0xff]
  %v13097 = vld [vmem:[%s12 + $0xd44] sm:$0xff]
  %v13098 = vld [vmem:[%s12 + $0xd4c] sm:$0xff]
  %v13099 = vld [vmem:[%s12 + $0xd54] sm:$0xf]
  %v13100 = vld [vmem:[%s12 + $0xd58] sm:$0xff]
  %v13101 = vld [vmem:[%s12 + $0xd60] sm:$0xff]
  %v13102 = vld [vmem:[%s12 + $0xd68] sm:$0xff]
  %v13103 = vld [vmem:[%s12 + $0xd70] sm:$0xf]
  %v13104 = vld [vmem:[%s12 + $0xd74] sm:$0xff]
  %v13105 = vld [vmem:[%s12 + $0xd7c] sm:$0xff]
  %v13106 = vld [vmem:[%s12 + $0xd84] sm:$0xff]
  %v13107 = vld [vmem:[%s12 + $0xd8c] sm:$0xf]
  %v13108 = vld [vmem:[%s12 + $0xd90] sm:$0xff]
  %v13109 = vld [vmem:[%s12 + $0xd98] sm:$0xff]
  %v13110 = vld [vmem:[%s12 + $0xda0] sm:$0xff]
  %v13111 = vld [vmem:[%s12 + $0xda8] sm:$0xf]
  %v13112 = vld [vmem:[%s12 + $0xdac] sm:$0xff]
  %v13113 = vld [vmem:[%s12 + $0xdb4] sm:$0xff]
  %v13114 = vld [vmem:[%s12 + $0xdbc] sm:$0xff]
  %v13115 = vld [vmem:[%s12 + $0xdc4] sm:$0xf]
  %v13116 = vld [vmem:[%s12 + $0xdc8] sm:$0xff]
  %v13117 = vld [vmem:[%s12 + $0xdd0] sm:$0xff]
  %v13118 = vld [vmem:[%s12 + $0xdd8] sm:$0xff]
  %v13119 = vld [vmem:[%s12 + $0xde0] sm:$0xf]
  %v13120 = vld [vmem:[%s12 + $0xde4] sm:$0xff]
  %v13121 = vld [vmem:[%s12 + $0xdec] sm:$0xff]
  %v13122 = vld [vmem:[%s12 + $0xdf4] sm:$0xff]
  %v13123 = vld [vmem:[%s12 + $0xdfc] sm:$0xf]
  %v13124 = vld [vmem:[%s13] sm:$0xff]
  %v13126 = vlaneseq
  %v13127 = vshrl.u32 %v13126, 7
  %v13128 = vsub.s32 0, %v13127
  %v13129 = vrot.slane %v13124, %v13128
  %v13130 = vlaneseq
  %v13131 = vshrl.u32 %v13130, 7
  %v13132 = vsub.s32 1, %v13131
  %v13133 = vrot.slane %v13124, %v13132
  %v13134 = vlaneseq
  %v13135 = vshrl.u32 %v13134, 7
  %v13136 = vsub.s32 2, %v13135
  %v13137 = vrot.slane %v13124, %v13136
  %v13138 = vlaneseq
  %v13139 = vshrl.u32 %v13138, 7
  %v13140 = vsub.s32 3, %v13139
  %v13141 = vrot.slane %v13124, %v13140
  %v13142 = vlaneseq
  %v13143 = vshrl.u32 %v13142, 7
  %v13144 = vsub.s32 4, %v13143
  %v13145 = vrot.slane %v13124, %v13144
  %v13146 = vlaneseq
  %v13147 = vshrl.u32 %v13146, 7
  %v13148 = vsub.s32 5, %v13147
  %v13149 = vrot.slane %v13124, %v13148
  %v13150 = vlaneseq
  %v13151 = vshrl.u32 %v13150, 7
  %v13152 = vsub.s32 6, %v13151
  %v13153 = vrot.slane %v13124, %v13152
  %v13673 = vunpack.c.l.b16 %v12612
  %v13674 = vunpack.c.h.b16 %v12612
  %v13675 = vunpack.c.l.b16 %v12613
  %v13676 = vunpack.c.h.b16 %v12613
  %v13677 = vunpack.c.l.b16 %v12614
  %v13678 = vunpack.c.h.b16 %v12614
  %v13679 = vunpack.c.l.b16 %v12615
  %v13680 = vunpack.c.l.b16 %v12616
  %v13681 = vunpack.c.h.b16 %v12616
  %v13682 = vunpack.c.l.b16 %v12617
  %v13683 = vunpack.c.h.b16 %v12617
  %v13684 = vunpack.c.l.b16 %v12618
  %v13685 = vunpack.c.h.b16 %v12618
  %v13686 = vunpack.c.l.b16 %v12619
  %v13687 = vunpack.c.l.b16 %v12620
  %v13688 = vunpack.c.h.b16 %v12620
  %v13689 = vunpack.c.l.b16 %v12621
  %v13690 = vunpack.c.h.b16 %v12621
  %v13691 = vunpack.c.l.b16 %v12622
  %v13692 = vunpack.c.h.b16 %v12622
  %v13693 = vunpack.c.l.b16 %v12623
  %v13694 = vunpack.c.l.b16 %v12624
  %v13695 = vunpack.c.h.b16 %v12624
  %v13696 = vunpack.c.l.b16 %v12625
  %v13697 = vunpack.c.h.b16 %v12625
  %v13698 = vunpack.c.l.b16 %v12626
  %v13699 = vunpack.c.h.b16 %v12626
  %v13700 = vunpack.c.l.b16 %v12627
  %v13701 = vunpack.c.l.b16 %v12628
  %v13702 = vunpack.c.h.b16 %v12628
  %v13703 = vunpack.c.l.b16 %v12629
  %v13704 = vunpack.c.h.b16 %v12629
  %v13705 = vunpack.c.l.b16 %v12630
  %v13706 = vunpack.c.h.b16 %v12630
  %v13707 = vunpack.c.l.b16 %v12631
  %v13708 = vunpack.c.l.b16 %v12632
  %v13709 = vunpack.c.h.b16 %v12632
  %v13710 = vunpack.c.l.b16 %v12633
  %v13711 = vunpack.c.h.b16 %v12633
  %v13712 = vunpack.c.l.b16 %v12634
  %v13713 = vunpack.c.h.b16 %v12634
  %v13714 = vunpack.c.l.b16 %v12635
  %v13715 = vunpack.c.l.b16 %v12636
  %v13716 = vunpack.c.h.b16 %v12636
  %v13717 = vunpack.c.l.b16 %v12637
  %v13718 = vunpack.c.h.b16 %v12637
  %v13719 = vunpack.c.l.b16 %v12638
  %v13720 = vunpack.c.h.b16 %v12638
  %v13721 = vunpack.c.l.b16 %v12639
  %v13722 = vunpack.c.l.b16 %v12640
  %v13723 = vunpack.c.h.b16 %v12640
  %v13724 = vunpack.c.l.b16 %v12641
  %v13725 = vunpack.c.h.b16 %v12641
  %v13726 = vunpack.c.l.b16 %v12642
  %v13727 = vunpack.c.h.b16 %v12642
  %v13728 = vunpack.c.l.b16 %v12643
  %v13729 = vunpack.c.l.b16 %v12644
  %v13730 = vunpack.c.h.b16 %v12644
  %v13731 = vunpack.c.l.b16 %v12645
  %v13732 = vunpack.c.h.b16 %v12645
  %v13733 = vunpack.c.l.b16 %v12646
  %v13734 = vunpack.c.h.b16 %v12646
  %v13735 = vunpack.c.l.b16 %v12647
  %v13736 = vunpack.c.l.b16 %v12648
  %v13737 = vunpack.c.h.b16 %v12648
  %v13738 = vunpack.c.l.b16 %v12649
  %v13739 = vunpack.c.h.b16 %v12649
  %v13740 = vunpack.c.l.b16 %v12650
  %v13741 = vunpack.c.h.b16 %v12650
  %v13742 = vunpack.c.l.b16 %v12651
  %v13743 = vunpack.c.l.b16 %v12652
  %v13744 = vunpack.c.h.b16 %v12652
  %v13745 = vunpack.c.l.b16 %v12653
  %v13746 = vunpack.c.h.b16 %v12653
  %v13747 = vunpack.c.l.b16 %v12654
  %v13748 = vunpack.c.h.b16 %v12654
  %v13749 = vunpack.c.l.b16 %v12655
  %v13750 = vunpack.c.l.b16 %v12656
  %v13751 = vunpack.c.h.b16 %v12656
  %v13752 = vunpack.c.l.b16 %v12657
  %v13753 = vunpack.c.h.b16 %v12657
  %v13754 = vunpack.c.l.b16 %v12658
  %v13755 = vunpack.c.h.b16 %v12658
  %v13756 = vunpack.c.l.b16 %v12659
  %v13757 = vunpack.c.l.b16 %v12660
  %v13758 = vunpack.c.h.b16 %v12660
  %v13759 = vunpack.c.l.b16 %v12661
  %v13760 = vunpack.c.h.b16 %v12661
  %v13761 = vunpack.c.l.b16 %v12662
  %v13762 = vunpack.c.h.b16 %v12662
  %v13763 = vunpack.c.l.b16 %v12663
  %v13764 = vunpack.c.l.b16 %v12664
  %v13765 = vunpack.c.h.b16 %v12664
  %v13766 = vunpack.c.l.b16 %v12665
  %v13767 = vunpack.c.h.b16 %v12665
  %v13768 = vunpack.c.l.b16 %v12666
  %v13769 = vunpack.c.h.b16 %v12666
  %v13770 = vunpack.c.l.b16 %v12667
  %v13771 = vunpack.c.l.b16 %v12668
  %v13772 = vunpack.c.h.b16 %v12668
  %v13773 = vunpack.c.l.b16 %v12669
  %v13774 = vunpack.c.h.b16 %v12669
  %v13775 = vunpack.c.l.b16 %v12670
  %v13776 = vunpack.c.h.b16 %v12670
  %v13777 = vunpack.c.l.b16 %v12671
  %v13778 = vunpack.c.l.b16 %v12672
  %v13779 = vunpack.c.h.b16 %v12672
  %v13780 = vunpack.c.l.b16 %v12673
  %v13781 = vunpack.c.h.b16 %v12673
  %v13782 = vunpack.c.l.b16 %v12674
  %v13783 = vunpack.c.h.b16 %v12674
  %v13784 = vunpack.c.l.b16 %v12675
  %v13785 = vunpack.c.l.b16 %v12676
  %v13786 = vunpack.c.h.b16 %v12676
  %v13787 = vunpack.c.l.b16 %v12677
  %v13788 = vunpack.c.h.b16 %v12677
  %v13789 = vunpack.c.l.b16 %v12678
  %v13790 = vunpack.c.h.b16 %v12678
  %v13791 = vunpack.c.l.b16 %v12679
  %v13792 = vunpack.c.l.b16 %v12680
  %v13793 = vunpack.c.h.b16 %v12680
  %v13794 = vunpack.c.l.b16 %v12681
  %v13795 = vunpack.c.h.b16 %v12681
  %v13796 = vunpack.c.l.b16 %v12682
  %v13797 = vunpack.c.h.b16 %v12682
  %v13798 = vunpack.c.l.b16 %v12683
  %v13799 = vunpack.c.l.b16 %v12684
  %v13800 = vunpack.c.h.b16 %v12684
  %v13801 = vunpack.c.l.b16 %v12685
  %v13802 = vunpack.c.h.b16 %v12685
  %v13803 = vunpack.c.l.b16 %v12686
  %v13804 = vunpack.c.h.b16 %v12686
  %v13805 = vunpack.c.l.b16 %v12687
  %v13806 = vunpack.c.l.b16 %v12688
  %v13807 = vunpack.c.h.b16 %v12688
  %v13808 = vunpack.c.l.b16 %v12689
  %v13809 = vunpack.c.h.b16 %v12689
  %v13810 = vunpack.c.l.b16 %v12690
  %v13811 = vunpack.c.h.b16 %v12690
  %v13812 = vunpack.c.l.b16 %v12691
  %v13813 = vunpack.c.l.b16 %v12692
  %v13814 = vunpack.c.h.b16 %v12692
  %v13815 = vunpack.c.l.b16 %v12693
  %v13816 = vunpack.c.h.b16 %v12693
  %v13817 = vunpack.c.l.b16 %v12694
  %v13818 = vunpack.c.h.b16 %v12694
  %v13819 = vunpack.c.l.b16 %v12695
  %v13820 = vunpack.c.l.b16 %v12696
  %v13821 = vunpack.c.h.b16 %v12696
  %v13822 = vunpack.c.l.b16 %v12697
  %v13823 = vunpack.c.h.b16 %v12697
  %v13824 = vunpack.c.l.b16 %v12698
  %v13825 = vunpack.c.h.b16 %v12698
  %v13826 = vunpack.c.l.b16 %v12699
  %v13827 = vunpack.c.l.b16 %v12700
  %v13828 = vunpack.c.h.b16 %v12700
  %v13829 = vunpack.c.l.b16 %v12701
  %v13830 = vunpack.c.h.b16 %v12701
  %v13831 = vunpack.c.l.b16 %v12702
  %v13832 = vunpack.c.h.b16 %v12702
  %v13833 = vunpack.c.l.b16 %v12703
  %v13834 = vunpack.c.l.b16 %v12704
  %v13835 = vunpack.c.h.b16 %v12704
  %v13836 = vunpack.c.l.b16 %v12705
  %v13837 = vunpack.c.h.b16 %v12705
  %v13838 = vunpack.c.l.b16 %v12706
  %v13839 = vunpack.c.h.b16 %v12706
  %v13840 = vunpack.c.l.b16 %v12707
  %v13841 = vunpack.c.l.b16 %v12708
  %v13842 = vunpack.c.h.b16 %v12708
  %v13843 = vunpack.c.l.b16 %v12709
  %v13844 = vunpack.c.h.b16 %v12709
  %v13845 = vunpack.c.l.b16 %v12710
  %v13846 = vunpack.c.h.b16 %v12710
  %v13847 = vunpack.c.l.b16 %v12711
  %v13848 = vunpack.c.l.b16 %v12712
  %v13849 = vunpack.c.h.b16 %v12712
  %v13850 = vunpack.c.l.b16 %v12713
  %v13851 = vunpack.c.h.b16 %v12713
  %v13852 = vunpack.c.l.b16 %v12714
  %v13853 = vunpack.c.h.b16 %v12714
  %v13854 = vunpack.c.l.b16 %v12715
  %v13855 = vunpack.c.l.b16 %v12716
  %v13856 = vunpack.c.h.b16 %v12716
  %v13857 = vunpack.c.l.b16 %v12717
  %v13858 = vunpack.c.h.b16 %v12717
  %v13859 = vunpack.c.l.b16 %v12718
  %v13860 = vunpack.c.h.b16 %v12718
  %v13861 = vunpack.c.l.b16 %v12719
  %v13862 = vunpack.c.l.b16 %v12720
  %v13863 = vunpack.c.h.b16 %v12720
  %v13864 = vunpack.c.l.b16 %v12721
  %v13865 = vunpack.c.h.b16 %v12721
  %v13866 = vunpack.c.l.b16 %v12722
  %v13867 = vunpack.c.h.b16 %v12722
  %v13868 = vunpack.c.l.b16 %v12723
  %v13869 = vunpack.c.l.b16 %v12724
  %v13870 = vunpack.c.h.b16 %v12724
  %v13871 = vunpack.c.l.b16 %v12725
  %v13872 = vunpack.c.h.b16 %v12725
  %v13873 = vunpack.c.l.b16 %v12726
  %v13874 = vunpack.c.h.b16 %v12726
  %v13875 = vunpack.c.l.b16 %v12727
  %v13876 = vunpack.c.l.b16 %v12728
  %v13877 = vunpack.c.h.b16 %v12728
  %v13878 = vunpack.c.l.b16 %v12729
  %v13879 = vunpack.c.h.b16 %v12729
  %v13880 = vunpack.c.l.b16 %v12730
  %v13881 = vunpack.c.h.b16 %v12730
  %v13882 = vunpack.c.l.b16 %v12731
  %v13883 = vunpack.c.l.b16 %v12732
  %v13884 = vunpack.c.h.b16 %v12732
  %v13885 = vunpack.c.l.b16 %v12733
  %v13886 = vunpack.c.h.b16 %v12733
  %v13887 = vunpack.c.l.b16 %v12734
  %v13888 = vunpack.c.h.b16 %v12734
  %v13889 = vunpack.c.l.b16 %v12735
  %v13890 = vunpack.c.l.b16 %v12736
  %v13891 = vunpack.c.h.b16 %v12736
  %v13892 = vunpack.c.l.b16 %v12737
  %v13893 = vunpack.c.h.b16 %v12737
  %v13894 = vunpack.c.l.b16 %v12738
  %v13895 = vunpack.c.h.b16 %v12738
  %v13896 = vunpack.c.l.b16 %v12739
  %v13897 = vunpack.c.l.b16 %v12740
  %v13898 = vunpack.c.h.b16 %v12740
  %v13899 = vunpack.c.l.b16 %v12741
  %v13900 = vunpack.c.h.b16 %v12741
  %v13901 = vunpack.c.l.b16 %v12742
  %v13902 = vunpack.c.h.b16 %v12742
  %v13903 = vunpack.c.l.b16 %v12743
  %v13904 = vunpack.c.l.b16 %v12744
  %v13905 = vunpack.c.h.b16 %v12744
  %v13906 = vunpack.c.l.b16 %v12745
  %v13907 = vunpack.c.h.b16 %v12745
  %v13908 = vunpack.c.l.b16 %v12746
  %v13909 = vunpack.c.h.b16 %v12746
  %v13910 = vunpack.c.l.b16 %v12747
  %v13911 = vunpack.c.l.b16 %v12748
  %v13912 = vunpack.c.h.b16 %v12748
  %v13913 = vunpack.c.l.b16 %v12749
  %v13914 = vunpack.c.h.b16 %v12749
  %v13915 = vunpack.c.l.b16 %v12750
  %v13916 = vunpack.c.h.b16 %v12750
  %v13917 = vunpack.c.l.b16 %v12751
  %v13918 = vunpack.c.l.b16 %v12752
  %v13919 = vunpack.c.h.b16 %v12752
  %v13920 = vunpack.c.l.b16 %v12753
  %v13921 = vunpack.c.h.b16 %v12753
  %v13922 = vunpack.c.l.b16 %v12754
  %v13923 = vunpack.c.h.b16 %v12754
  %v13924 = vunpack.c.l.b16 %v12755
  %v13925 = vunpack.c.l.b16 %v12756
  %v13926 = vunpack.c.h.b16 %v12756
  %v13927 = vunpack.c.l.b16 %v12757
  %v13928 = vunpack.c.h.b16 %v12757
  %v13929 = vunpack.c.l.b16 %v12758
  %v13930 = vunpack.c.h.b16 %v12758
  %v13931 = vunpack.c.l.b16 %v12759
  %v13932 = vunpack.c.l.b16 %v12760
  %v13933 = vunpack.c.h.b16 %v12760
  %v13934 = vunpack.c.l.b16 %v12761
  %v13935 = vunpack.c.h.b16 %v12761
  %v13936 = vunpack.c.l.b16 %v12762
  %v13937 = vunpack.c.h.b16 %v12762
  %v13938 = vunpack.c.l.b16 %v12763
  %v13939 = vunpack.c.l.b16 %v12764
  %v13940 = vunpack.c.h.b16 %v12764
  %v13941 = vunpack.c.l.b16 %v12765
  %v13942 = vunpack.c.h.b16 %v12765
  %v13943 = vunpack.c.l.b16 %v12766
  %v13944 = vunpack.c.h.b16 %v12766
  %v13945 = vunpack.c.l.b16 %v12767
  %v13946 = vunpack.c.l.b16 %v12768
  %v13947 = vunpack.c.h.b16 %v12768
  %v13948 = vunpack.c.l.b16 %v12769
  %v13949 = vunpack.c.h.b16 %v12769
  %v13950 = vunpack.c.l.b16 %v12770
  %v13951 = vunpack.c.h.b16 %v12770
  %v13952 = vunpack.c.l.b16 %v12771
  %v13953 = vunpack.c.l.b16 %v12772
  %v13954 = vunpack.c.h.b16 %v12772
  %v13955 = vunpack.c.l.b16 %v12773
  %v13956 = vunpack.c.h.b16 %v12773
  %v13957 = vunpack.c.l.b16 %v12774
  %v13958 = vunpack.c.h.b16 %v12774
  %v13959 = vunpack.c.l.b16 %v12775
  %v13960 = vunpack.c.l.b16 %v12776
  %v13961 = vunpack.c.h.b16 %v12776
  %v13962 = vunpack.c.l.b16 %v12777
  %v13963 = vunpack.c.h.b16 %v12777
  %v13964 = vunpack.c.l.b16 %v12778
  %v13965 = vunpack.c.h.b16 %v12778
  %v13966 = vunpack.c.l.b16 %v12779
  %v13967 = vunpack.c.l.b16 %v12780
  %v13968 = vunpack.c.h.b16 %v12780
  %v13969 = vunpack.c.l.b16 %v12781
  %v13970 = vunpack.c.h.b16 %v12781
  %v13971 = vunpack.c.l.b16 %v12782
  %v13972 = vunpack.c.h.b16 %v12782
  %v13973 = vunpack.c.l.b16 %v12783
  %v13974 = vunpack.c.l.b16 %v12784
  %v13975 = vunpack.c.h.b16 %v12784
  %v13976 = vunpack.c.l.b16 %v12785
  %v13977 = vunpack.c.h.b16 %v12785
  %v13978 = vunpack.c.l.b16 %v12786
  %v13979 = vunpack.c.h.b16 %v12786
  %v13980 = vunpack.c.l.b16 %v12787
  %v13981 = vunpack.c.l.b16 %v12788
  %v13982 = vunpack.c.h.b16 %v12788
  %v13983 = vunpack.c.l.b16 %v12789
  %v13984 = vunpack.c.h.b16 %v12789
  %v13985 = vunpack.c.l.b16 %v12790
  %v13986 = vunpack.c.h.b16 %v12790
  %v13987 = vunpack.c.l.b16 %v12791
  %v13988 = vunpack.c.l.b16 %v12792
  %v13989 = vunpack.c.h.b16 %v12792
  %v13990 = vunpack.c.l.b16 %v12793
  %v13991 = vunpack.c.h.b16 %v12793
  %v13992 = vunpack.c.l.b16 %v12794
  %v13993 = vunpack.c.h.b16 %v12794
  %v13994 = vunpack.c.l.b16 %v12795
  %v13995 = vunpack.c.l.b16 %v12796
  %v13996 = vunpack.c.h.b16 %v12796
  %v13997 = vunpack.c.l.b16 %v12797
  %v13998 = vunpack.c.h.b16 %v12797
  %v13999 = vunpack.c.l.b16 %v12798
  %v14000 = vunpack.c.h.b16 %v12798
  %v14001 = vunpack.c.l.b16 %v12799
  %v14002 = vunpack.c.l.b16 %v12800
  %v14003 = vunpack.c.h.b16 %v12800
  %v14004 = vunpack.c.l.b16 %v12801
  %v14005 = vunpack.c.h.b16 %v12801
  %v14006 = vunpack.c.l.b16 %v12802
  %v14007 = vunpack.c.h.b16 %v12802
  %v14008 = vunpack.c.l.b16 %v12803
  %v14009 = vunpack.c.l.b16 %v12804
  %v14010 = vunpack.c.h.b16 %v12804
  %v14011 = vunpack.c.l.b16 %v12805
  %v14012 = vunpack.c.h.b16 %v12805
  %v14013 = vunpack.c.l.b16 %v12806
  %v14014 = vunpack.c.h.b16 %v12806
  %v14015 = vunpack.c.l.b16 %v12807
  %v14016 = vunpack.c.l.b16 %v12808
  %v14017 = vunpack.c.h.b16 %v12808
  %v14018 = vunpack.c.l.b16 %v12809
  %v14019 = vunpack.c.h.b16 %v12809
  %v14020 = vunpack.c.l.b16 %v12810
  %v14021 = vunpack.c.h.b16 %v12810
  %v14022 = vunpack.c.l.b16 %v12811
  %v14023 = vunpack.c.l.b16 %v12812
  %v14024 = vunpack.c.h.b16 %v12812
  %v14025 = vunpack.c.l.b16 %v12813
  %v14026 = vunpack.c.h.b16 %v12813
  %v14027 = vunpack.c.l.b16 %v12814
  %v14028 = vunpack.c.h.b16 %v12814
  %v14029 = vunpack.c.l.b16 %v12815
  %v14030 = vunpack.c.l.b16 %v12816
  %v14031 = vunpack.c.h.b16 %v12816
  %v14032 = vunpack.c.l.b16 %v12817
  %v14033 = vunpack.c.h.b16 %v12817
  %v14034 = vunpack.c.l.b16 %v12818
  %v14035 = vunpack.c.h.b16 %v12818
  %v14036 = vunpack.c.l.b16 %v12819
  %v14037 = vunpack.c.l.b16 %v12820
  %v14038 = vunpack.c.h.b16 %v12820
  %v14039 = vunpack.c.l.b16 %v12821
  %v14040 = vunpack.c.h.b16 %v12821
  %v14041 = vunpack.c.l.b16 %v12822
  %v14042 = vunpack.c.h.b16 %v12822
  %v14043 = vunpack.c.l.b16 %v12823
  %v14044 = vunpack.c.l.b16 %v12824
  %v14045 = vunpack.c.h.b16 %v12824
  %v14046 = vunpack.c.l.b16 %v12825
  %v14047 = vunpack.c.h.b16 %v12825
  %v14048 = vunpack.c.l.b16 %v12826
  %v14049 = vunpack.c.h.b16 %v12826
  %v14050 = vunpack.c.l.b16 %v12827
  %v14051 = vunpack.c.l.b16 %v12828
  %v14052 = vunpack.c.h.b16 %v12828
  %v14053 = vunpack.c.l.b16 %v12829
  %v14054 = vunpack.c.h.b16 %v12829
  %v14055 = vunpack.c.l.b16 %v12830
  %v14056 = vunpack.c.h.b16 %v12830
  %v14057 = vunpack.c.l.b16 %v12831
  %v14058 = vunpack.c.l.b16 %v12832
  %v14059 = vunpack.c.h.b16 %v12832
  %v14060 = vunpack.c.l.b16 %v12833
  %v14061 = vunpack.c.h.b16 %v12833
  %v14062 = vunpack.c.l.b16 %v12834
  %v14063 = vunpack.c.h.b16 %v12834
  %v14064 = vunpack.c.l.b16 %v12835
  %v14065 = vunpack.c.l.b16 %v12836
  %v14066 = vunpack.c.h.b16 %v12836
  %v14067 = vunpack.c.l.b16 %v12837
  %v14068 = vunpack.c.h.b16 %v12837
  %v14069 = vunpack.c.l.b16 %v12838
  %v14070 = vunpack.c.h.b16 %v12838
  %v14071 = vunpack.c.l.b16 %v12839
  %v14072 = vunpack.c.l.b16 %v12840
  %v14073 = vunpack.c.h.b16 %v12840
  %v14074 = vunpack.c.l.b16 %v12841
  %v14075 = vunpack.c.h.b16 %v12841
  %v14076 = vunpack.c.l.b16 %v12842
  %v14077 = vunpack.c.h.b16 %v12842
  %v14078 = vunpack.c.l.b16 %v12843
  %v14079 = vunpack.c.l.b16 %v12844
  %v14080 = vunpack.c.h.b16 %v12844
  %v14081 = vunpack.c.l.b16 %v12845
  %v14082 = vunpack.c.h.b16 %v12845
  %v14083 = vunpack.c.l.b16 %v12846
  %v14084 = vunpack.c.h.b16 %v12846
  %v14085 = vunpack.c.l.b16 %v12847
  %v14086 = vunpack.c.l.b16 %v12848
  %v14087 = vunpack.c.h.b16 %v12848
  %v14088 = vunpack.c.l.b16 %v12849
  %v14089 = vunpack.c.h.b16 %v12849
  %v14090 = vunpack.c.l.b16 %v12850
  %v14091 = vunpack.c.h.b16 %v12850
  %v14092 = vunpack.c.l.b16 %v12851
  %v14093 = vunpack.c.l.b16 %v12852
  %v14094 = vunpack.c.h.b16 %v12852
  %v14095 = vunpack.c.l.b16 %v12853
  %v14096 = vunpack.c.h.b16 %v12853
  %v14097 = vunpack.c.l.b16 %v12854
  %v14098 = vunpack.c.h.b16 %v12854
  %v14099 = vunpack.c.l.b16 %v12855
  %v14100 = vunpack.c.l.b16 %v12856
  %v14101 = vunpack.c.h.b16 %v12856
  %v14102 = vunpack.c.l.b16 %v12857
  %v14103 = vunpack.c.h.b16 %v12857
  %v14104 = vunpack.c.l.b16 %v12858
  %v14105 = vunpack.c.h.b16 %v12858
  %v14106 = vunpack.c.l.b16 %v12859
  %v14107 = vunpack.c.l.b16 %v12860
  %v14108 = vunpack.c.h.b16 %v12860
  %v14109 = vunpack.c.l.b16 %v12861
  %v14110 = vunpack.c.h.b16 %v12861
  %v14111 = vunpack.c.l.b16 %v12862
  %v14112 = vunpack.c.h.b16 %v12862
  %v14113 = vunpack.c.l.b16 %v12863
  %v14114 = vunpack.c.l.b16 %v12864
  %v14115 = vunpack.c.h.b16 %v12864
  %v14116 = vunpack.c.l.b16 %v12865
  %v14117 = vunpack.c.h.b16 %v12865
  %v14118 = vunpack.c.l.b16 %v12866
  %v14119 = vunpack.c.h.b16 %v12866
  %v14120 = vunpack.c.l.b16 %v12867
  %v14121 = vunpack.c.l.b16 %v12868
  %v14122 = vunpack.c.h.b16 %v12868
  %v14123 = vunpack.c.l.b16 %v12869
  %v14124 = vunpack.c.h.b16 %v12869
  %v14125 = vunpack.c.l.b16 %v12870
  %v14126 = vunpack.c.h.b16 %v12870
  %v14127 = vunpack.c.l.b16 %v12871
  %v14128 = vunpack.c.l.b16 %v12872
  %v14129 = vunpack.c.h.b16 %v12872
  %v14130 = vunpack.c.l.b16 %v12873
  %v14131 = vunpack.c.h.b16 %v12873
  %v14132 = vunpack.c.l.b16 %v12874
  %v14133 = vunpack.c.h.b16 %v12874
  %v14134 = vunpack.c.l.b16 %v12875
  %v14135 = vunpack.c.l.b16 %v12876
  %v14136 = vunpack.c.h.b16 %v12876
  %v14137 = vunpack.c.l.b16 %v12877
  %v14138 = vunpack.c.h.b16 %v12877
  %v14139 = vunpack.c.l.b16 %v12878
  %v14140 = vunpack.c.h.b16 %v12878
  %v14141 = vunpack.c.l.b16 %v12879
  %v14142 = vunpack.c.l.b16 %v12880
  %v14143 = vunpack.c.h.b16 %v12880
  %v14144 = vunpack.c.l.b16 %v12881
  %v14145 = vunpack.c.h.b16 %v12881
  %v14146 = vunpack.c.l.b16 %v12882
  %v14147 = vunpack.c.h.b16 %v12882
  %v14148 = vunpack.c.l.b16 %v12883
  %v14149 = vunpack.c.l.b16 %v12884
  %v14150 = vunpack.c.h.b16 %v12884
  %v14151 = vunpack.c.l.b16 %v12885
  %v14152 = vunpack.c.h.b16 %v12885
  %v14153 = vunpack.c.l.b16 %v12886
  %v14154 = vunpack.c.h.b16 %v12886
  %v14155 = vunpack.c.l.b16 %v12887
  %v14156 = vunpack.c.l.b16 %v12888
  %v14157 = vunpack.c.h.b16 %v12888
  %v14158 = vunpack.c.l.b16 %v12889
  %v14159 = vunpack.c.h.b16 %v12889
  %v14160 = vunpack.c.l.b16 %v12890
  %v14161 = vunpack.c.h.b16 %v12890
  %v14162 = vunpack.c.l.b16 %v12891
  %v14163 = vunpack.c.l.b16 %v12892
  %v14164 = vunpack.c.h.b16 %v12892
  %v14165 = vunpack.c.l.b16 %v12893
  %v14166 = vunpack.c.h.b16 %v12893
  %v14167 = vunpack.c.l.b16 %v12894
  %v14168 = vunpack.c.h.b16 %v12894
  %v14169 = vunpack.c.l.b16 %v12895
  %v14170 = vunpack.c.l.b16 %v12896
  %v14171 = vunpack.c.h.b16 %v12896
  %v14172 = vunpack.c.l.b16 %v12897
  %v14173 = vunpack.c.h.b16 %v12897
  %v14174 = vunpack.c.l.b16 %v12898
  %v14175 = vunpack.c.h.b16 %v12898
  %v14176 = vunpack.c.l.b16 %v12899
  %v14177 = vunpack.c.l.b16 %v12900
  %v14178 = vunpack.c.h.b16 %v12900
  %v14179 = vunpack.c.l.b16 %v12901
  %v14180 = vunpack.c.h.b16 %v12901
  %v14181 = vunpack.c.l.b16 %v12902
  %v14182 = vunpack.c.h.b16 %v12902
  %v14183 = vunpack.c.l.b16 %v12903
  %v14184 = vunpack.c.l.b16 %v12904
  %v14185 = vunpack.c.h.b16 %v12904
  %v14186 = vunpack.c.l.b16 %v12905
  %v14187 = vunpack.c.h.b16 %v12905
  %v14188 = vunpack.c.l.b16 %v12906
  %v14189 = vunpack.c.h.b16 %v12906
  %v14190 = vunpack.c.l.b16 %v12907
  %v14191 = vunpack.c.l.b16 %v12908
  %v14192 = vunpack.c.h.b16 %v12908
  %v14193 = vunpack.c.l.b16 %v12909
  %v14194 = vunpack.c.h.b16 %v12909
  %v14195 = vunpack.c.l.b16 %v12910
  %v14196 = vunpack.c.h.b16 %v12910
  %v14197 = vunpack.c.l.b16 %v12911
  %v14198 = vunpack.c.l.b16 %v12912
  %v14199 = vunpack.c.h.b16 %v12912
  %v14200 = vunpack.c.l.b16 %v12913
  %v14201 = vunpack.c.h.b16 %v12913
  %v14202 = vunpack.c.l.b16 %v12914
  %v14203 = vunpack.c.h.b16 %v12914
  %v14204 = vunpack.c.l.b16 %v12915
  %v14205 = vunpack.c.l.b16 %v12916
  %v14206 = vunpack.c.h.b16 %v12916
  %v14207 = vunpack.c.l.b16 %v12917
  %v14208 = vunpack.c.h.b16 %v12917
  %v14209 = vunpack.c.l.b16 %v12918
  %v14210 = vunpack.c.h.b16 %v12918
  %v14211 = vunpack.c.l.b16 %v12919
  %v14212 = vunpack.c.l.b16 %v12920
  %v14213 = vunpack.c.h.b16 %v12920
  %v14214 = vunpack.c.l.b16 %v12921
  %v14215 = vunpack.c.h.b16 %v12921
  %v14216 = vunpack.c.l.b16 %v12922
  %v14217 = vunpack.c.h.b16 %v12922
  %v14218 = vunpack.c.l.b16 %v12923
  %v14219 = vunpack.c.l.b16 %v12924
  %v14220 = vunpack.c.h.b16 %v12924
  %v14221 = vunpack.c.l.b16 %v12925
  %v14222 = vunpack.c.h.b16 %v12925
  %v14223 = vunpack.c.l.b16 %v12926
  %v14224 = vunpack.c.h.b16 %v12926
  %v14225 = vunpack.c.l.b16 %v12927
  %v14226 = vunpack.c.l.b16 %v12928
  %v14227 = vunpack.c.h.b16 %v12928
  %v14228 = vunpack.c.l.b16 %v12929
  %v14229 = vunpack.c.h.b16 %v12929
  %v14230 = vunpack.c.l.b16 %v12930
  %v14231 = vunpack.c.h.b16 %v12930
  %v14232 = vunpack.c.l.b16 %v12931
  %v14233 = vunpack.c.l.b16 %v12932
  %v14234 = vunpack.c.h.b16 %v12932
  %v14235 = vunpack.c.l.b16 %v12933
  %v14236 = vunpack.c.h.b16 %v12933
  %v14237 = vunpack.c.l.b16 %v12934
  %v14238 = vunpack.c.h.b16 %v12934
  %v14239 = vunpack.c.l.b16 %v12935
  %v14240 = vunpack.c.l.b16 %v12936
  %v14241 = vunpack.c.h.b16 %v12936
  %v14242 = vunpack.c.l.b16 %v12937
  %v14243 = vunpack.c.h.b16 %v12937
  %v14244 = vunpack.c.l.b16 %v12938
  %v14245 = vunpack.c.h.b16 %v12938
  %v14246 = vunpack.c.l.b16 %v12939
  %v14247 = vunpack.c.l.b16 %v12940
  %v14248 = vunpack.c.h.b16 %v12940
  %v14249 = vunpack.c.l.b16 %v12941
  %v14250 = vunpack.c.h.b16 %v12941
  %v14251 = vunpack.c.l.b16 %v12942
  %v14252 = vunpack.c.h.b16 %v12942
  %v14253 = vunpack.c.l.b16 %v12943
  %v14254 = vunpack.c.l.b16 %v12944
  %v14255 = vunpack.c.h.b16 %v12944
  %v14256 = vunpack.c.l.b16 %v12945
  %v14257 = vunpack.c.h.b16 %v12945
  %v14258 = vunpack.c.l.b16 %v12946
  %v14259 = vunpack.c.h.b16 %v12946
  %v14260 = vunpack.c.l.b16 %v12947
  %v14261 = vunpack.c.l.b16 %v12948
  %v14262 = vunpack.c.h.b16 %v12948
  %v14263 = vunpack.c.l.b16 %v12949
  %v14264 = vunpack.c.h.b16 %v12949
  %v14265 = vunpack.c.l.b16 %v12950
  %v14266 = vunpack.c.h.b16 %v12950
  %v14267 = vunpack.c.l.b16 %v12951
  %v14268 = vunpack.c.l.b16 %v12952
  %v14269 = vunpack.c.h.b16 %v12952
  %v14270 = vunpack.c.l.b16 %v12953
  %v14271 = vunpack.c.h.b16 %v12953
  %v14272 = vunpack.c.l.b16 %v12954
  %v14273 = vunpack.c.h.b16 %v12954
  %v14274 = vunpack.c.l.b16 %v12955
  %v14275 = vunpack.c.l.b16 %v12956
  %v14276 = vunpack.c.h.b16 %v12956
  %v14277 = vunpack.c.l.b16 %v12957
  %v14278 = vunpack.c.h.b16 %v12957
  %v14279 = vunpack.c.l.b16 %v12958
  %v14280 = vunpack.c.h.b16 %v12958
  %v14281 = vunpack.c.l.b16 %v12959
  %v14282 = vunpack.c.l.b16 %v12960
  %v14283 = vunpack.c.h.b16 %v12960
  %v14284 = vunpack.c.l.b16 %v12961
  %v14285 = vunpack.c.h.b16 %v12961
  %v14286 = vunpack.c.l.b16 %v12962
  %v14287 = vunpack.c.h.b16 %v12962
  %v14288 = vunpack.c.l.b16 %v12963
  %v14289 = vunpack.c.l.b16 %v12964
  %v14290 = vunpack.c.h.b16 %v12964
  %v14291 = vunpack.c.l.b16 %v12965
  %v14292 = vunpack.c.h.b16 %v12965
  %v14293 = vunpack.c.l.b16 %v12966
  %v14294 = vunpack.c.h.b16 %v12966
  %v14295 = vunpack.c.l.b16 %v12967
  %v14296 = vunpack.c.l.b16 %v12968
  %v14297 = vunpack.c.h.b16 %v12968
  %v14298 = vunpack.c.l.b16 %v12969
  %v14299 = vunpack.c.h.b16 %v12969
  %v14300 = vunpack.c.l.b16 %v12970
  %v14301 = vunpack.c.h.b16 %v12970
  %v14302 = vunpack.c.l.b16 %v12971
  %v14303 = vunpack.c.l.b16 %v12972
  %v14304 = vunpack.c.h.b16 %v12972
  %v14305 = vunpack.c.l.b16 %v12973
  %v14306 = vunpack.c.h.b16 %v12973
  %v14307 = vunpack.c.l.b16 %v12974
  %v14308 = vunpack.c.h.b16 %v12974
  %v14309 = vunpack.c.l.b16 %v12975
  %v14310 = vunpack.c.l.b16 %v12976
  %v14311 = vunpack.c.h.b16 %v12976
  %v14312 = vunpack.c.l.b16 %v12977
  %v14313 = vunpack.c.h.b16 %v12977
  %v14314 = vunpack.c.l.b16 %v12978
  %v14315 = vunpack.c.h.b16 %v12978
  %v14316 = vunpack.c.l.b16 %v12979
  %v14317 = vunpack.c.l.b16 %v12980
  %v14318 = vunpack.c.h.b16 %v12980
  %v14319 = vunpack.c.l.b16 %v12981
  %v14320 = vunpack.c.h.b16 %v12981
  %v14321 = vunpack.c.l.b16 %v12982
  %v14322 = vunpack.c.h.b16 %v12982
  %v14323 = vunpack.c.l.b16 %v12983
  %v14324 = vunpack.c.l.b16 %v12984
  %v14325 = vunpack.c.h.b16 %v12984
  %v14326 = vunpack.c.l.b16 %v12985
  %v14327 = vunpack.c.h.b16 %v12985
  %v14328 = vunpack.c.l.b16 %v12986
  %v14329 = vunpack.c.h.b16 %v12986
  %v14330 = vunpack.c.l.b16 %v12987
  %v14331 = vunpack.c.l.b16 %v12988
  %v14332 = vunpack.c.h.b16 %v12988
  %v14333 = vunpack.c.l.b16 %v12989
  %v14334 = vunpack.c.h.b16 %v12989
  %v14335 = vunpack.c.l.b16 %v12990
  %v14336 = vunpack.c.h.b16 %v12990
  %v14337 = vunpack.c.l.b16 %v12991
  %v14338 = vunpack.c.l.b16 %v12992
  %v14339 = vunpack.c.h.b16 %v12992
  %v14340 = vunpack.c.l.b16 %v12993
  %v14341 = vunpack.c.h.b16 %v12993
  %v14342 = vunpack.c.l.b16 %v12994
  %v14343 = vunpack.c.h.b16 %v12994
  %v14344 = vunpack.c.l.b16 %v12995
  %v14345 = vunpack.c.l.b16 %v12996
  %v14346 = vunpack.c.h.b16 %v12996
  %v14347 = vunpack.c.l.b16 %v12997
  %v14348 = vunpack.c.h.b16 %v12997
  %v14349 = vunpack.c.l.b16 %v12998
  %v14350 = vunpack.c.h.b16 %v12998
  %v14351 = vunpack.c.l.b16 %v12999
  %v14352 = vunpack.c.l.b16 %v13000
  %v14353 = vunpack.c.h.b16 %v13000
  %v14354 = vunpack.c.l.b16 %v13001
  %v14355 = vunpack.c.h.b16 %v13001
  %v14356 = vunpack.c.l.b16 %v13002
  %v14357 = vunpack.c.h.b16 %v13002
  %v14358 = vunpack.c.l.b16 %v13003
  %v14359 = vunpack.c.l.b16 %v13004
  %v14360 = vunpack.c.h.b16 %v13004
  %v14361 = vunpack.c.l.b16 %v13005
  %v14362 = vunpack.c.h.b16 %v13005
  %v14363 = vunpack.c.l.b16 %v13006
  %v14364 = vunpack.c.h.b16 %v13006
  %v14365 = vunpack.c.l.b16 %v13007
  %v14366 = vunpack.c.l.b16 %v13008
  %v14367 = vunpack.c.h.b16 %v13008
  %v14368 = vunpack.c.l.b16 %v13009
  %v14369 = vunpack.c.h.b16 %v13009
  %v14370 = vunpack.c.l.b16 %v13010
  %v14371 = vunpack.c.h.b16 %v13010
  %v14372 = vunpack.c.l.b16 %v13011
  %v14373 = vunpack.c.l.b16 %v13012
  %v14374 = vunpack.c.h.b16 %v13012
  %v14375 = vunpack.c.l.b16 %v13013
  %v14376 = vunpack.c.h.b16 %v13013
  %v14377 = vunpack.c.l.b16 %v13014
  %v14378 = vunpack.c.h.b16 %v13014
  %v14379 = vunpack.c.l.b16 %v13015
  %v14380 = vunpack.c.l.b16 %v13016
  %v14381 = vunpack.c.h.b16 %v13016
  %v14382 = vunpack.c.l.b16 %v13017
  %v14383 = vunpack.c.h.b16 %v13017
  %v14384 = vunpack.c.l.b16 %v13018
  %v14385 = vunpack.c.h.b16 %v13018
  %v14386 = vunpack.c.l.b16 %v13019
  %v14387 = vunpack.c.l.b16 %v13020
  %v14388 = vunpack.c.h.b16 %v13020
  %v14389 = vunpack.c.l.b16 %v13021
  %v14390 = vunpack.c.h.b16 %v13021
  %v14391 = vunpack.c.l.b16 %v13022
  %v14392 = vunpack.c.h.b16 %v13022
  %v14393 = vunpack.c.l.b16 %v13023
  %v14394 = vunpack.c.l.b16 %v13024
  %v14395 = vunpack.c.h.b16 %v13024
  %v14396 = vunpack.c.l.b16 %v13025
  %v14397 = vunpack.c.h.b16 %v13025
  %v14398 = vunpack.c.l.b16 %v13026
  %v14399 = vunpack.c.h.b16 %v13026
  %v14400 = vunpack.c.l.b16 %v13027
  %v14401 = vunpack.c.l.b16 %v13028
  %v14402 = vunpack.c.h.b16 %v13028
  %v14403 = vunpack.c.l.b16 %v13029
  %v14404 = vunpack.c.h.b16 %v13029
  %v14405 = vunpack.c.l.b16 %v13030
  %v14406 = vunpack.c.h.b16 %v13030
  %v14407 = vunpack.c.l.b16 %v13031
  %v14408 = vunpack.c.l.b16 %v13032
  %v14409 = vunpack.c.h.b16 %v13032
  %v14410 = vunpack.c.l.b16 %v13033
  %v14411 = vunpack.c.h.b16 %v13033
  %v14412 = vunpack.c.l.b16 %v13034
  %v14413 = vunpack.c.h.b16 %v13034
  %v14414 = vunpack.c.l.b16 %v13035
  %v14415 = vunpack.c.l.b16 %v13036
  %v14416 = vunpack.c.h.b16 %v13036
  %v14417 = vunpack.c.l.b16 %v13037
  %v14418 = vunpack.c.h.b16 %v13037
  %v14419 = vunpack.c.l.b16 %v13038
  %v14420 = vunpack.c.h.b16 %v13038
  %v14421 = vunpack.c.l.b16 %v13039
  %v14422 = vunpack.c.l.b16 %v13040
  %v14423 = vunpack.c.h.b16 %v13040
  %v14424 = vunpack.c.l.b16 %v13041
  %v14425 = vunpack.c.h.b16 %v13041
  %v14426 = vunpack.c.l.b16 %v13042
  %v14427 = vunpack.c.h.b16 %v13042
  %v14428 = vunpack.c.l.b16 %v13043
  %v14429 = vunpack.c.l.b16 %v13044
  %v14430 = vunpack.c.h.b16 %v13044
  %v14431 = vunpack.c.l.b16 %v13045
  %v14432 = vunpack.c.h.b16 %v13045
  %v14433 = vunpack.c.l.b16 %v13046
  %v14434 = vunpack.c.h.b16 %v13046
  %v14435 = vunpack.c.l.b16 %v13047
  %v14436 = vunpack.c.l.b16 %v13048
  %v14437 = vunpack.c.h.b16 %v13048
  %v14438 = vunpack.c.l.b16 %v13049
  %v14439 = vunpack.c.h.b16 %v13049
  %v14440 = vunpack.c.l.b16 %v13050
  %v14441 = vunpack.c.h.b16 %v13050
  %v14442 = vunpack.c.l.b16 %v13051
  %v14443 = vunpack.c.l.b16 %v13052
  %v14444 = vunpack.c.h.b16 %v13052
  %v14445 = vunpack.c.l.b16 %v13053
  %v14446 = vunpack.c.h.b16 %v13053
  %v14447 = vunpack.c.l.b16 %v13054
  %v14448 = vunpack.c.h.b16 %v13054
  %v14449 = vunpack.c.l.b16 %v13055
  %v14450 = vunpack.c.l.b16 %v13056
  %v14451 = vunpack.c.h.b16 %v13056
  %v14452 = vunpack.c.l.b16 %v13057
  %v14453 = vunpack.c.h.b16 %v13057
  %v14454 = vunpack.c.l.b16 %v13058
  %v14455 = vunpack.c.h.b16 %v13058
  %v14456 = vunpack.c.l.b16 %v13059
  %v14457 = vunpack.c.l.b16 %v13060
  %v14458 = vunpack.c.h.b16 %v13060
  %v14459 = vunpack.c.l.b16 %v13061
  %v14460 = vunpack.c.h.b16 %v13061
  %v14461 = vunpack.c.l.b16 %v13062
  %v14462 = vunpack.c.h.b16 %v13062
  %v14463 = vunpack.c.l.b16 %v13063
  %v14464 = vunpack.c.l.b16 %v13064
  %v14465 = vunpack.c.h.b16 %v13064
  %v14466 = vunpack.c.l.b16 %v13065
  %v14467 = vunpack.c.h.b16 %v13065
  %v14468 = vunpack.c.l.b16 %v13066
  %v14469 = vunpack.c.h.b16 %v13066
  %v14470 = vunpack.c.l.b16 %v13067
  %v14471 = vunpack.c.l.b16 %v13068
  %v14472 = vunpack.c.h.b16 %v13068
  %v14473 = vunpack.c.l.b16 %v13069
  %v14474 = vunpack.c.h.b16 %v13069
  %v14475 = vunpack.c.l.b16 %v13070
  %v14476 = vunpack.c.h.b16 %v13070
  %v14477 = vunpack.c.l.b16 %v13071
  %v14478 = vunpack.c.l.b16 %v13072
  %v14479 = vunpack.c.h.b16 %v13072
  %v14480 = vunpack.c.l.b16 %v13073
  %v14481 = vunpack.c.h.b16 %v13073
  %v14482 = vunpack.c.l.b16 %v13074
  %v14483 = vunpack.c.h.b16 %v13074
  %v14484 = vunpack.c.l.b16 %v13075
  %v14485 = vunpack.c.l.b16 %v13076
  %v14486 = vunpack.c.h.b16 %v13076
  %v14487 = vunpack.c.l.b16 %v13077
  %v14488 = vunpack.c.h.b16 %v13077
  %v14489 = vunpack.c.l.b16 %v13078
  %v14490 = vunpack.c.h.b16 %v13078
  %v14491 = vunpack.c.l.b16 %v13079
  %v14492 = vunpack.c.l.b16 %v13080
  %v14493 = vunpack.c.h.b16 %v13080
  %v14494 = vunpack.c.l.b16 %v13081
  %v14495 = vunpack.c.h.b16 %v13081
  %v14496 = vunpack.c.l.b16 %v13082
  %v14497 = vunpack.c.h.b16 %v13082
  %v14498 = vunpack.c.l.b16 %v13083
  %v14499 = vunpack.c.l.b16 %v13084
  %v14500 = vunpack.c.h.b16 %v13084
  %v14501 = vunpack.c.l.b16 %v13085
  %v14502 = vunpack.c.h.b16 %v13085
  %v14503 = vunpack.c.l.b16 %v13086
  %v14504 = vunpack.c.h.b16 %v13086
  %v14505 = vunpack.c.l.b16 %v13087
  %v14506 = vunpack.c.l.b16 %v13088
  %v14507 = vunpack.c.h.b16 %v13088
  %v14508 = vunpack.c.l.b16 %v13089
  %v14509 = vunpack.c.h.b16 %v13089
  %v14510 = vunpack.c.l.b16 %v13090
  %v14511 = vunpack.c.h.b16 %v13090
  %v14512 = vunpack.c.l.b16 %v13091
  %v14513 = vunpack.c.l.b16 %v13092
  %v14514 = vunpack.c.h.b16 %v13092
  %v14515 = vunpack.c.l.b16 %v13093
  %v14516 = vunpack.c.h.b16 %v13093
  %v14517 = vunpack.c.l.b16 %v13094
  %v14518 = vunpack.c.h.b16 %v13094
  %v14519 = vunpack.c.l.b16 %v13095
  %v14520 = vunpack.c.l.b16 %v13096
  %v14521 = vunpack.c.h.b16 %v13096
  %v14522 = vunpack.c.l.b16 %v13097
  %v14523 = vunpack.c.h.b16 %v13097
  %v14524 = vunpack.c.l.b16 %v13098
  %v14525 = vunpack.c.h.b16 %v13098
  %v14526 = vunpack.c.l.b16 %v13099
  %v14527 = vunpack.c.l.b16 %v13100
  %v14528 = vunpack.c.h.b16 %v13100
  %v14529 = vunpack.c.l.b16 %v13101
  %v14530 = vunpack.c.h.b16 %v13101
  %v14531 = vunpack.c.l.b16 %v13102
  %v14532 = vunpack.c.h.b16 %v13102
  %v14533 = vunpack.c.l.b16 %v13103
  %v14534 = vunpack.c.l.b16 %v13104
  %v14535 = vunpack.c.h.b16 %v13104
  %v14536 = vunpack.c.l.b16 %v13105
  %v14537 = vunpack.c.h.b16 %v13105
  %v14538 = vunpack.c.l.b16 %v13106
  %v14539 = vunpack.c.h.b16 %v13106
  %v14540 = vunpack.c.l.b16 %v13107
  %v14541 = vunpack.c.l.b16 %v13108
  %v14542 = vunpack.c.h.b16 %v13108
  %v14543 = vunpack.c.l.b16 %v13109
  %v14544 = vunpack.c.h.b16 %v13109
  %v14545 = vunpack.c.l.b16 %v13110
  %v14546 = vunpack.c.h.b16 %v13110
  %v14547 = vunpack.c.l.b16 %v13111
  %v14548 = vunpack.c.l.b16 %v13112
  %v14549 = vunpack.c.h.b16 %v13112
  %v14550 = vunpack.c.l.b16 %v13113
  %v14551 = vunpack.c.h.b16 %v13113
  %v14552 = vunpack.c.l.b16 %v13114
  %v14553 = vunpack.c.h.b16 %v13114
  %v14554 = vunpack.c.l.b16 %v13115
  %v14555 = vunpack.c.l.b16 %v13116
  %v14556 = vunpack.c.h.b16 %v13116
  %v14557 = vunpack.c.l.b16 %v13117
  %v14558 = vunpack.c.h.b16 %v13117
  %v14559 = vunpack.c.l.b16 %v13118
  %v14560 = vunpack.c.h.b16 %v13118
  %v14561 = vunpack.c.l.b16 %v13119
  %v14562 = vunpack.c.l.b16 %v13120
  %v14563 = vunpack.c.h.b16 %v13120
  %v14564 = vunpack.c.l.b16 %v13121
  %v14565 = vunpack.c.h.b16 %v13121
  %v14566 = vunpack.c.l.b16 %v13122
  %v14567 = vunpack.c.h.b16 %v13122
  %v14568 = vunpack.c.l.b16 %v13123
  %v14569 = vpack.c.b16 %v13680, %v13673
  %v14570 = vpack.c.b16 %v13681, %v13674
  %v14571 = vpack.c.b16 %v13682, %v13675
  %v14572 = vpack.c.b16 %v13683, %v13676
  %v14573 = vpack.c.b16 %v13684, %v13677
  %v14574 = vpack.c.b16 %v13685, %v13678
  %v14575 = vpack.c.b16 %v13686, %v13679
  %v14576 = vpack.c.b16 %v13694, %v13687
  %v14577 = vpack.c.b16 %v13695, %v13688
  %v14578 = vpack.c.b16 %v13696, %v13689
  %v14579 = vpack.c.b16 %v13697, %v13690
  %v14580 = vpack.c.b16 %v13698, %v13691
  %v14581 = vpack.c.b16 %v13699, %v13692
  %v14582 = vpack.c.b16 %v13700, %v13693
  %v14583 = vpack.c.b16 %v13708, %v13701
  %v14584 = vpack.c.b16 %v13709, %v13702
  %v14585 = vpack.c.b16 %v13710, %v13703
  %v14586 = vpack.c.b16 %v13711, %v13704
  %v14587 = vpack.c.b16 %v13712, %v13705
  %v14588 = vpack.c.b16 %v13713, %v13706
  %v14589 = vpack.c.b16 %v13714, %v13707
  %v14590 = vpack.c.b16 %v13722, %v13715
  %v14591 = vpack.c.b16 %v13723, %v13716
  %v14592 = vpack.c.b16 %v13724, %v13717
  %v14593 = vpack.c.b16 %v13725, %v13718
  %v14594 = vpack.c.b16 %v13726, %v13719
  %v14595 = vpack.c.b16 %v13727, %v13720
  %v14596 = vpack.c.b16 %v13728, %v13721
  %v14597 = vpack.c.b16 %v13736, %v13729
  %v14598 = vpack.c.b16 %v13737, %v13730
  %v14599 = vpack.c.b16 %v13738, %v13731
  %v14600 = vpack.c.b16 %v13739, %v13732
  %v14601 = vpack.c.b16 %v13740, %v13733
  %v14602 = vpack.c.b16 %v13741, %v13734
  %v14603 = vpack.c.b16 %v13742, %v13735
  %v14604 = vpack.c.b16 %v13750, %v13743
  %v14605 = vpack.c.b16 %v13751, %v13744
  %v14606 = vpack.c.b16 %v13752, %v13745
  %v14607 = vpack.c.b16 %v13753, %v13746
  %v14608 = vpack.c.b16 %v13754, %v13747
  %v14609 = vpack.c.b16 %v13755, %v13748
  %v14610 = vpack.c.b16 %v13756, %v13749
  %v14611 = vpack.c.b16 %v13764, %v13757
  %v14612 = vpack.c.b16 %v13765, %v13758
  %v14613 = vpack.c.b16 %v13766, %v13759
  %v14614 = vpack.c.b16 %v13767, %v13760
  %v14615 = vpack.c.b16 %v13768, %v13761
  %v14616 = vpack.c.b16 %v13769, %v13762
  %v14617 = vpack.c.b16 %v13770, %v13763
  %v14618 = vpack.c.b16 %v13778, %v13771
  %v14619 = vpack.c.b16 %v13779, %v13772
  %v14620 = vpack.c.b16 %v13780, %v13773
  %v14621 = vpack.c.b16 %v13781, %v13774
  %v14622 = vpack.c.b16 %v13782, %v13775
  %v14623 = vpack.c.b16 %v13783, %v13776
  %v14624 = vpack.c.b16 %v13784, %v13777
  %v14625 = vpack.c.b16 %v13792, %v13785
  %v14626 = vpack.c.b16 %v13793, %v13786
  %v14627 = vpack.c.b16 %v13794, %v13787
  %v14628 = vpack.c.b16 %v13795, %v13788
  %v14629 = vpack.c.b16 %v13796, %v13789
  %v14630 = vpack.c.b16 %v13797, %v13790
  %v14631 = vpack.c.b16 %v13798, %v13791
  %v14632 = vpack.c.b16 %v13806, %v13799
  %v14633 = vpack.c.b16 %v13807, %v13800
  %v14634 = vpack.c.b16 %v13808, %v13801
  %v14635 = vpack.c.b16 %v13809, %v13802
  %v14636 = vpack.c.b16 %v13810, %v13803
  %v14637 = vpack.c.b16 %v13811, %v13804
  %v14638 = vpack.c.b16 %v13812, %v13805
  %v14639 = vpack.c.b16 %v13820, %v13813
  %v14640 = vpack.c.b16 %v13821, %v13814
  %v14641 = vpack.c.b16 %v13822, %v13815
  %v14642 = vpack.c.b16 %v13823, %v13816
  %v14643 = vpack.c.b16 %v13824, %v13817
  %v14644 = vpack.c.b16 %v13825, %v13818
  %v14645 = vpack.c.b16 %v13826, %v13819
  %v14646 = vpack.c.b16 %v13834, %v13827
  %v14647 = vpack.c.b16 %v13835, %v13828
  %v14648 = vpack.c.b16 %v13836, %v13829
  %v14649 = vpack.c.b16 %v13837, %v13830
  %v14650 = vpack.c.b16 %v13838, %v13831
  %v14651 = vpack.c.b16 %v13839, %v13832
  %v14652 = vpack.c.b16 %v13840, %v13833
  %v14653 = vpack.c.b16 %v13848, %v13841
  %v14654 = vpack.c.b16 %v13849, %v13842
  %v14655 = vpack.c.b16 %v13850, %v13843
  %v14656 = vpack.c.b16 %v13851, %v13844
  %v14657 = vpack.c.b16 %v13852, %v13845
  %v14658 = vpack.c.b16 %v13853, %v13846
  %v14659 = vpack.c.b16 %v13854, %v13847
  %v14660 = vpack.c.b16 %v13862, %v13855
  %v14661 = vpack.c.b16 %v13863, %v13856
  %v14662 = vpack.c.b16 %v13864, %v13857
  %v14663 = vpack.c.b16 %v13865, %v13858
  %v14664 = vpack.c.b16 %v13866, %v13859
  %v14665 = vpack.c.b16 %v13867, %v13860
  %v14666 = vpack.c.b16 %v13868, %v13861
  %v14667 = vpack.c.b16 %v13876, %v13869
  %v14668 = vpack.c.b16 %v13877, %v13870
  %v14669 = vpack.c.b16 %v13878, %v13871
  %v14670 = vpack.c.b16 %v13879, %v13872
  %v14671 = vpack.c.b16 %v13880, %v13873
  %v14672 = vpack.c.b16 %v13881, %v13874
  %v14673 = vpack.c.b16 %v13882, %v13875
  %v14674 = vpack.c.b16 %v13890, %v13883
  %v14675 = vpack.c.b16 %v13891, %v13884
  %v14676 = vpack.c.b16 %v13892, %v13885
  %v14677 = vpack.c.b16 %v13893, %v13886
  %v14678 = vpack.c.b16 %v13894, %v13887
  %v14679 = vpack.c.b16 %v13895, %v13888
  %v14680 = vpack.c.b16 %v13896, %v13889
  %v14681 = vpack.c.b16 %v13904, %v13897
  %v14682 = vpack.c.b16 %v13905, %v13898
  %v14683 = vpack.c.b16 %v13906, %v13899
  %v14684 = vpack.c.b16 %v13907, %v13900
  %v14685 = vpack.c.b16 %v13908, %v13901
  %v14686 = vpack.c.b16 %v13909, %v13902
  %v14687 = vpack.c.b16 %v13910, %v13903
  %v14688 = vpack.c.b16 %v13918, %v13911
  %v14689 = vpack.c.b16 %v13919, %v13912
  %v14690 = vpack.c.b16 %v13920, %v13913
  %v14691 = vpack.c.b16 %v13921, %v13914
  %v14692 = vpack.c.b16 %v13922, %v13915
  %v14693 = vpack.c.b16 %v13923, %v13916
  %v14694 = vpack.c.b16 %v13924, %v13917
  %v14695 = vpack.c.b16 %v13932, %v13925
  %v14696 = vpack.c.b16 %v13933, %v13926
  %v14697 = vpack.c.b16 %v13934, %v13927
  %v14698 = vpack.c.b16 %v13935, %v13928
  %v14699 = vpack.c.b16 %v13936, %v13929
  %v14700 = vpack.c.b16 %v13937, %v13930
  %v14701 = vpack.c.b16 %v13938, %v13931
  %v14702 = vpack.c.b16 %v13946, %v13939
  %v14703 = vpack.c.b16 %v13947, %v13940
  %v14704 = vpack.c.b16 %v13948, %v13941
  %v14705 = vpack.c.b16 %v13949, %v13942
  %v14706 = vpack.c.b16 %v13950, %v13943
  %v14707 = vpack.c.b16 %v13951, %v13944
  %v14708 = vpack.c.b16 %v13952, %v13945
  %v14709 = vpack.c.b16 %v13960, %v13953
  %v14710 = vpack.c.b16 %v13961, %v13954
  %v14711 = vpack.c.b16 %v13962, %v13955
  %v14712 = vpack.c.b16 %v13963, %v13956
  %v14713 = vpack.c.b16 %v13964, %v13957
  %v14714 = vpack.c.b16 %v13965, %v13958
  %v14715 = vpack.c.b16 %v13966, %v13959
  %v14716 = vpack.c.b16 %v13974, %v13967
  %v14717 = vpack.c.b16 %v13975, %v13968
  %v14718 = vpack.c.b16 %v13976, %v13969
  %v14719 = vpack.c.b16 %v13977, %v13970
  %v14720 = vpack.c.b16 %v13978, %v13971
  %v14721 = vpack.c.b16 %v13979, %v13972
  %v14722 = vpack.c.b16 %v13980, %v13973
  %v14723 = vpack.c.b16 %v13988, %v13981
  %v14724 = vpack.c.b16 %v13989, %v13982
  %v14725 = vpack.c.b16 %v13990, %v13983
  %v14726 = vpack.c.b16 %v13991, %v13984
  %v14727 = vpack.c.b16 %v13992, %v13985
  %v14728 = vpack.c.b16 %v13993, %v13986
  %v14729 = vpack.c.b16 %v13994, %v13987
  %v14730 = vpack.c.b16 %v14002, %v13995
  %v14731 = vpack.c.b16 %v14003, %v13996
  %v14732 = vpack.c.b16 %v14004, %v13997
  %v14733 = vpack.c.b16 %v14005, %v13998
  %v14734 = vpack.c.b16 %v14006, %v13999
  %v14735 = vpack.c.b16 %v14007, %v14000
  %v14736 = vpack.c.b16 %v14008, %v14001
  %v14737 = vpack.c.b16 %v14016, %v14009
  %v14738 = vpack.c.b16 %v14017, %v14010
  %v14739 = vpack.c.b16 %v14018, %v14011
  %v14740 = vpack.c.b16 %v14019, %v14012
  %v14741 = vpack.c.b16 %v14020, %v14013
  %v14742 = vpack.c.b16 %v14021, %v14014
  %v14743 = vpack.c.b16 %v14022, %v14015
  %v14744 = vpack.c.b16 %v14030, %v14023
  %v14745 = vpack.c.b16 %v14031, %v14024
  %v14746 = vpack.c.b16 %v14032, %v14025
  %v14747 = vpack.c.b16 %v14033, %v14026
  %v14748 = vpack.c.b16 %v14034, %v14027
  %v14749 = vpack.c.b16 %v14035, %v14028
  %v14750 = vpack.c.b16 %v14036, %v14029
  %v14751 = vpack.c.b16 %v14044, %v14037
  %v14752 = vpack.c.b16 %v14045, %v14038
  %v14753 = vpack.c.b16 %v14046, %v14039
  %v14754 = vpack.c.b16 %v14047, %v14040
  %v14755 = vpack.c.b16 %v14048, %v14041
  %v14756 = vpack.c.b16 %v14049, %v14042
  %v14757 = vpack.c.b16 %v14050, %v14043
  %v14758 = vpack.c.b16 %v14058, %v14051
  %v14759 = vpack.c.b16 %v14059, %v14052
  %v14760 = vpack.c.b16 %v14060, %v14053
  %v14761 = vpack.c.b16 %v14061, %v14054
  %v14762 = vpack.c.b16 %v14062, %v14055
  %v14763 = vpack.c.b16 %v14063, %v14056
  %v14764 = vpack.c.b16 %v14064, %v14057
  %v14765 = vpack.c.b16 %v14072, %v14065
  %v14766 = vpack.c.b16 %v14073, %v14066
  %v14767 = vpack.c.b16 %v14074, %v14067
  %v14768 = vpack.c.b16 %v14075, %v14068
  %v14769 = vpack.c.b16 %v14076, %v14069
  %v14770 = vpack.c.b16 %v14077, %v14070
  %v14771 = vpack.c.b16 %v14078, %v14071
  %v14772 = vpack.c.b16 %v14086, %v14079
  %v14773 = vpack.c.b16 %v14087, %v14080
  %v14774 = vpack.c.b16 %v14088, %v14081
  %v14775 = vpack.c.b16 %v14089, %v14082
  %v14776 = vpack.c.b16 %v14090, %v14083
  %v14777 = vpack.c.b16 %v14091, %v14084
  %v14778 = vpack.c.b16 %v14092, %v14085
  %v14779 = vpack.c.b16 %v14100, %v14093
  %v14780 = vpack.c.b16 %v14101, %v14094
  %v14781 = vpack.c.b16 %v14102, %v14095
  %v14782 = vpack.c.b16 %v14103, %v14096
  %v14783 = vpack.c.b16 %v14104, %v14097
  %v14784 = vpack.c.b16 %v14105, %v14098
  %v14785 = vpack.c.b16 %v14106, %v14099
  %v14786 = vpack.c.b16 %v14114, %v14107
  %v14787 = vpack.c.b16 %v14115, %v14108
  %v14788 = vpack.c.b16 %v14116, %v14109
  %v14789 = vpack.c.b16 %v14117, %v14110
  %v14790 = vpack.c.b16 %v14118, %v14111
  %v14791 = vpack.c.b16 %v14119, %v14112
  %v14792 = vpack.c.b16 %v14120, %v14113
  %v14793 = vpack.c.b16 %v14128, %v14121
  %v14794 = vpack.c.b16 %v14129, %v14122
  %v14795 = vpack.c.b16 %v14130, %v14123
  %v14796 = vpack.c.b16 %v14131, %v14124
  %v14797 = vpack.c.b16 %v14132, %v14125
  %v14798 = vpack.c.b16 %v14133, %v14126
  %v14799 = vpack.c.b16 %v14134, %v14127
  %v14800 = vpack.c.b16 %v14142, %v14135
  %v14801 = vpack.c.b16 %v14143, %v14136
  %v14802 = vpack.c.b16 %v14144, %v14137
  %v14803 = vpack.c.b16 %v14145, %v14138
  %v14804 = vpack.c.b16 %v14146, %v14139
  %v14805 = vpack.c.b16 %v14147, %v14140
  %v14806 = vpack.c.b16 %v14148, %v14141
  %v14807 = vpack.c.b16 %v14156, %v14149
  %v14808 = vpack.c.b16 %v14157, %v14150
  %v14809 = vpack.c.b16 %v14158, %v14151
  %v14810 = vpack.c.b16 %v14159, %v14152
  %v14811 = vpack.c.b16 %v14160, %v14153
  %v14812 = vpack.c.b16 %v14161, %v14154
  %v14813 = vpack.c.b16 %v14162, %v14155
  %v14814 = vpack.c.b16 %v14170, %v14163
  %v14815 = vpack.c.b16 %v14171, %v14164
  %v14816 = vpack.c.b16 %v14172, %v14165
  %v14817 = vpack.c.b16 %v14173, %v14166
  %v14818 = vpack.c.b16 %v14174, %v14167
  %v14819 = vpack.c.b16 %v14175, %v14168
  %v14820 = vpack.c.b16 %v14176, %v14169
  %v14821 = vpack.c.b16 %v14184, %v14177
  %v14822 = vpack.c.b16 %v14185, %v14178
  %v14823 = vpack.c.b16 %v14186, %v14179
  %v14824 = vpack.c.b16 %v14187, %v14180
  %v14825 = vpack.c.b16 %v14188, %v14181
  %v14826 = vpack.c.b16 %v14189, %v14182
  %v14827 = vpack.c.b16 %v14190, %v14183
  %v14828 = vpack.c.b16 %v14198, %v14191
  %v14829 = vpack.c.b16 %v14199, %v14192
  %v14830 = vpack.c.b16 %v14200, %v14193
  %v14831 = vpack.c.b16 %v14201, %v14194
  %v14832 = vpack.c.b16 %v14202, %v14195
  %v14833 = vpack.c.b16 %v14203, %v14196
  %v14834 = vpack.c.b16 %v14204, %v14197
  %v14835 = vpack.c.b16 %v14212, %v14205
  %v14836 = vpack.c.b16 %v14213, %v14206
  %v14837 = vpack.c.b16 %v14214, %v14207
  %v14838 = vpack.c.b16 %v14215, %v14208
  %v14839 = vpack.c.b16 %v14216, %v14209
  %v14840 = vpack.c.b16 %v14217, %v14210
  %v14841 = vpack.c.b16 %v14218, %v14211
  %v14842 = vpack.c.b16 %v14226, %v14219
  %v14843 = vpack.c.b16 %v14227, %v14220
  %v14844 = vpack.c.b16 %v14228, %v14221
  %v14845 = vpack.c.b16 %v14229, %v14222
  %v14846 = vpack.c.b16 %v14230, %v14223
  %v14847 = vpack.c.b16 %v14231, %v14224
  %v14848 = vpack.c.b16 %v14232, %v14225
  %v14849 = vpack.c.b16 %v14240, %v14233
  %v14850 = vpack.c.b16 %v14241, %v14234
  %v14851 = vpack.c.b16 %v14242, %v14235
  %v14852 = vpack.c.b16 %v14243, %v14236
  %v14853 = vpack.c.b16 %v14244, %v14237
  %v14854 = vpack.c.b16 %v14245, %v14238
  %v14855 = vpack.c.b16 %v14246, %v14239
  %v14856 = vpack.c.b16 %v14254, %v14247
  %v14857 = vpack.c.b16 %v14255, %v14248
  %v14858 = vpack.c.b16 %v14256, %v14249
  %v14859 = vpack.c.b16 %v14257, %v14250
  %v14860 = vpack.c.b16 %v14258, %v14251
  %v14861 = vpack.c.b16 %v14259, %v14252
  %v14862 = vpack.c.b16 %v14260, %v14253
  %v14863 = vpack.c.b16 %v14268, %v14261
  %v14864 = vpack.c.b16 %v14269, %v14262
  %v14865 = vpack.c.b16 %v14270, %v14263
  %v14866 = vpack.c.b16 %v14271, %v14264
  %v14867 = vpack.c.b16 %v14272, %v14265
  %v14868 = vpack.c.b16 %v14273, %v14266
  %v14869 = vpack.c.b16 %v14274, %v14267
  %v14870 = vpack.c.b16 %v14282, %v14275
  %v14871 = vpack.c.b16 %v14283, %v14276
  %v14872 = vpack.c.b16 %v14284, %v14277
  %v14873 = vpack.c.b16 %v14285, %v14278
  %v14874 = vpack.c.b16 %v14286, %v14279
  %v14875 = vpack.c.b16 %v14287, %v14280
  %v14876 = vpack.c.b16 %v14288, %v14281
  %v14877 = vpack.c.b16 %v14296, %v14289
  %v14878 = vpack.c.b16 %v14297, %v14290
  %v14879 = vpack.c.b16 %v14298, %v14291
  %v14880 = vpack.c.b16 %v14299, %v14292
  %v14881 = vpack.c.b16 %v14300, %v14293
  %v14882 = vpack.c.b16 %v14301, %v14294
  %v14883 = vpack.c.b16 %v14302, %v14295
  %v14884 = vpack.c.b16 %v14310, %v14303
  %v14885 = vpack.c.b16 %v14311, %v14304
  %v14886 = vpack.c.b16 %v14312, %v14305
  %v14887 = vpack.c.b16 %v14313, %v14306
  %v14888 = vpack.c.b16 %v14314, %v14307
  %v14889 = vpack.c.b16 %v14315, %v14308
  %v14890 = vpack.c.b16 %v14316, %v14309
  %v14891 = vpack.c.b16 %v14324, %v14317
  %v14892 = vpack.c.b16 %v14325, %v14318
  %v14893 = vpack.c.b16 %v14326, %v14319
  %v14894 = vpack.c.b16 %v14327, %v14320
  %v14895 = vpack.c.b16 %v14328, %v14321
  %v14896 = vpack.c.b16 %v14329, %v14322
  %v14897 = vpack.c.b16 %v14330, %v14323
  %v14898 = vpack.c.b16 %v14338, %v14331
  %v14899 = vpack.c.b16 %v14339, %v14332
  %v14900 = vpack.c.b16 %v14340, %v14333
  %v14901 = vpack.c.b16 %v14341, %v14334
  %v14902 = vpack.c.b16 %v14342, %v14335
  %v14903 = vpack.c.b16 %v14343, %v14336
  %v14904 = vpack.c.b16 %v14344, %v14337
  %v14905 = vpack.c.b16 %v14352, %v14345
  %v14906 = vpack.c.b16 %v14353, %v14346
  %v14907 = vpack.c.b16 %v14354, %v14347
  %v14908 = vpack.c.b16 %v14355, %v14348
  %v14909 = vpack.c.b16 %v14356, %v14349
  %v14910 = vpack.c.b16 %v14357, %v14350
  %v14911 = vpack.c.b16 %v14358, %v14351
  %v14912 = vpack.c.b16 %v14366, %v14359
  %v14913 = vpack.c.b16 %v14367, %v14360
  %v14914 = vpack.c.b16 %v14368, %v14361
  %v14915 = vpack.c.b16 %v14369, %v14362
  %v14916 = vpack.c.b16 %v14370, %v14363
  %v14917 = vpack.c.b16 %v14371, %v14364
  %v14918 = vpack.c.b16 %v14372, %v14365
  %v14919 = vpack.c.b16 %v14380, %v14373
  %v14920 = vpack.c.b16 %v14381, %v14374
  %v14921 = vpack.c.b16 %v14382, %v14375
  %v14922 = vpack.c.b16 %v14383, %v14376
  %v14923 = vpack.c.b16 %v14384, %v14377
  %v14924 = vpack.c.b16 %v14385, %v14378
  %v14925 = vpack.c.b16 %v14386, %v14379
  %v14926 = vpack.c.b16 %v14394, %v14387
  %v14927 = vpack.c.b16 %v14395, %v14388
  %v14928 = vpack.c.b16 %v14396, %v14389
  %v14929 = vpack.c.b16 %v14397, %v14390
  %v14930 = vpack.c.b16 %v14398, %v14391
  %v14931 = vpack.c.b16 %v14399, %v14392
  %v14932 = vpack.c.b16 %v14400, %v14393
  %v14933 = vpack.c.b16 %v14408, %v14401
  %v14934 = vpack.c.b16 %v14409, %v14402
  %v14935 = vpack.c.b16 %v14410, %v14403
  %v14936 = vpack.c.b16 %v14411, %v14404
  %v14937 = vpack.c.b16 %v14412, %v14405
  %v14938 = vpack.c.b16 %v14413, %v14406
  %v14939 = vpack.c.b16 %v14414, %v14407
  %v14940 = vpack.c.b16 %v14422, %v14415
  %v14941 = vpack.c.b16 %v14423, %v14416
  %v14942 = vpack.c.b16 %v14424, %v14417
  %v14943 = vpack.c.b16 %v14425, %v14418
  %v14944 = vpack.c.b16 %v14426, %v14419
  %v14945 = vpack.c.b16 %v14427, %v14420
  %v14946 = vpack.c.b16 %v14428, %v14421
  %v14947 = vpack.c.b16 %v14436, %v14429
  %v14948 = vpack.c.b16 %v14437, %v14430
  %v14949 = vpack.c.b16 %v14438, %v14431
  %v14950 = vpack.c.b16 %v14439, %v14432
  %v14951 = vpack.c.b16 %v14440, %v14433
  %v14952 = vpack.c.b16 %v14441, %v14434
  %v14953 = vpack.c.b16 %v14442, %v14435
  %v14954 = vpack.c.b16 %v14450, %v14443
  %v14955 = vpack.c.b16 %v14451, %v14444
  %v14956 = vpack.c.b16 %v14452, %v14445
  %v14957 = vpack.c.b16 %v14453, %v14446
  %v14958 = vpack.c.b16 %v14454, %v14447
  %v14959 = vpack.c.b16 %v14455, %v14448
  %v14960 = vpack.c.b16 %v14456, %v14449
  %v14961 = vpack.c.b16 %v14464, %v14457
  %v14962 = vpack.c.b16 %v14465, %v14458
  %v14963 = vpack.c.b16 %v14466, %v14459
  %v14964 = vpack.c.b16 %v14467, %v14460
  %v14965 = vpack.c.b16 %v14468, %v14461
  %v14966 = vpack.c.b16 %v14469, %v14462
  %v14967 = vpack.c.b16 %v14470, %v14463
  %v14968 = vpack.c.b16 %v14478, %v14471
  %v14969 = vpack.c.b16 %v14479, %v14472
  %v14970 = vpack.c.b16 %v14480, %v14473
  %v14971 = vpack.c.b16 %v14481, %v14474
  %v14972 = vpack.c.b16 %v14482, %v14475
  %v14973 = vpack.c.b16 %v14483, %v14476
  %v14974 = vpack.c.b16 %v14484, %v14477
  %v14975 = vpack.c.b16 %v14492, %v14485
  %v14976 = vpack.c.b16 %v14493, %v14486
  %v14977 = vpack.c.b16 %v14494, %v14487
  %v14978 = vpack.c.b16 %v14495, %v14488
  %v14979 = vpack.c.b16 %v14496, %v14489
  %v14980 = vpack.c.b16 %v14497, %v14490
  %v14981 = vpack.c.b16 %v14498, %v14491
  %v14982 = vpack.c.b16 %v14506, %v14499
  %v14983 = vpack.c.b16 %v14507, %v14500
  %v14984 = vpack.c.b16 %v14508, %v14501
  %v14985 = vpack.c.b16 %v14509, %v14502
  %v14986 = vpack.c.b16 %v14510, %v14503
  %v14987 = vpack.c.b16 %v14511, %v14504
  %v14988 = vpack.c.b16 %v14512, %v14505
  %v14989 = vpack.c.b16 %v14520, %v14513
  %v14990 = vpack.c.b16 %v14521, %v14514
  %v14991 = vpack.c.b16 %v14522, %v14515
  %v14992 = vpack.c.b16 %v14523, %v14516
  %v14993 = vpack.c.b16 %v14524, %v14517
  %v14994 = vpack.c.b16 %v14525, %v14518
  %v14995 = vpack.c.b16 %v14526, %v14519
  %v14996 = vpack.c.b16 %v14534, %v14527
  %v14997 = vpack.c.b16 %v14535, %v14528
  %v14998 = vpack.c.b16 %v14536, %v14529
  %v14999 = vpack.c.b16 %v14537, %v14530
  %v15000 = vpack.c.b16 %v14538, %v14531
  %v15001 = vpack.c.b16 %v14539, %v14532
  %v15002 = vpack.c.b16 %v14540, %v14533
  %v15003 = vpack.c.b16 %v14548, %v14541
  %v15004 = vpack.c.b16 %v14549, %v14542
  %v15005 = vpack.c.b16 %v14550, %v14543
  %v15006 = vpack.c.b16 %v14551, %v14544
  %v15007 = vpack.c.b16 %v14552, %v14545
  %v15008 = vpack.c.b16 %v14553, %v14546
  %v15009 = vpack.c.b16 %v14554, %v14547
  %v15010 = vpack.c.b16 %v14562, %v14555
  %v15011 = vpack.c.b16 %v14563, %v14556
  %v15012 = vpack.c.b16 %v14564, %v14557
  %v15013 = vpack.c.b16 %v14565, %v14558
  %v15014 = vpack.c.b16 %v14566, %v14559
  %v15015 = vpack.c.b16 %v14567, %v14560
  %v15016 = vpack.c.b16 %v14568, %v14561
  %15465 = vmatprep.subr.bf16.mxu0 %v14619
  %15466 = vmatpush1.bf16.msra.mxu0 %v14618
  %15467 = vmatprep.subr.bf16.mxu0 %v14612
  %15468 = vmatpush1.bf16.msra.mxu0 %v14611
  %15469 = vmatprep.subr.bf16.mxu0 %v14605
  %15470 = vmatpush1.bf16.msra.mxu0 %v14604
  %15471 = vmatprep.subr.bf16.mxu0 %v14598
  %15472 = vmatpush1.bf16.msra.mxu0 %v14597
  %15473 = vmatprep.subr.bf16.mxu0 %v14591
  %15474 = vmatpush1.bf16.msra.mxu0 %v14590
  %15475 = vmatprep.subr.bf16.mxu0 %v14584
  %15476 = vmatpush1.bf16.msra.mxu0 %v14583
  %15477 = vmatprep.subr.bf16.mxu0 %v14577
  %15478 = vmatpush1.bf16.msra.mxu0 %v14576
  %15479 = vmatprep.subr.bf16.mxu0 %v14570
  %15480 = vmatpush1.bf16.msra.mxu0 %v14569
  %15481 = vmatprep.subr.bf16.mxu0 %v14675
  %15482 = vmatpush2.bf16.msra.mxu0 %v14674
  %15483 = vmatprep.subr.bf16.mxu0 %v14668
  %15484 = vmatpush2.bf16.msra.mxu0 %v14667
  %15485 = vmatprep.subr.bf16.mxu0 %v14661
  %15486 = vmatpush2.bf16.msra.mxu0 %v14660
  %15487 = vmatprep.subr.bf16.mxu0 %v14654
  %15488 = vmatpush2.bf16.msra.mxu0 %v14653
  %15489 = vmatprep.subr.bf16.mxu0 %v14647
  %15490 = vmatpush2.bf16.msra.mxu0 %v14646
  %15491 = vmatprep.subr.bf16.mxu0 %v14640
  %15492 = vmatpush2.bf16.msra.mxu0 %v14639
  %15493 = vmatprep.subr.bf16.mxu0 %v14633
  %15494 = vmatpush2.bf16.msra.mxu0 %v14632
  %15495 = vmatprep.subr.bf16.mxu0 %v14626
  %15496 = vmatpush2.bf16.msra.mxu0 %v14625
  %15497 = vmatprep.mubr.bf16.mxu0 %v12605
  %15498 = vmatmul.mubr.bf16.gmra.mxu0 %v12604
  %v15499 = vpop.f32.mrf.mxu0
  %v15500 = vadd.f32 %v13129, %v15499
  %v15501 = vpop.f32.mrf.mxu0
  %v15502 = vadd.f32 %v13133, %v15501
  %v15503 = vpop.f32.mrf.mxu0
  %v15504 = vpop.f32.mrf.mxu0
  %15505 = vdwg.mxu0
  %15506 = vmatprep.subr.bf16.mxu0 %v14731
  %15507 = vmatpush1.bf16.msra.mxu0 %v14730
  %15508 = vmatprep.subr.bf16.mxu0 %v14724
  %15509 = vmatpush1.bf16.msra.mxu0 %v14723
  %15510 = vmatprep.subr.bf16.mxu0 %v14717
  %15511 = vmatpush1.bf16.msra.mxu0 %v14716
  %15512 = vmatprep.subr.bf16.mxu0 %v14710
  %15513 = vmatpush1.bf16.msra.mxu0 %v14709
  %15514 = vmatprep.subr.bf16.mxu0 %v14703
  %15515 = vmatpush1.bf16.msra.mxu0 %v14702
  %15516 = vmatprep.subr.bf16.mxu0 %v14696
  %15517 = vmatpush1.bf16.msra.mxu0 %v14695
  %15518 = vmatprep.subr.bf16.mxu0 %v14689
  %15519 = vmatpush1.bf16.msra.mxu0 %v14688
  %15520 = vmatprep.subr.bf16.mxu0 %v14682
  %15521 = vmatpush1.bf16.msra.mxu0 %v14681
  %15522 = vmatprep.subr.bf16.mxu0 %v14787
  %15523 = vmatpush2.bf16.msra.mxu0 %v14786
  %15524 = vmatprep.subr.bf16.mxu0 %v14780
  %15525 = vmatpush2.bf16.msra.mxu0 %v14779
  %15526 = vmatprep.subr.bf16.mxu0 %v14773
  %15527 = vmatpush2.bf16.msra.mxu0 %v14772
  %15528 = vmatprep.subr.bf16.mxu0 %v14766
  %15529 = vmatpush2.bf16.msra.mxu0 %v14765
  %15530 = vmatprep.subr.bf16.mxu0 %v14759
  %15531 = vmatpush2.bf16.msra.mxu0 %v14758
  %15532 = vmatprep.subr.bf16.mxu0 %v14752
  %15533 = vmatpush2.bf16.msra.mxu0 %v14751
  %15534 = vmatprep.subr.bf16.mxu0 %v14745
  %15535 = vmatpush2.bf16.msra.mxu0 %v14744
  %15536 = vmatprep.subr.bf16.mxu0 %v14738
  %15537 = vmatpush2.bf16.msra.mxu0 %v14737
  %15538 = vmatprep.mubr.bf16.mxu0 %v12607
  %15539 = vmatmul.mubr.bf16.gmra.mxu0 %v12606
  %v15540 = vpop.f32.mrf.mxu0
  %v15541 = vadd.f32 %v15500, %v15540
  %v15542 = vpop.f32.mrf.mxu0
  %v15543 = vadd.f32 %v15502, %v15542
  %v15544 = vpop.f32.mrf.mxu0
  %v15545 = vpop.f32.mrf.mxu0
  %15546 = vdwg.mxu0
  %15547 = vmatprep.subr.bf16.mxu0 %v14843
  %15548 = vmatpush1.bf16.msra.mxu0 %v14842
  %15549 = vmatprep.subr.bf16.mxu0 %v14836
  %15550 = vmatpush1.bf16.msra.mxu0 %v14835
  %15551 = vmatprep.subr.bf16.mxu0 %v14829
  %15552 = vmatpush1.bf16.msra.mxu0 %v14828
  %15553 = vmatprep.subr.bf16.mxu0 %v14822
  %15554 = vmatpush1.bf16.msra.mxu0 %v14821
  %15555 = vmatprep.subr.bf16.mxu0 %v14815
  %15556 = vmatpush1.bf16.msra.mxu0 %v14814
  %15557 = vmatprep.subr.bf16.mxu0 %v14808
  %15558 = vmatpush1.bf16.msra.mxu0 %v14807
  %15559 = vmatprep.subr.bf16.mxu0 %v14801
  %15560 = vmatpush1.bf16.msra.mxu0 %v14800
  %15561 = vmatprep.subr.bf16.mxu0 %v14794
  %15562 = vmatpush1.bf16.msra.mxu0 %v14793
  %15563 = vmatprep.subr.bf16.mxu0 %v14899
  %15564 = vmatpush2.bf16.msra.mxu0 %v14898
  %15565 = vmatprep.subr.bf16.mxu0 %v14892
  %15566 = vmatpush2.bf16.msra.mxu0 %v14891
  %15567 = vmatprep.subr.bf16.mxu0 %v14885
  %15568 = vmatpush2.bf16.msra.mxu0 %v14884
  %15569 = vmatprep.subr.bf16.mxu0 %v14878
  %15570 = vmatpush2.bf16.msra.mxu0 %v14877
  %15571 = vmatprep.subr.bf16.mxu0 %v14871
  %15572 = vmatpush2.bf16.msra.mxu0 %v14870
  %15573 = vmatprep.subr.bf16.mxu0 %v14864
  %15574 = vmatpush2.bf16.msra.mxu0 %v14863
  %15575 = vmatprep.subr.bf16.mxu0 %v14857
  %15576 = vmatpush2.bf16.msra.mxu0 %v14856
  %15577 = vmatprep.subr.bf16.mxu0 %v14850
  %15578 = vmatpush2.bf16.msra.mxu0 %v14849
  %15579 = vmatprep.mubr.bf16.mxu0 %v12609
  %15580 = vmatmul.mubr.bf16.gmra.mxu0 %v12608
  %v15581 = vpop.f32.mrf.mxu0
  %v15582 = vadd.f32 %v15541, %v15581
  %v15583 = vpop.f32.mrf.mxu0
  %v15584 = vadd.f32 %v15543, %v15583
  %v15585 = vpop.f32.mrf.mxu0
  %v15586 = vpop.f32.mrf.mxu0
  %15587 = vdwg.mxu0
  %15588 = vmatprep.subr.bf16.mxu0 %v14955
  %15589 = vmatpush1.bf16.msra.mxu0 %v14954
  %15590 = vmatprep.subr.bf16.mxu0 %v14948
  %15591 = vmatpush1.bf16.msra.mxu0 %v14947
  %15592 = vmatprep.subr.bf16.mxu0 %v14941
  %15593 = vmatpush1.bf16.msra.mxu0 %v14940
  %15594 = vmatprep.subr.bf16.mxu0 %v14934
  %15595 = vmatpush1.bf16.msra.mxu0 %v14933
  %15596 = vmatprep.subr.bf16.mxu0 %v14927
  %15597 = vmatpush1.bf16.msra.mxu0 %v14926
  %15598 = vmatprep.subr.bf16.mxu0 %v14920
  %15599 = vmatpush1.bf16.msra.mxu0 %v14919
  %15600 = vmatprep.subr.bf16.mxu0 %v14913
  %15601 = vmatpush1.bf16.msra.mxu0 %v14912
  %15602 = vmatprep.subr.bf16.mxu0 %v14906
  %15603 = vmatpush1.bf16.msra.mxu0 %v14905
  %15604 = vmatprep.subr.bf16.mxu0 %v15011
  %15605 = vmatpush2.bf16.msra.mxu0 %v15010
  %15606 = vmatprep.subr.bf16.mxu0 %v15004
  %15607 = vmatpush2.bf16.msra.mxu0 %v15003
  %15608 = vmatprep.subr.bf16.mxu0 %v14997
  %15609 = vmatpush2.bf16.msra.mxu0 %v14996
  %15610 = vmatprep.subr.bf16.mxu0 %v14990
  %15611 = vmatpush2.bf16.msra.mxu0 %v14989
  %15612 = vmatprep.subr.bf16.mxu0 %v14983
  %15613 = vmatpush2.bf16.msra.mxu0 %v14982
  %15614 = vmatprep.subr.bf16.mxu0 %v14976
  %15615 = vmatpush2.bf16.msra.mxu0 %v14975
  %15616 = vmatprep.subr.bf16.mxu0 %v14969
  %15617 = vmatpush2.bf16.msra.mxu0 %v14968
  %15618 = vmatprep.subr.bf16.mxu0 %v14962
  %15619 = vmatpush2.bf16.msra.mxu0 %v14961
  %15620 = vmatprep.mubr.bf16.mxu0 %v12611
  %15621 = vmatmul.mubr.bf16.gmra.mxu0 %v12610
  %v15622 = vpop.f32.mrf.mxu0
  %v15623 = vadd.f32 %v15582, %v15622
  %v15624 = vpop.f32.mrf.mxu0
  %v15625 = vadd.f32 %v15584, %v15624
  %v15626 = vpop.f32.mrf.mxu0
  %v15627 = vpop.f32.mrf.mxu0
  %15628 = vdwg.mxu0
  %15629 = vmatprep.subr.bf16.mxu0 %v14621
  %15630 = vmatpush1.bf16.msra.mxu0 %v14620
  %15631 = vmatprep.subr.bf16.mxu0 %v14614
  %15632 = vmatpush1.bf16.msra.mxu0 %v14613
  %15633 = vmatprep.subr.bf16.mxu0 %v14607
  %15634 = vmatpush1.bf16.msra.mxu0 %v14606
  %15635 = vmatprep.subr.bf16.mxu0 %v14600
  %15636 = vmatpush1.bf16.msra.mxu0 %v14599
  %15637 = vmatprep.subr.bf16.mxu0 %v14593
  %15638 = vmatpush1.bf16.msra.mxu0 %v14592
  %15639 = vmatprep.subr.bf16.mxu0 %v14586
  %15640 = vmatpush1.bf16.msra.mxu0 %v14585
  %15641 = vmatprep.subr.bf16.mxu0 %v14579
  %15642 = vmatpush1.bf16.msra.mxu0 %v14578
  %15643 = vmatprep.subr.bf16.mxu0 %v14572
  %15644 = vmatpush1.bf16.msra.mxu0 %v14571
  %15645 = vmatprep.subr.bf16.mxu0 %v14677
  %15646 = vmatpush2.bf16.msra.mxu0 %v14676
  %15647 = vmatprep.subr.bf16.mxu0 %v14670
  %15648 = vmatpush2.bf16.msra.mxu0 %v14669
  %15649 = vmatprep.subr.bf16.mxu0 %v14663
  %15650 = vmatpush2.bf16.msra.mxu0 %v14662
  %15651 = vmatprep.subr.bf16.mxu0 %v14656
  %15652 = vmatpush2.bf16.msra.mxu0 %v14655
  %15653 = vmatprep.subr.bf16.mxu0 %v14649
  %15654 = vmatpush2.bf16.msra.mxu0 %v14648
  %15655 = vmatprep.subr.bf16.mxu0 %v14642
  %15656 = vmatpush2.bf16.msra.mxu0 %v14641
  %15657 = vmatprep.subr.bf16.mxu0 %v14635
  %15658 = vmatpush2.bf16.msra.mxu0 %v14634
  %15659 = vmatprep.subr.bf16.mxu0 %v14628
  %15660 = vmatpush2.bf16.msra.mxu0 %v14627
  %15661 = vmatprep.mubr.bf16.mxu0 %v12605
  %15662 = vmatmul.mubr.bf16.gmra.mxu0 %v12604
  %v15663 = vpop.f32.mrf.mxu0
  %v15664 = vadd.f32 %v13137, %v15663
  %v15665 = vpop.f32.mrf.mxu0
  %v15666 = vadd.f32 %v13141, %v15665
  %v15667 = vpop.f32.mrf.mxu0
  %v15668 = vpop.f32.mrf.mxu0
  %15669 = vdwg.mxu0
  %15670 = vmatprep.subr.bf16.mxu0 %v14733
  %15671 = vmatpush1.bf16.msra.mxu0 %v14732
  %15672 = vmatprep.subr.bf16.mxu0 %v14726
  %15673 = vmatpush1.bf16.msra.mxu0 %v14725
  %15674 = vmatprep.subr.bf16.mxu0 %v14719
  %15675 = vmatpush1.bf16.msra.mxu0 %v14718
  %15676 = vmatprep.subr.bf16.mxu0 %v14712
  %15677 = vmatpush1.bf16.msra.mxu0 %v14711
  %15678 = vmatprep.subr.bf16.mxu0 %v14705
  %15679 = vmatpush1.bf16.msra.mxu0 %v14704
  %15680 = vmatprep.subr.bf16.mxu0 %v14698
  %15681 = vmatpush1.bf16.msra.mxu0 %v14697
  %15682 = vmatprep.subr.bf16.mxu0 %v14691
  %15683 = vmatpush1.bf16.msra.mxu0 %v14690
  %15684 = vmatprep.subr.bf16.mxu0 %v14684
  %15685 = vmatpush1.bf16.msra.mxu0 %v14683
  %15686 = vmatprep.subr.bf16.mxu0 %v14789
  %15687 = vmatpush2.bf16.msra.mxu0 %v14788
  %15688 = vmatprep.subr.bf16.mxu0 %v14782
  %15689 = vmatpush2.bf16.msra.mxu0 %v14781
  %15690 = vmatprep.subr.bf16.mxu0 %v14775
  %15691 = vmatpush2.bf16.msra.mxu0 %v14774
  %15692 = vmatprep.subr.bf16.mxu0 %v14768
  %15693 = vmatpush2.bf16.msra.mxu0 %v14767
  %15694 = vmatprep.subr.bf16.mxu0 %v14761
  %15695 = vmatpush2.bf16.msra.mxu0 %v14760
  %15696 = vmatprep.subr.bf16.mxu0 %v14754
  %15697 = vmatpush2.bf16.msra.mxu0 %v14753
  %15698 = vmatprep.subr.bf16.mxu0 %v14747
  %15699 = vmatpush2.bf16.msra.mxu0 %v14746
  %15700 = vmatprep.subr.bf16.mxu0 %v14740
  %15701 = vmatpush2.bf16.msra.mxu0 %v14739
  %15702 = vmatprep.mubr.bf16.mxu0 %v12607
  %15703 = vmatmul.mubr.bf16.gmra.mxu0 %v12606
  %v15704 = vpop.f32.mrf.mxu0
  %v15705 = vadd.f32 %v15664, %v15704
  %v15706 = vpop.f32.mrf.mxu0
  %v15707 = vadd.f32 %v15666, %v15706
  %v15708 = vpop.f32.mrf.mxu0
  %v15709 = vpop.f32.mrf.mxu0
  %15710 = vdwg.mxu0
  %15711 = vmatprep.subr.bf16.mxu0 %v14845
  %15712 = vmatpush1.bf16.msra.mxu0 %v14844
  %15713 = vmatprep.subr.bf16.mxu0 %v14838
  %15714 = vmatpush1.bf16.msra.mxu0 %v14837
  %15715 = vmatprep.subr.bf16.mxu0 %v14831
  %15716 = vmatpush1.bf16.msra.mxu0 %v14830
  %15717 = vmatprep.subr.bf16.mxu0 %v14824
  %15718 = vmatpush1.bf16.msra.mxu0 %v14823
  %15719 = vmatprep.subr.bf16.mxu0 %v14817
  %15720 = vmatpush1.bf16.msra.mxu0 %v14816
  %15721 = vmatprep.subr.bf16.mxu0 %v14810
  %15722 = vmatpush1.bf16.msra.mxu0 %v14809
  %15723 = vmatprep.subr.bf16.mxu0 %v14803
  %15724 = vmatpush1.bf16.msra.mxu0 %v14802
  %15725 = vmatprep.subr.bf16.mxu0 %v14796
  %15726 = vmatpush1.bf16.msra.mxu0 %v14795
  %15727 = vmatprep.subr.bf16.mxu0 %v14901
  %15728 = vmatpush2.bf16.msra.mxu0 %v14900
  %15729 = vmatprep.subr.bf16.mxu0 %v14894
  %15730 = vmatpush2.bf16.msra.mxu0 %v14893
  %15731 = vmatprep.subr.bf16.mxu0 %v14887
  %15732 = vmatpush2.bf16.msra.mxu0 %v14886
  %15733 = vmatprep.subr.bf16.mxu0 %v14880
  %15734 = vmatpush2.bf16.msra.mxu0 %v14879
  %15735 = vmatprep.subr.bf16.mxu0 %v14873
  %15736 = vmatpush2.bf16.msra.mxu0 %v14872
  %15737 = vmatprep.subr.bf16.mxu0 %v14866
  %15738 = vmatpush2.bf16.msra.mxu0 %v14865
  %15739 = vmatprep.subr.bf16.mxu0 %v14859
  %15740 = vmatpush2.bf16.msra.mxu0 %v14858
  %15741 = vmatprep.subr.bf16.mxu0 %v14852
  %15742 = vmatpush2.bf16.msra.mxu0 %v14851
  %15743 = vmatprep.mubr.bf16.mxu0 %v12609
  %15744 = vmatmul.mubr.bf16.gmra.mxu0 %v12608
  %v15745 = vpop.f32.mrf.mxu0
  %v15746 = vadd.f32 %v15705, %v15745
  %v15747 = vpop.f32.mrf.mxu0
  %v15748 = vadd.f32 %v15707, %v15747
  %v15749 = vpop.f32.mrf.mxu0
  %v15750 = vpop.f32.mrf.mxu0
  %15751 = vdwg.mxu0
  %15752 = vmatprep.subr.bf16.mxu0 %v14957
  %15753 = vmatpush1.bf16.msra.mxu0 %v14956
  %15754 = vmatprep.subr.bf16.mxu0 %v14950
  %15755 = vmatpush1.bf16.msra.mxu0 %v14949
  %15756 = vmatprep.subr.bf16.mxu0 %v14943
  %15757 = vmatpush1.bf16.msra.mxu0 %v14942
  %15758 = vmatprep.subr.bf16.mxu0 %v14936
  %15759 = vmatpush1.bf16.msra.mxu0 %v14935
  %15760 = vmatprep.subr.bf16.mxu0 %v14929
  %15761 = vmatpush1.bf16.msra.mxu0 %v14928
  %15762 = vmatprep.subr.bf16.mxu0 %v14922
  %15763 = vmatpush1.bf16.msra.mxu0 %v14921
  %15764 = vmatprep.subr.bf16.mxu0 %v14915
  %15765 = vmatpush1.bf16.msra.mxu0 %v14914
  %15766 = vmatprep.subr.bf16.mxu0 %v14908
  %15767 = vmatpush1.bf16.msra.mxu0 %v14907
  %15768 = vmatprep.subr.bf16.mxu0 %v15013
  %15769 = vmatpush2.bf16.msra.mxu0 %v15012
  %15770 = vmatprep.subr.bf16.mxu0 %v15006
  %15771 = vmatpush2.bf16.msra.mxu0 %v15005
  %15772 = vmatprep.subr.bf16.mxu0 %v14999
  %15773 = vmatpush2.bf16.msra.mxu0 %v14998
  %15774 = vmatprep.subr.bf16.mxu0 %v14992
  %15775 = vmatpush2.bf16.msra.mxu0 %v14991
  %15776 = vmatprep.subr.bf16.mxu0 %v14985
  %15777 = vmatpush2.bf16.msra.mxu0 %v14984
  %15778 = vmatprep.subr.bf16.mxu0 %v14978
  %15779 = vmatpush2.bf16.msra.mxu0 %v14977
  %15780 = vmatprep.subr.bf16.mxu0 %v14971
  %15781 = vmatpush2.bf16.msra.mxu0 %v14970
  %15782 = vmatprep.subr.bf16.mxu0 %v14964
  %15783 = vmatpush2.bf16.msra.mxu0 %v14963
  %15784 = vmatprep.mubr.bf16.mxu0 %v12611
  %15785 = vmatmul.mubr.bf16.gmra.mxu0 %v12610
  %v15786 = vpop.f32.mrf.mxu0
  %v15787 = vadd.f32 %v15746, %v15786
  %v15788 = vpop.f32.mrf.mxu0
  %v15789 = vadd.f32 %v15748, %v15788
  %v15790 = vpop.f32.mrf.mxu0
  %v15791 = vpop.f32.mrf.mxu0
  %15792 = vdwg.mxu0
  %15793 = vmatprep.subr.bf16.mxu0 %v14623
  %15794 = vmatpush1.bf16.msra.mxu0 %v14622
  %15795 = vmatprep.subr.bf16.mxu0 %v14616
  %15796 = vmatpush1.bf16.msra.mxu0 %v14615
  %15797 = vmatprep.subr.bf16.mxu0 %v14609
  %15798 = vmatpush1.bf16.msra.mxu0 %v14608
  %15799 = vmatprep.subr.bf16.mxu0 %v14602
  %15800 = vmatpush1.bf16.msra.mxu0 %v14601
  %15801 = vmatprep.subr.bf16.mxu0 %v14595
  %15802 = vmatpush1.bf16.msra.mxu0 %v14594
  %15803 = vmatprep.subr.bf16.mxu0 %v14588
  %15804 = vmatpush1.bf16.msra.mxu0 %v14587
  %15805 = vmatprep.subr.bf16.mxu0 %v14581
  %15806 = vmatpush1.bf16.msra.mxu0 %v14580
  %15807 = vmatprep.subr.bf16.mxu0 %v14574
  %15808 = vmatpush1.bf16.msra.mxu0 %v14573
  %15809 = vmatprep.subr.bf16.mxu0 %v14679
  %15810 = vmatpush2.bf16.msra.mxu0 %v14678
  %15811 = vmatprep.subr.bf16.mxu0 %v14672
  %15812 = vmatpush2.bf16.msra.mxu0 %v14671
  %15813 = vmatprep.subr.bf16.mxu0 %v14665
  %15814 = vmatpush2.bf16.msra.mxu0 %v14664
  %15815 = vmatprep.subr.bf16.mxu0 %v14658
  %15816 = vmatpush2.bf16.msra.mxu0 %v14657
  %15817 = vmatprep.subr.bf16.mxu0 %v14651
  %15818 = vmatpush2.bf16.msra.mxu0 %v14650
  %15819 = vmatprep.subr.bf16.mxu0 %v14644
  %15820 = vmatpush2.bf16.msra.mxu0 %v14643
  %15821 = vmatprep.subr.bf16.mxu0 %v14637
  %15822 = vmatpush2.bf16.msra.mxu0 %v14636
  %15823 = vmatprep.subr.bf16.mxu0 %v14630
  %15824 = vmatpush2.bf16.msra.mxu0 %v14629
  %15825 = vmatprep.mubr.bf16.mxu0 %v12605
  %15826 = vmatmul.mubr.bf16.gmra.mxu0 %v12604
  %v15827 = vpop.f32.mrf.mxu0
  %v15828 = vadd.f32 %v13145, %v15827
  %v15829 = vpop.f32.mrf.mxu0
  %v15830 = vadd.f32 %v13149, %v15829
  %v15831 = vpop.f32.mrf.mxu0
  %v15832 = vpop.f32.mrf.mxu0
  %15833 = vdwg.mxu0
  %15834 = vmatprep.subr.bf16.mxu0 %v14735
  %15835 = vmatpush1.bf16.msra.mxu0 %v14734
  %15836 = vmatprep.subr.bf16.mxu0 %v14728
  %15837 = vmatpush1.bf16.msra.mxu0 %v14727
  %15838 = vmatprep.subr.bf16.mxu0 %v14721
  %15839 = vmatpush1.bf16.msra.mxu0 %v14720
  %15840 = vmatprep.subr.bf16.mxu0 %v14714
  %15841 = vmatpush1.bf16.msra.mxu0 %v14713
  %15842 = vmatprep.subr.bf16.mxu0 %v14707
  %15843 = vmatpush1.bf16.msra.mxu0 %v14706
  %15844 = vmatprep.subr.bf16.mxu0 %v14700
  %15845 = vmatpush1.bf16.msra.mxu0 %v14699
  %15846 = vmatprep.subr.bf16.mxu0 %v14693
  %15847 = vmatpush1.bf16.msra.mxu0 %v14692
  %15848 = vmatprep.subr.bf16.mxu0 %v14686
  %15849 = vmatpush1.bf16.msra.mxu0 %v14685
  %15850 = vmatprep.subr.bf16.mxu0 %v14791
  %15851 = vmatpush2.bf16.msra.mxu0 %v14790
  %15852 = vmatprep.subr.bf16.mxu0 %v14784
  %15853 = vmatpush2.bf16.msra.mxu0 %v14783
  %15854 = vmatprep.subr.bf16.mxu0 %v14777
  %15855 = vmatpush2.bf16.msra.mxu0 %v14776
  %15856 = vmatprep.subr.bf16.mxu0 %v14770
  %15857 = vmatpush2.bf16.msra.mxu0 %v14769
  %15858 = vmatprep.subr.bf16.mxu0 %v14763
  %15859 = vmatpush2.bf16.msra.mxu0 %v14762
  %15860 = vmatprep.subr.bf16.mxu0 %v14756
  %15861 = vmatpush2.bf16.msra.mxu0 %v14755
  %15862 = vmatprep.subr.bf16.mxu0 %v14749
  %15863 = vmatpush2.bf16.msra.mxu0 %v14748
  %15864 = vmatprep.subr.bf16.mxu0 %v14742
  %15865 = vmatpush2.bf16.msra.mxu0 %v14741
  %15866 = vmatprep.mubr.bf16.mxu0 %v12607
  %15867 = vmatmul.mubr.bf16.gmra.mxu0 %v12606
  %v15868 = vpop.f32.mrf.mxu0
  %v15869 = vadd.f32 %v15828, %v15868
  %v15870 = vpop.f32.mrf.mxu0
  %v15871 = vadd.f32 %v15830, %v15870
  %v15872 = vpop.f32.mrf.mxu0
  %v15873 = vpop.f32.mrf.mxu0
  %15874 = vdwg.mxu0
  %15875 = vmatprep.subr.bf16.mxu0 %v14847
  %15876 = vmatpush1.bf16.msra.mxu0 %v14846
  %15877 = vmatprep.subr.bf16.mxu0 %v14840
  %15878 = vmatpush1.bf16.msra.mxu0 %v14839
  %15879 = vmatprep.subr.bf16.mxu0 %v14833
  %15880 = vmatpush1.bf16.msra.mxu0 %v14832
  %15881 = vmatprep.subr.bf16.mxu0 %v14826
  %15882 = vmatpush1.bf16.msra.mxu0 %v14825
  %15883 = vmatprep.subr.bf16.mxu0 %v14819
  %15884 = vmatpush1.bf16.msra.mxu0 %v14818
  %15885 = vmatprep.subr.bf16.mxu0 %v14812
  %15886 = vmatpush1.bf16.msra.mxu0 %v14811
  %15887 = vmatprep.subr.bf16.mxu0 %v14805
  %15888 = vmatpush1.bf16.msra.mxu0 %v14804
  %15889 = vmatprep.subr.bf16.mxu0 %v14798
  %15890 = vmatpush1.bf16.msra.mxu0 %v14797
  %15891 = vmatprep.subr.bf16.mxu0 %v14903
  %15892 = vmatpush2.bf16.msra.mxu0 %v14902
  %15893 = vmatprep.subr.bf16.mxu0 %v14896
  %15894 = vmatpush2.bf16.msra.mxu0 %v14895
  %15895 = vmatprep.subr.bf16.mxu0 %v14889
  %15896 = vmatpush2.bf16.msra.mxu0 %v14888
  %15897 = vmatprep.subr.bf16.mxu0 %v14882
  %15898 = vmatpush2.bf16.msra.mxu0 %v14881
  %15899 = vmatprep.subr.bf16.mxu0 %v14875
  %15900 = vmatpush2.bf16.msra.mxu0 %v14874
  %15901 = vmatprep.subr.bf16.mxu0 %v14868
  %15902 = vmatpush2.bf16.msra.mxu0 %v14867
  %15903 = vmatprep.subr.bf16.mxu0 %v14861
  %15904 = vmatpush2.bf16.msra.mxu0 %v14860
  %15905 = vmatprep.subr.bf16.mxu0 %v14854
  %15906 = vmatpush2.bf16.msra.mxu0 %v14853
  %15907 = vmatprep.mubr.bf16.mxu0 %v12609
  %15908 = vmatmul.mubr.bf16.gmra.mxu0 %v12608
  %v15909 = vpop.f32.mrf.mxu0
  %v15910 = vadd.f32 %v15869, %v15909
  %v15911 = vpop.f32.mrf.mxu0
  %v15912 = vadd.f32 %v15871, %v15911
  %v15913 = vpop.f32.mrf.mxu0
  %v15914 = vpop.f32.mrf.mxu0
  %15915 = vdwg.mxu0
  %15916 = vmatprep.subr.bf16.mxu0 %v14959
  %15917 = vmatpush1.bf16.msra.mxu0 %v14958
  %15918 = vmatprep.subr.bf16.mxu0 %v14952
  %15919 = vmatpush1.bf16.msra.mxu0 %v14951
  %15920 = vmatprep.subr.bf16.mxu0 %v14945
  %15921 = vmatpush1.bf16.msra.mxu0 %v14944
  %15922 = vmatprep.subr.bf16.mxu0 %v14938
  %15923 = vmatpush1.bf16.msra.mxu0 %v14937
  %15924 = vmatprep.subr.bf16.mxu0 %v14931
  %15925 = vmatpush1.bf16.msra.mxu0 %v14930
  %15926 = vmatprep.subr.bf16.mxu0 %v14924
  %15927 = vmatpush1.bf16.msra.mxu0 %v14923
  %15928 = vmatprep.subr.bf16.mxu0 %v14917
  %15929 = vmatpush1.bf16.msra.mxu0 %v14916
  %15930 = vmatprep.subr.bf16.mxu0 %v14910
  %15931 = vmatpush1.bf16.msra.mxu0 %v14909
  %15932 = vmatprep.subr.bf16.mxu0 %v15015
  %15933 = vmatpush2.bf16.msra.mxu0 %v15014
  %15934 = vmatprep.subr.bf16.mxu0 %v15008
  %15935 = vmatpush2.bf16.msra.mxu0 %v15007
  %15936 = vmatprep.subr.bf16.mxu0 %v15001
  %15937 = vmatpush2.bf16.msra.mxu0 %v15000
  %15938 = vmatprep.subr.bf16.mxu0 %v14994
  %15939 = vmatpush2.bf16.msra.mxu0 %v14993
  %15940 = vmatprep.subr.bf16.mxu0 %v14987
  %15941 = vmatpush2.bf16.msra.mxu0 %v14986
  %15942 = vmatprep.subr.bf16.mxu0 %v14980
  %15943 = vmatpush2.bf16.msra.mxu0 %v14979
  %15944 = vmatprep.subr.bf16.mxu0 %v14973
  %15945 = vmatpush2.bf16.msra.mxu0 %v14972
  %15946 = vmatprep.subr.bf16.mxu0 %v14966
  %15947 = vmatpush2.bf16.msra.mxu0 %v14965
  %15948 = vmatprep.mubr.bf16.mxu0 %v12611
  %15949 = vmatmul.mubr.bf16.gmra.mxu0 %v12610
  %v15950 = vpop.f32.mrf.mxu0
  %v15951 = vadd.f32 %v15910, %v15950
  %v15952 = vpop.f32.mrf.mxu0
  %v15953 = vadd.f32 %v15912, %v15952
  %v15954 = vpop.f32.mrf.mxu0
  %v15955 = vpop.f32.mrf.mxu0
  %15956 = vdwg.mxu0
  %15957 = vmatprep.subr.bf16.mxu0 0
  %15958 = vmatpush1.bf16.msra.mxu0 %v14624
  %15959 = vmatprep.subr.bf16.mxu0 0
  %15960 = vmatpush1.bf16.msra.mxu0 %v14617
  %15961 = vmatprep.subr.bf16.mxu0 0
  %15962 = vmatpush1.bf16.msra.mxu0 %v14610
  %15963 = vmatprep.subr.bf16.mxu0 0
  %15964 = vmatpush1.bf16.msra.mxu0 %v14603
  %15965 = vmatprep.subr.bf16.mxu0 0
  %15966 = vmatpush1.bf16.msra.mxu0 %v14596
  %15967 = vmatprep.subr.bf16.mxu0 0
  %15968 = vmatpush1.bf16.msra.mxu0 %v14589
  %15969 = vmatprep.subr.bf16.mxu0 0
  %15970 = vmatpush1.bf16.msra.mxu0 %v14582
  %15971 = vmatprep.subr.bf16.mxu0 0
  %15972 = vmatpush1.bf16.msra.mxu0 %v14575
  %15973 = vmatprep.subr.bf16.mxu0 0
  %15974 = vmatpush2.bf16.msra.mxu0 %v14680
  %15975 = vmatprep.subr.bf16.mxu0 0
  %15976 = vmatpush2.bf16.msra.mxu0 %v14673
  %15977 = vmatprep.subr.bf16.mxu0 0
  %15978 = vmatpush2.bf16.msra.mxu0 %v14666
  %15979 = vmatprep.subr.bf16.mxu0 0
  %15980 = vmatpush2.bf16.msra.mxu0 %v14659
  %15981 = vmatprep.subr.bf16.mxu0 0
  %15982 = vmatpush2.bf16.msra.mxu0 %v14652
  %15983 = vmatprep.subr.bf16.mxu0 0
  %15984 = vmatpush2.bf16.msra.mxu0 %v14645
  %15985 = vmatprep.subr.bf16.mxu0 0
  %15986 = vmatpush2.bf16.msra.mxu0 %v14638
  %15987 = vmatprep.subr.bf16.mxu0 0
  %15988 = vmatpush2.bf16.msra.mxu0 %v14631
  %15989 = vmatprep.mubr.bf16.mxu0 %v12605
  %15990 = vmatmul.mubr.bf16.gmra.mxu0 %v12604
  %v15991 = vpop.f32.mrf.mxu0
  %v15992 = vadd.f32 %v13153, %v15991
  %v15993 = vpop.f32.mrf.mxu0
  %v15994 = vpop.f32.mrf.mxu0
  %v15995 = vpop.f32.mrf.mxu0
  %15996 = vdwg.mxu0
  %15997 = vmatprep.subr.bf16.mxu0 0
  %15998 = vmatpush1.bf16.msra.mxu0 %v14736
  %15999 = vmatprep.subr.bf16.mxu0 0
  %16000 = vmatpush1.bf16.msra.mxu0 %v14729
  %16001 = vmatprep.subr.bf16.mxu0 0
  %16002 = vmatpush1.bf16.msra.mxu0 %v14722
  %16003 = vmatprep.subr.bf16.mxu0 0
  %16004 = vmatpush1.bf16.msra.mxu0 %v14715
  %16005 = vmatprep.subr.bf16.mxu0 0
  %16006 = vmatpush1.bf16.msra.mxu0 %v14708
  %16007 = vmatprep.subr.bf16.mxu0 0
  %16008 = vmatpush1.bf16.msra.mxu0 %v14701
  %16009 = vmatprep.subr.bf16.mxu0 0
  %16010 = vmatpush1.bf16.msra.mxu0 %v14694
  %16011 = vmatprep.subr.bf16.mxu0 0
  %16012 = vmatpush1.bf16.msra.mxu0 %v14687
  %16013 = vmatprep.subr.bf16.mxu0 0
  %16014 = vmatpush2.bf16.msra.mxu0 %v14792
  %16015 = vmatprep.subr.bf16.mxu0 0
  %16016 = vmatpush2.bf16.msra.mxu0 %v14785
  %16017 = vmatprep.subr.bf16.mxu0 0
  %16018 = vmatpush2.bf16.msra.mxu0 %v14778
  %16019 = vmatprep.subr.bf16.mxu0 0
  %16020 = vmatpush2.bf16.msra.mxu0 %v14771
  %16021 = vmatprep.subr.bf16.mxu0 0
  %16022 = vmatpush2.bf16.msra.mxu0 %v14764
  %16023 = vmatprep.subr.bf16.mxu0 0
  %16024 = vmatpush2.bf16.msra.mxu0 %v14757
  %16025 = vmatprep.subr.bf16.mxu0 0
  %16026 = vmatpush2.bf16.msra.mxu0 %v14750
  %16027 = vmatprep.subr.bf16.mxu0 0
  %16028 = vmatpush2.bf16.msra.mxu0 %v14743
  %16029 = vmatprep.mubr.bf16.mxu0 %v12607
  %16030 = vmatmul.mubr.bf16.gmra.mxu0 %v12606
  %v16031 = vpop.f32.mrf.mxu0
  %v16032 = vadd.f32 %v15992, %v16031
  %v16033 = vpop.f32.mrf.mxu0
  %v16034 = vpop.f32.mrf.mxu0
  %v16035 = vpop.f32.mrf.mxu0
  %16036 = vdwg.mxu0
  %16037 = vmatprep.subr.bf16.mxu0 0
  %16038 = vmatpush1.bf16.msra.mxu0 %v14848
  %16039 = vmatprep.subr.bf16.mxu0 0
  %16040 = vmatpush1.bf16.msra.mxu0 %v14841
  %16041 = vmatprep.subr.bf16.mxu0 0
  %16042 = vmatpush1.bf16.msra.mxu0 %v14834
  %16043 = vmatprep.subr.bf16.mxu0 0
  %16044 = vmatpush1.bf16.msra.mxu0 %v14827
  %16045 = vmatprep.subr.bf16.mxu0 0
  %16046 = vmatpush1.bf16.msra.mxu0 %v14820
  %16047 = vmatprep.subr.bf16.mxu0 0
  %16048 = vmatpush1.bf16.msra.mxu0 %v14813
  %16049 = vmatprep.subr.bf16.mxu0 0
  %16050 = vmatpush1.bf16.msra.mxu0 %v14806
  %16051 = vmatprep.subr.bf16.mxu0 0
  %16052 = vmatpush1.bf16.msra.mxu0 %v14799
  %16053 = vmatprep.subr.bf16.mxu0 0
  %16054 = vmatpush2.bf16.msra.mxu0 %v14904
  %16055 = vmatprep.subr.bf16.mxu0 0
  %16056 = vmatpush2.bf16.msra.mxu0 %v14897
  %16057 = vmatprep.subr.bf16.mxu0 0
  %16058 = vmatpush2.bf16.msra.mxu0 %v14890
  %16059 = vmatprep.subr.bf16.mxu0 0
  %16060 = vmatpush2.bf16.msra.mxu0 %v14883
  %16061 = vmatprep.subr.bf16.mxu0 0
  %16062 = vmatpush2.bf16.msra.mxu0 %v14876
  %16063 = vmatprep.subr.bf16.mxu0 0
  %16064 = vmatpush2.bf16.msra.mxu0 %v14869
  %16065 = vmatprep.subr.bf16.mxu0 0
  %16066 = vmatpush2.bf16.msra.mxu0 %v14862
  %16067 = vmatprep.subr.bf16.mxu0 0
  %16068 = vmatpush2.bf16.msra.mxu0 %v14855
  %16069 = vmatprep.mubr.bf16.mxu0 %v12609
  %16070 = vmatmul.mubr.bf16.gmra.mxu0 %v12608
  %v16071 = vpop.f32.mrf.mxu0
  %v16072 = vadd.f32 %v16032, %v16071
  %v16073 = vpop.f32.mrf.mxu0
  %v16074 = vpop.f32.mrf.mxu0
  %v16075 = vpop.f32.mrf.mxu0
  %16076 = vdwg.mxu0
  %16077 = vmatprep.subr.bf16.mxu0 0
  %16078 = vmatpush1.bf16.msra.mxu0 %v14960
  %16079 = vmatprep.subr.bf16.mxu0 0
  %16080 = vmatpush1.bf16.msra.mxu0 %v14953
  %16081 = vmatprep.subr.bf16.mxu0 0
  %16082 = vmatpush1.bf16.msra.mxu0 %v14946
  %16083 = vmatprep.subr.bf16.mxu0 0
  %16084 = vmatpush1.bf16.msra.mxu0 %v14939
  %16085 = vmatprep.subr.bf16.mxu0 0
  %16086 = vmatpush1.bf16.msra.mxu0 %v14932
  %16087 = vmatprep.subr.bf16.mxu0 0
  %16088 = vmatpush1.bf16.msra.mxu0 %v14925
  %16089 = vmatprep.subr.bf16.mxu0 0
  %16090 = vmatpush1.bf16.msra.mxu0 %v14918
  %16091 = vmatprep.subr.bf16.mxu0 0
  %16092 = vmatpush1.bf16.msra.mxu0 %v14911
  %16093 = vmatprep.subr.bf16.mxu0 0
  %16094 = vmatpush2.bf16.msra.mxu0 %v15016
  %16095 = vmatprep.subr.bf16.mxu0 0
  %16096 = vmatpush2.bf16.msra.mxu0 %v15009
  %16097 = vmatprep.subr.bf16.mxu0 0
  %16098 = vmatpush2.bf16.msra.mxu0 %v15002
  %16099 = vmatprep.subr.bf16.mxu0 0
  %16100 = vmatpush2.bf16.msra.mxu0 %v14995
  %16101 = vmatprep.subr.bf16.mxu0 0
  %16102 = vmatpush2.bf16.msra.mxu0 %v14988
  %16103 = vmatprep.subr.bf16.mxu0 0
  %16104 = vmatpush2.bf16.msra.mxu0 %v14981
  %16105 = vmatprep.subr.bf16.mxu0 0
  %16106 = vmatpush2.bf16.msra.mxu0 %v14974
  %16107 = vmatprep.subr.bf16.mxu0 0
  %16108 = vmatpush2.bf16.msra.mxu0 %v14967
  %16109 = vmatprep.mubr.bf16.mxu0 %v12611
  %16110 = vmatmul.mubr.bf16.gmra.mxu0 %v12610
  %v16111 = vpop.f32.mrf.mxu0
  %v16112 = vadd.f32 %v16072, %v16111
  %v16113 = vpop.f32.mrf.mxu0
  %v16114 = vpop.f32.mrf.mxu0
  %v16115 = vpop.f32.mrf.mxu0
  %16116 = vdwg.mxu0
  %v16117 = vxor.u32 %v15623, 2147483648
  %v16118 = vxor.u32 %v15625, 2147483648
  %v16119 = vxor.u32 %v15787, 2147483648
  %v16120 = vxor.u32 %v15789, 2147483648
  %v16121 = vxor.u32 %v15951, 2147483648
  %v16122 = vxor.u32 %v15953, 2147483648
  %v16123 = vxor.u32 %v16112, 2147483648
  %v16124 = vmul.f32 %v16117, 1.442695
  %v16125 = vpow.pop %v16124
  %v16126 = vmul.f32 %v16118, 1.442695
  %v16127 = vpow.pop %v16126
  %v16128 = vmul.f32 %v16119, 1.442695
  %v16129 = vpow.pop %v16128
  %v16130 = vmul.f32 %v16120, 1.442695
  %v16131 = vpow.pop %v16130
  %v16132 = vmul.f32 %v16121, 1.442695
  %v16133 = vpow.pop %v16132
  %v16134 = vmul.f32 %v16122, 1.442695
  %v16135 = vpow.pop %v16134
  %v16136 = vmul.f32 %v16123, 1.442695
  %v16137 = vpow.pop %v16136
  %v16138 = vadd.f32 %v16125, 1.0
  %v16139 = vadd.f32 %v16127, 1.0
  %v16140 = vadd.f32 %v16129, 1.0
  %v16141 = vadd.f32 %v16131, 1.0
  %v16142 = vadd.f32 %v16133, 1.0
  %v16143 = vadd.f32 %v16135, 1.0
  %v16144 = vadd.f32 %v16137, 1.0
  %v16145 = vrcp.pop %v16138
  %v16146 = vmul.f32 1.0, %v16145
  %v16147 = vrcp.pop %v16139
  %v16148 = vmul.f32 1.0, %v16147
  %v16149 = vrcp.pop %v16140
  %v16150 = vmul.f32 1.0, %v16149
  %v16151 = vrcp.pop %v16141
  %v16152 = vmul.f32 1.0, %v16151
  %v16153 = vrcp.pop %v16142
  %v16154 = vmul.f32 1.0, %v16153
  %v16155 = vrcp.pop %v16143
  %v16156 = vmul.f32 1.0, %v16155
  %v16157 = vrcp.pop %v16144
  %v16158 = vmul.f32 1.0, %v16157
  %v16159 = vpack.c.bf16 %v16146, %v16146
  %v16160 = vpack.c.bf16 %v16148, %v16148
  %v16161 = vpack.c.bf16 %v16150, %v16150
  %v16162 = vpack.c.bf16 %v16152, %v16152
  %v16163 = vpack.c.bf16 %v16154, %v16154
  %v16164 = vpack.c.bf16 %v16156, %v16156
  %v16165 = vpack.c.bf16 %v16158, %v16158
  %v16173 = vunpack.c.l.b16 %v16159
  %v16174 = vunpack.c.l.b16 %v16160
  %v16175 = vunpack.c.l.b16 %v16161
  %v16176 = vunpack.c.l.b16 %v16162
  %v16177 = vunpack.c.l.b16 %v16163
  %v16178 = vunpack.c.l.b16 %v16164
  %v16179 = vunpack.c.l.b16 %v16165
  %v16180 = vpack.c.b16 %v16174, %v16173
  %v16181 = vpack.c.b16 %v16176, %v16175
  %v16182 = vpack.c.b16 %v16178, %v16177
  %v16183 = vpack.c.b16 %v16179, %v16179
  %16188 = vst [vmem:[%s14] sm:$0xff] %v16180
  %16189 = vst [vmem:[%s14 + $0x8] sm:$0xff] %v16181
  %16190 = vst [vmem:[%s14 + $0x10] sm:$0xff] %v16182
  %16191 = vst [vmem:[%s14 + $0x18] sm:$0xf] %v16183
  // Predicated region
  $region58: #{vae_forward.1} parent=0 // pred_check
    _
  $region59: #{vae_forward.1} parent=0 // pred_check_branch
    %16193 = sbr.rel (0) target = $region61
  $region60: #{vae_forward.1} parent=0 // pred_region
    _
  $region61: #{vae_forward.1} parent=0 // pred_fallthru
    _
  // Predicated region
  $region62: #{vae_forward.1} parent=0 // pred_check
    _
  $region63: #{vae_forward.1} parent=0 // pred_check_branch
    %16195 = sbr.rel (0) target = $region65
  $region64: #{vae_forward.1} parent=0 // pred_region
    _
  $region65: #{vae_forward.1} parent=0 // pred_fallthru
    _
  // Predicated region
  $region66: #{vae_forward.1} parent=0 // pred_check
    _
  $region67: #{vae_forward.1} parent=0 // pred_check_branch
    %16197 = sbr.rel (0) target = $region69
  $region68: #{vae_forward.1} parent=0 // pred_region
    _
  $region69: #{vae_forward.1} parent=0 // pred_fallthru
    _
  // Predicated region
  $region70: #{vae_forward.1} parent=0 // pred_check
    _
  $region71: #{vae_forward.1} parent=0 // pred_check_branch
    %16199 = sbr.rel (0) target = $region73
  $region72: #{vae_forward.1} parent=0 // pred_region
    _
  $region73: #{vae_forward.1} parent=0 // pred_fallthru
    _

</llo_original>
